<compile_context>
chip_gen: v5e
topology: v5e:2x2
jax: 0.10.0
libtpu: 0.0.40
codegen_flags: <defaults>
</compile_context>

<pallas_src>
import math
import jax
import jax.numpy as jnp
from jax.experimental import pallas as pl
from jax.experimental.pallas import tpu as pltpu

# -------- static geometry (dictated by nn.Linear(64, 64) after Flatten) ------
CIN1, COUT = 5, 32
KH1 = KW1 = 5
PAD1 = 1
KH2 = KW2 = 3
PAD2 = 2
POOL = 8

H_IN, W_IN = 50, 114                 # -> conv1 (48,112) -> pool (6,14) -> conv2 (8,16) -> pool (1,2)
H1 = H_IN + 2 * PAD1 - KH1 + 1       # 48
W1 = W_IN + 2 * PAD1 - KW1 + 1       # 112
HP1, WP1 = H1 // POOL, W1 // POOL    # 6, 14
H2 = HP1 + 2 * PAD2 - KH2 + 1        # 8
W2 = WP1 + 2 * PAD2 - KW2 + 1        # 16
HP2, WP2 = H2 // POOL, W2 // POOL    # 1, 2
M1 = H1 * W1                         # 5376
M2 = H2 * W2                         # 128
K1 = KH1 * KW1 * CIN1                # 125
K1P = 128                            # K padded to fill the MXU depth
FEAT = COUT * HP2 * WP2              # 64
assert HP2 == 1 and FEAT == 64


# --------------------------- fused forward kernel ----------------------------
def _cnn_fused_kernel(x1_ref, w1_ref, b1_ref, w2_ref, b2_ref,
                      wf1_ref, bf1_ref, wf2_ref, bf2_ref,
                      o_ref, x2p_ref):
    # ---- conv1: one packed-K MXU matmul per image: (M1,128) @ (128,32) ------
    c1 = jnp.dot(x1_ref[0], w1_ref[...], preferred_element_type=jnp.float32)
    c1 = c1 + b1_ref[...]                                    # (M1, 32), rows = h*W1 + w

    # ---- maxpool1 (8x8), entirely in VMEM ------------------------------------
    # pool along W: 8 consecutive rows share (h, w1)
    p1 = jnp.max(c1.reshape(H1 * WP1, POOL, COUT), axis=1)   # (672, 32), rows = h*WP1 + w1
    # pool along H: rows = (h1*POOL + h2)*WP1 + w1 -> max over the h2 slices
    p1 = p1.reshape(HP1, POOL * WP1, COUT)                   # (6, 112, 32)
    pooled = p1[:, :WP1, :]
    for h2 in range(1, POOL):
        pooled = jnp.maximum(pooled, p1[:, h2 * WP1:(h2 + 1) * WP1, :])
    # pooled: (HP1, WP1, COUT) = (6, 14, 32)

    # ---- conv2 (k=3, pad=2): zero-padded VMEM scratch + per-tap MXU dots -----
    x2p_ref[...] = jnp.zeros_like(x2p_ref)
    x2p_ref[PAD2:PAD2 + HP1, PAD2:PAD2 + WP1, :] = pooled
    acc = jnp.zeros((M2, COUT), jnp.float32)
    for kh in range(KH2):
        for kw in range(KW2):
            xs = x2p_ref[kh:kh + H2, kw:kw + W2, :].reshape(M2, COUT)
            acc = acc + jnp.dot(xs, w2_ref[kh * KW2 + kw],
                                preferred_element_type=jnp.float32)
    c2 = acc + b2_ref[...]                                   # (128, 32), rows = h*W2 + w

    # ---- maxpool2 (8x8) -> (WP2, COUT) = (2, 32) -----------------------------
    q = jnp.max(c2.reshape(H2 * WP2, POOL, COUT), axis=1)    # (16, 32), rows = h*WP2 + w1
    p2 = q[:WP2, :]
    for h in range(1, H2):
        p2 = jnp.maximum(p2, q[h * WP2:(h + 1) * WP2, :])    # (2, 32) = (w, c)

    # ---- flatten (PyTorch NCHW order folded into the fc1 weight) + MLP -------
    h = bf1_ref[...]
    for w in range(WP2):
        h = h + jnp.dot(p2[w:w + 1, :], wf1_ref[w],
                        preferred_element_type=jnp.float32)  # (1, 64)
    y = jnp.dot(h, wf2_ref[...], preferred_element_type=jnp.float32) + bf2_ref[...]
    o_ref[0] = y.astype(o_ref.dtype)


# ------------------------------- glue / wrapper -------------------------------
def _pack_conv1_input(x_nchw):
    """NCHW -> lane-dense conv1 im2col slab (N, M1, 128); K order = (kh, kw, cin)."""
    N = x_nchw.shape[0]
    x = jnp.transpose(x_nchw, (0, 2, 3, 1))                            # NHWC
    xp = jnp.pad(x, ((0, 0), (PAD1, PAD1), (PAD1, PAD1), (0, 0)))
    taps = [xp[:, kh:kh + H1, kw:kw + W1, :]
            for kh in range(KH1) for kw in range(KW1)]
    packed = jnp.concatenate(taps, axis=-1).reshape(N, M1, K1)
    return jnp.pad(packed, ((0, 0), (0, 0), (0, K1P - K1)))            # (N, M1, 128)


def _pack_params(params):
    # conv1: (Cout, Cin, KH, KW) -> (K=(kh,kw,cin), Cout), K zero-padded to 128
    w1p = jnp.transpose(params["w_conv1"], (2, 3, 1, 0)).reshape(K1, COUT)
    w1p = jnp.pad(w1p, ((0, K1P - K1), (0, 0)))
    b1 = params["b_conv1"].reshape(1, COUT)
    # conv2: one (Cin, Cout) slab per tap, tap-major (kh, kw)
    w2t = jnp.transpose(params["w_conv2"], (2, 3, 1, 0)).reshape(KH2 * KW2, COUT, COUT)
    b2 = params["b_conv2"].reshape(1, COUT)
    # fc1: PyTorch flatten index is c*WP2 + w (HP2 == 1); the kernel consumes the
    # pooled (w, c) slab row-by-row, so reorder the weight to (w, c, out).
    wf1 = params["w_fc1"].T.reshape(COUT, WP2, FEAT)                   # (c, w, out)
    wf1 = jnp.transpose(wf1, (1, 0, 2))                                # (w, c, out)
    bf1 = params["b_fc1"].reshape(1, FEAT)
    wf2 = params["w_fc2"].T                                            # (64, 1)
    bf2 = params["b_fc2"].reshape(1, 1)
    return w1p, b1, w2t, b2, wf1, bf1, wf2, bf2


def cnn_forward_pallas(x_nchw, params):
    N = x_nchw.shape[0]
    x1 = _pack_conv1_input(x_nchw)
    w1p, b1, w2t, b2, wf1, bf1, wf2, bf2 = _pack_params(params)

    c2d = lambda n: (0, 0)
    c3d = lambda n: (0, 0, 0)
    out = pl.pallas_call(
        _cnn_fused_kernel,
        out_shape=jax.ShapeDtypeStruct((N, 1, 1), x_nchw.dtype),
        grid_spec=pltpu.PrefetchScalarGridSpec(
            num_scalar_prefetch=0,
            grid=(N,),
            in_specs=[
                pl.BlockSpec((1, M1, K1P), lambda n: (n, 0, 0)),   # packed image (per step)
                pl.BlockSpec((K1P, COUT), c2d),                    # conv1 weight (resident)
                pl.BlockSpec((1, COUT), c2d),                      # conv1 bias
                pl.BlockSpec((KH2 * KW2, COUT, COUT), c3d),        # conv2 taps  (resident)
                pl.BlockSpec((1, COUT), c2d),                      # conv2 bias
                pl.BlockSpec((WP2, COUT, FEAT), c3d),              # fc1 weight (w, c, out)
                pl.BlockSpec((1, FEAT), c2d),                      # fc1 bias
                pl.BlockSpec((FEAT, 1), c2d),                      # fc2 weight
                pl.BlockSpec((1, 1), c2d),                         # fc2 bias
            ],
            out_specs=pl.BlockSpec((1, 1, 1), lambda n: (n, 0, 0)),
            scratch_shapes=[
                pltpu.VMEM((HP1 + 2 * PAD2, WP1 + 2 * PAD2, COUT), jnp.float32),
            ],
        ),
        compiler_params=pltpu.CompilerParams(
            dimension_semantics=("parallel",),
            vmem_limit_bytes=32 * 1024 * 1024),
    )(x1, w1p, b1, w2t, b2, wf1, bf1, wf2, bf2)
    return out.reshape(N, 1)


# ------------------------ pure-JAX reference (sanity) -------------------------
def cnn_forward_reference(x_nchw, params):
    x = jnp.transpose(x_nchw, (0, 2, 3, 1))

    def conv(h, w, b, pad):
        y = jax.lax.conv_general_dilated(
            h, jnp.transpose(w, (2, 3, 1, 0)), (1, 1),
            [(pad, pad), (pad, pad)],
            dimension_numbers=("NHWC", "HWIO", "NHWC"))
        return y + b.reshape(1, 1, 1, -1)

    def pool8(h):
        return jax.lax.reduce_window(h, -jnp.inf, jax.lax.max,
                                     (1, 8, 8, 1), (1, 8, 8, 1), "VALID")

    y = pool8(conv(x, params["w_conv1"], params["b_conv1"], PAD1))
    y = pool8(conv(y, params["w_conv2"], params["b_conv2"], PAD2))
    feat = jnp.transpose(y, (0, 3, 1, 2)).reshape(y.shape[0], -1)
    y = feat @ params["w_fc1"].T + params["b_fc1"]
    return y @ params["w_fc2"].T + params["b_fc2"]


if __name__ == "__main__":
    key = jax.random.PRNGKey(0)
    ks = jax.random.split(key, 9)

    # H=50, W=114 chosen so Flatten yields exactly 64 features, as required by
    # nn.Linear(64, 64):  conv1(p1,k5)->(48,112), pool8->(6,14),
    # conv2(p2,k3)->(8,16), pool8->(1,2)  =>  32*1*2 = 64.
    N = 2
    x = jax.random.normal(ks[0], (N, CIN1, H_IN, W_IN), jnp.float32)

    def uinit(k, shape, fan_in):
        bound = 1.0 / math.sqrt(fan_in)
        return jax.random.uniform(k, shape, jnp.float32, -bound, bound)

    params = {
        "w_conv1": uinit(ks[1], (COUT, CIN1, KH1, KW1), CIN1 * KH1 * KW1),
        "b_conv1": uinit(ks[2], (COUT,), CIN1 * KH1 * KW1),
        "w_conv2": uinit(ks[3], (COUT, COUT, KH2, KW2), COUT * KH2 * KW2),
        "b_conv2": uinit(ks[4], (COUT,), COUT * KH2 * KW2),
        "w_fc1": uinit(ks[5], (FEAT, FEAT), FEAT),
        "b_fc1": uinit(ks[6], (FEAT,), FEAT),
        "w_fc2": uinit(ks[7], (1, FEAT), FEAT),
        "b_fc2": uinit(ks[8], (1,), FEAT),
    }

    out = jax.jit(cnn_forward_pallas)(x, params)
    out = jax.block_until_ready(out)
    assert out.shape == (N, 1), out.shape

    ref = cnn_forward_reference(x, params)
    max_err = float(jnp.max(jnp.abs(out - ref)))
    assert max_err < 2e-2, f"mismatch vs pure-JAX reference: {max_err}"

    print("KERNEL_OK")
</pallas_src>

<mosaic_0001>
module attributes {stable_mosaic.version = 11 : i64} {
  func.func @_cnn_fused_kernel(%arg0: i32, %arg1: memref<1x5376x128xf32, #tpu.memory_space<vmem>>, %arg2: memref<128x32xf32, #tpu.memory_space<vmem>>, %arg3: memref<1x32xf32, #tpu.memory_space<vmem>>, %arg4: memref<9x32x32xf32, #tpu.memory_space<vmem>>, %arg5: memref<1x32xf32, #tpu.memory_space<vmem>>, %arg6: memref<2x32x64xf32, #tpu.memory_space<vmem>>, %arg7: memref<1x64xf32, #tpu.memory_space<vmem>>, %arg8: memref<64x1xf32, #tpu.memory_space<vmem>>, %arg9: memref<1x1xf32, #tpu.memory_space<vmem>>, %arg10: memref<1x1x1xf32, #tpu.memory_space<vmem>>, %arg11: memref<10x18x32xf32, #tpu.memory_space<vmem>>) attributes {dimension_semantics = [#tpu.dimension_semantics<parallel>], iteration_bounds = array<i64: 2>, scalar_prefetch = 0 : i64, scratch_operands = 1 : i64, tpu.core_type = #tpu.core_type<tc>, window_params = [{transform_indices = @transform_0, window_bounds = array<i64: 1, 5376, 128>}, {pipeline_mode = #tpu.pipeline_mode<synchronous>, transform_indices = @transform_1, window_bounds = array<i64: 128, 32>}, {pipeline_mode = #tpu.pipeline_mode<synchronous>, transform_indices = @transform_2, window_bounds = array<i64: 1, 32>}, {pipeline_mode = #tpu.pipeline_mode<synchronous>, transform_indices = @transform_3, window_bounds = array<i64: 9, 32, 32>}, {pipeline_mode = #tpu.pipeline_mode<synchronous>, transform_indices = @transform_4, window_bounds = array<i64: 1, 32>}, {pipeline_mode = #tpu.pipeline_mode<synchronous>, transform_indices = @transform_5, window_bounds = array<i64: 2, 32, 64>}, {pipeline_mode = #tpu.pipeline_mode<synchronous>, transform_indices = @transform_6, window_bounds = array<i64: 1, 64>}, {pipeline_mode = #tpu.pipeline_mode<synchronous>, transform_indices = @transform_7, window_bounds = array<i64: 64, 1>}, {pipeline_mode = #tpu.pipeline_mode<synchronous>, transform_indices = @transform_8, window_bounds = array<i64: 1, 1>}, {transform_indices = @transform_9, window_bounds = array<i64: 1, 1, 1>}]} {
    %c0 = arith.constant 0 : index
    %c0_0 = arith.constant 0 : index
    %c0_1 = arith.constant 0 : index
    %0 = vector.load %arg1[%c0, %c0_0, %c0_1] : memref<1x5376x128xf32, #tpu.memory_space<vmem>>, vector<1x5376x128xf32>
    %1 = vector.shape_cast %0 : vector<1x5376x128xf32> to vector<5376x128xf32>
    %c0_2 = arith.constant 0 : index
    %c0_3 = arith.constant 0 : index
    %2 = vector.load %arg2[%c0_2, %c0_3] : memref<128x32xf32, #tpu.memory_space<vmem>>, vector<128x32xf32>
    %cst = arith.constant dense<0.000000e+00> : vector<5376x32xf32>
    %3 = tpu.matmul %1, %2, %cst {dimension_numbers = #tpu.dot_dimension_numbers<[1], [0], [0], [1], [0, 0, 1, 1], [], []>} : vector<5376x128xf32>, vector<128x32xf32>, vector<5376x32xf32> -> vector<5376x32xf32>
    %c0_4 = arith.constant 0 : index
    %c0_5 = arith.constant 0 : index
    %4 = vector.load %arg3[%c0_4, %c0_5] : memref<1x32xf32, #tpu.memory_space<vmem>>, vector<1x32xf32>
    %5 = vector.broadcast %4 : vector<1x32xf32> to vector<5376x32xf32>
    %6 = arith.addf %3, %5 : vector<5376x32xf32>
    %7 = vector.shape_cast %6 : vector<5376x32xf32> to vector<672x8x32xf32>
    %cst_6 = arith.constant dense<0xFF800000> : vector<672x32xf32>
    %8 = vector.multi_reduction <maximumf>, %7, %cst_6 [1] : vector<672x8x32xf32> to vector<672x32xf32>
    %9 = vector.shape_cast %8 : vector<672x32xf32> to vector<6x112x32xf32>
    %10 = vector.extract_strided_slice %9 {offsets = [0, 0, 0], sizes = [6, 14, 32], strides = [1, 1, 1]} : vector<6x112x32xf32> to vector<6x14x32xf32>
    %11 = vector.extract_strided_slice %9 {offsets = [0, 14, 0], sizes = [6, 14, 32], strides = [1, 1, 1]} : vector<6x112x32xf32> to vector<6x14x32xf32>
    %12 = arith.maximumf %10, %11 : vector<6x14x32xf32>
    %13 = vector.extract_strided_slice %9 {offsets = [0, 28, 0], sizes = [6, 14, 32], strides = [1, 1, 1]} : vector<6x112x32xf32> to vector<6x14x32xf32>
    %14 = arith.maximumf %12, %13 : vector<6x14x32xf32>
    %15 = vector.extract_strided_slice %9 {offsets = [0, 42, 0], sizes = [6, 14, 32], strides = [1, 1, 1]} : vector<6x112x32xf32> to vector<6x14x32xf32>
    %16 = arith.maximumf %14, %15 : vector<6x14x32xf32>
    %17 = vector.extract_strided_slice %9 {offsets = [0, 56, 0], sizes = [6, 14, 32], strides = [1, 1, 1]} : vector<6x112x32xf32> to vector<6x14x32xf32>
    %18 = arith.maximumf %16, %17 : vector<6x14x32xf32>
    %19 = vector.extract_strided_slice %9 {offsets = [0, 70, 0], sizes = [6, 14, 32], strides = [1, 1, 1]} : vector<6x112x32xf32> to vector<6x14x32xf32>
    %20 = arith.maximumf %18, %19 : vector<6x14x32xf32>
    %21 = vector.extract_strided_slice %9 {offsets = [0, 84, 0], sizes = [6, 14, 32], strides = [1, 1, 1]} : vector<6x112x32xf32> to vector<6x14x32xf32>
    %22 = arith.maximumf %20, %21 : vector<6x14x32xf32>
    %23 = vector.extract_strided_slice %9 {offsets = [0, 98, 0], sizes = [6, 14, 32], strides = [1, 1, 1]} : vector<6x112x32xf32> to vector<6x14x32xf32>
    %24 = arith.maximumf %22, %23 : vector<6x14x32xf32>
    %cst_7 = arith.constant 0.000000e+00 : f32
    %25 = vector.broadcast %cst_7 : f32 to vector<10x18x32xf32>
    %c0_8 = arith.constant 0 : index
    %c0_9 = arith.constant 0 : index
    %c0_10 = arith.constant 0 : index
    %26 = vector.load %arg11[%c0_8, %c0_9, %c0_10] : memref<10x18x32xf32, #tpu.memory_space<vmem>>, vector<10x18x32xf32>
    tpu.vector_store %arg11[%c0_8, %c0_9, %c0_10], %25 {strides = array<i32>} : memref<10x18x32xf32, #tpu.memory_space<vmem>>, vector<10x18x32xf32>,
    %c2 = arith.constant 2 : index
    %c2_11 = arith.constant 2 : index
    %c0_12 = arith.constant 0 : index
    %27 = vector.load %arg11[%c2, %c2_11, %c0_12] : memref<10x18x32xf32, #tpu.memory_space<vmem>>, vector<6x14x32xf32>
    tpu.vector_store %arg11[%c2, %c2_11, %c0_12], %24 {strides = array<i32>} : memref<10x18x32xf32, #tpu.memory_space<vmem>>, vector<6x14x32xf32>,
    %cst_13 = arith.constant 0.000000e+00 : f32
    %28 = vector.broadcast %cst_13 : f32 to vector<128x32xf32>
    %c0_14 = arith.constant 0 : index
    %c0_15 = arith.constant 0 : index
    %c0_16 = arith.constant 0 : index
    %29 = vector.load %arg11[%c0_14, %c0_15, %c0_16] : memref<10x18x32xf32, #tpu.memory_space<vmem>>, vector<8x16x32xf32>
    %30 = vector.shape_cast %29 : vector<8x16x32xf32> to vector<128x32xf32>
    %c0_17 = arith.constant 0 : index
    %c0_18 = arith.constant 0 : index
    %c0_19 = arith.constant 0 : index
    %31 = vector.load %arg4[%c0_17, %c0_18, %c0_19] : memref<9x32x32xf32, #tpu.memory_space<vmem>>, vector<1x32x32xf32>
    %32 = vector.shape_cast %31 : vector<1x32x32xf32> to vector<32x32xf32>
    %cst_20 = arith.constant dense<0.000000e+00> : vector<128x32xf32>
    %33 = tpu.matmul %30, %32, %cst_20 {dimension_numbers = #tpu.dot_dimension_numbers<[1], [0], [0], [1], [0, 0, 1, 1], [], []>} : vector<128x32xf32>, vector<32x32xf32>, vector<128x32xf32> -> vector<128x32xf32>
    %34 = arith.addf %28, %33 : vector<128x32xf32>
    %c0_21 = arith.constant 0 : index
    %c1 = arith.constant 1 : index
    %c0_22 = arith.constant 0 : index
    %35 = vector.load %arg11[%c0_21, %c1, %c0_22] : memref<10x18x32xf32, #tpu.memory_space<vmem>>, vector<8x16x32xf32>
    %36 = vector.shape_cast %35 : vector<8x16x32xf32> to vector<128x32xf32>
    %c1_23 = arith.constant 1 : index
    %c0_24 = arith.constant 0 : index
    %c0_25 = arith.constant 0 : index
    %37 = vector.load %arg4[%c1_23, %c0_24, %c0_25] : memref<9x32x32xf32, #tpu.memory_space<vmem>>, vector<1x32x32xf32>
    %38 = vector.shape_cast %37 : vector<1x32x32xf32> to vector<32x32xf32>
    %cst_26 = arith.constant dense<0.000000e+00> : vector<128x32xf32>
    %39 = tpu.matmul %36, %38, %cst_26 {dimension_numbers = #tpu.dot_dimension_numbers<[1], [0], [0], [1], [0, 0, 1, 1], [], []>} : vector<128x32xf32>, vector<32x32xf32>, vector<128x32xf32> -> vector<128x32xf32>
    %40 = arith.addf %34, %39 : vector<128x32xf32>
    %c0_27 = arith.constant 0 : index
    %c2_28 = arith.constant 2 : index
    %c0_29 = arith.constant 0 : index
    %41 = vector.load %arg11[%c0_27, %c2_28, %c0_29] : memref<10x18x32xf32, #tpu.memory_space<vmem>>, vector<8x16x32xf32>
    %42 = vector.shape_cast %41 : vector<8x16x32xf32> to vector<128x32xf32>
    %c2_30 = arith.constant 2 : index
    %c0_31 = arith.constant 0 : index
    %c0_32 = arith.constant 0 : index
    %43 = vector.load %arg4[%c2_30, %c0_31, %c0_32] : memref<9x32x32xf32, #tpu.memory_space<vmem>>, vector<1x32x32xf32>
    %44 = vector.shape_cast %43 : vector<1x32x32xf32> to vector<32x32xf32>
    %cst_33 = arith.constant dense<0.000000e+00> : vector<128x32xf32>
    %45 = tpu.matmul %42, %44, %cst_33 {dimension_numbers = #tpu.dot_dimension_numbers<[1], [0], [0], [1], [0, 0, 1, 1], [], []>} : vector<128x32xf32>, vector<32x32xf32>, vector<128x32xf32> -> vector<128x32xf32>
    %46 = arith.addf %40, %45 : vector<128x32xf32>
    %c1_34 = arith.constant 1 : index
    %c0_35 = arith.constant 0 : index
    %c0_36 = arith.constant 0 : index
    %47 = vector.load %arg11[%c1_34, %c0_35, %c0_36] : memref<10x18x32xf32, #tpu.memory_space<vmem>>, vector<8x16x32xf32>
    %48 = vector.shape_cast %47 : vector<8x16x32xf32> to vector<128x32xf32>
    %c3 = arith.constant 3 : index
    %c0_37 = arith.constant 0 : index
    %c0_38 = arith.constant 0 : index
    %49 = vector.load %arg4[%c3, %c0_37, %c0_38] : memref<9x32x32xf32, #tpu.memory_space<vmem>>, vector<1x32x32xf32>
    %50 = vector.shape_cast %49 : vector<1x32x32xf32> to vector<32x32xf32>
    %cst_39 = arith.constant dense<0.000000e+00> : vector<128x32xf32>
    %51 = tpu.matmul %48, %50, %cst_39 {dimension_numbers = #tpu.dot_dimension_numbers<[1], [0], [0], [1], [0, 0, 1, 1], [], []>} : vector<128x32xf32>, vector<32x32xf32>, vector<128x32xf32> -> vector<128x32xf32>
    %52 = arith.addf %46, %51 : vector<128x32xf32>
    %c1_40 = arith.constant 1 : index
    %c1_41 = arith.constant 1 : index
    %c0_42 = arith.constant 0 : index
    %53 = vector.load %arg11[%c1_40, %c1_41, %c0_42] : memref<10x18x32xf32, #tpu.memory_space<vmem>>, vector<8x16x32xf32>
    %54 = vector.shape_cast %53 : vector<8x16x32xf32> to vector<128x32xf32>
    %c4 = arith.constant 4 : index
    %c0_43 = arith.constant 0 : index
    %c0_44 = arith.constant 0 : index
    %55 = vector.load %arg4[%c4, %c0_43, %c0_44] : memref<9x32x32xf32, #tpu.memory_space<vmem>>, vector<1x32x32xf32>
    %56 = vector.shape_cast %55 : vector<1x32x32xf32> to vector<32x32xf32>
    %cst_45 = arith.constant dense<0.000000e+00> : vector<128x32xf32>
    %57 = tpu.matmul %54, %56, %cst_45 {dimension_numbers = #tpu.dot_dimension_numbers<[1], [0], [0], [1], [0, 0, 1, 1], [], []>} : vector<128x32xf32>, vector<32x32xf32>, vector<128x32xf32> -> vector<128x32xf32>
    %58 = arith.addf %52, %57 : vector<128x32xf32>
    %c1_46 = arith.constant 1 : index
    %c2_47 = arith.constant 2 : index
    %c0_48 = arith.constant 0 : index
    %59 = vector.load %arg11[%c1_46, %c2_47, %c0_48] : memref<10x18x32xf32, #tpu.memory_space<vmem>>, vector<8x16x32xf32>
    %60 = vector.shape_cast %59 : vector<8x16x32xf32> to vector<128x32xf32>
    %c5 = arith.constant 5 : index
    %c0_49 = arith.constant 0 : index
    %c0_50 = arith.constant 0 : index
    %61 = vector.load %arg4[%c5, %c0_49, %c0_50] : memref<9x32x32xf32, #tpu.memory_space<vmem>>, vector<1x32x32xf32>
    %62 = vector.shape_cast %61 : vector<1x32x32xf32> to vector<32x32xf32>
    %cst_51 = arith.constant dense<0.000000e+00> : vector<128x32xf32>
    %63 = tpu.matmul %60, %62, %cst_51 {dimension_numbers = #tpu.dot_dimension_numbers<[1], [0], [0], [1], [0, 0, 1, 1], [], []>} : vector<128x32xf32>, vector<32x32xf32>, vector<128x32xf32> -> vector<128x32xf32>
    %64 = arith.addf %58, %63 : vector<128x32xf32>
    %c2_52 = arith.constant 2 : index
    %c0_53 = arith.constant 0 : index
    %c0_54 = arith.constant 0 : index
    %65 = vector.load %arg11[%c2_52, %c0_53, %c0_54] : memref<10x18x32xf32, #tpu.memory_space<vmem>>, vector<8x16x32xf32>
    %66 = vector.shape_cast %65 : vector<8x16x32xf32> to vector<128x32xf32>
    %c6 = arith.constant 6 : index
    %c0_55 = arith.constant 0 : index
    %c0_56 = arith.constant 0 : index
    %67 = vector.load %arg4[%c6, %c0_55, %c0_56] : memref<9x32x32xf32, #tpu.memory_space<vmem>>, vector<1x32x32xf32>
    %68 = vector.shape_cast %67 : vector<1x32x32xf32> to vector<32x32xf32>
    %cst_57 = arith.constant dense<0.000000e+00> : vector<128x32xf32>
    %69 = tpu.matmul %66, %68, %cst_57 {dimension_numbers = #tpu.dot_dimension_numbers<[1], [0], [0], [1], [0, 0, 1, 1], [], []>} : vector<128x32xf32>, vector<32x32xf32>, vector<128x32xf32> -> vector<128x32xf32>
    %70 = arith.addf %64, %69 : vector<128x32xf32>
    %c2_58 = arith.constant 2 : index
    %c1_59 = arith.constant 1 : index
    %c0_60 = arith.constant 0 : index
    %71 = vector.load %arg11[%c2_58, %c1_59, %c0_60] : memref<10x18x32xf32, #tpu.memory_space<vmem>>, vector<8x16x32xf32>
    %72 = vector.shape_cast %71 : vector<8x16x32xf32> to vector<128x32xf32>
    %c7 = arith.constant 7 : index
    %c0_61 = arith.constant 0 : index
    %c0_62 = arith.constant 0 : index
    %73 = vector.load %arg4[%c7, %c0_61, %c0_62] : memref<9x32x32xf32, #tpu.memory_space<vmem>>, vector<1x32x32xf32>
    %74 = vector.shape_cast %73 : vector<1x32x32xf32> to vector<32x32xf32>
    %cst_63 = arith.constant dense<0.000000e+00> : vector<128x32xf32>
    %75 = tpu.matmul %72, %74, %cst_63 {dimension_numbers = #tpu.dot_dimension_numbers<[1], [0], [0], [1], [0, 0, 1, 1], [], []>} : vector<128x32xf32>, vector<32x32xf32>, vector<128x32xf32> -> vector<128x32xf32>
    %76 = arith.addf %70, %75 : vector<128x32xf32>
    %c2_64 = arith.constant 2 : index
    %c2_65 = arith.constant 2 : index
    %c0_66 = arith.constant 0 : index
    %77 = vector.load %arg11[%c2_64, %c2_65, %c0_66] : memref<10x18x32xf32, #tpu.memory_space<vmem>>, vector<8x16x32xf32>
    %78 = vector.shape_cast %77 : vector<8x16x32xf32> to vector<128x32xf32>
    %c8 = arith.constant 8 : index
    %c0_67 = arith.constant 0 : index
    %c0_68 = arith.constant 0 : index
    %79 = vector.load %arg4[%c8, %c0_67, %c0_68] : memref<9x32x32xf32, #tpu.memory_space<vmem>>, vector<1x32x32xf32>
    %80 = vector.shape_cast %79 : vector<1x32x32xf32> to vector<32x32xf32>
    %cst_69 = arith.constant dense<0.000000e+00> : vector<128x32xf32>
    %81 = tpu.matmul %78, %80, %cst_69 {dimension_numbers = #tpu.dot_dimension_numbers<[1], [0], [0], [1], [0, 0, 1, 1], [], []>} : vector<128x32xf32>, vector<32x32xf32>, vector<128x32xf32> -> vector<128x32xf32>
    %82 = arith.addf %76, %81 : vector<128x32xf32>
    %c0_70 = arith.constant 0 : index
    %c0_71 = arith.constant 0 : index
    %83 = vector.load %arg5[%c0_70, %c0_71] : memref<1x32xf32, #tpu.memory_space<vmem>>, vector<1x32xf32>
    %84 = vector.broadcast %83 : vector<1x32xf32> to vector<128x32xf32>
    %85 = arith.addf %82, %84 : vector<128x32xf32>
    %86 = vector.shape_cast %85 : vector<128x32xf32> to vector<16x8x32xf32>
    %cst_72 = arith.constant dense<0xFF800000> : vector<16x32xf32>
    %87 = vector.multi_reduction <maximumf>, %86, %cst_72 [1] : vector<16x8x32xf32> to vector<16x32xf32>
    %88 = vector.extract_strided_slice %87 {offsets = [0, 0], sizes = [2, 32], strides = [1, 1]} : vector<16x32xf32> to vector<2x32xf32>
    %89 = vector.extract_strided_slice %87 {offsets = [2, 0], sizes = [2, 32], strides = [1, 1]} : vector<16x32xf32> to vector<2x32xf32>
    %90 = arith.maximumf %88, %89 : vector<2x32xf32>
    %91 = vector.extract_strided_slice %87 {offsets = [4, 0], sizes = [2, 32], strides = [1, 1]} : vector<16x32xf32> to vector<2x32xf32>
    %92 = arith.maximumf %90, %91 : vector<2x32xf32>
    %93 = vector.extract_strided_slice %87 {offsets = [6, 0], sizes = [2, 32], strides = [1, 1]} : vector<16x32xf32> to vector<2x32xf32>
    %94 = arith.maximumf %92, %93 : vector<2x32xf32>
    %95 = vector.extract_strided_slice %87 {offsets = [8, 0], sizes = [2, 32], strides = [1, 1]} : vector<16x32xf32> to vector<2x32xf32>
    %96 = arith.maximumf %94, %95 : vector<2x32xf32>
    %97 = vector.extract_strided_slice %87 {offsets = [10, 0], sizes = [2, 32], strides = [1, 1]} : vector<16x32xf32> to vector<2x32xf32>
    %98 = arith.maximumf %96, %97 : vector<2x32xf32>
    %99 = vector.extract_strided_slice %87 {offsets = [12, 0], sizes = [2, 32], strides = [1, 1]} : vector<16x32xf32> to vector<2x32xf32>
    %100 = arith.maximumf %98, %99 : vector<2x32xf32>
    %101 = vector.extract_strided_slice %87 {offsets = [14, 0], sizes = [2, 32], strides = [1, 1]} : vector<16x32xf32> to vector<2x32xf32>
    %102 = arith.maximumf %100, %101 : vector<2x32xf32>
    %c0_73 = arith.constant 0 : index
    %c0_74 = arith.constant 0 : index
    %103 = vector.load %arg7[%c0_73, %c0_74] : memref<1x64xf32, #tpu.memory_space<vmem>>, vector<1x64xf32>
    %104 = vector.extract_strided_slice %102 {offsets = [0, 0], sizes = [1, 32], strides = [1, 1]} : vector<2x32xf32> to vector<1x32xf32>
    %c0_75 = arith.constant 0 : index
    %c0_76 = arith.constant 0 : index
    %c0_77 = arith.constant 0 : index
    %105 = vector.load %arg6[%c0_75, %c0_76, %c0_77] : memref<2x32x64xf32, #tpu.memory_space<vmem>>, vector<1x32x64xf32>
    %106 = vector.shape_cast %105 : vector<1x32x64xf32> to vector<32x64xf32>
    %cst_78 = arith.constant dense<0.000000e+00> : vector<1x64xf32>
    %107 = tpu.matmul %104, %106, %cst_78 {dimension_numbers = #tpu.dot_dimension_numbers<[1], [0], [0], [1], [0, 0, 1, 1], [], []>} : vector<1x32xf32>, vector<32x64xf32>, vector<1x64xf32> -> vector<1x64xf32>
    %108 = arith.addf %103, %107 : vector<1x64xf32>
    %109 = vector.extract_strided_slice %102 {offsets = [1, 0], sizes = [1, 32], strides = [1, 1]} : vector<2x32xf32> to vector<1x32xf32>
    %c1_79 = arith.constant 1 : index
    %c0_80 = arith.constant 0 : index
    %c0_81 = arith.constant 0 : index
    %110 = vector.load %arg6[%c1_79, %c0_80, %c0_81] : memref<2x32x64xf32, #tpu.memory_space<vmem>>, vector<1x32x64xf32>
    %111 = vector.shape_cast %110 : vector<1x32x64xf32> to vector<32x64xf32>
    %cst_82 = arith.constant dense<0.000000e+00> : vector<1x64xf32>
    %112 = tpu.matmul %109, %111, %cst_82 {dimension_numbers = #tpu.dot_dimension_numbers<[1], [0], [0], [1], [0, 0, 1, 1], [], []>} : vector<1x32xf32>, vector<32x64xf32>, vector<1x64xf32> -> vector<1x64xf32>
    %113 = arith.addf %108, %112 : vector<1x64xf32>
    %c0_83 = arith.constant 0 : index
    %c0_84 = arith.constant 0 : index
    %114 = vector.load %arg8[%c0_83, %c0_84] : memref<64x1xf32, #tpu.memory_space<vmem>>, vector<64x1xf32>
    %cst_85 = arith.constant dense<0.000000e+00> : vector<1x1xf32>
    %115 = tpu.matmul %113, %114, %cst_85 {dimension_numbers = #tpu.dot_dimension_numbers<[1], [0], [0], [1], [0, 0, 1, 1], [], []>} : vector<1x64xf32>, vector<64x1xf32>, vector<1x1xf32> -> vector<1x1xf32>
    %c0_86 = arith.constant 0 : index
    %c0_87 = arith.constant 0 : index
    %116 = vector.load %arg9[%c0_86, %c0_87] : memref<1x1xf32, #tpu.memory_space<vmem>>, vector<1x1xf32>
    %117 = arith.addf %115, %116 : vector<1x1xf32>
    %c0_88 = arith.constant 0 : index
    %c0_89 = arith.constant 0 : index
    %c0_90 = arith.constant 0 : index
    %118 = vector.load %arg10[%c0_88, %c0_89, %c0_90] : memref<1x1x1xf32, #tpu.memory_space<vmem>>, vector<1x1x1xf32>
    %119 = vector.shape_cast %118 : vector<1x1x1xf32> to vector<1x1xf32>
    %120 = vector.shape_cast %117 : vector<1x1xf32> to vector<1x1x1xf32>
    tpu.vector_store %arg10[%c0_88, %c0_89, %c0_90], %120 {strides = array<i32>} : memref<1x1x1xf32, #tpu.memory_space<vmem>>, vector<1x1x1xf32>,
    return
  }
  func.func @transform_0(%arg0: i32) -> (i32, i32, i32) {
    %c0_i32 = arith.constant 0 : i32
    %c0_i32_0 = arith.constant 0 : i32
    %c0_i32_1 = arith.constant 0 : i32
    return %arg0, %c0_i32, %c0_i32_0 : i32, i32, i32
  }
  func.func @transform_1(%arg0: i32) -> (i32, i32) {
    %c0_i32 = arith.constant 0 : i32
    %c0_i32_0 = arith.constant 0 : i32
    %c0_i32_1 = arith.constant 0 : i32
    return %c0_i32, %c0_i32_0 : i32, i32
  }
  func.func @transform_2(%arg0: i32) -> (i32, i32) {
    %c0_i32 = arith.constant 0 : i32
    %c0_i32_0 = arith.constant 0 : i32
    %c0_i32_1 = arith.constant 0 : i32
    return %c0_i32, %c0_i32_0 : i32, i32
  }
  func.func @transform_3(%arg0: i32) -> (i32, i32, i32) {
    %c0_i32 = arith.constant 0 : i32
    %c0_i32_0 = arith.constant 0 : i32
    %c0_i32_1 = arith.constant 0 : i32
    %c0_i32_2 = arith.constant 0 : i32
    return %c0_i32, %c0_i32_0, %c0_i32_1 : i32, i32, i32
  }
  func.func @transform_4(%arg0: i32) -> (i32, i32) {
    %c0_i32 = arith.constant 0 : i32
    %c0_i32_0 = arith.constant 0 : i32
    %c0_i32_1 = arith.constant 0 : i32
    return %c0_i32, %c0_i32_0 : i32, i32
  }
  func.func @transform_5(%arg0: i32) -> (i32, i32, i32) {
    %c0_i32 = arith.constant 0 : i32
    %c0_i32_0 = arith.constant 0 : i32
    %c0_i32_1 = arith.constant 0 : i32
    %c0_i32_2 = arith.constant 0 : i32
    return %c0_i32, %c0_i32_0, %c0_i32_1 : i32, i32, i32
  }
  func.func @transform_6(%arg0: i32) -> (i32, i32) {
    %c0_i32 = arith.constant 0 : i32
    %c0_i32_0 = arith.constant 0 : i32
    %c0_i32_1 = arith.constant 0 : i32
    return %c0_i32, %c0_i32_0 : i32, i32
  }
  func.func @transform_7(%arg0: i32) -> (i32, i32) {
    %c0_i32 = arith.constant 0 : i32
    %c0_i32_0 = arith.constant 0 : i32
    %c0_i32_1 = arith.constant 0 : i32
    return %c0_i32, %c0_i32_0 : i32, i32
  }
  func.func @transform_8(%arg0: i32) -> (i32, i32) {
    %c0_i32 = arith.constant 0 : i32
    %c0_i32_0 = arith.constant 0 : i32
    %c0_i32_1 = arith.constant 0 : i32
    return %c0_i32, %c0_i32_0 : i32, i32
  }
  func.func @transform_9(%arg0: i32) -> (i32, i32, i32) {
    %c0_i32 = arith.constant 0 : i32
    %c0_i32_0 = arith.constant 0 : i32
    %c0_i32_1 = arith.constant 0 : i32
    return %arg0, %c0_i32, %c0_i32_0 : i32, i32, i32
  }
}

</mosaic_0001>

<llo_original>
// kernel: cnn_forward_pallas.1
$region0: #{cnn_forward_pallas.1}
  #allocation0 [shape = 'u32[]', space=smem, size = 0x4, offset = 0x4, fixed_abs, tag = 'smem constant byte address 0x4 - core index']
  #allocation1 [shape = 'u32[72,128]{1,0:T(1,128)}', space=vmem, size = 0x9000, scoped, tag = 'internal scratch']
  #allocation2 [shape = 'f32[10,18,32]{2,1,0:T(8,128)}', space=vmem, size = 0x1e000, scoped, tag = 'scratch operand']
  #allocation3 [shape = 'f32[1,1]{1,0:T(1,128)S(1)}', space=vmem, size = 0x200, scoped, tag = 'scoped memory for cnn_forward_pallas.1']
  %s0 = inlined_call_operand.vmem [shape: f32[2,5376,128], index: 0, kind: input, shape index: {}]
  %s1 = inlined_call_operand.vmem [shape: f32[128,32], index: 1, kind: input, shape index: {}]
  %s2 = inlined_call_operand.vmem [shape: f32[1,32], index: 2, kind: input, shape index: {}]
  %s3 = inlined_call_operand.vmem [shape: f32[9,32,32], index: 3, kind: input, shape index: {}]
  %s4 = inlined_call_operand.vmem [shape: f32[1,32], index: 4, kind: input, shape index: {}]
  %s5 = inlined_call_operand.vmem [shape: f32[2,32,64], index: 5, kind: input, shape index: {}]
  %s6 = inlined_call_operand.vmem [shape: f32[1,64], index: 6, kind: input, shape index: {}]
  %s7 = inlined_call_operand.vmem [shape: f32[64,1], index: 7, kind: input, shape index: {}]
  %s8 = inlined_call_operand.<no memory space> [shape: f32[1,1], index: 8, kind: input, shape index: {}]
  %s9 = inlined_call_operand.vmem [shape: f32[2,1,1], index: 9, kind: output, shape index: {}]
  %s10 = sld [smem:[#allocation0]]
  $region69: #{cnn_forward_pallas.1} parent=0
    _
  %s12 = ssub.s32 1, %s10
  %s13 = scalar_select 0, %s12, %s10
  %v14 = vstv %s8
  %15 = vst [vmem:[#allocation3] sm:$0x1] %v14
  loop: start=0, step=1, limit=4
  $region2: #{cnn_forward_pallas.1} parent=0 // loop_pre_header
    _
  $region3: #{cnn_forward_pallas.1} parent=0 // loop_header
    %s17 = sphi 0, %s21
    %p18 = scmp.ge.s32.totalorder %s17, 4
    %s27 = sphi 0, %s29
    %s30 = sphi 0, %s27
    %s31 = sphi 0, %s30
    %s47 = sphi 0, %s31
    %s51 = sphi 0, %s51
    %s53 = sphi 0, %s51
    %s54 = sphi 0, %s53
    %s68 = sphi 0, %s54
    %s72 = sphi 0, %s72
    %s74 = sphi 0, %s72
    %s75 = sphi 0, %s74
    %s89 = sphi 0, %s75
    %s93 = sphi 0, %s93
    %s95 = sphi 0, %s93
    %s96 = sphi 0, %s95
    %s110 = sphi 0, %s96
    %s114 = sphi 0, %s114
    %s116 = sphi 0, %s114
    %s117 = sphi 0, %s116
    %s131 = sphi 0, %s117
    %s135 = sphi 0, %s135
    %s137 = sphi 0, %s135
    %s138 = sphi 0, %s137
    %s152 = sphi 0, %s138
    %s156 = sphi 0, %s156
    %s158 = sphi 0, %s156
    %s159 = sphi 0, %s158
    %s173 = sphi 0, %s159
    %s177 = sphi 0, %s177
    %s179 = sphi 0, %s177
    %s180 = sphi 0, %s179
    %s194 = sphi 0, %s180
    %s198 = sphi 0, %s198
    %s200 = sphi 0, %s198
    %s201 = sphi 0, %s200
    %s215 = sphi 0, %s201
    %s221 = sphi 0, %s223
    %s224 = sphi 0, %s221
    %s225 = sphi 0, %s224
    %s241 = sphi 0, %s225
  $region4: #{cnn_forward_pallas.1} parent=0 // loop_header_branch
    %20 = sbr.rel (%p18) target = $region8
  $region5: #{cnn_forward_pallas.1} parent=0 // loop_body
    %s22 = ssub.s32 %s17, 1
    %s23 = ssub.s32 %s17, 2
    %s24 = sadd.s32 %s17, 1
    %s25 = ssub.s32 %s17, %s24
    %p26 = scmp.eq.s32.totalorder %s25, 0
    %s28 = sadd.s32 %s27, 1
    %s29 = scalar_select %p26, %s27, %s28
    %p32 = pneg %p26
    %p33 = scmp.eq.s32.totalorder %s17, 1
    %p34 = por %p32, %p33
    %p35 = scmp.ne.s32.totalorder %s27, %s30
    %p36 = scmp.eq.s32.totalorder %s17, 0
    %p37 = por %p35, %p36
    %p38 = scmp.ne.s32.totalorder %s27, %s30
    %p39 = scmp.eq.s32.totalorder %s22, 1
    %p40 = por %p38, %p39
    %p41 = scmp.ne.s32.totalorder %s30, %s31
    %p42 = scmp.eq.s32.totalorder %s22, 0
    %p43 = por %p41, %p42
    %p44 = scmp.ne.s32.totalorder %s30, %s31
    %p45 = scmp.eq.s32.totalorder %s23, 1
    %p46 = por %p44, %p45
    %p48 = scmp.ne.s32.totalorder %s31, %s47
    %p49 = scmp.eq.s32.totalorder %s23, 0
    %p50 = por %p48, %p49
    %s52 = sadd.s32 %s51, 1
    %p55 = scmp.eq.s32.totalorder %s17, 1
    %p56 = scmp.ne.s32.totalorder %s51, %s53
    %p57 = scmp.eq.s32.totalorder %s17, 0
    %p58 = por %p56, %p57
    %p59 = scmp.ne.s32.totalorder %s51, %s53
    %p60 = scmp.eq.s32.totalorder %s22, 1
    %p61 = por %p59, %p60
    %p62 = scmp.ne.s32.totalorder %s53, %s54
    %p63 = scmp.eq.s32.totalorder %s22, 0
    %p64 = por %p62, %p63
    %p65 = scmp.ne.s32.totalorder %s53, %s54
    %p66 = scmp.eq.s32.totalorder %s23, 1
    %p67 = por %p65, %p66
    %p69 = scmp.ne.s32.totalorder %s54, %s68
    %p70 = scmp.eq.s32.totalorder %s23, 0
    %p71 = por %p69, %p70
    %s73 = sadd.s32 %s72, 1
    %p76 = scmp.eq.s32.totalorder %s17, 1
    %p77 = scmp.ne.s32.totalorder %s72, %s74
    %p78 = scmp.eq.s32.totalorder %s17, 0
    %p79 = por %p77, %p78
    %p80 = scmp.ne.s32.totalorder %s72, %s74
    %p81 = scmp.eq.s32.totalorder %s22, 1
    %p82 = por %p80, %p81
    %p83 = scmp.ne.s32.totalorder %s74, %s75
    %p84 = scmp.eq.s32.totalorder %s22, 0
    %p85 = por %p83, %p84
    %p86 = scmp.ne.s32.totalorder %s74, %s75
    %p87 = scmp.eq.s32.totalorder %s23, 1
    %p88 = por %p86, %p87
    %p90 = scmp.ne.s32.totalorder %s75, %s89
    %p91 = scmp.eq.s32.totalorder %s23, 0
    %p92 = por %p90, %p91
    %s94 = sadd.s32 %s93, 1
    %p97 = scmp.eq.s32.totalorder %s17, 1
    %p98 = scmp.ne.s32.totalorder %s93, %s95
    %p99 = scmp.eq.s32.totalorder %s17, 0
    %p100 = por %p98, %p99
    %p101 = scmp.ne.s32.totalorder %s93, %s95
    %p102 = scmp.eq.s32.totalorder %s22, 1
    %p103 = por %p101, %p102
    %p104 = scmp.ne.s32.totalorder %s95, %s96
    %p105 = scmp.eq.s32.totalorder %s22, 0
    %p106 = por %p104, %p105
    %p107 = scmp.ne.s32.totalorder %s95, %s96
    %p108 = scmp.eq.s32.totalorder %s23, 1
    %p109 = por %p107, %p108
    %p111 = scmp.ne.s32.totalorder %s96, %s110
    %p112 = scmp.eq.s32.totalorder %s23, 0
    %p113 = por %p111, %p112
    %s115 = sadd.s32 %s114, 1
    %p118 = scmp.eq.s32.totalorder %s17, 1
    %p119 = scmp.ne.s32.totalorder %s114, %s116
    %p120 = scmp.eq.s32.totalorder %s17, 0
    %p121 = por %p119, %p120
    %p122 = scmp.ne.s32.totalorder %s114, %s116
    %p123 = scmp.eq.s32.totalorder %s22, 1
    %p124 = por %p122, %p123
    %p125 = scmp.ne.s32.totalorder %s116, %s117
    %p126 = scmp.eq.s32.totalorder %s22, 0
    %p127 = por %p125, %p126
    %p128 = scmp.ne.s32.totalorder %s116, %s117
    %p129 = scmp.eq.s32.totalorder %s23, 1
    %p130 = por %p128, %p129
    %p132 = scmp.ne.s32.totalorder %s117, %s131
    %p133 = scmp.eq.s32.totalorder %s23, 0
    %p134 = por %p132, %p133
    %s136 = sadd.s32 %s135, 1
    %p139 = scmp.eq.s32.totalorder %s17, 1
    %p140 = scmp.ne.s32.totalorder %s135, %s137
    %p141 = scmp.eq.s32.totalorder %s17, 0
    %p142 = por %p140, %p141
    %p143 = scmp.ne.s32.totalorder %s135, %s137
    %p144 = scmp.eq.s32.totalorder %s22, 1
    %p145 = por %p143, %p144
    %p146 = scmp.ne.s32.totalorder %s137, %s138
    %p147 = scmp.eq.s32.totalorder %s22, 0
    %p148 = por %p146, %p147
    %p149 = scmp.ne.s32.totalorder %s137, %s138
    %p150 = scmp.eq.s32.totalorder %s23, 1
    %p151 = por %p149, %p150
    %p153 = scmp.ne.s32.totalorder %s138, %s152
    %p154 = scmp.eq.s32.totalorder %s23, 0
    %p155 = por %p153, %p154
    %s157 = sadd.s32 %s156, 1
    %p160 = scmp.eq.s32.totalorder %s17, 1
    %p161 = scmp.ne.s32.totalorder %s156, %s158
    %p162 = scmp.eq.s32.totalorder %s17, 0
    %p163 = por %p161, %p162
    %p164 = scmp.ne.s32.totalorder %s156, %s158
    %p165 = scmp.eq.s32.totalorder %s22, 1
    %p166 = por %p164, %p165
    %p167 = scmp.ne.s32.totalorder %s158, %s159
    %p168 = scmp.eq.s32.totalorder %s22, 0
    %p169 = por %p167, %p168
    %p170 = scmp.ne.s32.totalorder %s158, %s159
    %p171 = scmp.eq.s32.totalorder %s23, 1
    %p172 = por %p170, %p171
    %p174 = scmp.ne.s32.totalorder %s159, %s173
    %p175 = scmp.eq.s32.totalorder %s23, 0
    %p176 = por %p174, %p175
    %s178 = sadd.s32 %s177, 1
    %p181 = scmp.eq.s32.totalorder %s17, 1
    %p182 = scmp.ne.s32.totalorder %s177, %s179
    %p183 = scmp.eq.s32.totalorder %s17, 0
    %p184 = por %p182, %p183
    %p185 = scmp.ne.s32.totalorder %s177, %s179
    %p186 = scmp.eq.s32.totalorder %s22, 1
    %p187 = por %p185, %p186
    %p188 = scmp.ne.s32.totalorder %s179, %s180
    %p189 = scmp.eq.s32.totalorder %s22, 0
    %p190 = por %p188, %p189
    %p191 = scmp.ne.s32.totalorder %s179, %s180
    %p192 = scmp.eq.s32.totalorder %s23, 1
    %p193 = por %p191, %p192
    %p195 = scmp.ne.s32.totalorder %s180, %s194
    %p196 = scmp.eq.s32.totalorder %s23, 0
    %p197 = por %p195, %p196
    %s199 = sadd.s32 %s198, 1
    %p202 = scmp.eq.s32.totalorder %s17, 1
    %p203 = scmp.ne.s32.totalorder %s198, %s200
    %p204 = scmp.eq.s32.totalorder %s17, 0
    %p205 = por %p203, %p204
    %p206 = scmp.ne.s32.totalorder %s198, %s200
    %p207 = scmp.eq.s32.totalorder %s22, 1
    %p208 = por %p206, %p207
    %p209 = scmp.ne.s32.totalorder %s200, %s201
    %p210 = scmp.eq.s32.totalorder %s22, 0
    %p211 = por %p209, %p210
    %p212 = scmp.ne.s32.totalorder %s200, %s201
    %p213 = scmp.eq.s32.totalorder %s23, 1
    %p214 = por %p212, %p213
    %p216 = scmp.ne.s32.totalorder %s201, %s215
    %p217 = scmp.eq.s32.totalorder %s23, 0
    %p218 = por %p216, %p217
    %s219 = ssub.s32 %s17, %s24
    %p220 = scmp.eq.s32.totalorder %s219, 0
    %s222 = sadd.s32 %s221, 1
    %s223 = scalar_select %p220, %s221, %s222
    %p226 = pneg %p220
    %p227 = scmp.eq.s32.totalorder %s17, 1
    %p228 = por %p226, %p227
    %p229 = scmp.ne.s32.totalorder %s221, %s224
    %p230 = scmp.eq.s32.totalorder %s17, 0
    %p231 = por %p229, %p230
    %p232 = scmp.ne.s32.totalorder %s221, %s224
    %p233 = scmp.eq.s32.totalorder %s22, 1
    %p234 = por %p232, %p233
    %p235 = scmp.ne.s32.totalorder %s224, %s225
    %p236 = scmp.eq.s32.totalorder %s22, 0
    %p237 = por %p235, %p236
    %p238 = scmp.ne.s32.totalorder %s224, %s225
    %p239 = scmp.eq.s32.totalorder %s23, 1
    %p240 = por %p238, %p239
    %p242 = scmp.ne.s32.totalorder %s225, %s241
    %p243 = scmp.eq.s32.totalorder %s23, 0
    %p244 = por %p242, %p243
    %p245 = scmp.le.s32.totalorder 1, %s17
    %p246 = scmp.lt.s32.totalorder %s17, 3
    %p247 = pnand %p245, %p246
    %p248 = pneg %p247
    // Predicated region
    $region9: #{cnn_forward_pallas.1} parent=5 // pred_check
      _
    $region10: #{cnn_forward_pallas.1} parent=5 // pred_check_branch
      %250 = sbr.rel (%p247) target = $region12
    $region11: #{cnn_forward_pallas.1} parent=5 // pred_region
      %s251 = ssub.s32 %s17, 1
      // Predicated region
      $region13: #{cnn_forward_pallas.1} parent=11 // pred_check
        %p252 = pneg %p64
      $region14: #{cnn_forward_pallas.1} parent=11 // pred_check_branch
        %254 = sbr.rel (%p252) target = $region16
      $region15: #{cnn_forward_pallas.1} parent=11 // pred_region
        _
      $region16: #{cnn_forward_pallas.1} parent=11 // pred_fallthru
        _
      // Predicated region
      $region17: #{cnn_forward_pallas.1} parent=11 // pred_check
        %p255 = pneg %p85
      $region18: #{cnn_forward_pallas.1} parent=11 // pred_check_branch
        %257 = sbr.rel (%p255) target = $region20
      $region19: #{cnn_forward_pallas.1} parent=11 // pred_region
        _
      $region20: #{cnn_forward_pallas.1} parent=11 // pred_fallthru
        _
      // Predicated region
      $region21: #{cnn_forward_pallas.1} parent=11 // pred_check
        %p258 = pneg %p106
      $region22: #{cnn_forward_pallas.1} parent=11 // pred_check_branch
        %260 = sbr.rel (%p258) target = $region24
      $region23: #{cnn_forward_pallas.1} parent=11 // pred_region
        _
      $region24: #{cnn_forward_pallas.1} parent=11 // pred_fallthru
        _
      // Predicated region
      $region25: #{cnn_forward_pallas.1} parent=11 // pred_check
        %p261 = pneg %p127
      $region26: #{cnn_forward_pallas.1} parent=11 // pred_check_branch
        %263 = sbr.rel (%p261) target = $region28
      $region27: #{cnn_forward_pallas.1} parent=11 // pred_region
        _
      $region28: #{cnn_forward_pallas.1} parent=11 // pred_fallthru
        _
      // Predicated region
      $region29: #{cnn_forward_pallas.1} parent=11 // pred_check
        %p264 = pneg %p148
      $region30: #{cnn_forward_pallas.1} parent=11 // pred_check_branch
        %266 = sbr.rel (%p264) target = $region32
      $region31: #{cnn_forward_pallas.1} parent=11 // pred_region
        _
      $region32: #{cnn_forward_pallas.1} parent=11 // pred_fallthru
        _
      // Predicated region
      $region33: #{cnn_forward_pallas.1} parent=11 // pred_check
        %p267 = pneg %p169
      $region34: #{cnn_forward_pallas.1} parent=11 // pred_check_branch
        %269 = sbr.rel (%p267) target = $region36
      $region35: #{cnn_forward_pallas.1} parent=11 // pred_region
        _
      $region36: #{cnn_forward_pallas.1} parent=11 // pred_fallthru
        _
      // Predicated region
      $region37: #{cnn_forward_pallas.1} parent=11 // pred_check
        %p270 = pneg %p190
      $region38: #{cnn_forward_pallas.1} parent=11 // pred_check_branch
        %272 = sbr.rel (%p270) target = $region40
      $region39: #{cnn_forward_pallas.1} parent=11 // pred_region
        _
      $region40: #{cnn_forward_pallas.1} parent=11 // pred_fallthru
        _
      // Predicated region
      $region41: #{cnn_forward_pallas.1} parent=11 // pred_check
        %p273 = pneg %p211
      $region42: #{cnn_forward_pallas.1} parent=11 // pred_check_branch
        %275 = sbr.rel (%p273) target = $region44
      $region43: #{cnn_forward_pallas.1} parent=11 // pred_region
        _
      $region44: #{cnn_forward_pallas.1} parent=11 // pred_fallthru
        _
    $region12: #{cnn_forward_pallas.1} parent=5 // pred_fallthru
      _
    %p276 = scmp.lt.s32.totalorder %s17, 2
    // Predicated region
    $region45: #{cnn_forward_pallas.1} parent=5 // pred_check
      %p277 = pneg %p276
    $region46: #{cnn_forward_pallas.1} parent=5 // pred_check_branch
      %279 = sbr.rel (%p277) target = $region48
    $region47: #{cnn_forward_pallas.1} parent=5 // pred_region
      // Predicated region
      $region49: #{cnn_forward_pallas.1} parent=47 // pred_check
        %p280 = pneg %p37
      $region50: #{cnn_forward_pallas.1} parent=47 // pred_check_branch
        %282 = sbr.rel (%p280) target = $region52
      $region51: #{cnn_forward_pallas.1} parent=47 // pred_region
        %p283 = scmp.lt.s32.totalorder %s17, 1
        %s284 = scalar_select %p283, %s17, 1
        %s285 = smul.addr %s284, 672
        %s286 = smul.addr %s285, 8
        %s287 = scalar_lea.vmem %s0, %s286
      $region52: #{cnn_forward_pallas.1} parent=47 // pred_fallthru
        _
    $region48: #{cnn_forward_pallas.1} parent=5 // pred_fallthru
      _
    %p288 = scmp.le.s32.totalorder 1, %s17
    %p289 = scmp.lt.s32.totalorder %s17, 3
    %p290 = pnand %p288, %p289
    %p291 = pneg %p290
    // Predicated region
    $region53: #{cnn_forward_pallas.1} parent=5 // pred_check
      _
    $region54: #{cnn_forward_pallas.1} parent=5 // pred_check_branch
      %293 = sbr.rel (%p290) target = $region56
    $region55: #{cnn_forward_pallas.1} parent=5 // pred_region
      %s294 = ssub.s32 %s17, 1
      %p295 = scmp.lt.s32.totalorder %s22, 1
      %s296 = scalar_select %p295, %s22, 1
      %s297 = smul.addr %s296, 672
      %s298 = smul.addr %s297, 8
      %s299 = scalar_lea.vmem %s0, %s298
      %p300 = pneg %p43
      %p301 = pneg %p40
      %p302 = pneg %p64
      %p303 = pneg %p61
      %p304 = pneg %p85
      %p305 = pneg %p82
      %p306 = pneg %p106
      %p307 = pneg %p103
      %p308 = pneg %p127
      %p309 = pneg %p124
      %p310 = pneg %p148
      %p311 = pneg %p145
      %p312 = pneg %p169
      %p313 = pneg %p166
      %p314 = pneg %p190
      %p315 = pneg %p187
      %p316 = pneg %p211
      %p317 = pneg %p208
      %p318 = pneg %p237
      %p319 = pneg %p234
      %p320 = scmp.lt.s32.totalorder %s22, 1
      %s321 = scalar_select %p320, %s22, 1
      %s322 = scalar_lea.vmem %s9, %s321
      %p323 = scmp.lt.s32.totalorder %s22, 1
      %s324 = scalar_select %p323, %s22, 1
      %s325 = smul.addr %s324, 672
      %s326 = smul.addr %s325, 8
      %s327 = scalar_lea.vmem %s0, %s326
      %p328 = scmp.lt.s32.totalorder %s22, 1
      %s329 = scalar_select %p328, %s22, 1
      %s330 = scalar_lea.vmem %s9, %s329
      %v331 = vld [vmem:[%s327] sm:$0xff]
      %v332 = vld [vmem:[%s327 + $0x8] sm:$0xff]
      %v333 = vld [vmem:[%s327 + $0x10] sm:$0xff]
      %v334 = vld [vmem:[%s327 + $0x18] sm:$0xff]
      %v335 = vld [vmem:[%s327 + $0x20] sm:$0xff]
      %v336 = vld [vmem:[%s327 + $0x28] sm:$0xff]
      %v337 = vld [vmem:[%s327 + $0x30] sm:$0xff]
      %v338 = vld [vmem:[%s327 + $0x38] sm:$0xff]
      %v339 = vld [vmem:[%s327 + $0x40] sm:$0xff]
      %v340 = vld [vmem:[%s327 + $0x48] sm:$0xff]
      %v341 = vld [vmem:[%s327 + $0x50] sm:$0xff]
      %v342 = vld [vmem:[%s327 + $0x58] sm:$0xff]
      %v343 = vld [vmem:[%s327 + $0x60] sm:$0xff]
      %v344 = vld [vmem:[%s327 + $0x68] sm:$0xff]
      %v345 = vld [vmem:[%s327 + $0x70] sm:$0xff]
      %v346 = vld [vmem:[%s327 + $0x78] sm:$0xff]
      %v347 = vld [vmem:[%s327 + $0x80] sm:$0xff]
      %v348 = vld [vmem:[%s327 + $0x88] sm:$0xff]
      %v349 = vld [vmem:[%s327 + $0x90] sm:$0xff]
      %v350 = vld [vmem:[%s327 + $0x98] sm:$0xff]
      %v351 = vld [vmem:[%s327 + $0xa0] sm:$0xff]
      %v352 = vld [vmem:[%s327 + $0xa8] sm:$0xff]
      %v353 = vld [vmem:[%s327 + $0xb0] sm:$0xff]
      %v354 = vld [vmem:[%s327 + $0xb8] sm:$0xff]
      %v355 = vld [vmem:[%s327 + $0xc0] sm:$0xff]
      %v356 = vld [vmem:[%s327 + $0xc8] sm:$0xff]
      %v357 = vld [vmem:[%s327 + $0xd0] sm:$0xff]
      %v358 = vld [vmem:[%s327 + $0xd8] sm:$0xff]
      %v359 = vld [vmem:[%s327 + $0xe0] sm:$0xff]
      %v360 = vld [vmem:[%s327 + $0xe8] sm:$0xff]
      %v361 = vld [vmem:[%s327 + $0xf0] sm:$0xff]
      %v362 = vld [vmem:[%s327 + $0xf8] sm:$0xff]
      %v363 = vld [vmem:[%s327 + $0x100] sm:$0xff]
      %v364 = vld [vmem:[%s327 + $0x108] sm:$0xff]
      %v365 = vld [vmem:[%s327 + $0x110] sm:$0xff]
      %v366 = vld [vmem:[%s327 + $0x118] sm:$0xff]
      %v367 = vld [vmem:[%s327 + $0x120] sm:$0xff]
      %v368 = vld [vmem:[%s327 + $0x128] sm:$0xff]
      %v369 = vld [vmem:[%s327 + $0x130] sm:$0xff]
      %v370 = vld [vmem:[%s327 + $0x138] sm:$0xff]
      %v371 = vld [vmem:[%s327 + $0x140] sm:$0xff]
      %v372 = vld [vmem:[%s327 + $0x148] sm:$0xff]
      %v373 = vld [vmem:[%s327 + $0x150] sm:$0xff]
      %v374 = vld [vmem:[%s327 + $0x158] sm:$0xff]
      %v375 = vld [vmem:[%s327 + $0x160] sm:$0xff]
      %v376 = vld [vmem:[%s327 + $0x168] sm:$0xff]
      %v377 = vld [vmem:[%s327 + $0x170] sm:$0xff]
      %v378 = vld [vmem:[%s327 + $0x178] sm:$0xff]
      %v379 = vld [vmem:[%s327 + $0x180] sm:$0xff]
      %v380 = vld [vmem:[%s327 + $0x188] sm:$0xff]
      %v381 = vld [vmem:[%s327 + $0x190] sm:$0xff]
      %v382 = vld [vmem:[%s327 + $0x198] sm:$0xff]
      %v383 = vld [vmem:[%s327 + $0x1a0] sm:$0xff]
      %v384 = vld [vmem:[%s327 + $0x1a8] sm:$0xff]
      %v385 = vld [vmem:[%s327 + $0x1b0] sm:$0xff]
      %v386 = vld [vmem:[%s327 + $0x1b8] sm:$0xff]
      %v387 = vld [vmem:[%s327 + $0x1c0] sm:$0xff]
      %v388 = vld [vmem:[%s327 + $0x1c8] sm:$0xff]
      %v389 = vld [vmem:[%s327 + $0x1d0] sm:$0xff]
      %v390 = vld [vmem:[%s327 + $0x1d8] sm:$0xff]
      %v391 = vld [vmem:[%s327 + $0x1e0] sm:$0xff]
      %v392 = vld [vmem:[%s327 + $0x1e8] sm:$0xff]
      %v393 = vld [vmem:[%s327 + $0x1f0] sm:$0xff]
      %v394 = vld [vmem:[%s327 + $0x1f8] sm:$0xff]
      %v395 = vld [vmem:[%s327 + $0x200] sm:$0xff]
      %v396 = vld [vmem:[%s327 + $0x208] sm:$0xff]
      %v397 = vld [vmem:[%s327 + $0x210] sm:$0xff]
      %v398 = vld [vmem:[%s327 + $0x218] sm:$0xff]
      %v399 = vld [vmem:[%s327 + $0x220] sm:$0xff]
      %v400 = vld [vmem:[%s327 + $0x228] sm:$0xff]
      %v401 = vld [vmem:[%s327 + $0x230] sm:$0xff]
      %v402 = vld [vmem:[%s327 + $0x238] sm:$0xff]
      %v403 = vld [vmem:[%s327 + $0x240] sm:$0xff]
      %v404 = vld [vmem:[%s327 + $0x248] sm:$0xff]
      %v405 = vld [vmem:[%s327 + $0x250] sm:$0xff]
      %v406 = vld [vmem:[%s327 + $0x258] sm:$0xff]
      %v407 = vld [vmem:[%s327 + $0x260] sm:$0xff]
      %v408 = vld [vmem:[%s327 + $0x268] sm:$0xff]
      %v409 = vld [vmem:[%s327 + $0x270] sm:$0xff]
      %v410 = vld [vmem:[%s327 + $0x278] sm:$0xff]
      %v411 = vld [vmem:[%s327 + $0x280] sm:$0xff]
      %v412 = vld [vmem:[%s327 + $0x288] sm:$0xff]
      %v413 = vld [vmem:[%s327 + $0x290] sm:$0xff]
      %v414 = vld [vmem:[%s327 + $0x298] sm:$0xff]
      %v415 = vld [vmem:[%s327 + $0x2a0] sm:$0xff]
      %v416 = vld [vmem:[%s327 + $0x2a8] sm:$0xff]
      %v417 = vld [vmem:[%s327 + $0x2b0] sm:$0xff]
      %v418 = vld [vmem:[%s327 + $0x2b8] sm:$0xff]
      %v419 = vld [vmem:[%s327 + $0x2c0] sm:$0xff]
      %v420 = vld [vmem:[%s327 + $0x2c8] sm:$0xff]
      %v421 = vld [vmem:[%s327 + $0x2d0] sm:$0xff]
      %v422 = vld [vmem:[%s327 + $0x2d8] sm:$0xff]
      %v423 = vld [vmem:[%s327 + $0x2e0] sm:$0xff]
      %v424 = vld [vmem:[%s327 + $0x2e8] sm:$0xff]
      %v425 = vld [vmem:[%s327 + $0x2f0] sm:$0xff]
      %v426 = vld [vmem:[%s327 + $0x2f8] sm:$0xff]
      %v427 = vld [vmem:[%s327 + $0x300] sm:$0xff]
      %v428 = vld [vmem:[%s327 + $0x308] sm:$0xff]
      %v429 = vld [vmem:[%s327 + $0x310] sm:$0xff]
      %v430 = vld [vmem:[%s327 + $0x318] sm:$0xff]
      %v431 = vld [vmem:[%s327 + $0x320] sm:$0xff]
      %v432 = vld [vmem:[%s327 + $0x328] sm:$0xff]
      %v433 = vld [vmem:[%s327 + $0x330] sm:$0xff]
      %v434 = vld [vmem:[%s327 + $0x338] sm:$0xff]
      %v435 = vld [vmem:[%s327 + $0x340] sm:$0xff]
      %v436 = vld [vmem:[%s327 + $0x348] sm:$0xff]
      %v437 = vld [vmem:[%s327 + $0x350] sm:$0xff]
      %v438 = vld [vmem:[%s327 + $0x358] sm:$0xff]
      %v439 = vld [vmem:[%s327 + $0x360] sm:$0xff]
      %v440 = vld [vmem:[%s327 + $0x368] sm:$0xff]
      %v441 = vld [vmem:[%s327 + $0x370] sm:$0xff]
      %v442 = vld [vmem:[%s327 + $0x378] sm:$0xff]
      %v443 = vld [vmem:[%s327 + $0x380] sm:$0xff]
      %v444 = vld [vmem:[%s327 + $0x388] sm:$0xff]
      %v445 = vld [vmem:[%s327 + $0x390] sm:$0xff]
      %v446 = vld [vmem:[%s327 + $0x398] sm:$0xff]
      %v447 = vld [vmem:[%s327 + $0x3a0] sm:$0xff]
      %v448 = vld [vmem:[%s327 + $0x3a8] sm:$0xff]
      %v449 = vld [vmem:[%s327 + $0x3b0] sm:$0xff]
      %v450 = vld [vmem:[%s327 + $0x3b8] sm:$0xff]
      %v451 = vld [vmem:[%s327 + $0x3c0] sm:$0xff]
      %v452 = vld [vmem:[%s327 + $0x3c8] sm:$0xff]
      %v453 = vld [vmem:[%s327 + $0x3d0] sm:$0xff]
      %v454 = vld [vmem:[%s327 + $0x3d8] sm:$0xff]
      %v455 = vld [vmem:[%s327 + $0x3e0] sm:$0xff]
      %v456 = vld [vmem:[%s327 + $0x3e8] sm:$0xff]
      %v457 = vld [vmem:[%s327 + $0x3f0] sm:$0xff]
      %v458 = vld [vmem:[%s327 + $0x3f8] sm:$0xff]
      %v459 = vld [vmem:[%s327 + $0x400] sm:$0xff]
      %v460 = vld [vmem:[%s327 + $0x408] sm:$0xff]
      %v461 = vld [vmem:[%s327 + $0x410] sm:$0xff]
      %v462 = vld [vmem:[%s327 + $0x418] sm:$0xff]
      %v463 = vld [vmem:[%s327 + $0x420] sm:$0xff]
      %v464 = vld [vmem:[%s327 + $0x428] sm:$0xff]
      %v465 = vld [vmem:[%s327 + $0x430] sm:$0xff]
      %v466 = vld [vmem:[%s327 + $0x438] sm:$0xff]
      %v467 = vld [vmem:[%s327 + $0x440] sm:$0xff]
      %v468 = vld [vmem:[%s327 + $0x448] sm:$0xff]
      %v469 = vld [vmem:[%s327 + $0x450] sm:$0xff]
      %v470 = vld [vmem:[%s327 + $0x458] sm:$0xff]
      %v471 = vld [vmem:[%s327 + $0x460] sm:$0xff]
      %v472 = vld [vmem:[%s327 + $0x468] sm:$0xff]
      %v473 = vld [vmem:[%s327 + $0x470] sm:$0xff]
      %v474 = vld [vmem:[%s327 + $0x478] sm:$0xff]
      %v475 = vld [vmem:[%s327 + $0x480] sm:$0xff]
      %v476 = vld [vmem:[%s327 + $0x488] sm:$0xff]
      %v477 = vld [vmem:[%s327 + $0x490] sm:$0xff]
      %v478 = vld [vmem:[%s327 + $0x498] sm:$0xff]
      %v479 = vld [vmem:[%s327 + $0x4a0] sm:$0xff]
      %v480 = vld [vmem:[%s327 + $0x4a8] sm:$0xff]
      %v481 = vld [vmem:[%s327 + $0x4b0] sm:$0xff]
      %v482 = vld [vmem:[%s327 + $0x4b8] sm:$0xff]
      %v483 = vld [vmem:[%s327 + $0x4c0] sm:$0xff]
      %v484 = vld [vmem:[%s327 + $0x4c8] sm:$0xff]
      %v485 = vld [vmem:[%s327 + $0x4d0] sm:$0xff]
      %v486 = vld [vmem:[%s327 + $0x4d8] sm:$0xff]
      %v487 = vld [vmem:[%s327 + $0x4e0] sm:$0xff]
      %v488 = vld [vmem:[%s327 + $0x4e8] sm:$0xff]
      %v489 = vld [vmem:[%s327 + $0x4f0] sm:$0xff]
      %v490 = vld [vmem:[%s327 + $0x4f8] sm:$0xff]
      %v491 = vld [vmem:[%s327 + $0x500] sm:$0xff]
      %v492 = vld [vmem:[%s327 + $0x508] sm:$0xff]
      %v493 = vld [vmem:[%s327 + $0x510] sm:$0xff]
      %v494 = vld [vmem:[%s327 + $0x518] sm:$0xff]
      %v495 = vld [vmem:[%s327 + $0x520] sm:$0xff]
      %v496 = vld [vmem:[%s327 + $0x528] sm:$0xff]
      %v497 = vld [vmem:[%s327 + $0x530] sm:$0xff]
      %v498 = vld [vmem:[%s327 + $0x538] sm:$0xff]
      %v499 = vld [vmem:[%s327 + $0x540] sm:$0xff]
      %v500 = vld [vmem:[%s327 + $0x548] sm:$0xff]
      %v501 = vld [vmem:[%s327 + $0x550] sm:$0xff]
      %v502 = vld [vmem:[%s327 + $0x558] sm:$0xff]
      %v503 = vld [vmem:[%s327 + $0x560] sm:$0xff]
      %v504 = vld [vmem:[%s327 + $0x568] sm:$0xff]
      %v505 = vld [vmem:[%s327 + $0x570] sm:$0xff]
      %v506 = vld [vmem:[%s327 + $0x578] sm:$0xff]
      %v507 = vld [vmem:[%s327 + $0x580] sm:$0xff]
      %v508 = vld [vmem:[%s327 + $0x588] sm:$0xff]
      %v509 = vld [vmem:[%s327 + $0x590] sm:$0xff]
      %v510 = vld [vmem:[%s327 + $0x598] sm:$0xff]
      %v511 = vld [vmem:[%s327 + $0x5a0] sm:$0xff]
      %v512 = vld [vmem:[%s327 + $0x5a8] sm:$0xff]
      %v513 = vld [vmem:[%s327 + $0x5b0] sm:$0xff]
      %v514 = vld [vmem:[%s327 + $0x5b8] sm:$0xff]
      %v515 = vld [vmem:[%s327 + $0x5c0] sm:$0xff]
      %v516 = vld [vmem:[%s327 + $0x5c8] sm:$0xff]
      %v517 = vld [vmem:[%s327 + $0x5d0] sm:$0xff]
      %v518 = vld [vmem:[%s327 + $0x5d8] sm:$0xff]
      %v519 = vld [vmem:[%s327 + $0x5e0] sm:$0xff]
      %v520 = vld [vmem:[%s327 + $0x5e8] sm:$0xff]
      %v521 = vld [vmem:[%s327 + $0x5f0] sm:$0xff]
      %v522 = vld [vmem:[%s327 + $0x5f8] sm:$0xff]
      %v523 = vld [vmem:[%s327 + $0x600] sm:$0xff]
      %v524 = vld [vmem:[%s327 + $0x608] sm:$0xff]
      %v525 = vld [vmem:[%s327 + $0x610] sm:$0xff]
      %v526 = vld [vmem:[%s327 + $0x618] sm:$0xff]
      %v527 = vld [vmem:[%s327 + $0x620] sm:$0xff]
      %v528 = vld [vmem:[%s327 + $0x628] sm:$0xff]
      %v529 = vld [vmem:[%s327 + $0x630] sm:$0xff]
      %v530 = vld [vmem:[%s327 + $0x638] sm:$0xff]
      %v531 = vld [vmem:[%s327 + $0x640] sm:$0xff]
      %v532 = vld [vmem:[%s327 + $0x648] sm:$0xff]
      %v533 = vld [vmem:[%s327 + $0x650] sm:$0xff]
      %v534 = vld [vmem:[%s327 + $0x658] sm:$0xff]
      %v535 = vld [vmem:[%s327 + $0x660] sm:$0xff]
      %v536 = vld [vmem:[%s327 + $0x668] sm:$0xff]
      %v537 = vld [vmem:[%s327 + $0x670] sm:$0xff]
      %v538 = vld [vmem:[%s327 + $0x678] sm:$0xff]
      %v539 = vld [vmem:[%s327 + $0x680] sm:$0xff]
      %v540 = vld [vmem:[%s327 + $0x688] sm:$0xff]
      %v541 = vld [vmem:[%s327 + $0x690] sm:$0xff]
      %v542 = vld [vmem:[%s327 + $0x698] sm:$0xff]
      %v543 = vld [vmem:[%s327 + $0x6a0] sm:$0xff]
      %v544 = vld [vmem:[%s327 + $0x6a8] sm:$0xff]
      %v545 = vld [vmem:[%s327 + $0x6b0] sm:$0xff]
      %v546 = vld [vmem:[%s327 + $0x6b8] sm:$0xff]
      %v547 = vld [vmem:[%s327 + $0x6c0] sm:$0xff]
      %v548 = vld [vmem:[%s327 + $0x6c8] sm:$0xff]
      %v549 = vld [vmem:[%s327 + $0x6d0] sm:$0xff]
      %v550 = vld [vmem:[%s327 + $0x6d8] sm:$0xff]
      %v551 = vld [vmem:[%s327 + $0x6e0] sm:$0xff]
      %v552 = vld [vmem:[%s327 + $0x6e8] sm:$0xff]
      %v553 = vld [vmem:[%s327 + $0x6f0] sm:$0xff]
      %v554 = vld [vmem:[%s327 + $0x6f8] sm:$0xff]
      %v555 = vld [vmem:[%s327 + $0x700] sm:$0xff]
      %v556 = vld [vmem:[%s327 + $0x708] sm:$0xff]
      %v557 = vld [vmem:[%s327 + $0x710] sm:$0xff]
      %v558 = vld [vmem:[%s327 + $0x718] sm:$0xff]
      %v559 = vld [vmem:[%s327 + $0x720] sm:$0xff]
      %v560 = vld [vmem:[%s327 + $0x728] sm:$0xff]
      %v561 = vld [vmem:[%s327 + $0x730] sm:$0xff]
      %v562 = vld [vmem:[%s327 + $0x738] sm:$0xff]
      %v563 = vld [vmem:[%s327 + $0x740] sm:$0xff]
      %v564 = vld [vmem:[%s327 + $0x748] sm:$0xff]
      %v565 = vld [vmem:[%s327 + $0x750] sm:$0xff]
      %v566 = vld [vmem:[%s327 + $0x758] sm:$0xff]
      %v567 = vld [vmem:[%s327 + $0x760] sm:$0xff]
      %v568 = vld [vmem:[%s327 + $0x768] sm:$0xff]
      %v569 = vld [vmem:[%s327 + $0x770] sm:$0xff]
      %v570 = vld [vmem:[%s327 + $0x778] sm:$0xff]
      %v571 = vld [vmem:[%s327 + $0x780] sm:$0xff]
      %v572 = vld [vmem:[%s327 + $0x788] sm:$0xff]
      %v573 = vld [vmem:[%s327 + $0x790] sm:$0xff]
      %v574 = vld [vmem:[%s327 + $0x798] sm:$0xff]
      %v575 = vld [vmem:[%s327 + $0x7a0] sm:$0xff]
      %v576 = vld [vmem:[%s327 + $0x7a8] sm:$0xff]
      %v577 = vld [vmem:[%s327 + $0x7b0] sm:$0xff]
      %v578 = vld [vmem:[%s327 + $0x7b8] sm:$0xff]
      %v579 = vld [vmem:[%s327 + $0x7c0] sm:$0xff]
      %v580 = vld [vmem:[%s327 + $0x7c8] sm:$0xff]
      %v581 = vld [vmem:[%s327 + $0x7d0] sm:$0xff]
      %v582 = vld [vmem:[%s327 + $0x7d8] sm:$0xff]
      %v583 = vld [vmem:[%s327 + $0x7e0] sm:$0xff]
      %v584 = vld [vmem:[%s327 + $0x7e8] sm:$0xff]
      %v585 = vld [vmem:[%s327 + $0x7f0] sm:$0xff]
      %v586 = vld [vmem:[%s327 + $0x7f8] sm:$0xff]
      %v587 = vld [vmem:[%s327 + $0x800] sm:$0xff]
      %v588 = vld [vmem:[%s327 + $0x808] sm:$0xff]
      %v589 = vld [vmem:[%s327 + $0x810] sm:$0xff]
      %v590 = vld [vmem:[%s327 + $0x818] sm:$0xff]
      %v591 = vld [vmem:[%s327 + $0x820] sm:$0xff]
      %v592 = vld [vmem:[%s327 + $0x828] sm:$0xff]
      %v593 = vld [vmem:[%s327 + $0x830] sm:$0xff]
      %v594 = vld [vmem:[%s327 + $0x838] sm:$0xff]
      %v595 = vld [vmem:[%s327 + $0x840] sm:$0xff]
      %v596 = vld [vmem:[%s327 + $0x848] sm:$0xff]
      %v597 = vld [vmem:[%s327 + $0x850] sm:$0xff]
      %v598 = vld [vmem:[%s327 + $0x858] sm:$0xff]
      %v599 = vld [vmem:[%s327 + $0x860] sm:$0xff]
      %v600 = vld [vmem:[%s327 + $0x868] sm:$0xff]
      %v601 = vld [vmem:[%s327 + $0x870] sm:$0xff]
      %v602 = vld [vmem:[%s327 + $0x878] sm:$0xff]
      %v603 = vld [vmem:[%s327 + $0x880] sm:$0xff]
      %v604 = vld [vmem:[%s327 + $0x888] sm:$0xff]
      %v605 = vld [vmem:[%s327 + $0x890] sm:$0xff]
      %v606 = vld [vmem:[%s327 + $0x898] sm:$0xff]
      %v607 = vld [vmem:[%s327 + $0x8a0] sm:$0xff]
      %v608 = vld [vmem:[%s327 + $0x8a8] sm:$0xff]
      %v609 = vld [vmem:[%s327 + $0x8b0] sm:$0xff]
      %v610 = vld [vmem:[%s327 + $0x8b8] sm:$0xff]
      %v611 = vld [vmem:[%s327 + $0x8c0] sm:$0xff]
      %v612 = vld [vmem:[%s327 + $0x8c8] sm:$0xff]
      %v613 = vld [vmem:[%s327 + $0x8d0] sm:$0xff]
      %v614 = vld [vmem:[%s327 + $0x8d8] sm:$0xff]
      %v615 = vld [vmem:[%s327 + $0x8e0] sm:$0xff]
      %v616 = vld [vmem:[%s327 + $0x8e8] sm:$0xff]
      %v617 = vld [vmem:[%s327 + $0x8f0] sm:$0xff]
      %v618 = vld [vmem:[%s327 + $0x8f8] sm:$0xff]
      %v619 = vld [vmem:[%s327 + $0x900] sm:$0xff]
      %v620 = vld [vmem:[%s327 + $0x908] sm:$0xff]
      %v621 = vld [vmem:[%s327 + $0x910] sm:$0xff]
      %v622 = vld [vmem:[%s327 + $0x918] sm:$0xff]
      %v623 = vld [vmem:[%s327 + $0x920] sm:$0xff]
      %v624 = vld [vmem:[%s327 + $0x928] sm:$0xff]
      %v625 = vld [vmem:[%s327 + $0x930] sm:$0xff]
      %v626 = vld [vmem:[%s327 + $0x938] sm:$0xff]
      %v627 = vld [vmem:[%s327 + $0x940] sm:$0xff]
      %v628 = vld [vmem:[%s327 + $0x948] sm:$0xff]
      %v629 = vld [vmem:[%s327 + $0x950] sm:$0xff]
      %v630 = vld [vmem:[%s327 + $0x958] sm:$0xff]
      %v631 = vld [vmem:[%s327 + $0x960] sm:$0xff]
      %v632 = vld [vmem:[%s327 + $0x968] sm:$0xff]
      %v633 = vld [vmem:[%s327 + $0x970] sm:$0xff]
      %v634 = vld [vmem:[%s327 + $0x978] sm:$0xff]
      %v635 = vld [vmem:[%s327 + $0x980] sm:$0xff]
      %v636 = vld [vmem:[%s327 + $0x988] sm:$0xff]
      %v637 = vld [vmem:[%s327 + $0x990] sm:$0xff]
      %v638 = vld [vmem:[%s327 + $0x998] sm:$0xff]
      %v639 = vld [vmem:[%s327 + $0x9a0] sm:$0xff]
      %v640 = vld [vmem:[%s327 + $0x9a8] sm:$0xff]
      %v641 = vld [vmem:[%s327 + $0x9b0] sm:$0xff]
      %v642 = vld [vmem:[%s327 + $0x9b8] sm:$0xff]
      %v643 = vld [vmem:[%s327 + $0x9c0] sm:$0xff]
      %v644 = vld [vmem:[%s327 + $0x9c8] sm:$0xff]
      %v645 = vld [vmem:[%s327 + $0x9d0] sm:$0xff]
      %v646 = vld [vmem:[%s327 + $0x9d8] sm:$0xff]
      %v647 = vld [vmem:[%s327 + $0x9e0] sm:$0xff]
      %v648 = vld [vmem:[%s327 + $0x9e8] sm:$0xff]
      %v649 = vld [vmem:[%s327 + $0x9f0] sm:$0xff]
      %v650 = vld [vmem:[%s327 + $0x9f8] sm:$0xff]
      %v651 = vld [vmem:[%s327 + $0xa00] sm:$0xff]
      %v652 = vld [vmem:[%s327 + $0xa08] sm:$0xff]
      %v653 = vld [vmem:[%s327 + $0xa10] sm:$0xff]
      %v654 = vld [vmem:[%s327 + $0xa18] sm:$0xff]
      %v655 = vld [vmem:[%s327 + $0xa20] sm:$0xff]
      %v656 = vld [vmem:[%s327 + $0xa28] sm:$0xff]
      %v657 = vld [vmem:[%s327 + $0xa30] sm:$0xff]
      %v658 = vld [vmem:[%s327 + $0xa38] sm:$0xff]
      %v659 = vld [vmem:[%s327 + $0xa40] sm:$0xff]
      %v660 = vld [vmem:[%s327 + $0xa48] sm:$0xff]
      %v661 = vld [vmem:[%s327 + $0xa50] sm:$0xff]
      %v662 = vld [vmem:[%s327 + $0xa58] sm:$0xff]
      %v663 = vld [vmem:[%s327 + $0xa60] sm:$0xff]
      %v664 = vld [vmem:[%s327 + $0xa68] sm:$0xff]
      %v665 = vld [vmem:[%s327 + $0xa70] sm:$0xff]
      %v666 = vld [vmem:[%s327 + $0xa78] sm:$0xff]
      %v667 = vld [vmem:[%s327 + $0xa80] sm:$0xff]
      %v668 = vld [vmem:[%s327 + $0xa88] sm:$0xff]
      %v669 = vld [vmem:[%s327 + $0xa90] sm:$0xff]
      %v670 = vld [vmem:[%s327 + $0xa98] sm:$0xff]
      %v671 = vld [vmem:[%s327 + $0xaa0] sm:$0xff]
      %v672 = vld [vmem:[%s327 + $0xaa8] sm:$0xff]
      %v673 = vld [vmem:[%s327 + $0xab0] sm:$0xff]
      %v674 = vld [vmem:[%s327 + $0xab8] sm:$0xff]
      %v675 = vld [vmem:[%s327 + $0xac0] sm:$0xff]
      %v676 = vld [vmem:[%s327 + $0xac8] sm:$0xff]
      %v677 = vld [vmem:[%s327 + $0xad0] sm:$0xff]
      %v678 = vld [vmem:[%s327 + $0xad8] sm:$0xff]
      %v679 = vld [vmem:[%s327 + $0xae0] sm:$0xff]
      %v680 = vld [vmem:[%s327 + $0xae8] sm:$0xff]
      %v681 = vld [vmem:[%s327 + $0xaf0] sm:$0xff]
      %v682 = vld [vmem:[%s327 + $0xaf8] sm:$0xff]
      %v683 = vld [vmem:[%s327 + $0xb00] sm:$0xff]
      %v684 = vld [vmem:[%s327 + $0xb08] sm:$0xff]
      %v685 = vld [vmem:[%s327 + $0xb10] sm:$0xff]
      %v686 = vld [vmem:[%s327 + $0xb18] sm:$0xff]
      %v687 = vld [vmem:[%s327 + $0xb20] sm:$0xff]
      %v688 = vld [vmem:[%s327 + $0xb28] sm:$0xff]
      %v689 = vld [vmem:[%s327 + $0xb30] sm:$0xff]
      %v690 = vld [vmem:[%s327 + $0xb38] sm:$0xff]
      %v691 = vld [vmem:[%s327 + $0xb40] sm:$0xff]
      %v692 = vld [vmem:[%s327 + $0xb48] sm:$0xff]
      %v693 = vld [vmem:[%s327 + $0xb50] sm:$0xff]
      %v694 = vld [vmem:[%s327 + $0xb58] sm:$0xff]
      %v695 = vld [vmem:[%s327 + $0xb60] sm:$0xff]
      %v696 = vld [vmem:[%s327 + $0xb68] sm:$0xff]
      %v697 = vld [vmem:[%s327 + $0xb70] sm:$0xff]
      %v698 = vld [vmem:[%s327 + $0xb78] sm:$0xff]
      %v699 = vld [vmem:[%s327 + $0xb80] sm:$0xff]
      %v700 = vld [vmem:[%s327 + $0xb88] sm:$0xff]
      %v701 = vld [vmem:[%s327 + $0xb90] sm:$0xff]
      %v702 = vld [vmem:[%s327 + $0xb98] sm:$0xff]
      %v703 = vld [vmem:[%s327 + $0xba0] sm:$0xff]
      %v704 = vld [vmem:[%s327 + $0xba8] sm:$0xff]
      %v705 = vld [vmem:[%s327 + $0xbb0] sm:$0xff]
      %v706 = vld [vmem:[%s327 + $0xbb8] sm:$0xff]
      %v707 = vld [vmem:[%s327 + $0xbc0] sm:$0xff]
      %v708 = vld [vmem:[%s327 + $0xbc8] sm:$0xff]
      %v709 = vld [vmem:[%s327 + $0xbd0] sm:$0xff]
      %v710 = vld [vmem:[%s327 + $0xbd8] sm:$0xff]
      %v711 = vld [vmem:[%s327 + $0xbe0] sm:$0xff]
      %v712 = vld [vmem:[%s327 + $0xbe8] sm:$0xff]
      %v713 = vld [vmem:[%s327 + $0xbf0] sm:$0xff]
      %v714 = vld [vmem:[%s327 + $0xbf8] sm:$0xff]
      %v715 = vld [vmem:[%s327 + $0xc00] sm:$0xff]
      %v716 = vld [vmem:[%s327 + $0xc08] sm:$0xff]
      %v717 = vld [vmem:[%s327 + $0xc10] sm:$0xff]
      %v718 = vld [vmem:[%s327 + $0xc18] sm:$0xff]
      %v719 = vld [vmem:[%s327 + $0xc20] sm:$0xff]
      %v720 = vld [vmem:[%s327 + $0xc28] sm:$0xff]
      %v721 = vld [vmem:[%s327 + $0xc30] sm:$0xff]
      %v722 = vld [vmem:[%s327 + $0xc38] sm:$0xff]
      %v723 = vld [vmem:[%s327 + $0xc40] sm:$0xff]
      %v724 = vld [vmem:[%s327 + $0xc48] sm:$0xff]
      %v725 = vld [vmem:[%s327 + $0xc50] sm:$0xff]
      %v726 = vld [vmem:[%s327 + $0xc58] sm:$0xff]
      %v727 = vld [vmem:[%s327 + $0xc60] sm:$0xff]
      %v728 = vld [vmem:[%s327 + $0xc68] sm:$0xff]
      %v729 = vld [vmem:[%s327 + $0xc70] sm:$0xff]
      %v730 = vld [vmem:[%s327 + $0xc78] sm:$0xff]
      %v731 = vld [vmem:[%s327 + $0xc80] sm:$0xff]
      %v732 = vld [vmem:[%s327 + $0xc88] sm:$0xff]
      %v733 = vld [vmem:[%s327 + $0xc90] sm:$0xff]
      %v734 = vld [vmem:[%s327 + $0xc98] sm:$0xff]
      %v735 = vld [vmem:[%s327 + $0xca0] sm:$0xff]
      %v736 = vld [vmem:[%s327 + $0xca8] sm:$0xff]
      %v737 = vld [vmem:[%s327 + $0xcb0] sm:$0xff]
      %v738 = vld [vmem:[%s327 + $0xcb8] sm:$0xff]
      %v739 = vld [vmem:[%s327 + $0xcc0] sm:$0xff]
      %v740 = vld [vmem:[%s327 + $0xcc8] sm:$0xff]
      %v741 = vld [vmem:[%s327 + $0xcd0] sm:$0xff]
      %v742 = vld [vmem:[%s327 + $0xcd8] sm:$0xff]
      %v743 = vld [vmem:[%s327 + $0xce0] sm:$0xff]
      %v744 = vld [vmem:[%s327 + $0xce8] sm:$0xff]
      %v745 = vld [vmem:[%s327 + $0xcf0] sm:$0xff]
      %v746 = vld [vmem:[%s327 + $0xcf8] sm:$0xff]
      %v747 = vld [vmem:[%s327 + $0xd00] sm:$0xff]
      %v748 = vld [vmem:[%s327 + $0xd08] sm:$0xff]
      %v749 = vld [vmem:[%s327 + $0xd10] sm:$0xff]
      %v750 = vld [vmem:[%s327 + $0xd18] sm:$0xff]
      %v751 = vld [vmem:[%s327 + $0xd20] sm:$0xff]
      %v752 = vld [vmem:[%s327 + $0xd28] sm:$0xff]
      %v753 = vld [vmem:[%s327 + $0xd30] sm:$0xff]
      %v754 = vld [vmem:[%s327 + $0xd38] sm:$0xff]
      %v755 = vld [vmem:[%s327 + $0xd40] sm:$0xff]
      %v756 = vld [vmem:[%s327 + $0xd48] sm:$0xff]
      %v757 = vld [vmem:[%s327 + $0xd50] sm:$0xff]
      %v758 = vld [vmem:[%s327 + $0xd58] sm:$0xff]
      %v759 = vld [vmem:[%s327 + $0xd60] sm:$0xff]
      %v760 = vld [vmem:[%s327 + $0xd68] sm:$0xff]
      %v761 = vld [vmem:[%s327 + $0xd70] sm:$0xff]
      %v762 = vld [vmem:[%s327 + $0xd78] sm:$0xff]
      %v763 = vld [vmem:[%s327 + $0xd80] sm:$0xff]
      %v764 = vld [vmem:[%s327 + $0xd88] sm:$0xff]
      %v765 = vld [vmem:[%s327 + $0xd90] sm:$0xff]
      %v766 = vld [vmem:[%s327 + $0xd98] sm:$0xff]
      %v767 = vld [vmem:[%s327 + $0xda0] sm:$0xff]
      %v768 = vld [vmem:[%s327 + $0xda8] sm:$0xff]
      %v769 = vld [vmem:[%s327 + $0xdb0] sm:$0xff]
      %v770 = vld [vmem:[%s327 + $0xdb8] sm:$0xff]
      %v771 = vld [vmem:[%s327 + $0xdc0] sm:$0xff]
      %v772 = vld [vmem:[%s327 + $0xdc8] sm:$0xff]
      %v773 = vld [vmem:[%s327 + $0xdd0] sm:$0xff]
      %v774 = vld [vmem:[%s327 + $0xdd8] sm:$0xff]
      %v775 = vld [vmem:[%s327 + $0xde0] sm:$0xff]
      %v776 = vld [vmem:[%s327 + $0xde8] sm:$0xff]
      %v777 = vld [vmem:[%s327 + $0xdf0] sm:$0xff]
      %v778 = vld [vmem:[%s327 + $0xdf8] sm:$0xff]
      %v779 = vld [vmem:[%s327 + $0xe00] sm:$0xff]
      %v780 = vld [vmem:[%s327 + $0xe08] sm:$0xff]
      %v781 = vld [vmem:[%s327 + $0xe10] sm:$0xff]
      %v782 = vld [vmem:[%s327 + $0xe18] sm:$0xff]
      %v783 = vld [vmem:[%s327 + $0xe20] sm:$0xff]
      %v784 = vld [vmem:[%s327 + $0xe28] sm:$0xff]
      %v785 = vld [vmem:[%s327 + $0xe30] sm:$0xff]
      %v786 = vld [vmem:[%s327 + $0xe38] sm:$0xff]
      %v787 = vld [vmem:[%s327 + $0xe40] sm:$0xff]
      %v788 = vld [vmem:[%s327 + $0xe48] sm:$0xff]
      %v789 = vld [vmem:[%s327 + $0xe50] sm:$0xff]
      %v790 = vld [vmem:[%s327 + $0xe58] sm:$0xff]
      %v791 = vld [vmem:[%s327 + $0xe60] sm:$0xff]
      %v792 = vld [vmem:[%s327 + $0xe68] sm:$0xff]
      %v793 = vld [vmem:[%s327 + $0xe70] sm:$0xff]
      %v794 = vld [vmem:[%s327 + $0xe78] sm:$0xff]
      %v795 = vld [vmem:[%s327 + $0xe80] sm:$0xff]
      %v796 = vld [vmem:[%s327 + $0xe88] sm:$0xff]
      %v797 = vld [vmem:[%s327 + $0xe90] sm:$0xff]
      %v798 = vld [vmem:[%s327 + $0xe98] sm:$0xff]
      %v799 = vld [vmem:[%s327 + $0xea0] sm:$0xff]
      %v800 = vld [vmem:[%s327 + $0xea8] sm:$0xff]
      %v801 = vld [vmem:[%s327 + $0xeb0] sm:$0xff]
      %v802 = vld [vmem:[%s327 + $0xeb8] sm:$0xff]
      %v803 = vld [vmem:[%s327 + $0xec0] sm:$0xff]
      %v804 = vld [vmem:[%s327 + $0xec8] sm:$0xff]
      %v805 = vld [vmem:[%s327 + $0xed0] sm:$0xff]
      %v806 = vld [vmem:[%s327 + $0xed8] sm:$0xff]
      %v807 = vld [vmem:[%s327 + $0xee0] sm:$0xff]
      %v808 = vld [vmem:[%s327 + $0xee8] sm:$0xff]
      %v809 = vld [vmem:[%s327 + $0xef0] sm:$0xff]
      %v810 = vld [vmem:[%s327 + $0xef8] sm:$0xff]
      %v811 = vld [vmem:[%s327 + $0xf00] sm:$0xff]
      %v812 = vld [vmem:[%s327 + $0xf08] sm:$0xff]
      %v813 = vld [vmem:[%s327 + $0xf10] sm:$0xff]
      %v814 = vld [vmem:[%s327 + $0xf18] sm:$0xff]
      %v815 = vld [vmem:[%s327 + $0xf20] sm:$0xff]
      %v816 = vld [vmem:[%s327 + $0xf28] sm:$0xff]
      %v817 = vld [vmem:[%s327 + $0xf30] sm:$0xff]
      %v818 = vld [vmem:[%s327 + $0xf38] sm:$0xff]
      %v819 = vld [vmem:[%s327 + $0xf40] sm:$0xff]
      %v820 = vld [vmem:[%s327 + $0xf48] sm:$0xff]
      %v821 = vld [vmem:[%s327 + $0xf50] sm:$0xff]
      %v822 = vld [vmem:[%s327 + $0xf58] sm:$0xff]
      %v823 = vld [vmem:[%s327 + $0xf60] sm:$0xff]
      %v824 = vld [vmem:[%s327 + $0xf68] sm:$0xff]
      %v825 = vld [vmem:[%s327 + $0xf70] sm:$0xff]
      %v826 = vld [vmem:[%s327 + $0xf78] sm:$0xff]
      %v827 = vld [vmem:[%s327 + $0xf80] sm:$0xff]
      %v828 = vld [vmem:[%s327 + $0xf88] sm:$0xff]
      %v829 = vld [vmem:[%s327 + $0xf90] sm:$0xff]
      %v830 = vld [vmem:[%s327 + $0xf98] sm:$0xff]
      %v831 = vld [vmem:[%s327 + $0xfa0] sm:$0xff]
      %v832 = vld [vmem:[%s327 + $0xfa8] sm:$0xff]
      %v833 = vld [vmem:[%s327 + $0xfb0] sm:$0xff]
      %v834 = vld [vmem:[%s327 + $0xfb8] sm:$0xff]
      %v835 = vld [vmem:[%s327 + $0xfc0] sm:$0xff]
      %v836 = vld [vmem:[%s327 + $0xfc8] sm:$0xff]
      %v837 = vld [vmem:[%s327 + $0xfd0] sm:$0xff]
      %v838 = vld [vmem:[%s327 + $0xfd8] sm:$0xff]
      %v839 = vld [vmem:[%s327 + $0xfe0] sm:$0xff]
      %v840 = vld [vmem:[%s327 + $0xfe8] sm:$0xff]
      %v841 = vld [vmem:[%s327 + $0xff0] sm:$0xff]
      %v842 = vld [vmem:[%s327 + $0xff8] sm:$0xff]
      %v843 = vld [vmem:[%s327 + $0x1000] sm:$0xff]
      %v844 = vld [vmem:[%s327 + $0x1008] sm:$0xff]
      %v845 = vld [vmem:[%s327 + $0x1010] sm:$0xff]
      %v846 = vld [vmem:[%s327 + $0x1018] sm:$0xff]
      %v847 = vld [vmem:[%s327 + $0x1020] sm:$0xff]
      %v848 = vld [vmem:[%s327 + $0x1028] sm:$0xff]
      %v849 = vld [vmem:[%s327 + $0x1030] sm:$0xff]
      %v850 = vld [vmem:[%s327 + $0x1038] sm:$0xff]
      %v851 = vld [vmem:[%s327 + $0x1040] sm:$0xff]
      %v852 = vld [vmem:[%s327 + $0x1048] sm:$0xff]
      %v853 = vld [vmem:[%s327 + $0x1050] sm:$0xff]
      %v854 = vld [vmem:[%s327 + $0x1058] sm:$0xff]
      %v855 = vld [vmem:[%s327 + $0x1060] sm:$0xff]
      %v856 = vld [vmem:[%s327 + $0x1068] sm:$0xff]
      %v857 = vld [vmem:[%s327 + $0x1070] sm:$0xff]
      %v858 = vld [vmem:[%s327 + $0x1078] sm:$0xff]
      %v859 = vld [vmem:[%s327 + $0x1080] sm:$0xff]
      %v860 = vld [vmem:[%s327 + $0x1088] sm:$0xff]
      %v861 = vld [vmem:[%s327 + $0x1090] sm:$0xff]
      %v862 = vld [vmem:[%s327 + $0x1098] sm:$0xff]
      %v863 = vld [vmem:[%s327 + $0x10a0] sm:$0xff]
      %v864 = vld [vmem:[%s327 + $0x10a8] sm:$0xff]
      %v865 = vld [vmem:[%s327 + $0x10b0] sm:$0xff]
      %v866 = vld [vmem:[%s327 + $0x10b8] sm:$0xff]
      %v867 = vld [vmem:[%s327 + $0x10c0] sm:$0xff]
      %v868 = vld [vmem:[%s327 + $0x10c8] sm:$0xff]
      %v869 = vld [vmem:[%s327 + $0x10d0] sm:$0xff]
      %v870 = vld [vmem:[%s327 + $0x10d8] sm:$0xff]
      %v871 = vld [vmem:[%s327 + $0x10e0] sm:$0xff]
      %v872 = vld [vmem:[%s327 + $0x10e8] sm:$0xff]
      %v873 = vld [vmem:[%s327 + $0x10f0] sm:$0xff]
      %v874 = vld [vmem:[%s327 + $0x10f8] sm:$0xff]
      %v875 = vld [vmem:[%s327 + $0x1100] sm:$0xff]
      %v876 = vld [vmem:[%s327 + $0x1108] sm:$0xff]
      %v877 = vld [vmem:[%s327 + $0x1110] sm:$0xff]
      %v878 = vld [vmem:[%s327 + $0x1118] sm:$0xff]
      %v879 = vld [vmem:[%s327 + $0x1120] sm:$0xff]
      %v880 = vld [vmem:[%s327 + $0x1128] sm:$0xff]
      %v881 = vld [vmem:[%s327 + $0x1130] sm:$0xff]
      %v882 = vld [vmem:[%s327 + $0x1138] sm:$0xff]
      %v883 = vld [vmem:[%s327 + $0x1140] sm:$0xff]
      %v884 = vld [vmem:[%s327 + $0x1148] sm:$0xff]
      %v885 = vld [vmem:[%s327 + $0x1150] sm:$0xff]
      %v886 = vld [vmem:[%s327 + $0x1158] sm:$0xff]
      %v887 = vld [vmem:[%s327 + $0x1160] sm:$0xff]
      %v888 = vld [vmem:[%s327 + $0x1168] sm:$0xff]
      %v889 = vld [vmem:[%s327 + $0x1170] sm:$0xff]
      %v890 = vld [vmem:[%s327 + $0x1178] sm:$0xff]
      %v891 = vld [vmem:[%s327 + $0x1180] sm:$0xff]
      %v892 = vld [vmem:[%s327 + $0x1188] sm:$0xff]
      %v893 = vld [vmem:[%s327 + $0x1190] sm:$0xff]
      %v894 = vld [vmem:[%s327 + $0x1198] sm:$0xff]
      %v895 = vld [vmem:[%s327 + $0x11a0] sm:$0xff]
      %v896 = vld [vmem:[%s327 + $0x11a8] sm:$0xff]
      %v897 = vld [vmem:[%s327 + $0x11b0] sm:$0xff]
      %v898 = vld [vmem:[%s327 + $0x11b8] sm:$0xff]
      %v899 = vld [vmem:[%s327 + $0x11c0] sm:$0xff]
      %v900 = vld [vmem:[%s327 + $0x11c8] sm:$0xff]
      %v901 = vld [vmem:[%s327 + $0x11d0] sm:$0xff]
      %v902 = vld [vmem:[%s327 + $0x11d8] sm:$0xff]
      %v903 = vld [vmem:[%s327 + $0x11e0] sm:$0xff]
      %v904 = vld [vmem:[%s327 + $0x11e8] sm:$0xff]
      %v905 = vld [vmem:[%s327 + $0x11f0] sm:$0xff]
      %v906 = vld [vmem:[%s327 + $0x11f8] sm:$0xff]
      %v907 = vld [vmem:[%s327 + $0x1200] sm:$0xff]
      %v908 = vld [vmem:[%s327 + $0x1208] sm:$0xff]
      %v909 = vld [vmem:[%s327 + $0x1210] sm:$0xff]
      %v910 = vld [vmem:[%s327 + $0x1218] sm:$0xff]
      %v911 = vld [vmem:[%s327 + $0x1220] sm:$0xff]
      %v912 = vld [vmem:[%s327 + $0x1228] sm:$0xff]
      %v913 = vld [vmem:[%s327 + $0x1230] sm:$0xff]
      %v914 = vld [vmem:[%s327 + $0x1238] sm:$0xff]
      %v915 = vld [vmem:[%s327 + $0x1240] sm:$0xff]
      %v916 = vld [vmem:[%s327 + $0x1248] sm:$0xff]
      %v917 = vld [vmem:[%s327 + $0x1250] sm:$0xff]
      %v918 = vld [vmem:[%s327 + $0x1258] sm:$0xff]
      %v919 = vld [vmem:[%s327 + $0x1260] sm:$0xff]
      %v920 = vld [vmem:[%s327 + $0x1268] sm:$0xff]
      %v921 = vld [vmem:[%s327 + $0x1270] sm:$0xff]
      %v922 = vld [vmem:[%s327 + $0x1278] sm:$0xff]
      %v923 = vld [vmem:[%s327 + $0x1280] sm:$0xff]
      %v924 = vld [vmem:[%s327 + $0x1288] sm:$0xff]
      %v925 = vld [vmem:[%s327 + $0x1290] sm:$0xff]
      %v926 = vld [vmem:[%s327 + $0x1298] sm:$0xff]
      %v927 = vld [vmem:[%s327 + $0x12a0] sm:$0xff]
      %v928 = vld [vmem:[%s327 + $0x12a8] sm:$0xff]
      %v929 = vld [vmem:[%s327 + $0x12b0] sm:$0xff]
      %v930 = vld [vmem:[%s327 + $0x12b8] sm:$0xff]
      %v931 = vld [vmem:[%s327 + $0x12c0] sm:$0xff]
      %v932 = vld [vmem:[%s327 + $0x12c8] sm:$0xff]
      %v933 = vld [vmem:[%s327 + $0x12d0] sm:$0xff]
      %v934 = vld [vmem:[%s327 + $0x12d8] sm:$0xff]
      %v935 = vld [vmem:[%s327 + $0x12e0] sm:$0xff]
      %v936 = vld [vmem:[%s327 + $0x12e8] sm:$0xff]
      %v937 = vld [vmem:[%s327 + $0x12f0] sm:$0xff]
      %v938 = vld [vmem:[%s327 + $0x12f8] sm:$0xff]
      %v939 = vld [vmem:[%s327 + $0x1300] sm:$0xff]
      %v940 = vld [vmem:[%s327 + $0x1308] sm:$0xff]
      %v941 = vld [vmem:[%s327 + $0x1310] sm:$0xff]
      %v942 = vld [vmem:[%s327 + $0x1318] sm:$0xff]
      %v943 = vld [vmem:[%s327 + $0x1320] sm:$0xff]
      %v944 = vld [vmem:[%s327 + $0x1328] sm:$0xff]
      %v945 = vld [vmem:[%s327 + $0x1330] sm:$0xff]
      %v946 = vld [vmem:[%s327 + $0x1338] sm:$0xff]
      %v947 = vld [vmem:[%s327 + $0x1340] sm:$0xff]
      %v948 = vld [vmem:[%s327 + $0x1348] sm:$0xff]
      %v949 = vld [vmem:[%s327 + $0x1350] sm:$0xff]
      %v950 = vld [vmem:[%s327 + $0x1358] sm:$0xff]
      %v951 = vld [vmem:[%s327 + $0x1360] sm:$0xff]
      %v952 = vld [vmem:[%s327 + $0x1368] sm:$0xff]
      %v953 = vld [vmem:[%s327 + $0x1370] sm:$0xff]
      %v954 = vld [vmem:[%s327 + $0x1378] sm:$0xff]
      %v955 = vld [vmem:[%s327 + $0x1380] sm:$0xff]
      %v956 = vld [vmem:[%s327 + $0x1388] sm:$0xff]
      %v957 = vld [vmem:[%s327 + $0x1390] sm:$0xff]
      %v958 = vld [vmem:[%s327 + $0x1398] sm:$0xff]
      %v959 = vld [vmem:[%s327 + $0x13a0] sm:$0xff]
      %v960 = vld [vmem:[%s327 + $0x13a8] sm:$0xff]
      %v961 = vld [vmem:[%s327 + $0x13b0] sm:$0xff]
      %v962 = vld [vmem:[%s327 + $0x13b8] sm:$0xff]
      %v963 = vld [vmem:[%s327 + $0x13c0] sm:$0xff]
      %v964 = vld [vmem:[%s327 + $0x13c8] sm:$0xff]
      %v965 = vld [vmem:[%s327 + $0x13d0] sm:$0xff]
      %v966 = vld [vmem:[%s327 + $0x13d8] sm:$0xff]
      %v967 = vld [vmem:[%s327 + $0x13e0] sm:$0xff]
      %v968 = vld [vmem:[%s327 + $0x13e8] sm:$0xff]
      %v969 = vld [vmem:[%s327 + $0x13f0] sm:$0xff]
      %v970 = vld [vmem:[%s327 + $0x13f8] sm:$0xff]
      %v971 = vld [vmem:[%s327 + $0x1400] sm:$0xff]
      %v972 = vld [vmem:[%s327 + $0x1408] sm:$0xff]
      %v973 = vld [vmem:[%s327 + $0x1410] sm:$0xff]
      %v974 = vld [vmem:[%s327 + $0x1418] sm:$0xff]
      %v975 = vld [vmem:[%s327 + $0x1420] sm:$0xff]
      %v976 = vld [vmem:[%s327 + $0x1428] sm:$0xff]
      %v977 = vld [vmem:[%s327 + $0x1430] sm:$0xff]
      %v978 = vld [vmem:[%s327 + $0x1438] sm:$0xff]
      %v979 = vld [vmem:[%s327 + $0x1440] sm:$0xff]
      %v980 = vld [vmem:[%s327 + $0x1448] sm:$0xff]
      %v981 = vld [vmem:[%s327 + $0x1450] sm:$0xff]
      %v982 = vld [vmem:[%s327 + $0x1458] sm:$0xff]
      %v983 = vld [vmem:[%s327 + $0x1460] sm:$0xff]
      %v984 = vld [vmem:[%s327 + $0x1468] sm:$0xff]
      %v985 = vld [vmem:[%s327 + $0x1470] sm:$0xff]
      %v986 = vld [vmem:[%s327 + $0x1478] sm:$0xff]
      %v987 = vld [vmem:[%s327 + $0x1480] sm:$0xff]
      %v988 = vld [vmem:[%s327 + $0x1488] sm:$0xff]
      %v989 = vld [vmem:[%s327 + $0x1490] sm:$0xff]
      %v990 = vld [vmem:[%s327 + $0x1498] sm:$0xff]
      %v991 = vld [vmem:[%s327 + $0x14a0] sm:$0xff]
      %v992 = vld [vmem:[%s327 + $0x14a8] sm:$0xff]
      %v993 = vld [vmem:[%s327 + $0x14b0] sm:$0xff]
      %v994 = vld [vmem:[%s327 + $0x14b8] sm:$0xff]
      %v995 = vld [vmem:[%s327 + $0x14c0] sm:$0xff]
      %v996 = vld [vmem:[%s327 + $0x14c8] sm:$0xff]
      %v997 = vld [vmem:[%s327 + $0x14d0] sm:$0xff]
      %v998 = vld [vmem:[%s327 + $0x14d8] sm:$0xff]
      %v999 = vld [vmem:[%s327 + $0x14e0] sm:$0xff]
      %v1000 = vld [vmem:[%s327 + $0x14e8] sm:$0xff]
      %v1001 = vld [vmem:[%s327 + $0x14f0] sm:$0xff]
      %v1002 = vld [vmem:[%s327 + $0x14f8] sm:$0xff]
      %v1003 = vld [vmem:[%s1] sm:$0xff]
      %v1004 = vld [vmem:[%s1 + $0x8] sm:$0xff]
      %v1005 = vld [vmem:[%s1 + $0x10] sm:$0xff]
      %v1006 = vld [vmem:[%s1 + $0x18] sm:$0xff]
      %v1007 = vld [vmem:[%s1 + $0x20] sm:$0xff]
      %v1008 = vld [vmem:[%s1 + $0x28] sm:$0xff]
      %v1009 = vld [vmem:[%s1 + $0x30] sm:$0xff]
      %v1010 = vld [vmem:[%s1 + $0x38] sm:$0xff]
      %v1011 = vld [vmem:[%s1 + $0x40] sm:$0xff]
      %v1012 = vld [vmem:[%s1 + $0x48] sm:$0xff]
      %v1013 = vld [vmem:[%s1 + $0x50] sm:$0xff]
      %v1014 = vld [vmem:[%s1 + $0x58] sm:$0xff]
      %v1015 = vld [vmem:[%s1 + $0x60] sm:$0xff]
      %v1016 = vld [vmem:[%s1 + $0x68] sm:$0xff]
      %v1017 = vld [vmem:[%s1 + $0x70] sm:$0xff]
      %v1018 = vld [vmem:[%s1 + $0x78] sm:$0xff]
      %v1019 = vld [vmem:[%s2] sm:$0x1]
      %v1021 = vperm.slane %v1019, 0
      %1023 = vmatpush.msra.mxu0 %v1018
      %1024 = vmatpush.msra.mxu0 %v1017
      %1025 = vmatpush.msra.mxu0 %v1016
      %1026 = vmatpush.msra.mxu0 %v1015
      %1027 = vmatpush.msra.mxu0 %v1014
      %1028 = vmatpush.msra.mxu0 %v1013
      %1029 = vmatpush.msra.mxu0 %v1012
      %1030 = vmatpush.msra.mxu0 %v1011
      %1031 = vmatpush.msra.mxu0 %v1010
      %1032 = vmatpush.msra.mxu0 %v1009
      %1033 = vmatpush.msra.mxu0 %v1008
      %1034 = vmatpush.msra.mxu0 %v1007
      %1035 = vmatpush.msra.mxu0 %v1006
      %1036 = vmatpush.msra.mxu0 %v1005
      %1037 = vmatpush.msra.mxu0 %v1004
      %1038 = vmatpush.msra.mxu0 %v1003
      %1039 = vmatmul.f32.gmra.mxu0 %v331
      %v1040 = vpop.f32.mrf.mxu0
      %v1041 = vadd.f32 %v1021, %v1040
      %1042 = vmatmul.f32.gmra.mxu0 %v332
      %v1043 = vpop.f32.mrf.mxu0
      %v1044 = vadd.f32 %v1021, %v1043
      %1045 = vmatmul.f32.gmra.mxu0 %v333
      %v1046 = vpop.f32.mrf.mxu0
      %v1047 = vadd.f32 %v1021, %v1046
      %1048 = vmatmul.f32.gmra.mxu0 %v334
      %v1049 = vpop.f32.mrf.mxu0
      %v1050 = vadd.f32 %v1021, %v1049
      %1051 = vmatmul.f32.gmra.mxu0 %v335
      %v1052 = vpop.f32.mrf.mxu0
      %v1053 = vadd.f32 %v1021, %v1052
      %1054 = vmatmul.f32.gmra.mxu0 %v336
      %v1055 = vpop.f32.mrf.mxu0
      %v1056 = vadd.f32 %v1021, %v1055
      %1057 = vmatmul.f32.gmra.mxu0 %v337
      %v1058 = vpop.f32.mrf.mxu0
      %v1059 = vadd.f32 %v1021, %v1058
      %1060 = vmatmul.f32.gmra.mxu0 %v338
      %v1061 = vpop.f32.mrf.mxu0
      %v1062 = vadd.f32 %v1021, %v1061
      %1063 = vmatmul.f32.gmra.mxu0 %v339
      %v1064 = vpop.f32.mrf.mxu0
      %v1065 = vadd.f32 %v1021, %v1064
      %1066 = vmatmul.f32.gmra.mxu0 %v340
      %v1067 = vpop.f32.mrf.mxu0
      %v1068 = vadd.f32 %v1021, %v1067
      %1069 = vmatmul.f32.gmra.mxu0 %v341
      %v1070 = vpop.f32.mrf.mxu0
      %v1071 = vadd.f32 %v1021, %v1070
      %1072 = vmatmul.f32.gmra.mxu0 %v342
      %v1073 = vpop.f32.mrf.mxu0
      %v1074 = vadd.f32 %v1021, %v1073
      %1075 = vmatmul.f32.gmra.mxu0 %v343
      %v1076 = vpop.f32.mrf.mxu0
      %v1077 = vadd.f32 %v1021, %v1076
      %1078 = vmatmul.f32.gmra.mxu0 %v344
      %v1079 = vpop.f32.mrf.mxu0
      %v1080 = vadd.f32 %v1021, %v1079
      %1081 = vmatmul.f32.gmra.mxu0 %v345
      %v1082 = vpop.f32.mrf.mxu0
      %v1083 = vadd.f32 %v1021, %v1082
      %1084 = vmatmul.f32.gmra.mxu0 %v346
      %v1085 = vpop.f32.mrf.mxu0
      %v1086 = vadd.f32 %v1021, %v1085
      %1087 = vmatmul.f32.gmra.mxu0 %v347
      %v1088 = vpop.f32.mrf.mxu0
      %v1089 = vadd.f32 %v1021, %v1088
      %1090 = vmatmul.f32.gmra.mxu0 %v348
      %v1091 = vpop.f32.mrf.mxu0
      %v1092 = vadd.f32 %v1021, %v1091
      %1093 = vmatmul.f32.gmra.mxu0 %v349
      %v1094 = vpop.f32.mrf.mxu0
      %v1095 = vadd.f32 %v1021, %v1094
      %1096 = vmatmul.f32.gmra.mxu0 %v350
      %v1097 = vpop.f32.mrf.mxu0
      %v1098 = vadd.f32 %v1021, %v1097
      %1099 = vmatmul.f32.gmra.mxu0 %v351
      %v1100 = vpop.f32.mrf.mxu0
      %v1101 = vadd.f32 %v1021, %v1100
      %1102 = vmatmul.f32.gmra.mxu0 %v352
      %v1103 = vpop.f32.mrf.mxu0
      %v1104 = vadd.f32 %v1021, %v1103
      %1105 = vmatmul.f32.gmra.mxu0 %v353
      %v1106 = vpop.f32.mrf.mxu0
      %v1107 = vadd.f32 %v1021, %v1106
      %1108 = vmatmul.f32.gmra.mxu0 %v354
      %v1109 = vpop.f32.mrf.mxu0
      %v1110 = vadd.f32 %v1021, %v1109
      %1111 = vmatmul.f32.gmra.mxu0 %v355
      %v1112 = vpop.f32.mrf.mxu0
      %v1113 = vadd.f32 %v1021, %v1112
      %1114 = vmatmul.f32.gmra.mxu0 %v356
      %v1115 = vpop.f32.mrf.mxu0
      %v1116 = vadd.f32 %v1021, %v1115
      %1117 = vmatmul.f32.gmra.mxu0 %v357
      %v1118 = vpop.f32.mrf.mxu0
      %v1119 = vadd.f32 %v1021, %v1118
      %1120 = vmatmul.f32.gmra.mxu0 %v358
      %v1121 = vpop.f32.mrf.mxu0
      %v1122 = vadd.f32 %v1021, %v1121
      %1123 = vmatmul.f32.gmra.mxu0 %v359
      %v1124 = vpop.f32.mrf.mxu0
      %v1125 = vadd.f32 %v1021, %v1124
      %1126 = vmatmul.f32.gmra.mxu0 %v360
      %v1127 = vpop.f32.mrf.mxu0
      %v1128 = vadd.f32 %v1021, %v1127
      %1129 = vmatmul.f32.gmra.mxu0 %v361
      %v1130 = vpop.f32.mrf.mxu0
      %v1131 = vadd.f32 %v1021, %v1130
      %1132 = vmatmul.f32.gmra.mxu0 %v362
      %v1133 = vpop.f32.mrf.mxu0
      %v1134 = vadd.f32 %v1021, %v1133
      %1135 = vmatmul.f32.gmra.mxu0 %v363
      %v1136 = vpop.f32.mrf.mxu0
      %v1137 = vadd.f32 %v1021, %v1136
      %1138 = vmatmul.f32.gmra.mxu0 %v364
      %v1139 = vpop.f32.mrf.mxu0
      %v1140 = vadd.f32 %v1021, %v1139
      %1141 = vmatmul.f32.gmra.mxu0 %v365
      %v1142 = vpop.f32.mrf.mxu0
      %v1143 = vadd.f32 %v1021, %v1142
      %1144 = vmatmul.f32.gmra.mxu0 %v366
      %v1145 = vpop.f32.mrf.mxu0
      %v1146 = vadd.f32 %v1021, %v1145
      %1147 = vmatmul.f32.gmra.mxu0 %v367
      %v1148 = vpop.f32.mrf.mxu0
      %v1149 = vadd.f32 %v1021, %v1148
      %1150 = vmatmul.f32.gmra.mxu0 %v368
      %v1151 = vpop.f32.mrf.mxu0
      %v1152 = vadd.f32 %v1021, %v1151
      %1153 = vmatmul.f32.gmra.mxu0 %v369
      %v1154 = vpop.f32.mrf.mxu0
      %v1155 = vadd.f32 %v1021, %v1154
      %1156 = vmatmul.f32.gmra.mxu0 %v370
      %v1157 = vpop.f32.mrf.mxu0
      %v1158 = vadd.f32 %v1021, %v1157
      %1159 = vmatmul.f32.gmra.mxu0 %v371
      %v1160 = vpop.f32.mrf.mxu0
      %v1161 = vadd.f32 %v1021, %v1160
      %1162 = vmatmul.f32.gmra.mxu0 %v372
      %v1163 = vpop.f32.mrf.mxu0
      %v1164 = vadd.f32 %v1021, %v1163
      %1165 = vmatmul.f32.gmra.mxu0 %v373
      %v1166 = vpop.f32.mrf.mxu0
      %v1167 = vadd.f32 %v1021, %v1166
      %1168 = vmatmul.f32.gmra.mxu0 %v374
      %v1169 = vpop.f32.mrf.mxu0
      %v1170 = vadd.f32 %v1021, %v1169
      %1171 = vmatmul.f32.gmra.mxu0 %v375
      %v1172 = vpop.f32.mrf.mxu0
      %v1173 = vadd.f32 %v1021, %v1172
      %1174 = vmatmul.f32.gmra.mxu0 %v376
      %v1175 = vpop.f32.mrf.mxu0
      %v1176 = vadd.f32 %v1021, %v1175
      %1177 = vmatmul.f32.gmra.mxu0 %v377
      %v1178 = vpop.f32.mrf.mxu0
      %v1179 = vadd.f32 %v1021, %v1178
      %1180 = vmatmul.f32.gmra.mxu0 %v378
      %v1181 = vpop.f32.mrf.mxu0
      %v1182 = vadd.f32 %v1021, %v1181
      %1183 = vmatmul.f32.gmra.mxu0 %v379
      %v1184 = vpop.f32.mrf.mxu0
      %v1185 = vadd.f32 %v1021, %v1184
      %1186 = vmatmul.f32.gmra.mxu0 %v380
      %v1187 = vpop.f32.mrf.mxu0
      %v1188 = vadd.f32 %v1021, %v1187
      %1189 = vmatmul.f32.gmra.mxu0 %v381
      %v1190 = vpop.f32.mrf.mxu0
      %v1191 = vadd.f32 %v1021, %v1190
      %1192 = vmatmul.f32.gmra.mxu0 %v382
      %v1193 = vpop.f32.mrf.mxu0
      %v1194 = vadd.f32 %v1021, %v1193
      %1195 = vmatmul.f32.gmra.mxu0 %v383
      %v1196 = vpop.f32.mrf.mxu0
      %v1197 = vadd.f32 %v1021, %v1196
      %1198 = vmatmul.f32.gmra.mxu0 %v384
      %v1199 = vpop.f32.mrf.mxu0
      %v1200 = vadd.f32 %v1021, %v1199
      %1201 = vmatmul.f32.gmra.mxu0 %v385
      %v1202 = vpop.f32.mrf.mxu0
      %v1203 = vadd.f32 %v1021, %v1202
      %1204 = vmatmul.f32.gmra.mxu0 %v386
      %v1205 = vpop.f32.mrf.mxu0
      %v1206 = vadd.f32 %v1021, %v1205
      %1207 = vmatmul.f32.gmra.mxu0 %v387
      %v1208 = vpop.f32.mrf.mxu0
      %v1209 = vadd.f32 %v1021, %v1208
      %1210 = vmatmul.f32.gmra.mxu0 %v388
      %v1211 = vpop.f32.mrf.mxu0
      %v1212 = vadd.f32 %v1021, %v1211
      %1213 = vmatmul.f32.gmra.mxu0 %v389
      %v1214 = vpop.f32.mrf.mxu0
      %v1215 = vadd.f32 %v1021, %v1214
      %1216 = vmatmul.f32.gmra.mxu0 %v390
      %v1217 = vpop.f32.mrf.mxu0
      %v1218 = vadd.f32 %v1021, %v1217
      %1219 = vmatmul.f32.gmra.mxu0 %v391
      %v1220 = vpop.f32.mrf.mxu0
      %v1221 = vadd.f32 %v1021, %v1220
      %1222 = vmatmul.f32.gmra.mxu0 %v392
      %v1223 = vpop.f32.mrf.mxu0
      %v1224 = vadd.f32 %v1021, %v1223
      %1225 = vmatmul.f32.gmra.mxu0 %v393
      %v1226 = vpop.f32.mrf.mxu0
      %v1227 = vadd.f32 %v1021, %v1226
      %1228 = vmatmul.f32.gmra.mxu0 %v394
      %v1229 = vpop.f32.mrf.mxu0
      %v1230 = vadd.f32 %v1021, %v1229
      %1231 = vmatmul.f32.gmra.mxu0 %v395
      %v1232 = vpop.f32.mrf.mxu0
      %v1233 = vadd.f32 %v1021, %v1232
      %1234 = vmatmul.f32.gmra.mxu0 %v396
      %v1235 = vpop.f32.mrf.mxu0
      %v1236 = vadd.f32 %v1021, %v1235
      %1237 = vmatmul.f32.gmra.mxu0 %v397
      %v1238 = vpop.f32.mrf.mxu0
      %v1239 = vadd.f32 %v1021, %v1238
      %1240 = vmatmul.f32.gmra.mxu0 %v398
      %v1241 = vpop.f32.mrf.mxu0
      %v1242 = vadd.f32 %v1021, %v1241
      %1243 = vmatmul.f32.gmra.mxu0 %v399
      %v1244 = vpop.f32.mrf.mxu0
      %v1245 = vadd.f32 %v1021, %v1244
      %1246 = vmatmul.f32.gmra.mxu0 %v400
      %v1247 = vpop.f32.mrf.mxu0
      %v1248 = vadd.f32 %v1021, %v1247
      %1249 = vmatmul.f32.gmra.mxu0 %v401
      %v1250 = vpop.f32.mrf.mxu0
      %v1251 = vadd.f32 %v1021, %v1250
      %1252 = vmatmul.f32.gmra.mxu0 %v402
      %v1253 = vpop.f32.mrf.mxu0
      %v1254 = vadd.f32 %v1021, %v1253
      %1255 = vmatmul.f32.gmra.mxu0 %v403
      %v1256 = vpop.f32.mrf.mxu0
      %v1257 = vadd.f32 %v1021, %v1256
      %1258 = vmatmul.f32.gmra.mxu0 %v404
      %v1259 = vpop.f32.mrf.mxu0
      %v1260 = vadd.f32 %v1021, %v1259
      %1261 = vmatmul.f32.gmra.mxu0 %v405
      %v1262 = vpop.f32.mrf.mxu0
      %v1263 = vadd.f32 %v1021, %v1262
      %1264 = vmatmul.f32.gmra.mxu0 %v406
      %v1265 = vpop.f32.mrf.mxu0
      %v1266 = vadd.f32 %v1021, %v1265
      %1267 = vmatmul.f32.gmra.mxu0 %v407
      %v1268 = vpop.f32.mrf.mxu0
      %v1269 = vadd.f32 %v1021, %v1268
      %1270 = vmatmul.f32.gmra.mxu0 %v408
      %v1271 = vpop.f32.mrf.mxu0
      %v1272 = vadd.f32 %v1021, %v1271
      %1273 = vmatmul.f32.gmra.mxu0 %v409
      %v1274 = vpop.f32.mrf.mxu0
      %v1275 = vadd.f32 %v1021, %v1274
      %1276 = vmatmul.f32.gmra.mxu0 %v410
      %v1277 = vpop.f32.mrf.mxu0
      %v1278 = vadd.f32 %v1021, %v1277
      %1279 = vmatmul.f32.gmra.mxu0 %v411
      %v1280 = vpop.f32.mrf.mxu0
      %v1281 = vadd.f32 %v1021, %v1280
      %1282 = vmatmul.f32.gmra.mxu0 %v412
      %v1283 = vpop.f32.mrf.mxu0
      %v1284 = vadd.f32 %v1021, %v1283
      %1285 = vmatmul.f32.gmra.mxu0 %v413
      %v1286 = vpop.f32.mrf.mxu0
      %v1287 = vadd.f32 %v1021, %v1286
      %1288 = vmatmul.f32.gmra.mxu0 %v414
      %v1289 = vpop.f32.mrf.mxu0
      %v1290 = vadd.f32 %v1021, %v1289
      %1291 = vmatmul.f32.gmra.mxu0 %v415
      %v1292 = vpop.f32.mrf.mxu0
      %v1293 = vadd.f32 %v1021, %v1292
      %1294 = vmatmul.f32.gmra.mxu0 %v416
      %v1295 = vpop.f32.mrf.mxu0
      %v1296 = vadd.f32 %v1021, %v1295
      %1297 = vmatmul.f32.gmra.mxu0 %v417
      %v1298 = vpop.f32.mrf.mxu0
      %v1299 = vadd.f32 %v1021, %v1298
      %1300 = vmatmul.f32.gmra.mxu0 %v418
      %v1301 = vpop.f32.mrf.mxu0
      %v1302 = vadd.f32 %v1021, %v1301
      %1303 = vmatmul.f32.gmra.mxu0 %v419
      %v1304 = vpop.f32.mrf.mxu0
      %v1305 = vadd.f32 %v1021, %v1304
      %1306 = vmatmul.f32.gmra.mxu0 %v420
      %v1307 = vpop.f32.mrf.mxu0
      %v1308 = vadd.f32 %v1021, %v1307
      %1309 = vmatmul.f32.gmra.mxu0 %v421
      %v1310 = vpop.f32.mrf.mxu0
      %v1311 = vadd.f32 %v1021, %v1310
      %1312 = vmatmul.f32.gmra.mxu0 %v422
      %v1313 = vpop.f32.mrf.mxu0
      %v1314 = vadd.f32 %v1021, %v1313
      %1315 = vmatmul.f32.gmra.mxu0 %v423
      %v1316 = vpop.f32.mrf.mxu0
      %v1317 = vadd.f32 %v1021, %v1316
      %1318 = vmatmul.f32.gmra.mxu0 %v424
      %v1319 = vpop.f32.mrf.mxu0
      %v1320 = vadd.f32 %v1021, %v1319
      %1321 = vmatmul.f32.gmra.mxu0 %v425
      %v1322 = vpop.f32.mrf.mxu0
      %v1323 = vadd.f32 %v1021, %v1322
      %1324 = vmatmul.f32.gmra.mxu0 %v426
      %v1325 = vpop.f32.mrf.mxu0
      %v1326 = vadd.f32 %v1021, %v1325
      %1327 = vmatmul.f32.gmra.mxu0 %v427
      %v1328 = vpop.f32.mrf.mxu0
      %v1329 = vadd.f32 %v1021, %v1328
      %1330 = vmatmul.f32.gmra.mxu0 %v428
      %v1331 = vpop.f32.mrf.mxu0
      %v1332 = vadd.f32 %v1021, %v1331
      %1333 = vmatmul.f32.gmra.mxu0 %v429
      %v1334 = vpop.f32.mrf.mxu0
      %v1335 = vadd.f32 %v1021, %v1334
      %1336 = vmatmul.f32.gmra.mxu0 %v430
      %v1337 = vpop.f32.mrf.mxu0
      %v1338 = vadd.f32 %v1021, %v1337
      %1339 = vmatmul.f32.gmra.mxu0 %v431
      %v1340 = vpop.f32.mrf.mxu0
      %v1341 = vadd.f32 %v1021, %v1340
      %1342 = vmatmul.f32.gmra.mxu0 %v432
      %v1343 = vpop.f32.mrf.mxu0
      %v1344 = vadd.f32 %v1021, %v1343
      %1345 = vmatmul.f32.gmra.mxu0 %v433
      %v1346 = vpop.f32.mrf.mxu0
      %v1347 = vadd.f32 %v1021, %v1346
      %1348 = vmatmul.f32.gmra.mxu0 %v434
      %v1349 = vpop.f32.mrf.mxu0
      %v1350 = vadd.f32 %v1021, %v1349
      %1351 = vmatmul.f32.gmra.mxu0 %v435
      %v1352 = vpop.f32.mrf.mxu0
      %v1353 = vadd.f32 %v1021, %v1352
      %1354 = vmatmul.f32.gmra.mxu0 %v436
      %v1355 = vpop.f32.mrf.mxu0
      %v1356 = vadd.f32 %v1021, %v1355
      %1357 = vmatmul.f32.gmra.mxu0 %v437
      %v1358 = vpop.f32.mrf.mxu0
      %v1359 = vadd.f32 %v1021, %v1358
      %1360 = vmatmul.f32.gmra.mxu0 %v438
      %v1361 = vpop.f32.mrf.mxu0
      %v1362 = vadd.f32 %v1021, %v1361
      %1363 = vmatmul.f32.gmra.mxu0 %v439
      %v1364 = vpop.f32.mrf.mxu0
      %v1365 = vadd.f32 %v1021, %v1364
      %1366 = vmatmul.f32.gmra.mxu0 %v440
      %v1367 = vpop.f32.mrf.mxu0
      %v1368 = vadd.f32 %v1021, %v1367
      %1369 = vmatmul.f32.gmra.mxu0 %v441
      %v1370 = vpop.f32.mrf.mxu0
      %v1371 = vadd.f32 %v1021, %v1370
      %1372 = vmatmul.f32.gmra.mxu0 %v442
      %v1373 = vpop.f32.mrf.mxu0
      %v1374 = vadd.f32 %v1021, %v1373
      %1375 = vmatmul.f32.gmra.mxu0 %v443
      %v1376 = vpop.f32.mrf.mxu0
      %v1377 = vadd.f32 %v1021, %v1376
      %1378 = vmatmul.f32.gmra.mxu0 %v444
      %v1379 = vpop.f32.mrf.mxu0
      %v1380 = vadd.f32 %v1021, %v1379
      %1381 = vmatmul.f32.gmra.mxu0 %v445
      %v1382 = vpop.f32.mrf.mxu0
      %v1383 = vadd.f32 %v1021, %v1382
      %1384 = vmatmul.f32.gmra.mxu0 %v446
      %v1385 = vpop.f32.mrf.mxu0
      %v1386 = vadd.f32 %v1021, %v1385
      %1387 = vmatmul.f32.gmra.mxu0 %v447
      %v1388 = vpop.f32.mrf.mxu0
      %v1389 = vadd.f32 %v1021, %v1388
      %1390 = vmatmul.f32.gmra.mxu0 %v448
      %v1391 = vpop.f32.mrf.mxu0
      %v1392 = vadd.f32 %v1021, %v1391
      %1393 = vmatmul.f32.gmra.mxu0 %v449
      %v1394 = vpop.f32.mrf.mxu0
      %v1395 = vadd.f32 %v1021, %v1394
      %1396 = vmatmul.f32.gmra.mxu0 %v450
      %v1397 = vpop.f32.mrf.mxu0
      %v1398 = vadd.f32 %v1021, %v1397
      %1399 = vmatmul.f32.gmra.mxu0 %v451
      %v1400 = vpop.f32.mrf.mxu0
      %v1401 = vadd.f32 %v1021, %v1400
      %1402 = vmatmul.f32.gmra.mxu0 %v452
      %v1403 = vpop.f32.mrf.mxu0
      %v1404 = vadd.f32 %v1021, %v1403
      %1405 = vmatmul.f32.gmra.mxu0 %v453
      %v1406 = vpop.f32.mrf.mxu0
      %v1407 = vadd.f32 %v1021, %v1406
      %1408 = vmatmul.f32.gmra.mxu0 %v454
      %v1409 = vpop.f32.mrf.mxu0
      %v1410 = vadd.f32 %v1021, %v1409
      %1411 = vmatmul.f32.gmra.mxu0 %v455
      %v1412 = vpop.f32.mrf.mxu0
      %v1413 = vadd.f32 %v1021, %v1412
      %1414 = vmatmul.f32.gmra.mxu0 %v456
      %v1415 = vpop.f32.mrf.mxu0
      %v1416 = vadd.f32 %v1021, %v1415
      %1417 = vmatmul.f32.gmra.mxu0 %v457
      %v1418 = vpop.f32.mrf.mxu0
      %v1419 = vadd.f32 %v1021, %v1418
      %1420 = vmatmul.f32.gmra.mxu0 %v458
      %v1421 = vpop.f32.mrf.mxu0
      %v1422 = vadd.f32 %v1021, %v1421
      %1423 = vmatmul.f32.gmra.mxu0 %v459
      %v1424 = vpop.f32.mrf.mxu0
      %v1425 = vadd.f32 %v1021, %v1424
      %1426 = vmatmul.f32.gmra.mxu0 %v460
      %v1427 = vpop.f32.mrf.mxu0
      %v1428 = vadd.f32 %v1021, %v1427
      %1429 = vmatmul.f32.gmra.mxu0 %v461
      %v1430 = vpop.f32.mrf.mxu0
      %v1431 = vadd.f32 %v1021, %v1430
      %1432 = vmatmul.f32.gmra.mxu0 %v462
      %v1433 = vpop.f32.mrf.mxu0
      %v1434 = vadd.f32 %v1021, %v1433
      %1435 = vmatmul.f32.gmra.mxu0 %v463
      %v1436 = vpop.f32.mrf.mxu0
      %v1437 = vadd.f32 %v1021, %v1436
      %1438 = vmatmul.f32.gmra.mxu0 %v464
      %v1439 = vpop.f32.mrf.mxu0
      %v1440 = vadd.f32 %v1021, %v1439
      %1441 = vmatmul.f32.gmra.mxu0 %v465
      %v1442 = vpop.f32.mrf.mxu0
      %v1443 = vadd.f32 %v1021, %v1442
      %1444 = vmatmul.f32.gmra.mxu0 %v466
      %v1445 = vpop.f32.mrf.mxu0
      %v1446 = vadd.f32 %v1021, %v1445
      %1447 = vmatmul.f32.gmra.mxu0 %v467
      %v1448 = vpop.f32.mrf.mxu0
      %v1449 = vadd.f32 %v1021, %v1448
      %1450 = vmatmul.f32.gmra.mxu0 %v468
      %v1451 = vpop.f32.mrf.mxu0
      %v1452 = vadd.f32 %v1021, %v1451
      %1453 = vmatmul.f32.gmra.mxu0 %v469
      %v1454 = vpop.f32.mrf.mxu0
      %v1455 = vadd.f32 %v1021, %v1454
      %1456 = vmatmul.f32.gmra.mxu0 %v470
      %v1457 = vpop.f32.mrf.mxu0
      %v1458 = vadd.f32 %v1021, %v1457
      %1459 = vmatmul.f32.gmra.mxu0 %v471
      %v1460 = vpop.f32.mrf.mxu0
      %v1461 = vadd.f32 %v1021, %v1460
      %1462 = vmatmul.f32.gmra.mxu0 %v472
      %v1463 = vpop.f32.mrf.mxu0
      %v1464 = vadd.f32 %v1021, %v1463
      %1465 = vmatmul.f32.gmra.mxu0 %v473
      %v1466 = vpop.f32.mrf.mxu0
      %v1467 = vadd.f32 %v1021, %v1466
      %1468 = vmatmul.f32.gmra.mxu0 %v474
      %v1469 = vpop.f32.mrf.mxu0
      %v1470 = vadd.f32 %v1021, %v1469
      %1471 = vmatmul.f32.gmra.mxu0 %v475
      %v1472 = vpop.f32.mrf.mxu0
      %v1473 = vadd.f32 %v1021, %v1472
      %1474 = vmatmul.f32.gmra.mxu0 %v476
      %v1475 = vpop.f32.mrf.mxu0
      %v1476 = vadd.f32 %v1021, %v1475
      %1477 = vmatmul.f32.gmra.mxu0 %v477
      %v1478 = vpop.f32.mrf.mxu0
      %v1479 = vadd.f32 %v1021, %v1478
      %1480 = vmatmul.f32.gmra.mxu0 %v478
      %v1481 = vpop.f32.mrf.mxu0
      %v1482 = vadd.f32 %v1021, %v1481
      %1483 = vmatmul.f32.gmra.mxu0 %v479
      %v1484 = vpop.f32.mrf.mxu0
      %v1485 = vadd.f32 %v1021, %v1484
      %1486 = vmatmul.f32.gmra.mxu0 %v480
      %v1487 = vpop.f32.mrf.mxu0
      %v1488 = vadd.f32 %v1021, %v1487
      %1489 = vmatmul.f32.gmra.mxu0 %v481
      %v1490 = vpop.f32.mrf.mxu0
      %v1491 = vadd.f32 %v1021, %v1490
      %1492 = vmatmul.f32.gmra.mxu0 %v482
      %v1493 = vpop.f32.mrf.mxu0
      %v1494 = vadd.f32 %v1021, %v1493
      %1495 = vmatmul.f32.gmra.mxu0 %v483
      %v1496 = vpop.f32.mrf.mxu0
      %v1497 = vadd.f32 %v1021, %v1496
      %1498 = vmatmul.f32.gmra.mxu0 %v484
      %v1499 = vpop.f32.mrf.mxu0
      %v1500 = vadd.f32 %v1021, %v1499
      %1501 = vmatmul.f32.gmra.mxu0 %v485
      %v1502 = vpop.f32.mrf.mxu0
      %v1503 = vadd.f32 %v1021, %v1502
      %1504 = vmatmul.f32.gmra.mxu0 %v486
      %v1505 = vpop.f32.mrf.mxu0
      %v1506 = vadd.f32 %v1021, %v1505
      %1507 = vmatmul.f32.gmra.mxu0 %v487
      %v1508 = vpop.f32.mrf.mxu0
      %v1509 = vadd.f32 %v1021, %v1508
      %1510 = vmatmul.f32.gmra.mxu0 %v488
      %v1511 = vpop.f32.mrf.mxu0
      %v1512 = vadd.f32 %v1021, %v1511
      %1513 = vmatmul.f32.gmra.mxu0 %v489
      %v1514 = vpop.f32.mrf.mxu0
      %v1515 = vadd.f32 %v1021, %v1514
      %1516 = vmatmul.f32.gmra.mxu0 %v490
      %v1517 = vpop.f32.mrf.mxu0
      %v1518 = vadd.f32 %v1021, %v1517
      %1519 = vmatmul.f32.gmra.mxu0 %v491
      %v1520 = vpop.f32.mrf.mxu0
      %v1521 = vadd.f32 %v1021, %v1520
      %1522 = vmatmul.f32.gmra.mxu0 %v492
      %v1523 = vpop.f32.mrf.mxu0
      %v1524 = vadd.f32 %v1021, %v1523
      %1525 = vmatmul.f32.gmra.mxu0 %v493
      %v1526 = vpop.f32.mrf.mxu0
      %v1527 = vadd.f32 %v1021, %v1526
      %1528 = vmatmul.f32.gmra.mxu0 %v494
      %v1529 = vpop.f32.mrf.mxu0
      %v1530 = vadd.f32 %v1021, %v1529
      %1531 = vmatmul.f32.gmra.mxu0 %v495
      %v1532 = vpop.f32.mrf.mxu0
      %v1533 = vadd.f32 %v1021, %v1532
      %1534 = vmatmul.f32.gmra.mxu0 %v496
      %v1535 = vpop.f32.mrf.mxu0
      %v1536 = vadd.f32 %v1021, %v1535
      %1537 = vmatmul.f32.gmra.mxu0 %v497
      %v1538 = vpop.f32.mrf.mxu0
      %v1539 = vadd.f32 %v1021, %v1538
      %1540 = vmatmul.f32.gmra.mxu0 %v498
      %v1541 = vpop.f32.mrf.mxu0
      %v1542 = vadd.f32 %v1021, %v1541
      %1543 = vmatmul.f32.gmra.mxu0 %v499
      %v1544 = vpop.f32.mrf.mxu0
      %v1545 = vadd.f32 %v1021, %v1544
      %1546 = vmatmul.f32.gmra.mxu0 %v500
      %v1547 = vpop.f32.mrf.mxu0
      %v1548 = vadd.f32 %v1021, %v1547
      %1549 = vmatmul.f32.gmra.mxu0 %v501
      %v1550 = vpop.f32.mrf.mxu0
      %v1551 = vadd.f32 %v1021, %v1550
      %1552 = vmatmul.f32.gmra.mxu0 %v502
      %v1553 = vpop.f32.mrf.mxu0
      %v1554 = vadd.f32 %v1021, %v1553
      %1555 = vmatmul.f32.gmra.mxu0 %v503
      %v1556 = vpop.f32.mrf.mxu0
      %v1557 = vadd.f32 %v1021, %v1556
      %1558 = vmatmul.f32.gmra.mxu0 %v504
      %v1559 = vpop.f32.mrf.mxu0
      %v1560 = vadd.f32 %v1021, %v1559
      %1561 = vmatmul.f32.gmra.mxu0 %v505
      %v1562 = vpop.f32.mrf.mxu0
      %v1563 = vadd.f32 %v1021, %v1562
      %1564 = vmatmul.f32.gmra.mxu0 %v506
      %v1565 = vpop.f32.mrf.mxu0
      %v1566 = vadd.f32 %v1021, %v1565
      %1567 = vmatmul.f32.gmra.mxu0 %v507
      %v1568 = vpop.f32.mrf.mxu0
      %v1569 = vadd.f32 %v1021, %v1568
      %1570 = vmatmul.f32.gmra.mxu0 %v508
      %v1571 = vpop.f32.mrf.mxu0
      %v1572 = vadd.f32 %v1021, %v1571
      %1573 = vmatmul.f32.gmra.mxu0 %v509
      %v1574 = vpop.f32.mrf.mxu0
      %v1575 = vadd.f32 %v1021, %v1574
      %1576 = vmatmul.f32.gmra.mxu0 %v510
      %v1577 = vpop.f32.mrf.mxu0
      %v1578 = vadd.f32 %v1021, %v1577
      %1579 = vmatmul.f32.gmra.mxu0 %v511
      %v1580 = vpop.f32.mrf.mxu0
      %v1581 = vadd.f32 %v1021, %v1580
      %1582 = vmatmul.f32.gmra.mxu0 %v512
      %v1583 = vpop.f32.mrf.mxu0
      %v1584 = vadd.f32 %v1021, %v1583
      %1585 = vmatmul.f32.gmra.mxu0 %v513
      %v1586 = vpop.f32.mrf.mxu0
      %v1587 = vadd.f32 %v1021, %v1586
      %1588 = vmatmul.f32.gmra.mxu0 %v514
      %v1589 = vpop.f32.mrf.mxu0
      %v1590 = vadd.f32 %v1021, %v1589
      %1591 = vmatmul.f32.gmra.mxu0 %v515
      %v1592 = vpop.f32.mrf.mxu0
      %v1593 = vadd.f32 %v1021, %v1592
      %1594 = vmatmul.f32.gmra.mxu0 %v516
      %v1595 = vpop.f32.mrf.mxu0
      %v1596 = vadd.f32 %v1021, %v1595
      %1597 = vmatmul.f32.gmra.mxu0 %v517
      %v1598 = vpop.f32.mrf.mxu0
      %v1599 = vadd.f32 %v1021, %v1598
      %1600 = vmatmul.f32.gmra.mxu0 %v518
      %v1601 = vpop.f32.mrf.mxu0
      %v1602 = vadd.f32 %v1021, %v1601
      %1603 = vmatmul.f32.gmra.mxu0 %v519
      %v1604 = vpop.f32.mrf.mxu0
      %v1605 = vadd.f32 %v1021, %v1604
      %1606 = vmatmul.f32.gmra.mxu0 %v520
      %v1607 = vpop.f32.mrf.mxu0
      %v1608 = vadd.f32 %v1021, %v1607
      %1609 = vmatmul.f32.gmra.mxu0 %v521
      %v1610 = vpop.f32.mrf.mxu0
      %v1611 = vadd.f32 %v1021, %v1610
      %1612 = vmatmul.f32.gmra.mxu0 %v522
      %v1613 = vpop.f32.mrf.mxu0
      %v1614 = vadd.f32 %v1021, %v1613
      %1615 = vmatmul.f32.gmra.mxu0 %v523
      %v1616 = vpop.f32.mrf.mxu0
      %v1617 = vadd.f32 %v1021, %v1616
      %1618 = vmatmul.f32.gmra.mxu0 %v524
      %v1619 = vpop.f32.mrf.mxu0
      %v1620 = vadd.f32 %v1021, %v1619
      %1621 = vmatmul.f32.gmra.mxu0 %v525
      %v1622 = vpop.f32.mrf.mxu0
      %v1623 = vadd.f32 %v1021, %v1622
      %1624 = vmatmul.f32.gmra.mxu0 %v526
      %v1625 = vpop.f32.mrf.mxu0
      %v1626 = vadd.f32 %v1021, %v1625
      %1627 = vmatmul.f32.gmra.mxu0 %v527
      %v1628 = vpop.f32.mrf.mxu0
      %v1629 = vadd.f32 %v1021, %v1628
      %1630 = vmatmul.f32.gmra.mxu0 %v528
      %v1631 = vpop.f32.mrf.mxu0
      %v1632 = vadd.f32 %v1021, %v1631
      %1633 = vmatmul.f32.gmra.mxu0 %v529
      %v1634 = vpop.f32.mrf.mxu0
      %v1635 = vadd.f32 %v1021, %v1634
      %1636 = vmatmul.f32.gmra.mxu0 %v530
      %v1637 = vpop.f32.mrf.mxu0
      %v1638 = vadd.f32 %v1021, %v1637
      %1639 = vmatmul.f32.gmra.mxu0 %v531
      %v1640 = vpop.f32.mrf.mxu0
      %v1641 = vadd.f32 %v1021, %v1640
      %1642 = vmatmul.f32.gmra.mxu0 %v532
      %v1643 = vpop.f32.mrf.mxu0
      %v1644 = vadd.f32 %v1021, %v1643
      %1645 = vmatmul.f32.gmra.mxu0 %v533
      %v1646 = vpop.f32.mrf.mxu0
      %v1647 = vadd.f32 %v1021, %v1646
      %1648 = vmatmul.f32.gmra.mxu0 %v534
      %v1649 = vpop.f32.mrf.mxu0
      %v1650 = vadd.f32 %v1021, %v1649
      %1651 = vmatmul.f32.gmra.mxu0 %v535
      %v1652 = vpop.f32.mrf.mxu0
      %v1653 = vadd.f32 %v1021, %v1652
      %1654 = vmatmul.f32.gmra.mxu0 %v536
      %v1655 = vpop.f32.mrf.mxu0
      %v1656 = vadd.f32 %v1021, %v1655
      %1657 = vmatmul.f32.gmra.mxu0 %v537
      %v1658 = vpop.f32.mrf.mxu0
      %v1659 = vadd.f32 %v1021, %v1658
      %1660 = vmatmul.f32.gmra.mxu0 %v538
      %v1661 = vpop.f32.mrf.mxu0
      %v1662 = vadd.f32 %v1021, %v1661
      %1663 = vmatmul.f32.gmra.mxu0 %v539
      %v1664 = vpop.f32.mrf.mxu0
      %v1665 = vadd.f32 %v1021, %v1664
      %1666 = vmatmul.f32.gmra.mxu0 %v540
      %v1667 = vpop.f32.mrf.mxu0
      %v1668 = vadd.f32 %v1021, %v1667
      %1669 = vmatmul.f32.gmra.mxu0 %v541
      %v1670 = vpop.f32.mrf.mxu0
      %v1671 = vadd.f32 %v1021, %v1670
      %1672 = vmatmul.f32.gmra.mxu0 %v542
      %v1673 = vpop.f32.mrf.mxu0
      %v1674 = vadd.f32 %v1021, %v1673
      %1675 = vmatmul.f32.gmra.mxu0 %v543
      %v1676 = vpop.f32.mrf.mxu0
      %v1677 = vadd.f32 %v1021, %v1676
      %1678 = vmatmul.f32.gmra.mxu0 %v544
      %v1679 = vpop.f32.mrf.mxu0
      %v1680 = vadd.f32 %v1021, %v1679
      %1681 = vmatmul.f32.gmra.mxu0 %v545
      %v1682 = vpop.f32.mrf.mxu0
      %v1683 = vadd.f32 %v1021, %v1682
      %1684 = vmatmul.f32.gmra.mxu0 %v546
      %v1685 = vpop.f32.mrf.mxu0
      %v1686 = vadd.f32 %v1021, %v1685
      %1687 = vmatmul.f32.gmra.mxu0 %v547
      %v1688 = vpop.f32.mrf.mxu0
      %v1689 = vadd.f32 %v1021, %v1688
      %1690 = vmatmul.f32.gmra.mxu0 %v548
      %v1691 = vpop.f32.mrf.mxu0
      %v1692 = vadd.f32 %v1021, %v1691
      %1693 = vmatmul.f32.gmra.mxu0 %v549
      %v1694 = vpop.f32.mrf.mxu0
      %v1695 = vadd.f32 %v1021, %v1694
      %1696 = vmatmul.f32.gmra.mxu0 %v550
      %v1697 = vpop.f32.mrf.mxu0
      %v1698 = vadd.f32 %v1021, %v1697
      %1699 = vmatmul.f32.gmra.mxu0 %v551
      %v1700 = vpop.f32.mrf.mxu0
      %v1701 = vadd.f32 %v1021, %v1700
      %1702 = vmatmul.f32.gmra.mxu0 %v552
      %v1703 = vpop.f32.mrf.mxu0
      %v1704 = vadd.f32 %v1021, %v1703
      %1705 = vmatmul.f32.gmra.mxu0 %v553
      %v1706 = vpop.f32.mrf.mxu0
      %v1707 = vadd.f32 %v1021, %v1706
      %1708 = vmatmul.f32.gmra.mxu0 %v554
      %v1709 = vpop.f32.mrf.mxu0
      %v1710 = vadd.f32 %v1021, %v1709
      %1711 = vmatmul.f32.gmra.mxu0 %v555
      %v1712 = vpop.f32.mrf.mxu0
      %v1713 = vadd.f32 %v1021, %v1712
      %1714 = vmatmul.f32.gmra.mxu0 %v556
      %v1715 = vpop.f32.mrf.mxu0
      %v1716 = vadd.f32 %v1021, %v1715
      %1717 = vmatmul.f32.gmra.mxu0 %v557
      %v1718 = vpop.f32.mrf.mxu0
      %v1719 = vadd.f32 %v1021, %v1718
      %1720 = vmatmul.f32.gmra.mxu0 %v558
      %v1721 = vpop.f32.mrf.mxu0
      %v1722 = vadd.f32 %v1021, %v1721
      %1723 = vmatmul.f32.gmra.mxu0 %v559
      %v1724 = vpop.f32.mrf.mxu0
      %v1725 = vadd.f32 %v1021, %v1724
      %1726 = vmatmul.f32.gmra.mxu0 %v560
      %v1727 = vpop.f32.mrf.mxu0
      %v1728 = vadd.f32 %v1021, %v1727
      %1729 = vmatmul.f32.gmra.mxu0 %v561
      %v1730 = vpop.f32.mrf.mxu0
      %v1731 = vadd.f32 %v1021, %v1730
      %1732 = vmatmul.f32.gmra.mxu0 %v562
      %v1733 = vpop.f32.mrf.mxu0
      %v1734 = vadd.f32 %v1021, %v1733
      %1735 = vmatmul.f32.gmra.mxu0 %v563
      %v1736 = vpop.f32.mrf.mxu0
      %v1737 = vadd.f32 %v1021, %v1736
      %1738 = vmatmul.f32.gmra.mxu0 %v564
      %v1739 = vpop.f32.mrf.mxu0
      %v1740 = vadd.f32 %v1021, %v1739
      %1741 = vmatmul.f32.gmra.mxu0 %v565
      %v1742 = vpop.f32.mrf.mxu0
      %v1743 = vadd.f32 %v1021, %v1742
      %1744 = vmatmul.f32.gmra.mxu0 %v566
      %v1745 = vpop.f32.mrf.mxu0
      %v1746 = vadd.f32 %v1021, %v1745
      %1747 = vmatmul.f32.gmra.mxu0 %v567
      %v1748 = vpop.f32.mrf.mxu0
      %v1749 = vadd.f32 %v1021, %v1748
      %1750 = vmatmul.f32.gmra.mxu0 %v568
      %v1751 = vpop.f32.mrf.mxu0
      %v1752 = vadd.f32 %v1021, %v1751
      %1753 = vmatmul.f32.gmra.mxu0 %v569
      %v1754 = vpop.f32.mrf.mxu0
      %v1755 = vadd.f32 %v1021, %v1754
      %1756 = vmatmul.f32.gmra.mxu0 %v570
      %v1757 = vpop.f32.mrf.mxu0
      %v1758 = vadd.f32 %v1021, %v1757
      %1759 = vmatmul.f32.gmra.mxu0 %v571
      %v1760 = vpop.f32.mrf.mxu0
      %v1761 = vadd.f32 %v1021, %v1760
      %1762 = vmatmul.f32.gmra.mxu0 %v572
      %v1763 = vpop.f32.mrf.mxu0
      %v1764 = vadd.f32 %v1021, %v1763
      %1765 = vmatmul.f32.gmra.mxu0 %v573
      %v1766 = vpop.f32.mrf.mxu0
      %v1767 = vadd.f32 %v1021, %v1766
      %1768 = vmatmul.f32.gmra.mxu0 %v574
      %v1769 = vpop.f32.mrf.mxu0
      %v1770 = vadd.f32 %v1021, %v1769
      %1771 = vmatmul.f32.gmra.mxu0 %v575
      %v1772 = vpop.f32.mrf.mxu0
      %v1773 = vadd.f32 %v1021, %v1772
      %1774 = vmatmul.f32.gmra.mxu0 %v576
      %v1775 = vpop.f32.mrf.mxu0
      %v1776 = vadd.f32 %v1021, %v1775
      %1777 = vmatmul.f32.gmra.mxu0 %v577
      %v1778 = vpop.f32.mrf.mxu0
      %v1779 = vadd.f32 %v1021, %v1778
      %1780 = vmatmul.f32.gmra.mxu0 %v578
      %v1781 = vpop.f32.mrf.mxu0
      %v1782 = vadd.f32 %v1021, %v1781
      %1783 = vmatmul.f32.gmra.mxu0 %v579
      %v1784 = vpop.f32.mrf.mxu0
      %v1785 = vadd.f32 %v1021, %v1784
      %1786 = vmatmul.f32.gmra.mxu0 %v580
      %v1787 = vpop.f32.mrf.mxu0
      %v1788 = vadd.f32 %v1021, %v1787
      %1789 = vmatmul.f32.gmra.mxu0 %v581
      %v1790 = vpop.f32.mrf.mxu0
      %v1791 = vadd.f32 %v1021, %v1790
      %1792 = vmatmul.f32.gmra.mxu0 %v582
      %v1793 = vpop.f32.mrf.mxu0
      %v1794 = vadd.f32 %v1021, %v1793
      %1795 = vmatmul.f32.gmra.mxu0 %v583
      %v1796 = vpop.f32.mrf.mxu0
      %v1797 = vadd.f32 %v1021, %v1796
      %1798 = vmatmul.f32.gmra.mxu0 %v584
      %v1799 = vpop.f32.mrf.mxu0
      %v1800 = vadd.f32 %v1021, %v1799
      %1801 = vmatmul.f32.gmra.mxu0 %v585
      %v1802 = vpop.f32.mrf.mxu0
      %v1803 = vadd.f32 %v1021, %v1802
      %1804 = vmatmul.f32.gmra.mxu0 %v586
      %v1805 = vpop.f32.mrf.mxu0
      %v1806 = vadd.f32 %v1021, %v1805
      %1807 = vmatmul.f32.gmra.mxu0 %v587
      %v1808 = vpop.f32.mrf.mxu0
      %v1809 = vadd.f32 %v1021, %v1808
      %1810 = vmatmul.f32.gmra.mxu0 %v588
      %v1811 = vpop.f32.mrf.mxu0
      %v1812 = vadd.f32 %v1021, %v1811
      %1813 = vmatmul.f32.gmra.mxu0 %v589
      %v1814 = vpop.f32.mrf.mxu0
      %v1815 = vadd.f32 %v1021, %v1814
      %1816 = vmatmul.f32.gmra.mxu0 %v590
      %v1817 = vpop.f32.mrf.mxu0
      %v1818 = vadd.f32 %v1021, %v1817
      %1819 = vmatmul.f32.gmra.mxu0 %v591
      %v1820 = vpop.f32.mrf.mxu0
      %v1821 = vadd.f32 %v1021, %v1820
      %1822 = vmatmul.f32.gmra.mxu0 %v592
      %v1823 = vpop.f32.mrf.mxu0
      %v1824 = vadd.f32 %v1021, %v1823
      %1825 = vmatmul.f32.gmra.mxu0 %v593
      %v1826 = vpop.f32.mrf.mxu0
      %v1827 = vadd.f32 %v1021, %v1826
      %1828 = vmatmul.f32.gmra.mxu0 %v594
      %v1829 = vpop.f32.mrf.mxu0
      %v1830 = vadd.f32 %v1021, %v1829
      %1831 = vmatmul.f32.gmra.mxu0 %v595
      %v1832 = vpop.f32.mrf.mxu0
      %v1833 = vadd.f32 %v1021, %v1832
      %1834 = vmatmul.f32.gmra.mxu0 %v596
      %v1835 = vpop.f32.mrf.mxu0
      %v1836 = vadd.f32 %v1021, %v1835
      %1837 = vmatmul.f32.gmra.mxu0 %v597
      %v1838 = vpop.f32.mrf.mxu0
      %v1839 = vadd.f32 %v1021, %v1838
      %1840 = vmatmul.f32.gmra.mxu0 %v598
      %v1841 = vpop.f32.mrf.mxu0
      %v1842 = vadd.f32 %v1021, %v1841
      %1843 = vmatmul.f32.gmra.mxu0 %v599
      %v1844 = vpop.f32.mrf.mxu0
      %v1845 = vadd.f32 %v1021, %v1844
      %1846 = vmatmul.f32.gmra.mxu0 %v600
      %v1847 = vpop.f32.mrf.mxu0
      %v1848 = vadd.f32 %v1021, %v1847
      %1849 = vmatmul.f32.gmra.mxu0 %v601
      %v1850 = vpop.f32.mrf.mxu0
      %v1851 = vadd.f32 %v1021, %v1850
      %1852 = vmatmul.f32.gmra.mxu0 %v602
      %v1853 = vpop.f32.mrf.mxu0
      %v1854 = vadd.f32 %v1021, %v1853
      %1855 = vmatmul.f32.gmra.mxu0 %v603
      %v1856 = vpop.f32.mrf.mxu0
      %v1857 = vadd.f32 %v1021, %v1856
      %1858 = vmatmul.f32.gmra.mxu0 %v604
      %v1859 = vpop.f32.mrf.mxu0
      %v1860 = vadd.f32 %v1021, %v1859
      %1861 = vmatmul.f32.gmra.mxu0 %v605
      %v1862 = vpop.f32.mrf.mxu0
      %v1863 = vadd.f32 %v1021, %v1862
      %1864 = vmatmul.f32.gmra.mxu0 %v606
      %v1865 = vpop.f32.mrf.mxu0
      %v1866 = vadd.f32 %v1021, %v1865
      %1867 = vmatmul.f32.gmra.mxu0 %v607
      %v1868 = vpop.f32.mrf.mxu0
      %v1869 = vadd.f32 %v1021, %v1868
      %1870 = vmatmul.f32.gmra.mxu0 %v608
      %v1871 = vpop.f32.mrf.mxu0
      %v1872 = vadd.f32 %v1021, %v1871
      %1873 = vmatmul.f32.gmra.mxu0 %v609
      %v1874 = vpop.f32.mrf.mxu0
      %v1875 = vadd.f32 %v1021, %v1874
      %1876 = vmatmul.f32.gmra.mxu0 %v610
      %v1877 = vpop.f32.mrf.mxu0
      %v1878 = vadd.f32 %v1021, %v1877
      %1879 = vmatmul.f32.gmra.mxu0 %v611
      %v1880 = vpop.f32.mrf.mxu0
      %v1881 = vadd.f32 %v1021, %v1880
      %1882 = vmatmul.f32.gmra.mxu0 %v612
      %v1883 = vpop.f32.mrf.mxu0
      %v1884 = vadd.f32 %v1021, %v1883
      %1885 = vmatmul.f32.gmra.mxu0 %v613
      %v1886 = vpop.f32.mrf.mxu0
      %v1887 = vadd.f32 %v1021, %v1886
      %1888 = vmatmul.f32.gmra.mxu0 %v614
      %v1889 = vpop.f32.mrf.mxu0
      %v1890 = vadd.f32 %v1021, %v1889
      %1891 = vmatmul.f32.gmra.mxu0 %v615
      %v1892 = vpop.f32.mrf.mxu0
      %v1893 = vadd.f32 %v1021, %v1892
      %1894 = vmatmul.f32.gmra.mxu0 %v616
      %v1895 = vpop.f32.mrf.mxu0
      %v1896 = vadd.f32 %v1021, %v1895
      %1897 = vmatmul.f32.gmra.mxu0 %v617
      %v1898 = vpop.f32.mrf.mxu0
      %v1899 = vadd.f32 %v1021, %v1898
      %1900 = vmatmul.f32.gmra.mxu0 %v618
      %v1901 = vpop.f32.mrf.mxu0
      %v1902 = vadd.f32 %v1021, %v1901
      %1903 = vmatmul.f32.gmra.mxu0 %v619
      %v1904 = vpop.f32.mrf.mxu0
      %v1905 = vadd.f32 %v1021, %v1904
      %1906 = vmatmul.f32.gmra.mxu0 %v620
      %v1907 = vpop.f32.mrf.mxu0
      %v1908 = vadd.f32 %v1021, %v1907
      %1909 = vmatmul.f32.gmra.mxu0 %v621
      %v1910 = vpop.f32.mrf.mxu0
      %v1911 = vadd.f32 %v1021, %v1910
      %1912 = vmatmul.f32.gmra.mxu0 %v622
      %v1913 = vpop.f32.mrf.mxu0
      %v1914 = vadd.f32 %v1021, %v1913
      %1915 = vmatmul.f32.gmra.mxu0 %v623
      %v1916 = vpop.f32.mrf.mxu0
      %v1917 = vadd.f32 %v1021, %v1916
      %1918 = vmatmul.f32.gmra.mxu0 %v624
      %v1919 = vpop.f32.mrf.mxu0
      %v1920 = vadd.f32 %v1021, %v1919
      %1921 = vmatmul.f32.gmra.mxu0 %v625
      %v1922 = vpop.f32.mrf.mxu0
      %v1923 = vadd.f32 %v1021, %v1922
      %1924 = vmatmul.f32.gmra.mxu0 %v626
      %v1925 = vpop.f32.mrf.mxu0
      %v1926 = vadd.f32 %v1021, %v1925
      %1927 = vmatmul.f32.gmra.mxu0 %v627
      %v1928 = vpop.f32.mrf.mxu0
      %v1929 = vadd.f32 %v1021, %v1928
      %1930 = vmatmul.f32.gmra.mxu0 %v628
      %v1931 = vpop.f32.mrf.mxu0
      %v1932 = vadd.f32 %v1021, %v1931
      %1933 = vmatmul.f32.gmra.mxu0 %v629
      %v1934 = vpop.f32.mrf.mxu0
      %v1935 = vadd.f32 %v1021, %v1934
      %1936 = vmatmul.f32.gmra.mxu0 %v630
      %v1937 = vpop.f32.mrf.mxu0
      %v1938 = vadd.f32 %v1021, %v1937
      %1939 = vmatmul.f32.gmra.mxu0 %v631
      %v1940 = vpop.f32.mrf.mxu0
      %v1941 = vadd.f32 %v1021, %v1940
      %1942 = vmatmul.f32.gmra.mxu0 %v632
      %v1943 = vpop.f32.mrf.mxu0
      %v1944 = vadd.f32 %v1021, %v1943
      %1945 = vmatmul.f32.gmra.mxu0 %v633
      %v1946 = vpop.f32.mrf.mxu0
      %v1947 = vadd.f32 %v1021, %v1946
      %1948 = vmatmul.f32.gmra.mxu0 %v634
      %v1949 = vpop.f32.mrf.mxu0
      %v1950 = vadd.f32 %v1021, %v1949
      %1951 = vmatmul.f32.gmra.mxu0 %v635
      %v1952 = vpop.f32.mrf.mxu0
      %v1953 = vadd.f32 %v1021, %v1952
      %1954 = vmatmul.f32.gmra.mxu0 %v636
      %v1955 = vpop.f32.mrf.mxu0
      %v1956 = vadd.f32 %v1021, %v1955
      %1957 = vmatmul.f32.gmra.mxu0 %v637
      %v1958 = vpop.f32.mrf.mxu0
      %v1959 = vadd.f32 %v1021, %v1958
      %1960 = vmatmul.f32.gmra.mxu0 %v638
      %v1961 = vpop.f32.mrf.mxu0
      %v1962 = vadd.f32 %v1021, %v1961
      %1963 = vmatmul.f32.gmra.mxu0 %v639
      %v1964 = vpop.f32.mrf.mxu0
      %v1965 = vadd.f32 %v1021, %v1964
      %1966 = vmatmul.f32.gmra.mxu0 %v640
      %v1967 = vpop.f32.mrf.mxu0
      %v1968 = vadd.f32 %v1021, %v1967
      %1969 = vmatmul.f32.gmra.mxu0 %v641
      %v1970 = vpop.f32.mrf.mxu0
      %v1971 = vadd.f32 %v1021, %v1970
      %1972 = vmatmul.f32.gmra.mxu0 %v642
      %v1973 = vpop.f32.mrf.mxu0
      %v1974 = vadd.f32 %v1021, %v1973
      %1975 = vmatmul.f32.gmra.mxu0 %v643
      %v1976 = vpop.f32.mrf.mxu0
      %v1977 = vadd.f32 %v1021, %v1976
      %1978 = vmatmul.f32.gmra.mxu0 %v644
      %v1979 = vpop.f32.mrf.mxu0
      %v1980 = vadd.f32 %v1021, %v1979
      %1981 = vmatmul.f32.gmra.mxu0 %v645
      %v1982 = vpop.f32.mrf.mxu0
      %v1983 = vadd.f32 %v1021, %v1982
      %1984 = vmatmul.f32.gmra.mxu0 %v646
      %v1985 = vpop.f32.mrf.mxu0
      %v1986 = vadd.f32 %v1021, %v1985
      %1987 = vmatmul.f32.gmra.mxu0 %v647
      %v1988 = vpop.f32.mrf.mxu0
      %v1989 = vadd.f32 %v1021, %v1988
      %1990 = vmatmul.f32.gmra.mxu0 %v648
      %v1991 = vpop.f32.mrf.mxu0
      %v1992 = vadd.f32 %v1021, %v1991
      %1993 = vmatmul.f32.gmra.mxu0 %v649
      %v1994 = vpop.f32.mrf.mxu0
      %v1995 = vadd.f32 %v1021, %v1994
      %1996 = vmatmul.f32.gmra.mxu0 %v650
      %v1997 = vpop.f32.mrf.mxu0
      %v1998 = vadd.f32 %v1021, %v1997
      %1999 = vmatmul.f32.gmra.mxu0 %v651
      %v2000 = vpop.f32.mrf.mxu0
      %v2001 = vadd.f32 %v1021, %v2000
      %2002 = vmatmul.f32.gmra.mxu0 %v652
      %v2003 = vpop.f32.mrf.mxu0
      %v2004 = vadd.f32 %v1021, %v2003
      %2005 = vmatmul.f32.gmra.mxu0 %v653
      %v2006 = vpop.f32.mrf.mxu0
      %v2007 = vadd.f32 %v1021, %v2006
      %2008 = vmatmul.f32.gmra.mxu0 %v654
      %v2009 = vpop.f32.mrf.mxu0
      %v2010 = vadd.f32 %v1021, %v2009
      %2011 = vmatmul.f32.gmra.mxu0 %v655
      %v2012 = vpop.f32.mrf.mxu0
      %v2013 = vadd.f32 %v1021, %v2012
      %2014 = vmatmul.f32.gmra.mxu0 %v656
      %v2015 = vpop.f32.mrf.mxu0
      %v2016 = vadd.f32 %v1021, %v2015
      %2017 = vmatmul.f32.gmra.mxu0 %v657
      %v2018 = vpop.f32.mrf.mxu0
      %v2019 = vadd.f32 %v1021, %v2018
      %2020 = vmatmul.f32.gmra.mxu0 %v658
      %v2021 = vpop.f32.mrf.mxu0
      %v2022 = vadd.f32 %v1021, %v2021
      %2023 = vmatmul.f32.gmra.mxu0 %v659
      %v2024 = vpop.f32.mrf.mxu0
      %v2025 = vadd.f32 %v1021, %v2024
      %2026 = vmatmul.f32.gmra.mxu0 %v660
      %v2027 = vpop.f32.mrf.mxu0
      %v2028 = vadd.f32 %v1021, %v2027
      %2029 = vmatmul.f32.gmra.mxu0 %v661
      %v2030 = vpop.f32.mrf.mxu0
      %v2031 = vadd.f32 %v1021, %v2030
      %2032 = vmatmul.f32.gmra.mxu0 %v662
      %v2033 = vpop.f32.mrf.mxu0
      %v2034 = vadd.f32 %v1021, %v2033
      %2035 = vmatmul.f32.gmra.mxu0 %v663
      %v2036 = vpop.f32.mrf.mxu0
      %v2037 = vadd.f32 %v1021, %v2036
      %2038 = vmatmul.f32.gmra.mxu0 %v664
      %v2039 = vpop.f32.mrf.mxu0
      %v2040 = vadd.f32 %v1021, %v2039
      %2041 = vmatmul.f32.gmra.mxu0 %v665
      %v2042 = vpop.f32.mrf.mxu0
      %v2043 = vadd.f32 %v1021, %v2042
      %2044 = vmatmul.f32.gmra.mxu0 %v666
      %v2045 = vpop.f32.mrf.mxu0
      %v2046 = vadd.f32 %v1021, %v2045
      %2047 = vmatmul.f32.gmra.mxu0 %v667
      %v2048 = vpop.f32.mrf.mxu0
      %v2049 = vadd.f32 %v1021, %v2048
      %2050 = vmatmul.f32.gmra.mxu0 %v668
      %v2051 = vpop.f32.mrf.mxu0
      %v2052 = vadd.f32 %v1021, %v2051
      %2053 = vmatmul.f32.gmra.mxu0 %v669
      %v2054 = vpop.f32.mrf.mxu0
      %v2055 = vadd.f32 %v1021, %v2054
      %2056 = vmatmul.f32.gmra.mxu0 %v670
      %v2057 = vpop.f32.mrf.mxu0
      %v2058 = vadd.f32 %v1021, %v2057
      %2059 = vmatmul.f32.gmra.mxu0 %v671
      %v2060 = vpop.f32.mrf.mxu0
      %v2061 = vadd.f32 %v1021, %v2060
      %2062 = vmatmul.f32.gmra.mxu0 %v672
      %v2063 = vpop.f32.mrf.mxu0
      %v2064 = vadd.f32 %v1021, %v2063
      %2065 = vmatmul.f32.gmra.mxu0 %v673
      %v2066 = vpop.f32.mrf.mxu0
      %v2067 = vadd.f32 %v1021, %v2066
      %2068 = vmatmul.f32.gmra.mxu0 %v674
      %v2069 = vpop.f32.mrf.mxu0
      %v2070 = vadd.f32 %v1021, %v2069
      %2071 = vmatmul.f32.gmra.mxu0 %v675
      %v2072 = vpop.f32.mrf.mxu0
      %v2073 = vadd.f32 %v1021, %v2072
      %2074 = vmatmul.f32.gmra.mxu0 %v676
      %v2075 = vpop.f32.mrf.mxu0
      %v2076 = vadd.f32 %v1021, %v2075
      %2077 = vmatmul.f32.gmra.mxu0 %v677
      %v2078 = vpop.f32.mrf.mxu0
      %v2079 = vadd.f32 %v1021, %v2078
      %2080 = vmatmul.f32.gmra.mxu0 %v678
      %v2081 = vpop.f32.mrf.mxu0
      %v2082 = vadd.f32 %v1021, %v2081
      %2083 = vmatmul.f32.gmra.mxu0 %v679
      %v2084 = vpop.f32.mrf.mxu0
      %v2085 = vadd.f32 %v1021, %v2084
      %2086 = vmatmul.f32.gmra.mxu0 %v680
      %v2087 = vpop.f32.mrf.mxu0
      %v2088 = vadd.f32 %v1021, %v2087
      %2089 = vmatmul.f32.gmra.mxu0 %v681
      %v2090 = vpop.f32.mrf.mxu0
      %v2091 = vadd.f32 %v1021, %v2090
      %2092 = vmatmul.f32.gmra.mxu0 %v682
      %v2093 = vpop.f32.mrf.mxu0
      %v2094 = vadd.f32 %v1021, %v2093
      %2095 = vmatmul.f32.gmra.mxu0 %v683
      %v2096 = vpop.f32.mrf.mxu0
      %v2097 = vadd.f32 %v1021, %v2096
      %2098 = vmatmul.f32.gmra.mxu0 %v684
      %v2099 = vpop.f32.mrf.mxu0
      %v2100 = vadd.f32 %v1021, %v2099
      %2101 = vmatmul.f32.gmra.mxu0 %v685
      %v2102 = vpop.f32.mrf.mxu0
      %v2103 = vadd.f32 %v1021, %v2102
      %2104 = vmatmul.f32.gmra.mxu0 %v686
      %v2105 = vpop.f32.mrf.mxu0
      %v2106 = vadd.f32 %v1021, %v2105
      %2107 = vmatmul.f32.gmra.mxu0 %v687
      %v2108 = vpop.f32.mrf.mxu0
      %v2109 = vadd.f32 %v1021, %v2108
      %2110 = vmatmul.f32.gmra.mxu0 %v688
      %v2111 = vpop.f32.mrf.mxu0
      %v2112 = vadd.f32 %v1021, %v2111
      %2113 = vmatmul.f32.gmra.mxu0 %v689
      %v2114 = vpop.f32.mrf.mxu0
      %v2115 = vadd.f32 %v1021, %v2114
      %2116 = vmatmul.f32.gmra.mxu0 %v690
      %v2117 = vpop.f32.mrf.mxu0
      %v2118 = vadd.f32 %v1021, %v2117
      %2119 = vmatmul.f32.gmra.mxu0 %v691
      %v2120 = vpop.f32.mrf.mxu0
      %v2121 = vadd.f32 %v1021, %v2120
      %2122 = vmatmul.f32.gmra.mxu0 %v692
      %v2123 = vpop.f32.mrf.mxu0
      %v2124 = vadd.f32 %v1021, %v2123
      %2125 = vmatmul.f32.gmra.mxu0 %v693
      %v2126 = vpop.f32.mrf.mxu0
      %v2127 = vadd.f32 %v1021, %v2126
      %2128 = vmatmul.f32.gmra.mxu0 %v694
      %v2129 = vpop.f32.mrf.mxu0
      %v2130 = vadd.f32 %v1021, %v2129
      %2131 = vmatmul.f32.gmra.mxu0 %v695
      %v2132 = vpop.f32.mrf.mxu0
      %v2133 = vadd.f32 %v1021, %v2132
      %2134 = vmatmul.f32.gmra.mxu0 %v696
      %v2135 = vpop.f32.mrf.mxu0
      %v2136 = vadd.f32 %v1021, %v2135
      %2137 = vmatmul.f32.gmra.mxu0 %v697
      %v2138 = vpop.f32.mrf.mxu0
      %v2139 = vadd.f32 %v1021, %v2138
      %2140 = vmatmul.f32.gmra.mxu0 %v698
      %v2141 = vpop.f32.mrf.mxu0
      %v2142 = vadd.f32 %v1021, %v2141
      %2143 = vmatmul.f32.gmra.mxu0 %v699
      %v2144 = vpop.f32.mrf.mxu0
      %v2145 = vadd.f32 %v1021, %v2144
      %2146 = vmatmul.f32.gmra.mxu0 %v700
      %v2147 = vpop.f32.mrf.mxu0
      %v2148 = vadd.f32 %v1021, %v2147
      %2149 = vmatmul.f32.gmra.mxu0 %v701
      %v2150 = vpop.f32.mrf.mxu0
      %v2151 = vadd.f32 %v1021, %v2150
      %2152 = vmatmul.f32.gmra.mxu0 %v702
      %v2153 = vpop.f32.mrf.mxu0
      %v2154 = vadd.f32 %v1021, %v2153
      %2155 = vmatmul.f32.gmra.mxu0 %v703
      %v2156 = vpop.f32.mrf.mxu0
      %v2157 = vadd.f32 %v1021, %v2156
      %2158 = vmatmul.f32.gmra.mxu0 %v704
      %v2159 = vpop.f32.mrf.mxu0
      %v2160 = vadd.f32 %v1021, %v2159
      %2161 = vmatmul.f32.gmra.mxu0 %v705
      %v2162 = vpop.f32.mrf.mxu0
      %v2163 = vadd.f32 %v1021, %v2162
      %2164 = vmatmul.f32.gmra.mxu0 %v706
      %v2165 = vpop.f32.mrf.mxu0
      %v2166 = vadd.f32 %v1021, %v2165
      %2167 = vmatmul.f32.gmra.mxu0 %v707
      %v2168 = vpop.f32.mrf.mxu0
      %v2169 = vadd.f32 %v1021, %v2168
      %2170 = vmatmul.f32.gmra.mxu0 %v708
      %v2171 = vpop.f32.mrf.mxu0
      %v2172 = vadd.f32 %v1021, %v2171
      %2173 = vmatmul.f32.gmra.mxu0 %v709
      %v2174 = vpop.f32.mrf.mxu0
      %v2175 = vadd.f32 %v1021, %v2174
      %2176 = vmatmul.f32.gmra.mxu0 %v710
      %v2177 = vpop.f32.mrf.mxu0
      %v2178 = vadd.f32 %v1021, %v2177
      %2179 = vmatmul.f32.gmra.mxu0 %v711
      %v2180 = vpop.f32.mrf.mxu0
      %v2181 = vadd.f32 %v1021, %v2180
      %2182 = vmatmul.f32.gmra.mxu0 %v712
      %v2183 = vpop.f32.mrf.mxu0
      %v2184 = vadd.f32 %v1021, %v2183
      %2185 = vmatmul.f32.gmra.mxu0 %v713
      %v2186 = vpop.f32.mrf.mxu0
      %v2187 = vadd.f32 %v1021, %v2186
      %2188 = vmatmul.f32.gmra.mxu0 %v714
      %v2189 = vpop.f32.mrf.mxu0
      %v2190 = vadd.f32 %v1021, %v2189
      %2191 = vmatmul.f32.gmra.mxu0 %v715
      %v2192 = vpop.f32.mrf.mxu0
      %v2193 = vadd.f32 %v1021, %v2192
      %2194 = vmatmul.f32.gmra.mxu0 %v716
      %v2195 = vpop.f32.mrf.mxu0
      %v2196 = vadd.f32 %v1021, %v2195
      %2197 = vmatmul.f32.gmra.mxu0 %v717
      %v2198 = vpop.f32.mrf.mxu0
      %v2199 = vadd.f32 %v1021, %v2198
      %2200 = vmatmul.f32.gmra.mxu0 %v718
      %v2201 = vpop.f32.mrf.mxu0
      %v2202 = vadd.f32 %v1021, %v2201
      %2203 = vmatmul.f32.gmra.mxu0 %v719
      %v2204 = vpop.f32.mrf.mxu0
      %v2205 = vadd.f32 %v1021, %v2204
      %2206 = vmatmul.f32.gmra.mxu0 %v720
      %v2207 = vpop.f32.mrf.mxu0
      %v2208 = vadd.f32 %v1021, %v2207
      %2209 = vmatmul.f32.gmra.mxu0 %v721
      %v2210 = vpop.f32.mrf.mxu0
      %v2211 = vadd.f32 %v1021, %v2210
      %2212 = vmatmul.f32.gmra.mxu0 %v722
      %v2213 = vpop.f32.mrf.mxu0
      %v2214 = vadd.f32 %v1021, %v2213
      %2215 = vmatmul.f32.gmra.mxu0 %v723
      %v2216 = vpop.f32.mrf.mxu0
      %v2217 = vadd.f32 %v1021, %v2216
      %2218 = vmatmul.f32.gmra.mxu0 %v724
      %v2219 = vpop.f32.mrf.mxu0
      %v2220 = vadd.f32 %v1021, %v2219
      %2221 = vmatmul.f32.gmra.mxu0 %v725
      %v2222 = vpop.f32.mrf.mxu0
      %v2223 = vadd.f32 %v1021, %v2222
      %2224 = vmatmul.f32.gmra.mxu0 %v726
      %v2225 = vpop.f32.mrf.mxu0
      %v2226 = vadd.f32 %v1021, %v2225
      %2227 = vmatmul.f32.gmra.mxu0 %v727
      %v2228 = vpop.f32.mrf.mxu0
      %v2229 = vadd.f32 %v1021, %v2228
      %2230 = vmatmul.f32.gmra.mxu0 %v728
      %v2231 = vpop.f32.mrf.mxu0
      %v2232 = vadd.f32 %v1021, %v2231
      %2233 = vmatmul.f32.gmra.mxu0 %v729
      %v2234 = vpop.f32.mrf.mxu0
      %v2235 = vadd.f32 %v1021, %v2234
      %2236 = vmatmul.f32.gmra.mxu0 %v730
      %v2237 = vpop.f32.mrf.mxu0
      %v2238 = vadd.f32 %v1021, %v2237
      %2239 = vmatmul.f32.gmra.mxu0 %v731
      %v2240 = vpop.f32.mrf.mxu0
      %v2241 = vadd.f32 %v1021, %v2240
      %2242 = vmatmul.f32.gmra.mxu0 %v732
      %v2243 = vpop.f32.mrf.mxu0
      %v2244 = vadd.f32 %v1021, %v2243
      %2245 = vmatmul.f32.gmra.mxu0 %v733
      %v2246 = vpop.f32.mrf.mxu0
      %v2247 = vadd.f32 %v1021, %v2246
      %2248 = vmatmul.f32.gmra.mxu0 %v734
      %v2249 = vpop.f32.mrf.mxu0
      %v2250 = vadd.f32 %v1021, %v2249
      %2251 = vmatmul.f32.gmra.mxu0 %v735
      %v2252 = vpop.f32.mrf.mxu0
      %v2253 = vadd.f32 %v1021, %v2252
      %2254 = vmatmul.f32.gmra.mxu0 %v736
      %v2255 = vpop.f32.mrf.mxu0
      %v2256 = vadd.f32 %v1021, %v2255
      %2257 = vmatmul.f32.gmra.mxu0 %v737
      %v2258 = vpop.f32.mrf.mxu0
      %v2259 = vadd.f32 %v1021, %v2258
      %2260 = vmatmul.f32.gmra.mxu0 %v738
      %v2261 = vpop.f32.mrf.mxu0
      %v2262 = vadd.f32 %v1021, %v2261
      %2263 = vmatmul.f32.gmra.mxu0 %v739
      %v2264 = vpop.f32.mrf.mxu0
      %v2265 = vadd.f32 %v1021, %v2264
      %2266 = vmatmul.f32.gmra.mxu0 %v740
      %v2267 = vpop.f32.mrf.mxu0
      %v2268 = vadd.f32 %v1021, %v2267
      %2269 = vmatmul.f32.gmra.mxu0 %v741
      %v2270 = vpop.f32.mrf.mxu0
      %v2271 = vadd.f32 %v1021, %v2270
      %2272 = vmatmul.f32.gmra.mxu0 %v742
      %v2273 = vpop.f32.mrf.mxu0
      %v2274 = vadd.f32 %v1021, %v2273
      %2275 = vmatmul.f32.gmra.mxu0 %v743
      %v2276 = vpop.f32.mrf.mxu0
      %v2277 = vadd.f32 %v1021, %v2276
      %2278 = vmatmul.f32.gmra.mxu0 %v744
      %v2279 = vpop.f32.mrf.mxu0
      %v2280 = vadd.f32 %v1021, %v2279
      %2281 = vmatmul.f32.gmra.mxu0 %v745
      %v2282 = vpop.f32.mrf.mxu0
      %v2283 = vadd.f32 %v1021, %v2282
      %2284 = vmatmul.f32.gmra.mxu0 %v746
      %v2285 = vpop.f32.mrf.mxu0
      %v2286 = vadd.f32 %v1021, %v2285
      %2287 = vmatmul.f32.gmra.mxu0 %v747
      %v2288 = vpop.f32.mrf.mxu0
      %v2289 = vadd.f32 %v1021, %v2288
      %2290 = vmatmul.f32.gmra.mxu0 %v748
      %v2291 = vpop.f32.mrf.mxu0
      %v2292 = vadd.f32 %v1021, %v2291
      %2293 = vmatmul.f32.gmra.mxu0 %v749
      %v2294 = vpop.f32.mrf.mxu0
      %v2295 = vadd.f32 %v1021, %v2294
      %2296 = vmatmul.f32.gmra.mxu0 %v750
      %v2297 = vpop.f32.mrf.mxu0
      %v2298 = vadd.f32 %v1021, %v2297
      %2299 = vmatmul.f32.gmra.mxu0 %v751
      %v2300 = vpop.f32.mrf.mxu0
      %v2301 = vadd.f32 %v1021, %v2300
      %2302 = vmatmul.f32.gmra.mxu0 %v752
      %v2303 = vpop.f32.mrf.mxu0
      %v2304 = vadd.f32 %v1021, %v2303
      %2305 = vmatmul.f32.gmra.mxu0 %v753
      %v2306 = vpop.f32.mrf.mxu0
      %v2307 = vadd.f32 %v1021, %v2306
      %2308 = vmatmul.f32.gmra.mxu0 %v754
      %v2309 = vpop.f32.mrf.mxu0
      %v2310 = vadd.f32 %v1021, %v2309
      %2311 = vmatmul.f32.gmra.mxu0 %v755
      %v2312 = vpop.f32.mrf.mxu0
      %v2313 = vadd.f32 %v1021, %v2312
      %2314 = vmatmul.f32.gmra.mxu0 %v756
      %v2315 = vpop.f32.mrf.mxu0
      %v2316 = vadd.f32 %v1021, %v2315
      %2317 = vmatmul.f32.gmra.mxu0 %v757
      %v2318 = vpop.f32.mrf.mxu0
      %v2319 = vadd.f32 %v1021, %v2318
      %2320 = vmatmul.f32.gmra.mxu0 %v758
      %v2321 = vpop.f32.mrf.mxu0
      %v2322 = vadd.f32 %v1021, %v2321
      %2323 = vmatmul.f32.gmra.mxu0 %v759
      %v2324 = vpop.f32.mrf.mxu0
      %v2325 = vadd.f32 %v1021, %v2324
      %2326 = vmatmul.f32.gmra.mxu0 %v760
      %v2327 = vpop.f32.mrf.mxu0
      %v2328 = vadd.f32 %v1021, %v2327
      %2329 = vmatmul.f32.gmra.mxu0 %v761
      %v2330 = vpop.f32.mrf.mxu0
      %v2331 = vadd.f32 %v1021, %v2330
      %2332 = vmatmul.f32.gmra.mxu0 %v762
      %v2333 = vpop.f32.mrf.mxu0
      %v2334 = vadd.f32 %v1021, %v2333
      %2335 = vmatmul.f32.gmra.mxu0 %v763
      %v2336 = vpop.f32.mrf.mxu0
      %v2337 = vadd.f32 %v1021, %v2336
      %2338 = vmatmul.f32.gmra.mxu0 %v764
      %v2339 = vpop.f32.mrf.mxu0
      %v2340 = vadd.f32 %v1021, %v2339
      %2341 = vmatmul.f32.gmra.mxu0 %v765
      %v2342 = vpop.f32.mrf.mxu0
      %v2343 = vadd.f32 %v1021, %v2342
      %2344 = vmatmul.f32.gmra.mxu0 %v766
      %v2345 = vpop.f32.mrf.mxu0
      %v2346 = vadd.f32 %v1021, %v2345
      %2347 = vmatmul.f32.gmra.mxu0 %v767
      %v2348 = vpop.f32.mrf.mxu0
      %v2349 = vadd.f32 %v1021, %v2348
      %2350 = vmatmul.f32.gmra.mxu0 %v768
      %v2351 = vpop.f32.mrf.mxu0
      %v2352 = vadd.f32 %v1021, %v2351
      %2353 = vmatmul.f32.gmra.mxu0 %v769
      %v2354 = vpop.f32.mrf.mxu0
      %v2355 = vadd.f32 %v1021, %v2354
      %2356 = vmatmul.f32.gmra.mxu0 %v770
      %v2357 = vpop.f32.mrf.mxu0
      %v2358 = vadd.f32 %v1021, %v2357
      %2359 = vmatmul.f32.gmra.mxu0 %v771
      %v2360 = vpop.f32.mrf.mxu0
      %v2361 = vadd.f32 %v1021, %v2360
      %2362 = vmatmul.f32.gmra.mxu0 %v772
      %v2363 = vpop.f32.mrf.mxu0
      %v2364 = vadd.f32 %v1021, %v2363
      %2365 = vmatmul.f32.gmra.mxu0 %v773
      %v2366 = vpop.f32.mrf.mxu0
      %v2367 = vadd.f32 %v1021, %v2366
      %2368 = vmatmul.f32.gmra.mxu0 %v774
      %v2369 = vpop.f32.mrf.mxu0
      %v2370 = vadd.f32 %v1021, %v2369
      %2371 = vmatmul.f32.gmra.mxu0 %v775
      %v2372 = vpop.f32.mrf.mxu0
      %v2373 = vadd.f32 %v1021, %v2372
      %2374 = vmatmul.f32.gmra.mxu0 %v776
      %v2375 = vpop.f32.mrf.mxu0
      %v2376 = vadd.f32 %v1021, %v2375
      %2377 = vmatmul.f32.gmra.mxu0 %v777
      %v2378 = vpop.f32.mrf.mxu0
      %v2379 = vadd.f32 %v1021, %v2378
      %2380 = vmatmul.f32.gmra.mxu0 %v778
      %v2381 = vpop.f32.mrf.mxu0
      %v2382 = vadd.f32 %v1021, %v2381
      %2383 = vmatmul.f32.gmra.mxu0 %v779
      %v2384 = vpop.f32.mrf.mxu0
      %v2385 = vadd.f32 %v1021, %v2384
      %2386 = vmatmul.f32.gmra.mxu0 %v780
      %v2387 = vpop.f32.mrf.mxu0
      %v2388 = vadd.f32 %v1021, %v2387
      %2389 = vmatmul.f32.gmra.mxu0 %v781
      %v2390 = vpop.f32.mrf.mxu0
      %v2391 = vadd.f32 %v1021, %v2390
      %2392 = vmatmul.f32.gmra.mxu0 %v782
      %v2393 = vpop.f32.mrf.mxu0
      %v2394 = vadd.f32 %v1021, %v2393
      %2395 = vmatmul.f32.gmra.mxu0 %v783
      %v2396 = vpop.f32.mrf.mxu0
      %v2397 = vadd.f32 %v1021, %v2396
      %2398 = vmatmul.f32.gmra.mxu0 %v784
      %v2399 = vpop.f32.mrf.mxu0
      %v2400 = vadd.f32 %v1021, %v2399
      %2401 = vmatmul.f32.gmra.mxu0 %v785
      %v2402 = vpop.f32.mrf.mxu0
      %v2403 = vadd.f32 %v1021, %v2402
      %2404 = vmatmul.f32.gmra.mxu0 %v786
      %v2405 = vpop.f32.mrf.mxu0
      %v2406 = vadd.f32 %v1021, %v2405
      %2407 = vmatmul.f32.gmra.mxu0 %v787
      %v2408 = vpop.f32.mrf.mxu0
      %v2409 = vadd.f32 %v1021, %v2408
      %2410 = vmatmul.f32.gmra.mxu0 %v788
      %v2411 = vpop.f32.mrf.mxu0
      %v2412 = vadd.f32 %v1021, %v2411
      %2413 = vmatmul.f32.gmra.mxu0 %v789
      %v2414 = vpop.f32.mrf.mxu0
      %v2415 = vadd.f32 %v1021, %v2414
      %2416 = vmatmul.f32.gmra.mxu0 %v790
      %v2417 = vpop.f32.mrf.mxu0
      %v2418 = vadd.f32 %v1021, %v2417
      %2419 = vmatmul.f32.gmra.mxu0 %v791
      %v2420 = vpop.f32.mrf.mxu0
      %v2421 = vadd.f32 %v1021, %v2420
      %2422 = vmatmul.f32.gmra.mxu0 %v792
      %v2423 = vpop.f32.mrf.mxu0
      %v2424 = vadd.f32 %v1021, %v2423
      %2425 = vmatmul.f32.gmra.mxu0 %v793
      %v2426 = vpop.f32.mrf.mxu0
      %v2427 = vadd.f32 %v1021, %v2426
      %2428 = vmatmul.f32.gmra.mxu0 %v794
      %v2429 = vpop.f32.mrf.mxu0
      %v2430 = vadd.f32 %v1021, %v2429
      %2431 = vmatmul.f32.gmra.mxu0 %v795
      %v2432 = vpop.f32.mrf.mxu0
      %v2433 = vadd.f32 %v1021, %v2432
      %2434 = vmatmul.f32.gmra.mxu0 %v796
      %v2435 = vpop.f32.mrf.mxu0
      %v2436 = vadd.f32 %v1021, %v2435
      %2437 = vmatmul.f32.gmra.mxu0 %v797
      %v2438 = vpop.f32.mrf.mxu0
      %v2439 = vadd.f32 %v1021, %v2438
      %2440 = vmatmul.f32.gmra.mxu0 %v798
      %v2441 = vpop.f32.mrf.mxu0
      %v2442 = vadd.f32 %v1021, %v2441
      %2443 = vmatmul.f32.gmra.mxu0 %v799
      %v2444 = vpop.f32.mrf.mxu0
      %v2445 = vadd.f32 %v1021, %v2444
      %2446 = vmatmul.f32.gmra.mxu0 %v800
      %v2447 = vpop.f32.mrf.mxu0
      %v2448 = vadd.f32 %v1021, %v2447
      %2449 = vmatmul.f32.gmra.mxu0 %v801
      %v2450 = vpop.f32.mrf.mxu0
      %v2451 = vadd.f32 %v1021, %v2450
      %2452 = vmatmul.f32.gmra.mxu0 %v802
      %v2453 = vpop.f32.mrf.mxu0
      %v2454 = vadd.f32 %v1021, %v2453
      %2455 = vmatmul.f32.gmra.mxu0 %v803
      %v2456 = vpop.f32.mrf.mxu0
      %v2457 = vadd.f32 %v1021, %v2456
      %2458 = vmatmul.f32.gmra.mxu0 %v804
      %v2459 = vpop.f32.mrf.mxu0
      %v2460 = vadd.f32 %v1021, %v2459
      %2461 = vmatmul.f32.gmra.mxu0 %v805
      %v2462 = vpop.f32.mrf.mxu0
      %v2463 = vadd.f32 %v1021, %v2462
      %2464 = vmatmul.f32.gmra.mxu0 %v806
      %v2465 = vpop.f32.mrf.mxu0
      %v2466 = vadd.f32 %v1021, %v2465
      %2467 = vmatmul.f32.gmra.mxu0 %v807
      %v2468 = vpop.f32.mrf.mxu0
      %v2469 = vadd.f32 %v1021, %v2468
      %2470 = vmatmul.f32.gmra.mxu0 %v808
      %v2471 = vpop.f32.mrf.mxu0
      %v2472 = vadd.f32 %v1021, %v2471
      %2473 = vmatmul.f32.gmra.mxu0 %v809
      %v2474 = vpop.f32.mrf.mxu0
      %v2475 = vadd.f32 %v1021, %v2474
      %2476 = vmatmul.f32.gmra.mxu0 %v810
      %v2477 = vpop.f32.mrf.mxu0
      %v2478 = vadd.f32 %v1021, %v2477
      %2479 = vmatmul.f32.gmra.mxu0 %v811
      %v2480 = vpop.f32.mrf.mxu0
      %v2481 = vadd.f32 %v1021, %v2480
      %2482 = vmatmul.f32.gmra.mxu0 %v812
      %v2483 = vpop.f32.mrf.mxu0
      %v2484 = vadd.f32 %v1021, %v2483
      %2485 = vmatmul.f32.gmra.mxu0 %v813
      %v2486 = vpop.f32.mrf.mxu0
      %v2487 = vadd.f32 %v1021, %v2486
      %2488 = vmatmul.f32.gmra.mxu0 %v814
      %v2489 = vpop.f32.mrf.mxu0
      %v2490 = vadd.f32 %v1021, %v2489
      %2491 = vmatmul.f32.gmra.mxu0 %v815
      %v2492 = vpop.f32.mrf.mxu0
      %v2493 = vadd.f32 %v1021, %v2492
      %2494 = vmatmul.f32.gmra.mxu0 %v816
      %v2495 = vpop.f32.mrf.mxu0
      %v2496 = vadd.f32 %v1021, %v2495
      %2497 = vmatmul.f32.gmra.mxu0 %v817
      %v2498 = vpop.f32.mrf.mxu0
      %v2499 = vadd.f32 %v1021, %v2498
      %2500 = vmatmul.f32.gmra.mxu0 %v818
      %v2501 = vpop.f32.mrf.mxu0
      %v2502 = vadd.f32 %v1021, %v2501
      %2503 = vmatmul.f32.gmra.mxu0 %v819
      %v2504 = vpop.f32.mrf.mxu0
      %v2505 = vadd.f32 %v1021, %v2504
      %2506 = vmatmul.f32.gmra.mxu0 %v820
      %v2507 = vpop.f32.mrf.mxu0
      %v2508 = vadd.f32 %v1021, %v2507
      %2509 = vmatmul.f32.gmra.mxu0 %v821
      %v2510 = vpop.f32.mrf.mxu0
      %v2511 = vadd.f32 %v1021, %v2510
      %2512 = vmatmul.f32.gmra.mxu0 %v822
      %v2513 = vpop.f32.mrf.mxu0
      %v2514 = vadd.f32 %v1021, %v2513
      %2515 = vmatmul.f32.gmra.mxu0 %v823
      %v2516 = vpop.f32.mrf.mxu0
      %v2517 = vadd.f32 %v1021, %v2516
      %2518 = vmatmul.f32.gmra.mxu0 %v824
      %v2519 = vpop.f32.mrf.mxu0
      %v2520 = vadd.f32 %v1021, %v2519
      %2521 = vmatmul.f32.gmra.mxu0 %v825
      %v2522 = vpop.f32.mrf.mxu0
      %v2523 = vadd.f32 %v1021, %v2522
      %2524 = vmatmul.f32.gmra.mxu0 %v826
      %v2525 = vpop.f32.mrf.mxu0
      %v2526 = vadd.f32 %v1021, %v2525
      %2527 = vmatmul.f32.gmra.mxu0 %v827
      %v2528 = vpop.f32.mrf.mxu0
      %v2529 = vadd.f32 %v1021, %v2528
      %2530 = vmatmul.f32.gmra.mxu0 %v828
      %v2531 = vpop.f32.mrf.mxu0
      %v2532 = vadd.f32 %v1021, %v2531
      %2533 = vmatmul.f32.gmra.mxu0 %v829
      %v2534 = vpop.f32.mrf.mxu0
      %v2535 = vadd.f32 %v1021, %v2534
      %2536 = vmatmul.f32.gmra.mxu0 %v830
      %v2537 = vpop.f32.mrf.mxu0
      %v2538 = vadd.f32 %v1021, %v2537
      %2539 = vmatmul.f32.gmra.mxu0 %v831
      %v2540 = vpop.f32.mrf.mxu0
      %v2541 = vadd.f32 %v1021, %v2540
      %2542 = vmatmul.f32.gmra.mxu0 %v832
      %v2543 = vpop.f32.mrf.mxu0
      %v2544 = vadd.f32 %v1021, %v2543
      %2545 = vmatmul.f32.gmra.mxu0 %v833
      %v2546 = vpop.f32.mrf.mxu0
      %v2547 = vadd.f32 %v1021, %v2546
      %2548 = vmatmul.f32.gmra.mxu0 %v834
      %v2549 = vpop.f32.mrf.mxu0
      %v2550 = vadd.f32 %v1021, %v2549
      %2551 = vmatmul.f32.gmra.mxu0 %v835
      %v2552 = vpop.f32.mrf.mxu0
      %v2553 = vadd.f32 %v1021, %v2552
      %2554 = vmatmul.f32.gmra.mxu0 %v836
      %v2555 = vpop.f32.mrf.mxu0
      %v2556 = vadd.f32 %v1021, %v2555
      %2557 = vmatmul.f32.gmra.mxu0 %v837
      %v2558 = vpop.f32.mrf.mxu0
      %v2559 = vadd.f32 %v1021, %v2558
      %2560 = vmatmul.f32.gmra.mxu0 %v838
      %v2561 = vpop.f32.mrf.mxu0
      %v2562 = vadd.f32 %v1021, %v2561
      %2563 = vmatmul.f32.gmra.mxu0 %v839
      %v2564 = vpop.f32.mrf.mxu0
      %v2565 = vadd.f32 %v1021, %v2564
      %2566 = vmatmul.f32.gmra.mxu0 %v840
      %v2567 = vpop.f32.mrf.mxu0
      %v2568 = vadd.f32 %v1021, %v2567
      %2569 = vmatmul.f32.gmra.mxu0 %v841
      %v2570 = vpop.f32.mrf.mxu0
      %v2571 = vadd.f32 %v1021, %v2570
      %2572 = vmatmul.f32.gmra.mxu0 %v842
      %v2573 = vpop.f32.mrf.mxu0
      %v2574 = vadd.f32 %v1021, %v2573
      %2575 = vmatmul.f32.gmra.mxu0 %v843
      %v2576 = vpop.f32.mrf.mxu0
      %v2577 = vadd.f32 %v1021, %v2576
      %2578 = vmatmul.f32.gmra.mxu0 %v844
      %v2579 = vpop.f32.mrf.mxu0
      %v2580 = vadd.f32 %v1021, %v2579
      %2581 = vmatmul.f32.gmra.mxu0 %v845
      %v2582 = vpop.f32.mrf.mxu0
      %v2583 = vadd.f32 %v1021, %v2582
      %2584 = vmatmul.f32.gmra.mxu0 %v846
      %v2585 = vpop.f32.mrf.mxu0
      %v2586 = vadd.f32 %v1021, %v2585
      %2587 = vmatmul.f32.gmra.mxu0 %v847
      %v2588 = vpop.f32.mrf.mxu0
      %v2589 = vadd.f32 %v1021, %v2588
      %2590 = vmatmul.f32.gmra.mxu0 %v848
      %v2591 = vpop.f32.mrf.mxu0
      %v2592 = vadd.f32 %v1021, %v2591
      %2593 = vmatmul.f32.gmra.mxu0 %v849
      %v2594 = vpop.f32.mrf.mxu0
      %v2595 = vadd.f32 %v1021, %v2594
      %2596 = vmatmul.f32.gmra.mxu0 %v850
      %v2597 = vpop.f32.mrf.mxu0
      %v2598 = vadd.f32 %v1021, %v2597
      %2599 = vmatmul.f32.gmra.mxu0 %v851
      %v2600 = vpop.f32.mrf.mxu0
      %v2601 = vadd.f32 %v1021, %v2600
      %2602 = vmatmul.f32.gmra.mxu0 %v852
      %v2603 = vpop.f32.mrf.mxu0
      %v2604 = vadd.f32 %v1021, %v2603
      %2605 = vmatmul.f32.gmra.mxu0 %v853
      %v2606 = vpop.f32.mrf.mxu0
      %v2607 = vadd.f32 %v1021, %v2606
      %2608 = vmatmul.f32.gmra.mxu0 %v854
      %v2609 = vpop.f32.mrf.mxu0
      %v2610 = vadd.f32 %v1021, %v2609
      %2611 = vmatmul.f32.gmra.mxu0 %v855
      %v2612 = vpop.f32.mrf.mxu0
      %v2613 = vadd.f32 %v1021, %v2612
      %2614 = vmatmul.f32.gmra.mxu0 %v856
      %v2615 = vpop.f32.mrf.mxu0
      %v2616 = vadd.f32 %v1021, %v2615
      %2617 = vmatmul.f32.gmra.mxu0 %v857
      %v2618 = vpop.f32.mrf.mxu0
      %v2619 = vadd.f32 %v1021, %v2618
      %2620 = vmatmul.f32.gmra.mxu0 %v858
      %v2621 = vpop.f32.mrf.mxu0
      %v2622 = vadd.f32 %v1021, %v2621
      %2623 = vmatmul.f32.gmra.mxu0 %v859
      %v2624 = vpop.f32.mrf.mxu0
      %v2625 = vadd.f32 %v1021, %v2624
      %2626 = vmatmul.f32.gmra.mxu0 %v860
      %v2627 = vpop.f32.mrf.mxu0
      %v2628 = vadd.f32 %v1021, %v2627
      %2629 = vmatmul.f32.gmra.mxu0 %v861
      %v2630 = vpop.f32.mrf.mxu0
      %v2631 = vadd.f32 %v1021, %v2630
      %2632 = vmatmul.f32.gmra.mxu0 %v862
      %v2633 = vpop.f32.mrf.mxu0
      %v2634 = vadd.f32 %v1021, %v2633
      %2635 = vmatmul.f32.gmra.mxu0 %v863
      %v2636 = vpop.f32.mrf.mxu0
      %v2637 = vadd.f32 %v1021, %v2636
      %2638 = vmatmul.f32.gmra.mxu0 %v864
      %v2639 = vpop.f32.mrf.mxu0
      %v2640 = vadd.f32 %v1021, %v2639
      %2641 = vmatmul.f32.gmra.mxu0 %v865
      %v2642 = vpop.f32.mrf.mxu0
      %v2643 = vadd.f32 %v1021, %v2642
      %2644 = vmatmul.f32.gmra.mxu0 %v866
      %v2645 = vpop.f32.mrf.mxu0
      %v2646 = vadd.f32 %v1021, %v2645
      %2647 = vmatmul.f32.gmra.mxu0 %v867
      %v2648 = vpop.f32.mrf.mxu0
      %v2649 = vadd.f32 %v1021, %v2648
      %2650 = vmatmul.f32.gmra.mxu0 %v868
      %v2651 = vpop.f32.mrf.mxu0
      %v2652 = vadd.f32 %v1021, %v2651
      %2653 = vmatmul.f32.gmra.mxu0 %v869
      %v2654 = vpop.f32.mrf.mxu0
      %v2655 = vadd.f32 %v1021, %v2654
      %2656 = vmatmul.f32.gmra.mxu0 %v870
      %v2657 = vpop.f32.mrf.mxu0
      %v2658 = vadd.f32 %v1021, %v2657
      %2659 = vmatmul.f32.gmra.mxu0 %v871
      %v2660 = vpop.f32.mrf.mxu0
      %v2661 = vadd.f32 %v1021, %v2660
      %2662 = vmatmul.f32.gmra.mxu0 %v872
      %v2663 = vpop.f32.mrf.mxu0
      %v2664 = vadd.f32 %v1021, %v2663
      %2665 = vmatmul.f32.gmra.mxu0 %v873
      %v2666 = vpop.f32.mrf.mxu0
      %v2667 = vadd.f32 %v1021, %v2666
      %2668 = vmatmul.f32.gmra.mxu0 %v874
      %v2669 = vpop.f32.mrf.mxu0
      %v2670 = vadd.f32 %v1021, %v2669
      %2671 = vmatmul.f32.gmra.mxu0 %v875
      %v2672 = vpop.f32.mrf.mxu0
      %v2673 = vadd.f32 %v1021, %v2672
      %2674 = vmatmul.f32.gmra.mxu0 %v876
      %v2675 = vpop.f32.mrf.mxu0
      %v2676 = vadd.f32 %v1021, %v2675
      %2677 = vmatmul.f32.gmra.mxu0 %v877
      %v2678 = vpop.f32.mrf.mxu0
      %v2679 = vadd.f32 %v1021, %v2678
      %2680 = vmatmul.f32.gmra.mxu0 %v878
      %v2681 = vpop.f32.mrf.mxu0
      %v2682 = vadd.f32 %v1021, %v2681
      %2683 = vmatmul.f32.gmra.mxu0 %v879
      %v2684 = vpop.f32.mrf.mxu0
      %v2685 = vadd.f32 %v1021, %v2684
      %2686 = vmatmul.f32.gmra.mxu0 %v880
      %v2687 = vpop.f32.mrf.mxu0
      %v2688 = vadd.f32 %v1021, %v2687
      %2689 = vmatmul.f32.gmra.mxu0 %v881
      %v2690 = vpop.f32.mrf.mxu0
      %v2691 = vadd.f32 %v1021, %v2690
      %2692 = vmatmul.f32.gmra.mxu0 %v882
      %v2693 = vpop.f32.mrf.mxu0
      %v2694 = vadd.f32 %v1021, %v2693
      %2695 = vmatmul.f32.gmra.mxu0 %v883
      %v2696 = vpop.f32.mrf.mxu0
      %v2697 = vadd.f32 %v1021, %v2696
      %2698 = vmatmul.f32.gmra.mxu0 %v884
      %v2699 = vpop.f32.mrf.mxu0
      %v2700 = vadd.f32 %v1021, %v2699
      %2701 = vmatmul.f32.gmra.mxu0 %v885
      %v2702 = vpop.f32.mrf.mxu0
      %v2703 = vadd.f32 %v1021, %v2702
      %2704 = vmatmul.f32.gmra.mxu0 %v886
      %v2705 = vpop.f32.mrf.mxu0
      %v2706 = vadd.f32 %v1021, %v2705
      %2707 = vmatmul.f32.gmra.mxu0 %v887
      %v2708 = vpop.f32.mrf.mxu0
      %v2709 = vadd.f32 %v1021, %v2708
      %2710 = vmatmul.f32.gmra.mxu0 %v888
      %v2711 = vpop.f32.mrf.mxu0
      %v2712 = vadd.f32 %v1021, %v2711
      %2713 = vmatmul.f32.gmra.mxu0 %v889
      %v2714 = vpop.f32.mrf.mxu0
      %v2715 = vadd.f32 %v1021, %v2714
      %2716 = vmatmul.f32.gmra.mxu0 %v890
      %v2717 = vpop.f32.mrf.mxu0
      %v2718 = vadd.f32 %v1021, %v2717
      %2719 = vmatmul.f32.gmra.mxu0 %v891
      %v2720 = vpop.f32.mrf.mxu0
      %v2721 = vadd.f32 %v1021, %v2720
      %2722 = vmatmul.f32.gmra.mxu0 %v892
      %v2723 = vpop.f32.mrf.mxu0
      %v2724 = vadd.f32 %v1021, %v2723
      %2725 = vmatmul.f32.gmra.mxu0 %v893
      %v2726 = vpop.f32.mrf.mxu0
      %v2727 = vadd.f32 %v1021, %v2726
      %2728 = vmatmul.f32.gmra.mxu0 %v894
      %v2729 = vpop.f32.mrf.mxu0
      %v2730 = vadd.f32 %v1021, %v2729
      %2731 = vmatmul.f32.gmra.mxu0 %v895
      %v2732 = vpop.f32.mrf.mxu0
      %v2733 = vadd.f32 %v1021, %v2732
      %2734 = vmatmul.f32.gmra.mxu0 %v896
      %v2735 = vpop.f32.mrf.mxu0
      %v2736 = vadd.f32 %v1021, %v2735
      %2737 = vmatmul.f32.gmra.mxu0 %v897
      %v2738 = vpop.f32.mrf.mxu0
      %v2739 = vadd.f32 %v1021, %v2738
      %2740 = vmatmul.f32.gmra.mxu0 %v898
      %v2741 = vpop.f32.mrf.mxu0
      %v2742 = vadd.f32 %v1021, %v2741
      %2743 = vmatmul.f32.gmra.mxu0 %v899
      %v2744 = vpop.f32.mrf.mxu0
      %v2745 = vadd.f32 %v1021, %v2744
      %2746 = vmatmul.f32.gmra.mxu0 %v900
      %v2747 = vpop.f32.mrf.mxu0
      %v2748 = vadd.f32 %v1021, %v2747
      %2749 = vmatmul.f32.gmra.mxu0 %v901
      %v2750 = vpop.f32.mrf.mxu0
      %v2751 = vadd.f32 %v1021, %v2750
      %2752 = vmatmul.f32.gmra.mxu0 %v902
      %v2753 = vpop.f32.mrf.mxu0
      %v2754 = vadd.f32 %v1021, %v2753
      %2755 = vmatmul.f32.gmra.mxu0 %v903
      %v2756 = vpop.f32.mrf.mxu0
      %v2757 = vadd.f32 %v1021, %v2756
      %2758 = vmatmul.f32.gmra.mxu0 %v904
      %v2759 = vpop.f32.mrf.mxu0
      %v2760 = vadd.f32 %v1021, %v2759
      %2761 = vmatmul.f32.gmra.mxu0 %v905
      %v2762 = vpop.f32.mrf.mxu0
      %v2763 = vadd.f32 %v1021, %v2762
      %2764 = vmatmul.f32.gmra.mxu0 %v906
      %v2765 = vpop.f32.mrf.mxu0
      %v2766 = vadd.f32 %v1021, %v2765
      %2767 = vmatmul.f32.gmra.mxu0 %v907
      %v2768 = vpop.f32.mrf.mxu0
      %v2769 = vadd.f32 %v1021, %v2768
      %2770 = vmatmul.f32.gmra.mxu0 %v908
      %v2771 = vpop.f32.mrf.mxu0
      %v2772 = vadd.f32 %v1021, %v2771
      %2773 = vmatmul.f32.gmra.mxu0 %v909
      %v2774 = vpop.f32.mrf.mxu0
      %v2775 = vadd.f32 %v1021, %v2774
      %2776 = vmatmul.f32.gmra.mxu0 %v910
      %v2777 = vpop.f32.mrf.mxu0
      %v2778 = vadd.f32 %v1021, %v2777
      %2779 = vmatmul.f32.gmra.mxu0 %v911
      %v2780 = vpop.f32.mrf.mxu0
      %v2781 = vadd.f32 %v1021, %v2780
      %2782 = vmatmul.f32.gmra.mxu0 %v912
      %v2783 = vpop.f32.mrf.mxu0
      %v2784 = vadd.f32 %v1021, %v2783
      %2785 = vmatmul.f32.gmra.mxu0 %v913
      %v2786 = vpop.f32.mrf.mxu0
      %v2787 = vadd.f32 %v1021, %v2786
      %2788 = vmatmul.f32.gmra.mxu0 %v914
      %v2789 = vpop.f32.mrf.mxu0
      %v2790 = vadd.f32 %v1021, %v2789
      %2791 = vmatmul.f32.gmra.mxu0 %v915
      %v2792 = vpop.f32.mrf.mxu0
      %v2793 = vadd.f32 %v1021, %v2792
      %2794 = vmatmul.f32.gmra.mxu0 %v916
      %v2795 = vpop.f32.mrf.mxu0
      %v2796 = vadd.f32 %v1021, %v2795
      %2797 = vmatmul.f32.gmra.mxu0 %v917
      %v2798 = vpop.f32.mrf.mxu0
      %v2799 = vadd.f32 %v1021, %v2798
      %2800 = vmatmul.f32.gmra.mxu0 %v918
      %v2801 = vpop.f32.mrf.mxu0
      %v2802 = vadd.f32 %v1021, %v2801
      %2803 = vmatmul.f32.gmra.mxu0 %v919
      %v2804 = vpop.f32.mrf.mxu0
      %v2805 = vadd.f32 %v1021, %v2804
      %2806 = vmatmul.f32.gmra.mxu0 %v920
      %v2807 = vpop.f32.mrf.mxu0
      %v2808 = vadd.f32 %v1021, %v2807
      %2809 = vmatmul.f32.gmra.mxu0 %v921
      %v2810 = vpop.f32.mrf.mxu0
      %v2811 = vadd.f32 %v1021, %v2810
      %2812 = vmatmul.f32.gmra.mxu0 %v922
      %v2813 = vpop.f32.mrf.mxu0
      %v2814 = vadd.f32 %v1021, %v2813
      %2815 = vmatmul.f32.gmra.mxu0 %v923
      %v2816 = vpop.f32.mrf.mxu0
      %v2817 = vadd.f32 %v1021, %v2816
      %2818 = vmatmul.f32.gmra.mxu0 %v924
      %v2819 = vpop.f32.mrf.mxu0
      %v2820 = vadd.f32 %v1021, %v2819
      %2821 = vmatmul.f32.gmra.mxu0 %v925
      %v2822 = vpop.f32.mrf.mxu0
      %v2823 = vadd.f32 %v1021, %v2822
      %2824 = vmatmul.f32.gmra.mxu0 %v926
      %v2825 = vpop.f32.mrf.mxu0
      %v2826 = vadd.f32 %v1021, %v2825
      %2827 = vmatmul.f32.gmra.mxu0 %v927
      %v2828 = vpop.f32.mrf.mxu0
      %v2829 = vadd.f32 %v1021, %v2828
      %2830 = vmatmul.f32.gmra.mxu0 %v928
      %v2831 = vpop.f32.mrf.mxu0
      %v2832 = vadd.f32 %v1021, %v2831
      %2833 = vmatmul.f32.gmra.mxu0 %v929
      %v2834 = vpop.f32.mrf.mxu0
      %v2835 = vadd.f32 %v1021, %v2834
      %2836 = vmatmul.f32.gmra.mxu0 %v930
      %v2837 = vpop.f32.mrf.mxu0
      %v2838 = vadd.f32 %v1021, %v2837
      %2839 = vmatmul.f32.gmra.mxu0 %v931
      %v2840 = vpop.f32.mrf.mxu0
      %v2841 = vadd.f32 %v1021, %v2840
      %2842 = vmatmul.f32.gmra.mxu0 %v932
      %v2843 = vpop.f32.mrf.mxu0
      %v2844 = vadd.f32 %v1021, %v2843
      %2845 = vmatmul.f32.gmra.mxu0 %v933
      %v2846 = vpop.f32.mrf.mxu0
      %v2847 = vadd.f32 %v1021, %v2846
      %2848 = vmatmul.f32.gmra.mxu0 %v934
      %v2849 = vpop.f32.mrf.mxu0
      %v2850 = vadd.f32 %v1021, %v2849
      %2851 = vmatmul.f32.gmra.mxu0 %v935
      %v2852 = vpop.f32.mrf.mxu0
      %v2853 = vadd.f32 %v1021, %v2852
      %2854 = vmatmul.f32.gmra.mxu0 %v936
      %v2855 = vpop.f32.mrf.mxu0
      %v2856 = vadd.f32 %v1021, %v2855
      %2857 = vmatmul.f32.gmra.mxu0 %v937
      %v2858 = vpop.f32.mrf.mxu0
      %v2859 = vadd.f32 %v1021, %v2858
      %2860 = vmatmul.f32.gmra.mxu0 %v938
      %v2861 = vpop.f32.mrf.mxu0
      %v2862 = vadd.f32 %v1021, %v2861
      %2863 = vmatmul.f32.gmra.mxu0 %v939
      %v2864 = vpop.f32.mrf.mxu0
      %v2865 = vadd.f32 %v1021, %v2864
      %2866 = vmatmul.f32.gmra.mxu0 %v940
      %v2867 = vpop.f32.mrf.mxu0
      %v2868 = vadd.f32 %v1021, %v2867
      %2869 = vmatmul.f32.gmra.mxu0 %v941
      %v2870 = vpop.f32.mrf.mxu0
      %v2871 = vadd.f32 %v1021, %v2870
      %2872 = vmatmul.f32.gmra.mxu0 %v942
      %v2873 = vpop.f32.mrf.mxu0
      %v2874 = vadd.f32 %v1021, %v2873
      %2875 = vmatmul.f32.gmra.mxu0 %v943
      %v2876 = vpop.f32.mrf.mxu0
      %v2877 = vadd.f32 %v1021, %v2876
      %2878 = vmatmul.f32.gmra.mxu0 %v944
      %v2879 = vpop.f32.mrf.mxu0
      %v2880 = vadd.f32 %v1021, %v2879
      %2881 = vmatmul.f32.gmra.mxu0 %v945
      %v2882 = vpop.f32.mrf.mxu0
      %v2883 = vadd.f32 %v1021, %v2882
      %2884 = vmatmul.f32.gmra.mxu0 %v946
      %v2885 = vpop.f32.mrf.mxu0
      %v2886 = vadd.f32 %v1021, %v2885
      %2887 = vmatmul.f32.gmra.mxu0 %v947
      %v2888 = vpop.f32.mrf.mxu0
      %v2889 = vadd.f32 %v1021, %v2888
      %2890 = vmatmul.f32.gmra.mxu0 %v948
      %v2891 = vpop.f32.mrf.mxu0
      %v2892 = vadd.f32 %v1021, %v2891
      %2893 = vmatmul.f32.gmra.mxu0 %v949
      %v2894 = vpop.f32.mrf.mxu0
      %v2895 = vadd.f32 %v1021, %v2894
      %2896 = vmatmul.f32.gmra.mxu0 %v950
      %v2897 = vpop.f32.mrf.mxu0
      %v2898 = vadd.f32 %v1021, %v2897
      %2899 = vmatmul.f32.gmra.mxu0 %v951
      %v2900 = vpop.f32.mrf.mxu0
      %v2901 = vadd.f32 %v1021, %v2900
      %2902 = vmatmul.f32.gmra.mxu0 %v952
      %v2903 = vpop.f32.mrf.mxu0
      %v2904 = vadd.f32 %v1021, %v2903
      %2905 = vmatmul.f32.gmra.mxu0 %v953
      %v2906 = vpop.f32.mrf.mxu0
      %v2907 = vadd.f32 %v1021, %v2906
      %2908 = vmatmul.f32.gmra.mxu0 %v954
      %v2909 = vpop.f32.mrf.mxu0
      %v2910 = vadd.f32 %v1021, %v2909
      %2911 = vmatmul.f32.gmra.mxu0 %v955
      %v2912 = vpop.f32.mrf.mxu0
      %v2913 = vadd.f32 %v1021, %v2912
      %2914 = vmatmul.f32.gmra.mxu0 %v956
      %v2915 = vpop.f32.mrf.mxu0
      %v2916 = vadd.f32 %v1021, %v2915
      %2917 = vmatmul.f32.gmra.mxu0 %v957
      %v2918 = vpop.f32.mrf.mxu0
      %v2919 = vadd.f32 %v1021, %v2918
      %2920 = vmatmul.f32.gmra.mxu0 %v958
      %v2921 = vpop.f32.mrf.mxu0
      %v2922 = vadd.f32 %v1021, %v2921
      %2923 = vmatmul.f32.gmra.mxu0 %v959
      %v2924 = vpop.f32.mrf.mxu0
      %v2925 = vadd.f32 %v1021, %v2924
      %2926 = vmatmul.f32.gmra.mxu0 %v960
      %v2927 = vpop.f32.mrf.mxu0
      %v2928 = vadd.f32 %v1021, %v2927
      %2929 = vmatmul.f32.gmra.mxu0 %v961
      %v2930 = vpop.f32.mrf.mxu0
      %v2931 = vadd.f32 %v1021, %v2930
      %2932 = vmatmul.f32.gmra.mxu0 %v962
      %v2933 = vpop.f32.mrf.mxu0
      %v2934 = vadd.f32 %v1021, %v2933
      %2935 = vmatmul.f32.gmra.mxu0 %v963
      %v2936 = vpop.f32.mrf.mxu0
      %v2937 = vadd.f32 %v1021, %v2936
      %2938 = vmatmul.f32.gmra.mxu0 %v964
      %v2939 = vpop.f32.mrf.mxu0
      %v2940 = vadd.f32 %v1021, %v2939
      %2941 = vmatmul.f32.gmra.mxu0 %v965
      %v2942 = vpop.f32.mrf.mxu0
      %v2943 = vadd.f32 %v1021, %v2942
      %2944 = vmatmul.f32.gmra.mxu0 %v966
      %v2945 = vpop.f32.mrf.mxu0
      %v2946 = vadd.f32 %v1021, %v2945
      %2947 = vmatmul.f32.gmra.mxu0 %v967
      %v2948 = vpop.f32.mrf.mxu0
      %v2949 = vadd.f32 %v1021, %v2948
      %2950 = vmatmul.f32.gmra.mxu0 %v968
      %v2951 = vpop.f32.mrf.mxu0
      %v2952 = vadd.f32 %v1021, %v2951
      %2953 = vmatmul.f32.gmra.mxu0 %v969
      %v2954 = vpop.f32.mrf.mxu0
      %v2955 = vadd.f32 %v1021, %v2954
      %2956 = vmatmul.f32.gmra.mxu0 %v970
      %v2957 = vpop.f32.mrf.mxu0
      %v2958 = vadd.f32 %v1021, %v2957
      %2959 = vmatmul.f32.gmra.mxu0 %v971
      %v2960 = vpop.f32.mrf.mxu0
      %v2961 = vadd.f32 %v1021, %v2960
      %2962 = vmatmul.f32.gmra.mxu0 %v972
      %v2963 = vpop.f32.mrf.mxu0
      %v2964 = vadd.f32 %v1021, %v2963
      %2965 = vmatmul.f32.gmra.mxu0 %v973
      %v2966 = vpop.f32.mrf.mxu0
      %v2967 = vadd.f32 %v1021, %v2966
      %2968 = vmatmul.f32.gmra.mxu0 %v974
      %v2969 = vpop.f32.mrf.mxu0
      %v2970 = vadd.f32 %v1021, %v2969
      %2971 = vmatmul.f32.gmra.mxu0 %v975
      %v2972 = vpop.f32.mrf.mxu0
      %v2973 = vadd.f32 %v1021, %v2972
      %2974 = vmatmul.f32.gmra.mxu0 %v976
      %v2975 = vpop.f32.mrf.mxu0
      %v2976 = vadd.f32 %v1021, %v2975
      %2977 = vmatmul.f32.gmra.mxu0 %v977
      %v2978 = vpop.f32.mrf.mxu0
      %v2979 = vadd.f32 %v1021, %v2978
      %2980 = vmatmul.f32.gmra.mxu0 %v978
      %v2981 = vpop.f32.mrf.mxu0
      %v2982 = vadd.f32 %v1021, %v2981
      %2983 = vmatmul.f32.gmra.mxu0 %v979
      %v2984 = vpop.f32.mrf.mxu0
      %v2985 = vadd.f32 %v1021, %v2984
      %2986 = vmatmul.f32.gmra.mxu0 %v980
      %v2987 = vpop.f32.mrf.mxu0
      %v2988 = vadd.f32 %v1021, %v2987
      %2989 = vmatmul.f32.gmra.mxu0 %v981
      %v2990 = vpop.f32.mrf.mxu0
      %v2991 = vadd.f32 %v1021, %v2990
      %2992 = vmatmul.f32.gmra.mxu0 %v982
      %v2993 = vpop.f32.mrf.mxu0
      %v2994 = vadd.f32 %v1021, %v2993
      %2995 = vmatmul.f32.gmra.mxu0 %v983
      %v2996 = vpop.f32.mrf.mxu0
      %v2997 = vadd.f32 %v1021, %v2996
      %2998 = vmatmul.f32.gmra.mxu0 %v984
      %v2999 = vpop.f32.mrf.mxu0
      %v3000 = vadd.f32 %v1021, %v2999
      %3001 = vmatmul.f32.gmra.mxu0 %v985
      %v3002 = vpop.f32.mrf.mxu0
      %v3003 = vadd.f32 %v1021, %v3002
      %3004 = vmatmul.f32.gmra.mxu0 %v986
      %v3005 = vpop.f32.mrf.mxu0
      %v3006 = vadd.f32 %v1021, %v3005
      %3007 = vmatmul.f32.gmra.mxu0 %v987
      %v3008 = vpop.f32.mrf.mxu0
      %v3009 = vadd.f32 %v1021, %v3008
      %3010 = vmatmul.f32.gmra.mxu0 %v988
      %v3011 = vpop.f32.mrf.mxu0
      %v3012 = vadd.f32 %v1021, %v3011
      %3013 = vmatmul.f32.gmra.mxu0 %v989
      %v3014 = vpop.f32.mrf.mxu0
      %v3015 = vadd.f32 %v1021, %v3014
      %3016 = vmatmul.f32.gmra.mxu0 %v990
      %v3017 = vpop.f32.mrf.mxu0
      %v3018 = vadd.f32 %v1021, %v3017
      %3019 = vmatmul.f32.gmra.mxu0 %v991
      %v3020 = vpop.f32.mrf.mxu0
      %v3021 = vadd.f32 %v1021, %v3020
      %3022 = vmatmul.f32.gmra.mxu0 %v992
      %v3023 = vpop.f32.mrf.mxu0
      %v3024 = vadd.f32 %v1021, %v3023
      %3025 = vmatmul.f32.gmra.mxu0 %v993
      %v3026 = vpop.f32.mrf.mxu0
      %v3027 = vadd.f32 %v1021, %v3026
      %3028 = vmatmul.f32.gmra.mxu0 %v994
      %v3029 = vpop.f32.mrf.mxu0
      %v3030 = vadd.f32 %v1021, %v3029
      %3031 = vmatmul.f32.gmra.mxu0 %v995
      %v3032 = vpop.f32.mrf.mxu0
      %v3033 = vadd.f32 %v1021, %v3032
      %3034 = vmatmul.f32.gmra.mxu0 %v996
      %v3035 = vpop.f32.mrf.mxu0
      %v3036 = vadd.f32 %v1021, %v3035
      %3037 = vmatmul.f32.gmra.mxu0 %v997
      %v3038 = vpop.f32.mrf.mxu0
      %v3039 = vadd.f32 %v1021, %v3038
      %3040 = vmatmul.f32.gmra.mxu0 %v998
      %v3041 = vpop.f32.mrf.mxu0
      %v3042 = vadd.f32 %v1021, %v3041
      %3043 = vmatmul.f32.gmra.mxu0 %v999
      %v3044 = vpop.f32.mrf.mxu0
      %v3045 = vadd.f32 %v1021, %v3044
      %3046 = vmatmul.f32.gmra.mxu0 %v1000
      %v3047 = vpop.f32.mrf.mxu0
      %v3048 = vadd.f32 %v1021, %v3047
      %3049 = vmatmul.f32.gmra.mxu0 %v1001
      %v3050 = vpop.f32.mrf.mxu0
      %v3051 = vadd.f32 %v1021, %v3050
      %3052 = vmatmul.f32.gmra.mxu0 %v1002
      %v3053 = vpop.f32.mrf.mxu0
      %v3054 = vadd.f32 %v1021, %v3053
      %3055 = vdwg.mxu0
      %vm3056 = vcmask 261120
      %v3057 = vsel %vm3056, %v1041, -inf
      %v3058 = vrot.slane %v3057, 4
      %v3059 = vmax.f32 %v3057, %v3058
      %v3060 = vrot.slane %v3059, 2
      %v3061 = vmax.f32 %v3059, %v3060
      %v3062 = vrot.slane %v3061, 1
      %v3063 = vmax.f32 %v3061, %v3062
      %v3064 = vsel %vm3056, %v1044, -inf
      %v3065 = vrot.slane %v3064, 4
      %v3066 = vmax.f32 %v3064, %v3065
      %v3067 = vrot.slane %v3066, 2
      %v3068 = vmax.f32 %v3066, %v3067
      %v3069 = vrot.slane %v3068, 1
      %v3070 = vmax.f32 %v3068, %v3069
      %v3071 = vsel %vm3056, %v1047, -inf
      %v3072 = vrot.slane %v3071, 4
      %v3073 = vmax.f32 %v3071, %v3072
      %v3074 = vrot.slane %v3073, 2
      %v3075 = vmax.f32 %v3073, %v3074
      %v3076 = vrot.slane %v3075, 1
      %v3077 = vmax.f32 %v3075, %v3076
      %v3078 = vsel %vm3056, %v1050, -inf
      %v3079 = vrot.slane %v3078, 4
      %v3080 = vmax.f32 %v3078, %v3079
      %v3081 = vrot.slane %v3080, 2
      %v3082 = vmax.f32 %v3080, %v3081
      %v3083 = vrot.slane %v3082, 1
      %v3084 = vmax.f32 %v3082, %v3083
      %v3085 = vsel %vm3056, %v1053, -inf
      %v3086 = vrot.slane %v3085, 4
      %v3087 = vmax.f32 %v3085, %v3086
      %v3088 = vrot.slane %v3087, 2
      %v3089 = vmax.f32 %v3087, %v3088
      %v3090 = vrot.slane %v3089, 1
      %v3091 = vmax.f32 %v3089, %v3090
      %v3092 = vsel %vm3056, %v1056, -inf
      %v3093 = vrot.slane %v3092, 4
      %v3094 = vmax.f32 %v3092, %v3093
      %v3095 = vrot.slane %v3094, 2
      %v3096 = vmax.f32 %v3094, %v3095
      %v3097 = vrot.slane %v3096, 1
      %v3098 = vmax.f32 %v3096, %v3097
      %v3099 = vsel %vm3056, %v1059, -inf
      %v3100 = vrot.slane %v3099, 4
      %v3101 = vmax.f32 %v3099, %v3100
      %v3102 = vrot.slane %v3101, 2
      %v3103 = vmax.f32 %v3101, %v3102
      %v3104 = vrot.slane %v3103, 1
      %v3105 = vmax.f32 %v3103, %v3104
      %v3106 = vsel %vm3056, %v1062, -inf
      %v3107 = vrot.slane %v3106, 4
      %v3108 = vmax.f32 %v3106, %v3107
      %v3109 = vrot.slane %v3108, 2
      %v3110 = vmax.f32 %v3108, %v3109
      %v3111 = vrot.slane %v3110, 1
      %v3112 = vmax.f32 %v3110, %v3111
      %v3113 = vsel %vm3056, %v1065, -inf
      %v3114 = vrot.slane %v3113, 4
      %v3115 = vmax.f32 %v3113, %v3114
      %v3116 = vrot.slane %v3115, 2
      %v3117 = vmax.f32 %v3115, %v3116
      %v3118 = vrot.slane %v3117, 1
      %v3119 = vmax.f32 %v3117, %v3118
      %v3120 = vsel %vm3056, %v1068, -inf
      %v3121 = vrot.slane %v3120, 4
      %v3122 = vmax.f32 %v3120, %v3121
      %v3123 = vrot.slane %v3122, 2
      %v3124 = vmax.f32 %v3122, %v3123
      %v3125 = vrot.slane %v3124, 1
      %v3126 = vmax.f32 %v3124, %v3125
      %v3127 = vsel %vm3056, %v1071, -inf
      %v3128 = vrot.slane %v3127, 4
      %v3129 = vmax.f32 %v3127, %v3128
      %v3130 = vrot.slane %v3129, 2
      %v3131 = vmax.f32 %v3129, %v3130
      %v3132 = vrot.slane %v3131, 1
      %v3133 = vmax.f32 %v3131, %v3132
      %v3134 = vsel %vm3056, %v1074, -inf
      %v3135 = vrot.slane %v3134, 4
      %v3136 = vmax.f32 %v3134, %v3135
      %v3137 = vrot.slane %v3136, 2
      %v3138 = vmax.f32 %v3136, %v3137
      %v3139 = vrot.slane %v3138, 1
      %v3140 = vmax.f32 %v3138, %v3139
      %v3141 = vsel %vm3056, %v1077, -inf
      %v3142 = vrot.slane %v3141, 4
      %v3143 = vmax.f32 %v3141, %v3142
      %v3144 = vrot.slane %v3143, 2
      %v3145 = vmax.f32 %v3143, %v3144
      %v3146 = vrot.slane %v3145, 1
      %v3147 = vmax.f32 %v3145, %v3146
      %v3148 = vsel %vm3056, %v1080, -inf
      %v3149 = vrot.slane %v3148, 4
      %v3150 = vmax.f32 %v3148, %v3149
      %v3151 = vrot.slane %v3150, 2
      %v3152 = vmax.f32 %v3150, %v3151
      %v3153 = vrot.slane %v3152, 1
      %v3154 = vmax.f32 %v3152, %v3153
      %v3155 = vsel %vm3056, %v1083, -inf
      %v3156 = vrot.slane %v3155, 4
      %v3157 = vmax.f32 %v3155, %v3156
      %v3158 = vrot.slane %v3157, 2
      %v3159 = vmax.f32 %v3157, %v3158
      %v3160 = vrot.slane %v3159, 1
      %v3161 = vmax.f32 %v3159, %v3160
      %v3162 = vsel %vm3056, %v1086, -inf
      %v3163 = vrot.slane %v3162, 4
      %v3164 = vmax.f32 %v3162, %v3163
      %v3165 = vrot.slane %v3164, 2
      %v3166 = vmax.f32 %v3164, %v3165
      %v3167 = vrot.slane %v3166, 1
      %v3168 = vmax.f32 %v3166, %v3167
      %v3169 = vsel %vm3056, %v1089, -inf
      %v3170 = vrot.slane %v3169, 4
      %v3171 = vmax.f32 %v3169, %v3170
      %v3172 = vrot.slane %v3171, 2
      %v3173 = vmax.f32 %v3171, %v3172
      %v3174 = vrot.slane %v3173, 1
      %v3175 = vmax.f32 %v3173, %v3174
      %v3176 = vsel %vm3056, %v1092, -inf
      %v3177 = vrot.slane %v3176, 4
      %v3178 = vmax.f32 %v3176, %v3177
      %v3179 = vrot.slane %v3178, 2
      %v3180 = vmax.f32 %v3178, %v3179
      %v3181 = vrot.slane %v3180, 1
      %v3182 = vmax.f32 %v3180, %v3181
      %v3183 = vsel %vm3056, %v1095, -inf
      %v3184 = vrot.slane %v3183, 4
      %v3185 = vmax.f32 %v3183, %v3184
      %v3186 = vrot.slane %v3185, 2
      %v3187 = vmax.f32 %v3185, %v3186
      %v3188 = vrot.slane %v3187, 1
      %v3189 = vmax.f32 %v3187, %v3188
      %v3190 = vsel %vm3056, %v1098, -inf
      %v3191 = vrot.slane %v3190, 4
      %v3192 = vmax.f32 %v3190, %v3191
      %v3193 = vrot.slane %v3192, 2
      %v3194 = vmax.f32 %v3192, %v3193
      %v3195 = vrot.slane %v3194, 1
      %v3196 = vmax.f32 %v3194, %v3195
      %v3197 = vsel %vm3056, %v1101, -inf
      %v3198 = vrot.slane %v3197, 4
      %v3199 = vmax.f32 %v3197, %v3198
      %v3200 = vrot.slane %v3199, 2
      %v3201 = vmax.f32 %v3199, %v3200
      %v3202 = vrot.slane %v3201, 1
      %v3203 = vmax.f32 %v3201, %v3202
      %v3204 = vsel %vm3056, %v1104, -inf
      %v3205 = vrot.slane %v3204, 4
      %v3206 = vmax.f32 %v3204, %v3205
      %v3207 = vrot.slane %v3206, 2
      %v3208 = vmax.f32 %v3206, %v3207
      %v3209 = vrot.slane %v3208, 1
      %v3210 = vmax.f32 %v3208, %v3209
      %v3211 = vsel %vm3056, %v1107, -inf
      %v3212 = vrot.slane %v3211, 4
      %v3213 = vmax.f32 %v3211, %v3212
      %v3214 = vrot.slane %v3213, 2
      %v3215 = vmax.f32 %v3213, %v3214
      %v3216 = vrot.slane %v3215, 1
      %v3217 = vmax.f32 %v3215, %v3216
      %v3218 = vsel %vm3056, %v1110, -inf
      %v3219 = vrot.slane %v3218, 4
      %v3220 = vmax.f32 %v3218, %v3219
      %v3221 = vrot.slane %v3220, 2
      %v3222 = vmax.f32 %v3220, %v3221
      %v3223 = vrot.slane %v3222, 1
      %v3224 = vmax.f32 %v3222, %v3223
      %v3225 = vsel %vm3056, %v1113, -inf
      %v3226 = vrot.slane %v3225, 4
      %v3227 = vmax.f32 %v3225, %v3226
      %v3228 = vrot.slane %v3227, 2
      %v3229 = vmax.f32 %v3227, %v3228
      %v3230 = vrot.slane %v3229, 1
      %v3231 = vmax.f32 %v3229, %v3230
      %v3232 = vsel %vm3056, %v1116, -inf
      %v3233 = vrot.slane %v3232, 4
      %v3234 = vmax.f32 %v3232, %v3233
      %v3235 = vrot.slane %v3234, 2
      %v3236 = vmax.f32 %v3234, %v3235
      %v3237 = vrot.slane %v3236, 1
      %v3238 = vmax.f32 %v3236, %v3237
      %v3239 = vsel %vm3056, %v1119, -inf
      %v3240 = vrot.slane %v3239, 4
      %v3241 = vmax.f32 %v3239, %v3240
      %v3242 = vrot.slane %v3241, 2
      %v3243 = vmax.f32 %v3241, %v3242
      %v3244 = vrot.slane %v3243, 1
      %v3245 = vmax.f32 %v3243, %v3244
      %v3246 = vsel %vm3056, %v1122, -inf
      %v3247 = vrot.slane %v3246, 4
      %v3248 = vmax.f32 %v3246, %v3247
      %v3249 = vrot.slane %v3248, 2
      %v3250 = vmax.f32 %v3248, %v3249
      %v3251 = vrot.slane %v3250, 1
      %v3252 = vmax.f32 %v3250, %v3251
      %v3253 = vsel %vm3056, %v1125, -inf
      %v3254 = vrot.slane %v3253, 4
      %v3255 = vmax.f32 %v3253, %v3254
      %v3256 = vrot.slane %v3255, 2
      %v3257 = vmax.f32 %v3255, %v3256
      %v3258 = vrot.slane %v3257, 1
      %v3259 = vmax.f32 %v3257, %v3258
      %v3260 = vsel %vm3056, %v1128, -inf
      %v3261 = vrot.slane %v3260, 4
      %v3262 = vmax.f32 %v3260, %v3261
      %v3263 = vrot.slane %v3262, 2
      %v3264 = vmax.f32 %v3262, %v3263
      %v3265 = vrot.slane %v3264, 1
      %v3266 = vmax.f32 %v3264, %v3265
      %v3267 = vsel %vm3056, %v1131, -inf
      %v3268 = vrot.slane %v3267, 4
      %v3269 = vmax.f32 %v3267, %v3268
      %v3270 = vrot.slane %v3269, 2
      %v3271 = vmax.f32 %v3269, %v3270
      %v3272 = vrot.slane %v3271, 1
      %v3273 = vmax.f32 %v3271, %v3272
      %v3274 = vsel %vm3056, %v1134, -inf
      %v3275 = vrot.slane %v3274, 4
      %v3276 = vmax.f32 %v3274, %v3275
      %v3277 = vrot.slane %v3276, 2
      %v3278 = vmax.f32 %v3276, %v3277
      %v3279 = vrot.slane %v3278, 1
      %v3280 = vmax.f32 %v3278, %v3279
      %v3281 = vsel %vm3056, %v1137, -inf
      %v3282 = vrot.slane %v3281, 4
      %v3283 = vmax.f32 %v3281, %v3282
      %v3284 = vrot.slane %v3283, 2
      %v3285 = vmax.f32 %v3283, %v3284
      %v3286 = vrot.slane %v3285, 1
      %v3287 = vmax.f32 %v3285, %v3286
      %v3288 = vsel %vm3056, %v1140, -inf
      %v3289 = vrot.slane %v3288, 4
      %v3290 = vmax.f32 %v3288, %v3289
      %v3291 = vrot.slane %v3290, 2
      %v3292 = vmax.f32 %v3290, %v3291
      %v3293 = vrot.slane %v3292, 1
      %v3294 = vmax.f32 %v3292, %v3293
      %v3295 = vsel %vm3056, %v1143, -inf
      %v3296 = vrot.slane %v3295, 4
      %v3297 = vmax.f32 %v3295, %v3296
      %v3298 = vrot.slane %v3297, 2
      %v3299 = vmax.f32 %v3297, %v3298
      %v3300 = vrot.slane %v3299, 1
      %v3301 = vmax.f32 %v3299, %v3300
      %v3302 = vsel %vm3056, %v1146, -inf
      %v3303 = vrot.slane %v3302, 4
      %v3304 = vmax.f32 %v3302, %v3303
      %v3305 = vrot.slane %v3304, 2
      %v3306 = vmax.f32 %v3304, %v3305
      %v3307 = vrot.slane %v3306, 1
      %v3308 = vmax.f32 %v3306, %v3307
      %v3309 = vsel %vm3056, %v1149, -inf
      %v3310 = vrot.slane %v3309, 4
      %v3311 = vmax.f32 %v3309, %v3310
      %v3312 = vrot.slane %v3311, 2
      %v3313 = vmax.f32 %v3311, %v3312
      %v3314 = vrot.slane %v3313, 1
      %v3315 = vmax.f32 %v3313, %v3314
      %v3316 = vsel %vm3056, %v1152, -inf
      %v3317 = vrot.slane %v3316, 4
      %v3318 = vmax.f32 %v3316, %v3317
      %v3319 = vrot.slane %v3318, 2
      %v3320 = vmax.f32 %v3318, %v3319
      %v3321 = vrot.slane %v3320, 1
      %v3322 = vmax.f32 %v3320, %v3321
      %v3323 = vsel %vm3056, %v1155, -inf
      %v3324 = vrot.slane %v3323, 4
      %v3325 = vmax.f32 %v3323, %v3324
      %v3326 = vrot.slane %v3325, 2
      %v3327 = vmax.f32 %v3325, %v3326
      %v3328 = vrot.slane %v3327, 1
      %v3329 = vmax.f32 %v3327, %v3328
      %v3330 = vsel %vm3056, %v1158, -inf
      %v3331 = vrot.slane %v3330, 4
      %v3332 = vmax.f32 %v3330, %v3331
      %v3333 = vrot.slane %v3332, 2
      %v3334 = vmax.f32 %v3332, %v3333
      %v3335 = vrot.slane %v3334, 1
      %v3336 = vmax.f32 %v3334, %v3335
      %v3337 = vsel %vm3056, %v1161, -inf
      %v3338 = vrot.slane %v3337, 4
      %v3339 = vmax.f32 %v3337, %v3338
      %v3340 = vrot.slane %v3339, 2
      %v3341 = vmax.f32 %v3339, %v3340
      %v3342 = vrot.slane %v3341, 1
      %v3343 = vmax.f32 %v3341, %v3342
      %v3344 = vsel %vm3056, %v1164, -inf
      %v3345 = vrot.slane %v3344, 4
      %v3346 = vmax.f32 %v3344, %v3345
      %v3347 = vrot.slane %v3346, 2
      %v3348 = vmax.f32 %v3346, %v3347
      %v3349 = vrot.slane %v3348, 1
      %v3350 = vmax.f32 %v3348, %v3349
      %v3351 = vsel %vm3056, %v1167, -inf
      %v3352 = vrot.slane %v3351, 4
      %v3353 = vmax.f32 %v3351, %v3352
      %v3354 = vrot.slane %v3353, 2
      %v3355 = vmax.f32 %v3353, %v3354
      %v3356 = vrot.slane %v3355, 1
      %v3357 = vmax.f32 %v3355, %v3356
      %v3358 = vsel %vm3056, %v1170, -inf
      %v3359 = vrot.slane %v3358, 4
      %v3360 = vmax.f32 %v3358, %v3359
      %v3361 = vrot.slane %v3360, 2
      %v3362 = vmax.f32 %v3360, %v3361
      %v3363 = vrot.slane %v3362, 1
      %v3364 = vmax.f32 %v3362, %v3363
      %v3365 = vsel %vm3056, %v1173, -inf
      %v3366 = vrot.slane %v3365, 4
      %v3367 = vmax.f32 %v3365, %v3366
      %v3368 = vrot.slane %v3367, 2
      %v3369 = vmax.f32 %v3367, %v3368
      %v3370 = vrot.slane %v3369, 1
      %v3371 = vmax.f32 %v3369, %v3370
      %v3372 = vsel %vm3056, %v1176, -inf
      %v3373 = vrot.slane %v3372, 4
      %v3374 = vmax.f32 %v3372, %v3373
      %v3375 = vrot.slane %v3374, 2
      %v3376 = vmax.f32 %v3374, %v3375
      %v3377 = vrot.slane %v3376, 1
      %v3378 = vmax.f32 %v3376, %v3377
      %v3379 = vsel %vm3056, %v1179, -inf
      %v3380 = vrot.slane %v3379, 4
      %v3381 = vmax.f32 %v3379, %v3380
      %v3382 = vrot.slane %v3381, 2
      %v3383 = vmax.f32 %v3381, %v3382
      %v3384 = vrot.slane %v3383, 1
      %v3385 = vmax.f32 %v3383, %v3384
      %v3386 = vsel %vm3056, %v1182, -inf
      %v3387 = vrot.slane %v3386, 4
      %v3388 = vmax.f32 %v3386, %v3387
      %v3389 = vrot.slane %v3388, 2
      %v3390 = vmax.f32 %v3388, %v3389
      %v3391 = vrot.slane %v3390, 1
      %v3392 = vmax.f32 %v3390, %v3391
      %v3393 = vsel %vm3056, %v1185, -inf
      %v3394 = vrot.slane %v3393, 4
      %v3395 = vmax.f32 %v3393, %v3394
      %v3396 = vrot.slane %v3395, 2
      %v3397 = vmax.f32 %v3395, %v3396
      %v3398 = vrot.slane %v3397, 1
      %v3399 = vmax.f32 %v3397, %v3398
      %v3400 = vsel %vm3056, %v1188, -inf
      %v3401 = vrot.slane %v3400, 4
      %v3402 = vmax.f32 %v3400, %v3401
      %v3403 = vrot.slane %v3402, 2
      %v3404 = vmax.f32 %v3402, %v3403
      %v3405 = vrot.slane %v3404, 1
      %v3406 = vmax.f32 %v3404, %v3405
      %v3407 = vsel %vm3056, %v1191, -inf
      %v3408 = vrot.slane %v3407, 4
      %v3409 = vmax.f32 %v3407, %v3408
      %v3410 = vrot.slane %v3409, 2
      %v3411 = vmax.f32 %v3409, %v3410
      %v3412 = vrot.slane %v3411, 1
      %v3413 = vmax.f32 %v3411, %v3412
      %v3414 = vsel %vm3056, %v1194, -inf
      %v3415 = vrot.slane %v3414, 4
      %v3416 = vmax.f32 %v3414, %v3415
      %v3417 = vrot.slane %v3416, 2
      %v3418 = vmax.f32 %v3416, %v3417
      %v3419 = vrot.slane %v3418, 1
      %v3420 = vmax.f32 %v3418, %v3419
      %v3421 = vsel %vm3056, %v1197, -inf
      %v3422 = vrot.slane %v3421, 4
      %v3423 = vmax.f32 %v3421, %v3422
      %v3424 = vrot.slane %v3423, 2
      %v3425 = vmax.f32 %v3423, %v3424
      %v3426 = vrot.slane %v3425, 1
      %v3427 = vmax.f32 %v3425, %v3426
      %v3428 = vsel %vm3056, %v1200, -inf
      %v3429 = vrot.slane %v3428, 4
      %v3430 = vmax.f32 %v3428, %v3429
      %v3431 = vrot.slane %v3430, 2
      %v3432 = vmax.f32 %v3430, %v3431
      %v3433 = vrot.slane %v3432, 1
      %v3434 = vmax.f32 %v3432, %v3433
      %v3435 = vsel %vm3056, %v1203, -inf
      %v3436 = vrot.slane %v3435, 4
      %v3437 = vmax.f32 %v3435, %v3436
      %v3438 = vrot.slane %v3437, 2
      %v3439 = vmax.f32 %v3437, %v3438
      %v3440 = vrot.slane %v3439, 1
      %v3441 = vmax.f32 %v3439, %v3440
      %v3442 = vsel %vm3056, %v1206, -inf
      %v3443 = vrot.slane %v3442, 4
      %v3444 = vmax.f32 %v3442, %v3443
      %v3445 = vrot.slane %v3444, 2
      %v3446 = vmax.f32 %v3444, %v3445
      %v3447 = vrot.slane %v3446, 1
      %v3448 = vmax.f32 %v3446, %v3447
      %v3449 = vsel %vm3056, %v1209, -inf
      %v3450 = vrot.slane %v3449, 4
      %v3451 = vmax.f32 %v3449, %v3450
      %v3452 = vrot.slane %v3451, 2
      %v3453 = vmax.f32 %v3451, %v3452
      %v3454 = vrot.slane %v3453, 1
      %v3455 = vmax.f32 %v3453, %v3454
      %v3456 = vsel %vm3056, %v1212, -inf
      %v3457 = vrot.slane %v3456, 4
      %v3458 = vmax.f32 %v3456, %v3457
      %v3459 = vrot.slane %v3458, 2
      %v3460 = vmax.f32 %v3458, %v3459
      %v3461 = vrot.slane %v3460, 1
      %v3462 = vmax.f32 %v3460, %v3461
      %v3463 = vsel %vm3056, %v1215, -inf
      %v3464 = vrot.slane %v3463, 4
      %v3465 = vmax.f32 %v3463, %v3464
      %v3466 = vrot.slane %v3465, 2
      %v3467 = vmax.f32 %v3465, %v3466
      %v3468 = vrot.slane %v3467, 1
      %v3469 = vmax.f32 %v3467, %v3468
      %v3470 = vsel %vm3056, %v1218, -inf
      %v3471 = vrot.slane %v3470, 4
      %v3472 = vmax.f32 %v3470, %v3471
      %v3473 = vrot.slane %v3472, 2
      %v3474 = vmax.f32 %v3472, %v3473
      %v3475 = vrot.slane %v3474, 1
      %v3476 = vmax.f32 %v3474, %v3475
      %v3477 = vsel %vm3056, %v1221, -inf
      %v3478 = vrot.slane %v3477, 4
      %v3479 = vmax.f32 %v3477, %v3478
      %v3480 = vrot.slane %v3479, 2
      %v3481 = vmax.f32 %v3479, %v3480
      %v3482 = vrot.slane %v3481, 1
      %v3483 = vmax.f32 %v3481, %v3482
      %v3484 = vsel %vm3056, %v1224, -inf
      %v3485 = vrot.slane %v3484, 4
      %v3486 = vmax.f32 %v3484, %v3485
      %v3487 = vrot.slane %v3486, 2
      %v3488 = vmax.f32 %v3486, %v3487
      %v3489 = vrot.slane %v3488, 1
      %v3490 = vmax.f32 %v3488, %v3489
      %v3491 = vsel %vm3056, %v1227, -inf
      %v3492 = vrot.slane %v3491, 4
      %v3493 = vmax.f32 %v3491, %v3492
      %v3494 = vrot.slane %v3493, 2
      %v3495 = vmax.f32 %v3493, %v3494
      %v3496 = vrot.slane %v3495, 1
      %v3497 = vmax.f32 %v3495, %v3496
      %v3498 = vsel %vm3056, %v1230, -inf
      %v3499 = vrot.slane %v3498, 4
      %v3500 = vmax.f32 %v3498, %v3499
      %v3501 = vrot.slane %v3500, 2
      %v3502 = vmax.f32 %v3500, %v3501
      %v3503 = vrot.slane %v3502, 1
      %v3504 = vmax.f32 %v3502, %v3503
      %v3505 = vsel %vm3056, %v1233, -inf
      %v3506 = vrot.slane %v3505, 4
      %v3507 = vmax.f32 %v3505, %v3506
      %v3508 = vrot.slane %v3507, 2
      %v3509 = vmax.f32 %v3507, %v3508
      %v3510 = vrot.slane %v3509, 1
      %v3511 = vmax.f32 %v3509, %v3510
      %v3512 = vsel %vm3056, %v1236, -inf
      %v3513 = vrot.slane %v3512, 4
      %v3514 = vmax.f32 %v3512, %v3513
      %v3515 = vrot.slane %v3514, 2
      %v3516 = vmax.f32 %v3514, %v3515
      %v3517 = vrot.slane %v3516, 1
      %v3518 = vmax.f32 %v3516, %v3517
      %v3519 = vsel %vm3056, %v1239, -inf
      %v3520 = vrot.slane %v3519, 4
      %v3521 = vmax.f32 %v3519, %v3520
      %v3522 = vrot.slane %v3521, 2
      %v3523 = vmax.f32 %v3521, %v3522
      %v3524 = vrot.slane %v3523, 1
      %v3525 = vmax.f32 %v3523, %v3524
      %v3526 = vsel %vm3056, %v1242, -inf
      %v3527 = vrot.slane %v3526, 4
      %v3528 = vmax.f32 %v3526, %v3527
      %v3529 = vrot.slane %v3528, 2
      %v3530 = vmax.f32 %v3528, %v3529
      %v3531 = vrot.slane %v3530, 1
      %v3532 = vmax.f32 %v3530, %v3531
      %v3533 = vsel %vm3056, %v1245, -inf
      %v3534 = vrot.slane %v3533, 4
      %v3535 = vmax.f32 %v3533, %v3534
      %v3536 = vrot.slane %v3535, 2
      %v3537 = vmax.f32 %v3535, %v3536
      %v3538 = vrot.slane %v3537, 1
      %v3539 = vmax.f32 %v3537, %v3538
      %v3540 = vsel %vm3056, %v1248, -inf
      %v3541 = vrot.slane %v3540, 4
      %v3542 = vmax.f32 %v3540, %v3541
      %v3543 = vrot.slane %v3542, 2
      %v3544 = vmax.f32 %v3542, %v3543
      %v3545 = vrot.slane %v3544, 1
      %v3546 = vmax.f32 %v3544, %v3545
      %v3547 = vsel %vm3056, %v1251, -inf
      %v3548 = vrot.slane %v3547, 4
      %v3549 = vmax.f32 %v3547, %v3548
      %v3550 = vrot.slane %v3549, 2
      %v3551 = vmax.f32 %v3549, %v3550
      %v3552 = vrot.slane %v3551, 1
      %v3553 = vmax.f32 %v3551, %v3552
      %v3554 = vsel %vm3056, %v1254, -inf
      %v3555 = vrot.slane %v3554, 4
      %v3556 = vmax.f32 %v3554, %v3555
      %v3557 = vrot.slane %v3556, 2
      %v3558 = vmax.f32 %v3556, %v3557
      %v3559 = vrot.slane %v3558, 1
      %v3560 = vmax.f32 %v3558, %v3559
      %v3561 = vsel %vm3056, %v1257, -inf
      %v3562 = vrot.slane %v3561, 4
      %v3563 = vmax.f32 %v3561, %v3562
      %v3564 = vrot.slane %v3563, 2
      %v3565 = vmax.f32 %v3563, %v3564
      %v3566 = vrot.slane %v3565, 1
      %v3567 = vmax.f32 %v3565, %v3566
      %v3568 = vsel %vm3056, %v1260, -inf
      %v3569 = vrot.slane %v3568, 4
      %v3570 = vmax.f32 %v3568, %v3569
      %v3571 = vrot.slane %v3570, 2
      %v3572 = vmax.f32 %v3570, %v3571
      %v3573 = vrot.slane %v3572, 1
      %v3574 = vmax.f32 %v3572, %v3573
      %v3575 = vsel %vm3056, %v1263, -inf
      %v3576 = vrot.slane %v3575, 4
      %v3577 = vmax.f32 %v3575, %v3576
      %v3578 = vrot.slane %v3577, 2
      %v3579 = vmax.f32 %v3577, %v3578
      %v3580 = vrot.slane %v3579, 1
      %v3581 = vmax.f32 %v3579, %v3580
      %v3582 = vsel %vm3056, %v1266, -inf
      %v3583 = vrot.slane %v3582, 4
      %v3584 = vmax.f32 %v3582, %v3583
      %v3585 = vrot.slane %v3584, 2
      %v3586 = vmax.f32 %v3584, %v3585
      %v3587 = vrot.slane %v3586, 1
      %v3588 = vmax.f32 %v3586, %v3587
      %v3589 = vsel %vm3056, %v1269, -inf
      %v3590 = vrot.slane %v3589, 4
      %v3591 = vmax.f32 %v3589, %v3590
      %v3592 = vrot.slane %v3591, 2
      %v3593 = vmax.f32 %v3591, %v3592
      %v3594 = vrot.slane %v3593, 1
      %v3595 = vmax.f32 %v3593, %v3594
      %v3596 = vsel %vm3056, %v1272, -inf
      %v3597 = vrot.slane %v3596, 4
      %v3598 = vmax.f32 %v3596, %v3597
      %v3599 = vrot.slane %v3598, 2
      %v3600 = vmax.f32 %v3598, %v3599
      %v3601 = vrot.slane %v3600, 1
      %v3602 = vmax.f32 %v3600, %v3601
      %v3603 = vsel %vm3056, %v1275, -inf
      %v3604 = vrot.slane %v3603, 4
      %v3605 = vmax.f32 %v3603, %v3604
      %v3606 = vrot.slane %v3605, 2
      %v3607 = vmax.f32 %v3605, %v3606
      %v3608 = vrot.slane %v3607, 1
      %v3609 = vmax.f32 %v3607, %v3608
      %v3610 = vsel %vm3056, %v1278, -inf
      %v3611 = vrot.slane %v3610, 4
      %v3612 = vmax.f32 %v3610, %v3611
      %v3613 = vrot.slane %v3612, 2
      %v3614 = vmax.f32 %v3612, %v3613
      %v3615 = vrot.slane %v3614, 1
      %v3616 = vmax.f32 %v3614, %v3615
      %v3617 = vsel %vm3056, %v1281, -inf
      %v3618 = vrot.slane %v3617, 4
      %v3619 = vmax.f32 %v3617, %v3618
      %v3620 = vrot.slane %v3619, 2
      %v3621 = vmax.f32 %v3619, %v3620
      %v3622 = vrot.slane %v3621, 1
      %v3623 = vmax.f32 %v3621, %v3622
      %v3624 = vsel %vm3056, %v1284, -inf
      %v3625 = vrot.slane %v3624, 4
      %v3626 = vmax.f32 %v3624, %v3625
      %v3627 = vrot.slane %v3626, 2
      %v3628 = vmax.f32 %v3626, %v3627
      %v3629 = vrot.slane %v3628, 1
      %v3630 = vmax.f32 %v3628, %v3629
      %v3631 = vsel %vm3056, %v1287, -inf
      %v3632 = vrot.slane %v3631, 4
      %v3633 = vmax.f32 %v3631, %v3632
      %v3634 = vrot.slane %v3633, 2
      %v3635 = vmax.f32 %v3633, %v3634
      %v3636 = vrot.slane %v3635, 1
      %v3637 = vmax.f32 %v3635, %v3636
      %v3638 = vsel %vm3056, %v1290, -inf
      %v3639 = vrot.slane %v3638, 4
      %v3640 = vmax.f32 %v3638, %v3639
      %v3641 = vrot.slane %v3640, 2
      %v3642 = vmax.f32 %v3640, %v3641
      %v3643 = vrot.slane %v3642, 1
      %v3644 = vmax.f32 %v3642, %v3643
      %v3645 = vsel %vm3056, %v1293, -inf
      %v3646 = vrot.slane %v3645, 4
      %v3647 = vmax.f32 %v3645, %v3646
      %v3648 = vrot.slane %v3647, 2
      %v3649 = vmax.f32 %v3647, %v3648
      %v3650 = vrot.slane %v3649, 1
      %v3651 = vmax.f32 %v3649, %v3650
      %v3652 = vsel %vm3056, %v1296, -inf
      %v3653 = vrot.slane %v3652, 4
      %v3654 = vmax.f32 %v3652, %v3653
      %v3655 = vrot.slane %v3654, 2
      %v3656 = vmax.f32 %v3654, %v3655
      %v3657 = vrot.slane %v3656, 1
      %v3658 = vmax.f32 %v3656, %v3657
      %v3659 = vsel %vm3056, %v1299, -inf
      %v3660 = vrot.slane %v3659, 4
      %v3661 = vmax.f32 %v3659, %v3660
      %v3662 = vrot.slane %v3661, 2
      %v3663 = vmax.f32 %v3661, %v3662
      %v3664 = vrot.slane %v3663, 1
      %v3665 = vmax.f32 %v3663, %v3664
      %v3666 = vsel %vm3056, %v1302, -inf
      %v3667 = vrot.slane %v3666, 4
      %v3668 = vmax.f32 %v3666, %v3667
      %v3669 = vrot.slane %v3668, 2
      %v3670 = vmax.f32 %v3668, %v3669
      %v3671 = vrot.slane %v3670, 1
      %v3672 = vmax.f32 %v3670, %v3671
      %v3673 = vsel %vm3056, %v1305, -inf
      %v3674 = vrot.slane %v3673, 4
      %v3675 = vmax.f32 %v3673, %v3674
      %v3676 = vrot.slane %v3675, 2
      %v3677 = vmax.f32 %v3675, %v3676
      %v3678 = vrot.slane %v3677, 1
      %v3679 = vmax.f32 %v3677, %v3678
      %v3680 = vsel %vm3056, %v1308, -inf
      %v3681 = vrot.slane %v3680, 4
      %v3682 = vmax.f32 %v3680, %v3681
      %v3683 = vrot.slane %v3682, 2
      %v3684 = vmax.f32 %v3682, %v3683
      %v3685 = vrot.slane %v3684, 1
      %v3686 = vmax.f32 %v3684, %v3685
      %v3687 = vsel %vm3056, %v1311, -inf
      %v3688 = vrot.slane %v3687, 4
      %v3689 = vmax.f32 %v3687, %v3688
      %v3690 = vrot.slane %v3689, 2
      %v3691 = vmax.f32 %v3689, %v3690
      %v3692 = vrot.slane %v3691, 1
      %v3693 = vmax.f32 %v3691, %v3692
      %v3694 = vsel %vm3056, %v1314, -inf
      %v3695 = vrot.slane %v3694, 4
      %v3696 = vmax.f32 %v3694, %v3695
      %v3697 = vrot.slane %v3696, 2
      %v3698 = vmax.f32 %v3696, %v3697
      %v3699 = vrot.slane %v3698, 1
      %v3700 = vmax.f32 %v3698, %v3699
      %v3701 = vsel %vm3056, %v1317, -inf
      %v3702 = vrot.slane %v3701, 4
      %v3703 = vmax.f32 %v3701, %v3702
      %v3704 = vrot.slane %v3703, 2
      %v3705 = vmax.f32 %v3703, %v3704
      %v3706 = vrot.slane %v3705, 1
      %v3707 = vmax.f32 %v3705, %v3706
      %v3708 = vsel %vm3056, %v1320, -inf
      %v3709 = vrot.slane %v3708, 4
      %v3710 = vmax.f32 %v3708, %v3709
      %v3711 = vrot.slane %v3710, 2
      %v3712 = vmax.f32 %v3710, %v3711
      %v3713 = vrot.slane %v3712, 1
      %v3714 = vmax.f32 %v3712, %v3713
      %v3715 = vsel %vm3056, %v1323, -inf
      %v3716 = vrot.slane %v3715, 4
      %v3717 = vmax.f32 %v3715, %v3716
      %v3718 = vrot.slane %v3717, 2
      %v3719 = vmax.f32 %v3717, %v3718
      %v3720 = vrot.slane %v3719, 1
      %v3721 = vmax.f32 %v3719, %v3720
      %v3722 = vsel %vm3056, %v1326, -inf
      %v3723 = vrot.slane %v3722, 4
      %v3724 = vmax.f32 %v3722, %v3723
      %v3725 = vrot.slane %v3724, 2
      %v3726 = vmax.f32 %v3724, %v3725
      %v3727 = vrot.slane %v3726, 1
      %v3728 = vmax.f32 %v3726, %v3727
      %v3729 = vsel %vm3056, %v1329, -inf
      %v3730 = vrot.slane %v3729, 4
      %v3731 = vmax.f32 %v3729, %v3730
      %v3732 = vrot.slane %v3731, 2
      %v3733 = vmax.f32 %v3731, %v3732
      %v3734 = vrot.slane %v3733, 1
      %v3735 = vmax.f32 %v3733, %v3734
      %v3736 = vsel %vm3056, %v1332, -inf
      %v3737 = vrot.slane %v3736, 4
      %v3738 = vmax.f32 %v3736, %v3737
      %v3739 = vrot.slane %v3738, 2
      %v3740 = vmax.f32 %v3738, %v3739
      %v3741 = vrot.slane %v3740, 1
      %v3742 = vmax.f32 %v3740, %v3741
      %v3743 = vsel %vm3056, %v1335, -inf
      %v3744 = vrot.slane %v3743, 4
      %v3745 = vmax.f32 %v3743, %v3744
      %v3746 = vrot.slane %v3745, 2
      %v3747 = vmax.f32 %v3745, %v3746
      %v3748 = vrot.slane %v3747, 1
      %v3749 = vmax.f32 %v3747, %v3748
      %v3750 = vsel %vm3056, %v1338, -inf
      %v3751 = vrot.slane %v3750, 4
      %v3752 = vmax.f32 %v3750, %v3751
      %v3753 = vrot.slane %v3752, 2
      %v3754 = vmax.f32 %v3752, %v3753
      %v3755 = vrot.slane %v3754, 1
      %v3756 = vmax.f32 %v3754, %v3755
      %v3757 = vsel %vm3056, %v1341, -inf
      %v3758 = vrot.slane %v3757, 4
      %v3759 = vmax.f32 %v3757, %v3758
      %v3760 = vrot.slane %v3759, 2
      %v3761 = vmax.f32 %v3759, %v3760
      %v3762 = vrot.slane %v3761, 1
      %v3763 = vmax.f32 %v3761, %v3762
      %v3764 = vsel %vm3056, %v1344, -inf
      %v3765 = vrot.slane %v3764, 4
      %v3766 = vmax.f32 %v3764, %v3765
      %v3767 = vrot.slane %v3766, 2
      %v3768 = vmax.f32 %v3766, %v3767
      %v3769 = vrot.slane %v3768, 1
      %v3770 = vmax.f32 %v3768, %v3769
      %v3771 = vsel %vm3056, %v1347, -inf
      %v3772 = vrot.slane %v3771, 4
      %v3773 = vmax.f32 %v3771, %v3772
      %v3774 = vrot.slane %v3773, 2
      %v3775 = vmax.f32 %v3773, %v3774
      %v3776 = vrot.slane %v3775, 1
      %v3777 = vmax.f32 %v3775, %v3776
      %v3778 = vsel %vm3056, %v1350, -inf
      %v3779 = vrot.slane %v3778, 4
      %v3780 = vmax.f32 %v3778, %v3779
      %v3781 = vrot.slane %v3780, 2
      %v3782 = vmax.f32 %v3780, %v3781
      %v3783 = vrot.slane %v3782, 1
      %v3784 = vmax.f32 %v3782, %v3783
      %v3785 = vsel %vm3056, %v1353, -inf
      %v3786 = vrot.slane %v3785, 4
      %v3787 = vmax.f32 %v3785, %v3786
      %v3788 = vrot.slane %v3787, 2
      %v3789 = vmax.f32 %v3787, %v3788
      %v3790 = vrot.slane %v3789, 1
      %v3791 = vmax.f32 %v3789, %v3790
      %v3792 = vsel %vm3056, %v1356, -inf
      %v3793 = vrot.slane %v3792, 4
      %v3794 = vmax.f32 %v3792, %v3793
      %v3795 = vrot.slane %v3794, 2
      %v3796 = vmax.f32 %v3794, %v3795
      %v3797 = vrot.slane %v3796, 1
      %v3798 = vmax.f32 %v3796, %v3797
      %v3799 = vsel %vm3056, %v1359, -inf
      %v3800 = vrot.slane %v3799, 4
      %v3801 = vmax.f32 %v3799, %v3800
      %v3802 = vrot.slane %v3801, 2
      %v3803 = vmax.f32 %v3801, %v3802
      %v3804 = vrot.slane %v3803, 1
      %v3805 = vmax.f32 %v3803, %v3804
      %v3806 = vsel %vm3056, %v1362, -inf
      %v3807 = vrot.slane %v3806, 4
      %v3808 = vmax.f32 %v3806, %v3807
      %v3809 = vrot.slane %v3808, 2
      %v3810 = vmax.f32 %v3808, %v3809
      %v3811 = vrot.slane %v3810, 1
      %v3812 = vmax.f32 %v3810, %v3811
      %v3813 = vsel %vm3056, %v1365, -inf
      %v3814 = vrot.slane %v3813, 4
      %v3815 = vmax.f32 %v3813, %v3814
      %v3816 = vrot.slane %v3815, 2
      %v3817 = vmax.f32 %v3815, %v3816
      %v3818 = vrot.slane %v3817, 1
      %v3819 = vmax.f32 %v3817, %v3818
      %v3820 = vsel %vm3056, %v1368, -inf
      %v3821 = vrot.slane %v3820, 4
      %v3822 = vmax.f32 %v3820, %v3821
      %v3823 = vrot.slane %v3822, 2
      %v3824 = vmax.f32 %v3822, %v3823
      %v3825 = vrot.slane %v3824, 1
      %v3826 = vmax.f32 %v3824, %v3825
      %v3827 = vsel %vm3056, %v1371, -inf
      %v3828 = vrot.slane %v3827, 4
      %v3829 = vmax.f32 %v3827, %v3828
      %v3830 = vrot.slane %v3829, 2
      %v3831 = vmax.f32 %v3829, %v3830
      %v3832 = vrot.slane %v3831, 1
      %v3833 = vmax.f32 %v3831, %v3832
      %v3834 = vsel %vm3056, %v1374, -inf
      %v3835 = vrot.slane %v3834, 4
      %v3836 = vmax.f32 %v3834, %v3835
      %v3837 = vrot.slane %v3836, 2
      %v3838 = vmax.f32 %v3836, %v3837
      %v3839 = vrot.slane %v3838, 1
      %v3840 = vmax.f32 %v3838, %v3839
      %v3841 = vsel %vm3056, %v1377, -inf
      %v3842 = vrot.slane %v3841, 4
      %v3843 = vmax.f32 %v3841, %v3842
      %v3844 = vrot.slane %v3843, 2
      %v3845 = vmax.f32 %v3843, %v3844
      %v3846 = vrot.slane %v3845, 1
      %v3847 = vmax.f32 %v3845, %v3846
      %v3848 = vsel %vm3056, %v1380, -inf
      %v3849 = vrot.slane %v3848, 4
      %v3850 = vmax.f32 %v3848, %v3849
      %v3851 = vrot.slane %v3850, 2
      %v3852 = vmax.f32 %v3850, %v3851
      %v3853 = vrot.slane %v3852, 1
      %v3854 = vmax.f32 %v3852, %v3853
      %v3855 = vsel %vm3056, %v1383, -inf
      %v3856 = vrot.slane %v3855, 4
      %v3857 = vmax.f32 %v3855, %v3856
      %v3858 = vrot.slane %v3857, 2
      %v3859 = vmax.f32 %v3857, %v3858
      %v3860 = vrot.slane %v3859, 1
      %v3861 = vmax.f32 %v3859, %v3860
      %v3862 = vsel %vm3056, %v1386, -inf
      %v3863 = vrot.slane %v3862, 4
      %v3864 = vmax.f32 %v3862, %v3863
      %v3865 = vrot.slane %v3864, 2
      %v3866 = vmax.f32 %v3864, %v3865
      %v3867 = vrot.slane %v3866, 1
      %v3868 = vmax.f32 %v3866, %v3867
      %v3869 = vsel %vm3056, %v1389, -inf
      %v3870 = vrot.slane %v3869, 4
      %v3871 = vmax.f32 %v3869, %v3870
      %v3872 = vrot.slane %v3871, 2
      %v3873 = vmax.f32 %v3871, %v3872
      %v3874 = vrot.slane %v3873, 1
      %v3875 = vmax.f32 %v3873, %v3874
      %v3876 = vsel %vm3056, %v1392, -inf
      %v3877 = vrot.slane %v3876, 4
      %v3878 = vmax.f32 %v3876, %v3877
      %v3879 = vrot.slane %v3878, 2
      %v3880 = vmax.f32 %v3878, %v3879
      %v3881 = vrot.slane %v3880, 1
      %v3882 = vmax.f32 %v3880, %v3881
      %v3883 = vsel %vm3056, %v1395, -inf
      %v3884 = vrot.slane %v3883, 4
      %v3885 = vmax.f32 %v3883, %v3884
      %v3886 = vrot.slane %v3885, 2
      %v3887 = vmax.f32 %v3885, %v3886
      %v3888 = vrot.slane %v3887, 1
      %v3889 = vmax.f32 %v3887, %v3888
      %v3890 = vsel %vm3056, %v1398, -inf
      %v3891 = vrot.slane %v3890, 4
      %v3892 = vmax.f32 %v3890, %v3891
      %v3893 = vrot.slane %v3892, 2
      %v3894 = vmax.f32 %v3892, %v3893
      %v3895 = vrot.slane %v3894, 1
      %v3896 = vmax.f32 %v3894, %v3895
      %v3897 = vsel %vm3056, %v1401, -inf
      %v3898 = vrot.slane %v3897, 4
      %v3899 = vmax.f32 %v3897, %v3898
      %v3900 = vrot.slane %v3899, 2
      %v3901 = vmax.f32 %v3899, %v3900
      %v3902 = vrot.slane %v3901, 1
      %v3903 = vmax.f32 %v3901, %v3902
      %v3904 = vsel %vm3056, %v1404, -inf
      %v3905 = vrot.slane %v3904, 4
      %v3906 = vmax.f32 %v3904, %v3905
      %v3907 = vrot.slane %v3906, 2
      %v3908 = vmax.f32 %v3906, %v3907
      %v3909 = vrot.slane %v3908, 1
      %v3910 = vmax.f32 %v3908, %v3909
      %v3911 = vsel %vm3056, %v1407, -inf
      %v3912 = vrot.slane %v3911, 4
      %v3913 = vmax.f32 %v3911, %v3912
      %v3914 = vrot.slane %v3913, 2
      %v3915 = vmax.f32 %v3913, %v3914
      %v3916 = vrot.slane %v3915, 1
      %v3917 = vmax.f32 %v3915, %v3916
      %v3918 = vsel %vm3056, %v1410, -inf
      %v3919 = vrot.slane %v3918, 4
      %v3920 = vmax.f32 %v3918, %v3919
      %v3921 = vrot.slane %v3920, 2
      %v3922 = vmax.f32 %v3920, %v3921
      %v3923 = vrot.slane %v3922, 1
      %v3924 = vmax.f32 %v3922, %v3923
      %v3925 = vsel %vm3056, %v1413, -inf
      %v3926 = vrot.slane %v3925, 4
      %v3927 = vmax.f32 %v3925, %v3926
      %v3928 = vrot.slane %v3927, 2
      %v3929 = vmax.f32 %v3927, %v3928
      %v3930 = vrot.slane %v3929, 1
      %v3931 = vmax.f32 %v3929, %v3930
      %v3932 = vsel %vm3056, %v1416, -inf
      %v3933 = vrot.slane %v3932, 4
      %v3934 = vmax.f32 %v3932, %v3933
      %v3935 = vrot.slane %v3934, 2
      %v3936 = vmax.f32 %v3934, %v3935
      %v3937 = vrot.slane %v3936, 1
      %v3938 = vmax.f32 %v3936, %v3937
      %v3939 = vsel %vm3056, %v1419, -inf
      %v3940 = vrot.slane %v3939, 4
      %v3941 = vmax.f32 %v3939, %v3940
      %v3942 = vrot.slane %v3941, 2
      %v3943 = vmax.f32 %v3941, %v3942
      %v3944 = vrot.slane %v3943, 1
      %v3945 = vmax.f32 %v3943, %v3944
      %v3946 = vsel %vm3056, %v1422, -inf
      %v3947 = vrot.slane %v3946, 4
      %v3948 = vmax.f32 %v3946, %v3947
      %v3949 = vrot.slane %v3948, 2
      %v3950 = vmax.f32 %v3948, %v3949
      %v3951 = vrot.slane %v3950, 1
      %v3952 = vmax.f32 %v3950, %v3951
      %v3953 = vsel %vm3056, %v1425, -inf
      %v3954 = vrot.slane %v3953, 4
      %v3955 = vmax.f32 %v3953, %v3954
      %v3956 = vrot.slane %v3955, 2
      %v3957 = vmax.f32 %v3955, %v3956
      %v3958 = vrot.slane %v3957, 1
      %v3959 = vmax.f32 %v3957, %v3958
      %v3960 = vsel %vm3056, %v1428, -inf
      %v3961 = vrot.slane %v3960, 4
      %v3962 = vmax.f32 %v3960, %v3961
      %v3963 = vrot.slane %v3962, 2
      %v3964 = vmax.f32 %v3962, %v3963
      %v3965 = vrot.slane %v3964, 1
      %v3966 = vmax.f32 %v3964, %v3965
      %v3967 = vsel %vm3056, %v1431, -inf
      %v3968 = vrot.slane %v3967, 4
      %v3969 = vmax.f32 %v3967, %v3968
      %v3970 = vrot.slane %v3969, 2
      %v3971 = vmax.f32 %v3969, %v3970
      %v3972 = vrot.slane %v3971, 1
      %v3973 = vmax.f32 %v3971, %v3972
      %v3974 = vsel %vm3056, %v1434, -inf
      %v3975 = vrot.slane %v3974, 4
      %v3976 = vmax.f32 %v3974, %v3975
      %v3977 = vrot.slane %v3976, 2
      %v3978 = vmax.f32 %v3976, %v3977
      %v3979 = vrot.slane %v3978, 1
      %v3980 = vmax.f32 %v3978, %v3979
      %v3981 = vsel %vm3056, %v1437, -inf
      %v3982 = vrot.slane %v3981, 4
      %v3983 = vmax.f32 %v3981, %v3982
      %v3984 = vrot.slane %v3983, 2
      %v3985 = vmax.f32 %v3983, %v3984
      %v3986 = vrot.slane %v3985, 1
      %v3987 = vmax.f32 %v3985, %v3986
      %v3988 = vsel %vm3056, %v1440, -inf
      %v3989 = vrot.slane %v3988, 4
      %v3990 = vmax.f32 %v3988, %v3989
      %v3991 = vrot.slane %v3990, 2
      %v3992 = vmax.f32 %v3990, %v3991
      %v3993 = vrot.slane %v3992, 1
      %v3994 = vmax.f32 %v3992, %v3993
      %v3995 = vsel %vm3056, %v1443, -inf
      %v3996 = vrot.slane %v3995, 4
      %v3997 = vmax.f32 %v3995, %v3996
      %v3998 = vrot.slane %v3997, 2
      %v3999 = vmax.f32 %v3997, %v3998
      %v4000 = vrot.slane %v3999, 1
      %v4001 = vmax.f32 %v3999, %v4000
      %v4002 = vsel %vm3056, %v1446, -inf
      %v4003 = vrot.slane %v4002, 4
      %v4004 = vmax.f32 %v4002, %v4003
      %v4005 = vrot.slane %v4004, 2
      %v4006 = vmax.f32 %v4004, %v4005
      %v4007 = vrot.slane %v4006, 1
      %v4008 = vmax.f32 %v4006, %v4007
      %v4009 = vsel %vm3056, %v1449, -inf
      %v4010 = vrot.slane %v4009, 4
      %v4011 = vmax.f32 %v4009, %v4010
      %v4012 = vrot.slane %v4011, 2
      %v4013 = vmax.f32 %v4011, %v4012
      %v4014 = vrot.slane %v4013, 1
      %v4015 = vmax.f32 %v4013, %v4014
      %v4016 = vsel %vm3056, %v1452, -inf
      %v4017 = vrot.slane %v4016, 4
      %v4018 = vmax.f32 %v4016, %v4017
      %v4019 = vrot.slane %v4018, 2
      %v4020 = vmax.f32 %v4018, %v4019
      %v4021 = vrot.slane %v4020, 1
      %v4022 = vmax.f32 %v4020, %v4021
      %v4023 = vsel %vm3056, %v1455, -inf
      %v4024 = vrot.slane %v4023, 4
      %v4025 = vmax.f32 %v4023, %v4024
      %v4026 = vrot.slane %v4025, 2
      %v4027 = vmax.f32 %v4025, %v4026
      %v4028 = vrot.slane %v4027, 1
      %v4029 = vmax.f32 %v4027, %v4028
      %v4030 = vsel %vm3056, %v1458, -inf
      %v4031 = vrot.slane %v4030, 4
      %v4032 = vmax.f32 %v4030, %v4031
      %v4033 = vrot.slane %v4032, 2
      %v4034 = vmax.f32 %v4032, %v4033
      %v4035 = vrot.slane %v4034, 1
      %v4036 = vmax.f32 %v4034, %v4035
      %v4037 = vsel %vm3056, %v1461, -inf
      %v4038 = vrot.slane %v4037, 4
      %v4039 = vmax.f32 %v4037, %v4038
      %v4040 = vrot.slane %v4039, 2
      %v4041 = vmax.f32 %v4039, %v4040
      %v4042 = vrot.slane %v4041, 1
      %v4043 = vmax.f32 %v4041, %v4042
      %v4044 = vsel %vm3056, %v1464, -inf
      %v4045 = vrot.slane %v4044, 4
      %v4046 = vmax.f32 %v4044, %v4045
      %v4047 = vrot.slane %v4046, 2
      %v4048 = vmax.f32 %v4046, %v4047
      %v4049 = vrot.slane %v4048, 1
      %v4050 = vmax.f32 %v4048, %v4049
      %v4051 = vsel %vm3056, %v1467, -inf
      %v4052 = vrot.slane %v4051, 4
      %v4053 = vmax.f32 %v4051, %v4052
      %v4054 = vrot.slane %v4053, 2
      %v4055 = vmax.f32 %v4053, %v4054
      %v4056 = vrot.slane %v4055, 1
      %v4057 = vmax.f32 %v4055, %v4056
      %v4058 = vsel %vm3056, %v1470, -inf
      %v4059 = vrot.slane %v4058, 4
      %v4060 = vmax.f32 %v4058, %v4059
      %v4061 = vrot.slane %v4060, 2
      %v4062 = vmax.f32 %v4060, %v4061
      %v4063 = vrot.slane %v4062, 1
      %v4064 = vmax.f32 %v4062, %v4063
      %v4065 = vsel %vm3056, %v1473, -inf
      %v4066 = vrot.slane %v4065, 4
      %v4067 = vmax.f32 %v4065, %v4066
      %v4068 = vrot.slane %v4067, 2
      %v4069 = vmax.f32 %v4067, %v4068
      %v4070 = vrot.slane %v4069, 1
      %v4071 = vmax.f32 %v4069, %v4070
      %v4072 = vsel %vm3056, %v1476, -inf
      %v4073 = vrot.slane %v4072, 4
      %v4074 = vmax.f32 %v4072, %v4073
      %v4075 = vrot.slane %v4074, 2
      %v4076 = vmax.f32 %v4074, %v4075
      %v4077 = vrot.slane %v4076, 1
      %v4078 = vmax.f32 %v4076, %v4077
      %v4079 = vsel %vm3056, %v1479, -inf
      %v4080 = vrot.slane %v4079, 4
      %v4081 = vmax.f32 %v4079, %v4080
      %v4082 = vrot.slane %v4081, 2
      %v4083 = vmax.f32 %v4081, %v4082
      %v4084 = vrot.slane %v4083, 1
      %v4085 = vmax.f32 %v4083, %v4084
      %v4086 = vsel %vm3056, %v1482, -inf
      %v4087 = vrot.slane %v4086, 4
      %v4088 = vmax.f32 %v4086, %v4087
      %v4089 = vrot.slane %v4088, 2
      %v4090 = vmax.f32 %v4088, %v4089
      %v4091 = vrot.slane %v4090, 1
      %v4092 = vmax.f32 %v4090, %v4091
      %v4093 = vsel %vm3056, %v1485, -inf
      %v4094 = vrot.slane %v4093, 4
      %v4095 = vmax.f32 %v4093, %v4094
      %v4096 = vrot.slane %v4095, 2
      %v4097 = vmax.f32 %v4095, %v4096
      %v4098 = vrot.slane %v4097, 1
      %v4099 = vmax.f32 %v4097, %v4098
      %v4100 = vsel %vm3056, %v1488, -inf
      %v4101 = vrot.slane %v4100, 4
      %v4102 = vmax.f32 %v4100, %v4101
      %v4103 = vrot.slane %v4102, 2
      %v4104 = vmax.f32 %v4102, %v4103
      %v4105 = vrot.slane %v4104, 1
      %v4106 = vmax.f32 %v4104, %v4105
      %v4107 = vsel %vm3056, %v1491, -inf
      %v4108 = vrot.slane %v4107, 4
      %v4109 = vmax.f32 %v4107, %v4108
      %v4110 = vrot.slane %v4109, 2
      %v4111 = vmax.f32 %v4109, %v4110
      %v4112 = vrot.slane %v4111, 1
      %v4113 = vmax.f32 %v4111, %v4112
      %v4114 = vsel %vm3056, %v1494, -inf
      %v4115 = vrot.slane %v4114, 4
      %v4116 = vmax.f32 %v4114, %v4115
      %v4117 = vrot.slane %v4116, 2
      %v4118 = vmax.f32 %v4116, %v4117
      %v4119 = vrot.slane %v4118, 1
      %v4120 = vmax.f32 %v4118, %v4119
      %v4121 = vsel %vm3056, %v1497, -inf
      %v4122 = vrot.slane %v4121, 4
      %v4123 = vmax.f32 %v4121, %v4122
      %v4124 = vrot.slane %v4123, 2
      %v4125 = vmax.f32 %v4123, %v4124
      %v4126 = vrot.slane %v4125, 1
      %v4127 = vmax.f32 %v4125, %v4126
      %v4128 = vsel %vm3056, %v1500, -inf
      %v4129 = vrot.slane %v4128, 4
      %v4130 = vmax.f32 %v4128, %v4129
      %v4131 = vrot.slane %v4130, 2
      %v4132 = vmax.f32 %v4130, %v4131
      %v4133 = vrot.slane %v4132, 1
      %v4134 = vmax.f32 %v4132, %v4133
      %v4135 = vsel %vm3056, %v1503, -inf
      %v4136 = vrot.slane %v4135, 4
      %v4137 = vmax.f32 %v4135, %v4136
      %v4138 = vrot.slane %v4137, 2
      %v4139 = vmax.f32 %v4137, %v4138
      %v4140 = vrot.slane %v4139, 1
      %v4141 = vmax.f32 %v4139, %v4140
      %v4142 = vsel %vm3056, %v1506, -inf
      %v4143 = vrot.slane %v4142, 4
      %v4144 = vmax.f32 %v4142, %v4143
      %v4145 = vrot.slane %v4144, 2
      %v4146 = vmax.f32 %v4144, %v4145
      %v4147 = vrot.slane %v4146, 1
      %v4148 = vmax.f32 %v4146, %v4147
      %v4149 = vsel %vm3056, %v1509, -inf
      %v4150 = vrot.slane %v4149, 4
      %v4151 = vmax.f32 %v4149, %v4150
      %v4152 = vrot.slane %v4151, 2
      %v4153 = vmax.f32 %v4151, %v4152
      %v4154 = vrot.slane %v4153, 1
      %v4155 = vmax.f32 %v4153, %v4154
      %v4156 = vsel %vm3056, %v1512, -inf
      %v4157 = vrot.slane %v4156, 4
      %v4158 = vmax.f32 %v4156, %v4157
      %v4159 = vrot.slane %v4158, 2
      %v4160 = vmax.f32 %v4158, %v4159
      %v4161 = vrot.slane %v4160, 1
      %v4162 = vmax.f32 %v4160, %v4161
      %v4163 = vsel %vm3056, %v1515, -inf
      %v4164 = vrot.slane %v4163, 4
      %v4165 = vmax.f32 %v4163, %v4164
      %v4166 = vrot.slane %v4165, 2
      %v4167 = vmax.f32 %v4165, %v4166
      %v4168 = vrot.slane %v4167, 1
      %v4169 = vmax.f32 %v4167, %v4168
      %v4170 = vsel %vm3056, %v1518, -inf
      %v4171 = vrot.slane %v4170, 4
      %v4172 = vmax.f32 %v4170, %v4171
      %v4173 = vrot.slane %v4172, 2
      %v4174 = vmax.f32 %v4172, %v4173
      %v4175 = vrot.slane %v4174, 1
      %v4176 = vmax.f32 %v4174, %v4175
      %v4177 = vsel %vm3056, %v1521, -inf
      %v4178 = vrot.slane %v4177, 4
      %v4179 = vmax.f32 %v4177, %v4178
      %v4180 = vrot.slane %v4179, 2
      %v4181 = vmax.f32 %v4179, %v4180
      %v4182 = vrot.slane %v4181, 1
      %v4183 = vmax.f32 %v4181, %v4182
      %v4184 = vsel %vm3056, %v1524, -inf
      %v4185 = vrot.slane %v4184, 4
      %v4186 = vmax.f32 %v4184, %v4185
      %v4187 = vrot.slane %v4186, 2
      %v4188 = vmax.f32 %v4186, %v4187
      %v4189 = vrot.slane %v4188, 1
      %v4190 = vmax.f32 %v4188, %v4189
      %v4191 = vsel %vm3056, %v1527, -inf
      %v4192 = vrot.slane %v4191, 4
      %v4193 = vmax.f32 %v4191, %v4192
      %v4194 = vrot.slane %v4193, 2
      %v4195 = vmax.f32 %v4193, %v4194
      %v4196 = vrot.slane %v4195, 1
      %v4197 = vmax.f32 %v4195, %v4196
      %v4198 = vsel %vm3056, %v1530, -inf
      %v4199 = vrot.slane %v4198, 4
      %v4200 = vmax.f32 %v4198, %v4199
      %v4201 = vrot.slane %v4200, 2
      %v4202 = vmax.f32 %v4200, %v4201
      %v4203 = vrot.slane %v4202, 1
      %v4204 = vmax.f32 %v4202, %v4203
      %v4205 = vsel %vm3056, %v1533, -inf
      %v4206 = vrot.slane %v4205, 4
      %v4207 = vmax.f32 %v4205, %v4206
      %v4208 = vrot.slane %v4207, 2
      %v4209 = vmax.f32 %v4207, %v4208
      %v4210 = vrot.slane %v4209, 1
      %v4211 = vmax.f32 %v4209, %v4210
      %v4212 = vsel %vm3056, %v1536, -inf
      %v4213 = vrot.slane %v4212, 4
      %v4214 = vmax.f32 %v4212, %v4213
      %v4215 = vrot.slane %v4214, 2
      %v4216 = vmax.f32 %v4214, %v4215
      %v4217 = vrot.slane %v4216, 1
      %v4218 = vmax.f32 %v4216, %v4217
      %v4219 = vsel %vm3056, %v1539, -inf
      %v4220 = vrot.slane %v4219, 4
      %v4221 = vmax.f32 %v4219, %v4220
      %v4222 = vrot.slane %v4221, 2
      %v4223 = vmax.f32 %v4221, %v4222
      %v4224 = vrot.slane %v4223, 1
      %v4225 = vmax.f32 %v4223, %v4224
      %v4226 = vsel %vm3056, %v1542, -inf
      %v4227 = vrot.slane %v4226, 4
      %v4228 = vmax.f32 %v4226, %v4227
      %v4229 = vrot.slane %v4228, 2
      %v4230 = vmax.f32 %v4228, %v4229
      %v4231 = vrot.slane %v4230, 1
      %v4232 = vmax.f32 %v4230, %v4231
      %v4233 = vsel %vm3056, %v1545, -inf
      %v4234 = vrot.slane %v4233, 4
      %v4235 = vmax.f32 %v4233, %v4234
      %v4236 = vrot.slane %v4235, 2
      %v4237 = vmax.f32 %v4235, %v4236
      %v4238 = vrot.slane %v4237, 1
      %v4239 = vmax.f32 %v4237, %v4238
      %v4240 = vsel %vm3056, %v1548, -inf
      %v4241 = vrot.slane %v4240, 4
      %v4242 = vmax.f32 %v4240, %v4241
      %v4243 = vrot.slane %v4242, 2
      %v4244 = vmax.f32 %v4242, %v4243
      %v4245 = vrot.slane %v4244, 1
      %v4246 = vmax.f32 %v4244, %v4245
      %v4247 = vsel %vm3056, %v1551, -inf
      %v4248 = vrot.slane %v4247, 4
      %v4249 = vmax.f32 %v4247, %v4248
      %v4250 = vrot.slane %v4249, 2
      %v4251 = vmax.f32 %v4249, %v4250
      %v4252 = vrot.slane %v4251, 1
      %v4253 = vmax.f32 %v4251, %v4252
      %v4254 = vsel %vm3056, %v1554, -inf
      %v4255 = vrot.slane %v4254, 4
      %v4256 = vmax.f32 %v4254, %v4255
      %v4257 = vrot.slane %v4256, 2
      %v4258 = vmax.f32 %v4256, %v4257
      %v4259 = vrot.slane %v4258, 1
      %v4260 = vmax.f32 %v4258, %v4259
      %v4261 = vsel %vm3056, %v1557, -inf
      %v4262 = vrot.slane %v4261, 4
      %v4263 = vmax.f32 %v4261, %v4262
      %v4264 = vrot.slane %v4263, 2
      %v4265 = vmax.f32 %v4263, %v4264
      %v4266 = vrot.slane %v4265, 1
      %v4267 = vmax.f32 %v4265, %v4266
      %v4268 = vsel %vm3056, %v1560, -inf
      %v4269 = vrot.slane %v4268, 4
      %v4270 = vmax.f32 %v4268, %v4269
      %v4271 = vrot.slane %v4270, 2
      %v4272 = vmax.f32 %v4270, %v4271
      %v4273 = vrot.slane %v4272, 1
      %v4274 = vmax.f32 %v4272, %v4273
      %v4275 = vsel %vm3056, %v1563, -inf
      %v4276 = vrot.slane %v4275, 4
      %v4277 = vmax.f32 %v4275, %v4276
      %v4278 = vrot.slane %v4277, 2
      %v4279 = vmax.f32 %v4277, %v4278
      %v4280 = vrot.slane %v4279, 1
      %v4281 = vmax.f32 %v4279, %v4280
      %v4282 = vsel %vm3056, %v1566, -inf
      %v4283 = vrot.slane %v4282, 4
      %v4284 = vmax.f32 %v4282, %v4283
      %v4285 = vrot.slane %v4284, 2
      %v4286 = vmax.f32 %v4284, %v4285
      %v4287 = vrot.slane %v4286, 1
      %v4288 = vmax.f32 %v4286, %v4287
      %v4289 = vsel %vm3056, %v1569, -inf
      %v4290 = vrot.slane %v4289, 4
      %v4291 = vmax.f32 %v4289, %v4290
      %v4292 = vrot.slane %v4291, 2
      %v4293 = vmax.f32 %v4291, %v4292
      %v4294 = vrot.slane %v4293, 1
      %v4295 = vmax.f32 %v4293, %v4294
      %v4296 = vsel %vm3056, %v1572, -inf
      %v4297 = vrot.slane %v4296, 4
      %v4298 = vmax.f32 %v4296, %v4297
      %v4299 = vrot.slane %v4298, 2
      %v4300 = vmax.f32 %v4298, %v4299
      %v4301 = vrot.slane %v4300, 1
      %v4302 = vmax.f32 %v4300, %v4301
      %v4303 = vsel %vm3056, %v1575, -inf
      %v4304 = vrot.slane %v4303, 4
      %v4305 = vmax.f32 %v4303, %v4304
      %v4306 = vrot.slane %v4305, 2
      %v4307 = vmax.f32 %v4305, %v4306
      %v4308 = vrot.slane %v4307, 1
      %v4309 = vmax.f32 %v4307, %v4308
      %v4310 = vsel %vm3056, %v1578, -inf
      %v4311 = vrot.slane %v4310, 4
      %v4312 = vmax.f32 %v4310, %v4311
      %v4313 = vrot.slane %v4312, 2
      %v4314 = vmax.f32 %v4312, %v4313
      %v4315 = vrot.slane %v4314, 1
      %v4316 = vmax.f32 %v4314, %v4315
      %v4317 = vsel %vm3056, %v1581, -inf
      %v4318 = vrot.slane %v4317, 4
      %v4319 = vmax.f32 %v4317, %v4318
      %v4320 = vrot.slane %v4319, 2
      %v4321 = vmax.f32 %v4319, %v4320
      %v4322 = vrot.slane %v4321, 1
      %v4323 = vmax.f32 %v4321, %v4322
      %v4324 = vsel %vm3056, %v1584, -inf
      %v4325 = vrot.slane %v4324, 4
      %v4326 = vmax.f32 %v4324, %v4325
      %v4327 = vrot.slane %v4326, 2
      %v4328 = vmax.f32 %v4326, %v4327
      %v4329 = vrot.slane %v4328, 1
      %v4330 = vmax.f32 %v4328, %v4329
      %v4331 = vsel %vm3056, %v1587, -inf
      %v4332 = vrot.slane %v4331, 4
      %v4333 = vmax.f32 %v4331, %v4332
      %v4334 = vrot.slane %v4333, 2
      %v4335 = vmax.f32 %v4333, %v4334
      %v4336 = vrot.slane %v4335, 1
      %v4337 = vmax.f32 %v4335, %v4336
      %v4338 = vsel %vm3056, %v1590, -inf
      %v4339 = vrot.slane %v4338, 4
      %v4340 = vmax.f32 %v4338, %v4339
      %v4341 = vrot.slane %v4340, 2
      %v4342 = vmax.f32 %v4340, %v4341
      %v4343 = vrot.slane %v4342, 1
      %v4344 = vmax.f32 %v4342, %v4343
      %v4345 = vsel %vm3056, %v1593, -inf
      %v4346 = vrot.slane %v4345, 4
      %v4347 = vmax.f32 %v4345, %v4346
      %v4348 = vrot.slane %v4347, 2
      %v4349 = vmax.f32 %v4347, %v4348
      %v4350 = vrot.slane %v4349, 1
      %v4351 = vmax.f32 %v4349, %v4350
      %v4352 = vsel %vm3056, %v1596, -inf
      %v4353 = vrot.slane %v4352, 4
      %v4354 = vmax.f32 %v4352, %v4353
      %v4355 = vrot.slane %v4354, 2
      %v4356 = vmax.f32 %v4354, %v4355
      %v4357 = vrot.slane %v4356, 1
      %v4358 = vmax.f32 %v4356, %v4357
      %v4359 = vsel %vm3056, %v1599, -inf
      %v4360 = vrot.slane %v4359, 4
      %v4361 = vmax.f32 %v4359, %v4360
      %v4362 = vrot.slane %v4361, 2
      %v4363 = vmax.f32 %v4361, %v4362
      %v4364 = vrot.slane %v4363, 1
      %v4365 = vmax.f32 %v4363, %v4364
      %v4366 = vsel %vm3056, %v1602, -inf
      %v4367 = vrot.slane %v4366, 4
      %v4368 = vmax.f32 %v4366, %v4367
      %v4369 = vrot.slane %v4368, 2
      %v4370 = vmax.f32 %v4368, %v4369
      %v4371 = vrot.slane %v4370, 1
      %v4372 = vmax.f32 %v4370, %v4371
      %v4373 = vsel %vm3056, %v1605, -inf
      %v4374 = vrot.slane %v4373, 4
      %v4375 = vmax.f32 %v4373, %v4374
      %v4376 = vrot.slane %v4375, 2
      %v4377 = vmax.f32 %v4375, %v4376
      %v4378 = vrot.slane %v4377, 1
      %v4379 = vmax.f32 %v4377, %v4378
      %v4380 = vsel %vm3056, %v1608, -inf
      %v4381 = vrot.slane %v4380, 4
      %v4382 = vmax.f32 %v4380, %v4381
      %v4383 = vrot.slane %v4382, 2
      %v4384 = vmax.f32 %v4382, %v4383
      %v4385 = vrot.slane %v4384, 1
      %v4386 = vmax.f32 %v4384, %v4385
      %v4387 = vsel %vm3056, %v1611, -inf
      %v4388 = vrot.slane %v4387, 4
      %v4389 = vmax.f32 %v4387, %v4388
      %v4390 = vrot.slane %v4389, 2
      %v4391 = vmax.f32 %v4389, %v4390
      %v4392 = vrot.slane %v4391, 1
      %v4393 = vmax.f32 %v4391, %v4392
      %v4394 = vsel %vm3056, %v1614, -inf
      %v4395 = vrot.slane %v4394, 4
      %v4396 = vmax.f32 %v4394, %v4395
      %v4397 = vrot.slane %v4396, 2
      %v4398 = vmax.f32 %v4396, %v4397
      %v4399 = vrot.slane %v4398, 1
      %v4400 = vmax.f32 %v4398, %v4399
      %v4401 = vsel %vm3056, %v1617, -inf
      %v4402 = vrot.slane %v4401, 4
      %v4403 = vmax.f32 %v4401, %v4402
      %v4404 = vrot.slane %v4403, 2
      %v4405 = vmax.f32 %v4403, %v4404
      %v4406 = vrot.slane %v4405, 1
      %v4407 = vmax.f32 %v4405, %v4406
      %v4408 = vsel %vm3056, %v1620, -inf
      %v4409 = vrot.slane %v4408, 4
      %v4410 = vmax.f32 %v4408, %v4409
      %v4411 = vrot.slane %v4410, 2
      %v4412 = vmax.f32 %v4410, %v4411
      %v4413 = vrot.slane %v4412, 1
      %v4414 = vmax.f32 %v4412, %v4413
      %v4415 = vsel %vm3056, %v1623, -inf
      %v4416 = vrot.slane %v4415, 4
      %v4417 = vmax.f32 %v4415, %v4416
      %v4418 = vrot.slane %v4417, 2
      %v4419 = vmax.f32 %v4417, %v4418
      %v4420 = vrot.slane %v4419, 1
      %v4421 = vmax.f32 %v4419, %v4420
      %v4422 = vsel %vm3056, %v1626, -inf
      %v4423 = vrot.slane %v4422, 4
      %v4424 = vmax.f32 %v4422, %v4423
      %v4425 = vrot.slane %v4424, 2
      %v4426 = vmax.f32 %v4424, %v4425
      %v4427 = vrot.slane %v4426, 1
      %v4428 = vmax.f32 %v4426, %v4427
      %v4429 = vsel %vm3056, %v1629, -inf
      %v4430 = vrot.slane %v4429, 4
      %v4431 = vmax.f32 %v4429, %v4430
      %v4432 = vrot.slane %v4431, 2
      %v4433 = vmax.f32 %v4431, %v4432
      %v4434 = vrot.slane %v4433, 1
      %v4435 = vmax.f32 %v4433, %v4434
      %v4436 = vsel %vm3056, %v1632, -inf
      %v4437 = vrot.slane %v4436, 4
      %v4438 = vmax.f32 %v4436, %v4437
      %v4439 = vrot.slane %v4438, 2
      %v4440 = vmax.f32 %v4438, %v4439
      %v4441 = vrot.slane %v4440, 1
      %v4442 = vmax.f32 %v4440, %v4441
      %v4443 = vsel %vm3056, %v1635, -inf
      %v4444 = vrot.slane %v4443, 4
      %v4445 = vmax.f32 %v4443, %v4444
      %v4446 = vrot.slane %v4445, 2
      %v4447 = vmax.f32 %v4445, %v4446
      %v4448 = vrot.slane %v4447, 1
      %v4449 = vmax.f32 %v4447, %v4448
      %v4450 = vsel %vm3056, %v1638, -inf
      %v4451 = vrot.slane %v4450, 4
      %v4452 = vmax.f32 %v4450, %v4451
      %v4453 = vrot.slane %v4452, 2
      %v4454 = vmax.f32 %v4452, %v4453
      %v4455 = vrot.slane %v4454, 1
      %v4456 = vmax.f32 %v4454, %v4455
      %v4457 = vsel %vm3056, %v1641, -inf
      %v4458 = vrot.slane %v4457, 4
      %v4459 = vmax.f32 %v4457, %v4458
      %v4460 = vrot.slane %v4459, 2
      %v4461 = vmax.f32 %v4459, %v4460
      %v4462 = vrot.slane %v4461, 1
      %v4463 = vmax.f32 %v4461, %v4462
      %v4464 = vsel %vm3056, %v1644, -inf
      %v4465 = vrot.slane %v4464, 4
      %v4466 = vmax.f32 %v4464, %v4465
      %v4467 = vrot.slane %v4466, 2
      %v4468 = vmax.f32 %v4466, %v4467
      %v4469 = vrot.slane %v4468, 1
      %v4470 = vmax.f32 %v4468, %v4469
      %v4471 = vsel %vm3056, %v1647, -inf
      %v4472 = vrot.slane %v4471, 4
      %v4473 = vmax.f32 %v4471, %v4472
      %v4474 = vrot.slane %v4473, 2
      %v4475 = vmax.f32 %v4473, %v4474
      %v4476 = vrot.slane %v4475, 1
      %v4477 = vmax.f32 %v4475, %v4476
      %v4478 = vsel %vm3056, %v1650, -inf
      %v4479 = vrot.slane %v4478, 4
      %v4480 = vmax.f32 %v4478, %v4479
      %v4481 = vrot.slane %v4480, 2
      %v4482 = vmax.f32 %v4480, %v4481
      %v4483 = vrot.slane %v4482, 1
      %v4484 = vmax.f32 %v4482, %v4483
      %v4485 = vsel %vm3056, %v1653, -inf
      %v4486 = vrot.slane %v4485, 4
      %v4487 = vmax.f32 %v4485, %v4486
      %v4488 = vrot.slane %v4487, 2
      %v4489 = vmax.f32 %v4487, %v4488
      %v4490 = vrot.slane %v4489, 1
      %v4491 = vmax.f32 %v4489, %v4490
      %v4492 = vsel %vm3056, %v1656, -inf
      %v4493 = vrot.slane %v4492, 4
      %v4494 = vmax.f32 %v4492, %v4493
      %v4495 = vrot.slane %v4494, 2
      %v4496 = vmax.f32 %v4494, %v4495
      %v4497 = vrot.slane %v4496, 1
      %v4498 = vmax.f32 %v4496, %v4497
      %v4499 = vsel %vm3056, %v1659, -inf
      %v4500 = vrot.slane %v4499, 4
      %v4501 = vmax.f32 %v4499, %v4500
      %v4502 = vrot.slane %v4501, 2
      %v4503 = vmax.f32 %v4501, %v4502
      %v4504 = vrot.slane %v4503, 1
      %v4505 = vmax.f32 %v4503, %v4504
      %v4506 = vsel %vm3056, %v1662, -inf
      %v4507 = vrot.slane %v4506, 4
      %v4508 = vmax.f32 %v4506, %v4507
      %v4509 = vrot.slane %v4508, 2
      %v4510 = vmax.f32 %v4508, %v4509
      %v4511 = vrot.slane %v4510, 1
      %v4512 = vmax.f32 %v4510, %v4511
      %v4513 = vsel %vm3056, %v1665, -inf
      %v4514 = vrot.slane %v4513, 4
      %v4515 = vmax.f32 %v4513, %v4514
      %v4516 = vrot.slane %v4515, 2
      %v4517 = vmax.f32 %v4515, %v4516
      %v4518 = vrot.slane %v4517, 1
      %v4519 = vmax.f32 %v4517, %v4518
      %v4520 = vsel %vm3056, %v1668, -inf
      %v4521 = vrot.slane %v4520, 4
      %v4522 = vmax.f32 %v4520, %v4521
      %v4523 = vrot.slane %v4522, 2
      %v4524 = vmax.f32 %v4522, %v4523
      %v4525 = vrot.slane %v4524, 1
      %v4526 = vmax.f32 %v4524, %v4525
      %v4527 = vsel %vm3056, %v1671, -inf
      %v4528 = vrot.slane %v4527, 4
      %v4529 = vmax.f32 %v4527, %v4528
      %v4530 = vrot.slane %v4529, 2
      %v4531 = vmax.f32 %v4529, %v4530
      %v4532 = vrot.slane %v4531, 1
      %v4533 = vmax.f32 %v4531, %v4532
      %v4534 = vsel %vm3056, %v1674, -inf
      %v4535 = vrot.slane %v4534, 4
      %v4536 = vmax.f32 %v4534, %v4535
      %v4537 = vrot.slane %v4536, 2
      %v4538 = vmax.f32 %v4536, %v4537
      %v4539 = vrot.slane %v4538, 1
      %v4540 = vmax.f32 %v4538, %v4539
      %v4541 = vsel %vm3056, %v1677, -inf
      %v4542 = vrot.slane %v4541, 4
      %v4543 = vmax.f32 %v4541, %v4542
      %v4544 = vrot.slane %v4543, 2
      %v4545 = vmax.f32 %v4543, %v4544
      %v4546 = vrot.slane %v4545, 1
      %v4547 = vmax.f32 %v4545, %v4546
      %v4548 = vsel %vm3056, %v1680, -inf
      %v4549 = vrot.slane %v4548, 4
      %v4550 = vmax.f32 %v4548, %v4549
      %v4551 = vrot.slane %v4550, 2
      %v4552 = vmax.f32 %v4550, %v4551
      %v4553 = vrot.slane %v4552, 1
      %v4554 = vmax.f32 %v4552, %v4553
      %v4555 = vsel %vm3056, %v1683, -inf
      %v4556 = vrot.slane %v4555, 4
      %v4557 = vmax.f32 %v4555, %v4556
      %v4558 = vrot.slane %v4557, 2
      %v4559 = vmax.f32 %v4557, %v4558
      %v4560 = vrot.slane %v4559, 1
      %v4561 = vmax.f32 %v4559, %v4560
      %v4562 = vsel %vm3056, %v1686, -inf
      %v4563 = vrot.slane %v4562, 4
      %v4564 = vmax.f32 %v4562, %v4563
      %v4565 = vrot.slane %v4564, 2
      %v4566 = vmax.f32 %v4564, %v4565
      %v4567 = vrot.slane %v4566, 1
      %v4568 = vmax.f32 %v4566, %v4567
      %v4569 = vsel %vm3056, %v1689, -inf
      %v4570 = vrot.slane %v4569, 4
      %v4571 = vmax.f32 %v4569, %v4570
      %v4572 = vrot.slane %v4571, 2
      %v4573 = vmax.f32 %v4571, %v4572
      %v4574 = vrot.slane %v4573, 1
      %v4575 = vmax.f32 %v4573, %v4574
      %v4576 = vsel %vm3056, %v1692, -inf
      %v4577 = vrot.slane %v4576, 4
      %v4578 = vmax.f32 %v4576, %v4577
      %v4579 = vrot.slane %v4578, 2
      %v4580 = vmax.f32 %v4578, %v4579
      %v4581 = vrot.slane %v4580, 1
      %v4582 = vmax.f32 %v4580, %v4581
      %v4583 = vsel %vm3056, %v1695, -inf
      %v4584 = vrot.slane %v4583, 4
      %v4585 = vmax.f32 %v4583, %v4584
      %v4586 = vrot.slane %v4585, 2
      %v4587 = vmax.f32 %v4585, %v4586
      %v4588 = vrot.slane %v4587, 1
      %v4589 = vmax.f32 %v4587, %v4588
      %v4590 = vsel %vm3056, %v1698, -inf
      %v4591 = vrot.slane %v4590, 4
      %v4592 = vmax.f32 %v4590, %v4591
      %v4593 = vrot.slane %v4592, 2
      %v4594 = vmax.f32 %v4592, %v4593
      %v4595 = vrot.slane %v4594, 1
      %v4596 = vmax.f32 %v4594, %v4595
      %v4597 = vsel %vm3056, %v1701, -inf
      %v4598 = vrot.slane %v4597, 4
      %v4599 = vmax.f32 %v4597, %v4598
      %v4600 = vrot.slane %v4599, 2
      %v4601 = vmax.f32 %v4599, %v4600
      %v4602 = vrot.slane %v4601, 1
      %v4603 = vmax.f32 %v4601, %v4602
      %v4604 = vsel %vm3056, %v1704, -inf
      %v4605 = vrot.slane %v4604, 4
      %v4606 = vmax.f32 %v4604, %v4605
      %v4607 = vrot.slane %v4606, 2
      %v4608 = vmax.f32 %v4606, %v4607
      %v4609 = vrot.slane %v4608, 1
      %v4610 = vmax.f32 %v4608, %v4609
      %v4611 = vsel %vm3056, %v1707, -inf
      %v4612 = vrot.slane %v4611, 4
      %v4613 = vmax.f32 %v4611, %v4612
      %v4614 = vrot.slane %v4613, 2
      %v4615 = vmax.f32 %v4613, %v4614
      %v4616 = vrot.slane %v4615, 1
      %v4617 = vmax.f32 %v4615, %v4616
      %v4618 = vsel %vm3056, %v1710, -inf
      %v4619 = vrot.slane %v4618, 4
      %v4620 = vmax.f32 %v4618, %v4619
      %v4621 = vrot.slane %v4620, 2
      %v4622 = vmax.f32 %v4620, %v4621
      %v4623 = vrot.slane %v4622, 1
      %v4624 = vmax.f32 %v4622, %v4623
      %v4625 = vsel %vm3056, %v1713, -inf
      %v4626 = vrot.slane %v4625, 4
      %v4627 = vmax.f32 %v4625, %v4626
      %v4628 = vrot.slane %v4627, 2
      %v4629 = vmax.f32 %v4627, %v4628
      %v4630 = vrot.slane %v4629, 1
      %v4631 = vmax.f32 %v4629, %v4630
      %v4632 = vsel %vm3056, %v1716, -inf
      %v4633 = vrot.slane %v4632, 4
      %v4634 = vmax.f32 %v4632, %v4633
      %v4635 = vrot.slane %v4634, 2
      %v4636 = vmax.f32 %v4634, %v4635
      %v4637 = vrot.slane %v4636, 1
      %v4638 = vmax.f32 %v4636, %v4637
      %v4639 = vsel %vm3056, %v1719, -inf
      %v4640 = vrot.slane %v4639, 4
      %v4641 = vmax.f32 %v4639, %v4640
      %v4642 = vrot.slane %v4641, 2
      %v4643 = vmax.f32 %v4641, %v4642
      %v4644 = vrot.slane %v4643, 1
      %v4645 = vmax.f32 %v4643, %v4644
      %v4646 = vsel %vm3056, %v1722, -inf
      %v4647 = vrot.slane %v4646, 4
      %v4648 = vmax.f32 %v4646, %v4647
      %v4649 = vrot.slane %v4648, 2
      %v4650 = vmax.f32 %v4648, %v4649
      %v4651 = vrot.slane %v4650, 1
      %v4652 = vmax.f32 %v4650, %v4651
      %v4653 = vsel %vm3056, %v1725, -inf
      %v4654 = vrot.slane %v4653, 4
      %v4655 = vmax.f32 %v4653, %v4654
      %v4656 = vrot.slane %v4655, 2
      %v4657 = vmax.f32 %v4655, %v4656
      %v4658 = vrot.slane %v4657, 1
      %v4659 = vmax.f32 %v4657, %v4658
      %v4660 = vsel %vm3056, %v1728, -inf
      %v4661 = vrot.slane %v4660, 4
      %v4662 = vmax.f32 %v4660, %v4661
      %v4663 = vrot.slane %v4662, 2
      %v4664 = vmax.f32 %v4662, %v4663
      %v4665 = vrot.slane %v4664, 1
      %v4666 = vmax.f32 %v4664, %v4665
      %v4667 = vsel %vm3056, %v1731, -inf
      %v4668 = vrot.slane %v4667, 4
      %v4669 = vmax.f32 %v4667, %v4668
      %v4670 = vrot.slane %v4669, 2
      %v4671 = vmax.f32 %v4669, %v4670
      %v4672 = vrot.slane %v4671, 1
      %v4673 = vmax.f32 %v4671, %v4672
      %v4674 = vsel %vm3056, %v1734, -inf
      %v4675 = vrot.slane %v4674, 4
      %v4676 = vmax.f32 %v4674, %v4675
      %v4677 = vrot.slane %v4676, 2
      %v4678 = vmax.f32 %v4676, %v4677
      %v4679 = vrot.slane %v4678, 1
      %v4680 = vmax.f32 %v4678, %v4679
      %v4681 = vsel %vm3056, %v1737, -inf
      %v4682 = vrot.slane %v4681, 4
      %v4683 = vmax.f32 %v4681, %v4682
      %v4684 = vrot.slane %v4683, 2
      %v4685 = vmax.f32 %v4683, %v4684
      %v4686 = vrot.slane %v4685, 1
      %v4687 = vmax.f32 %v4685, %v4686
      %v4688 = vsel %vm3056, %v1740, -inf
      %v4689 = vrot.slane %v4688, 4
      %v4690 = vmax.f32 %v4688, %v4689
      %v4691 = vrot.slane %v4690, 2
      %v4692 = vmax.f32 %v4690, %v4691
      %v4693 = vrot.slane %v4692, 1
      %v4694 = vmax.f32 %v4692, %v4693
      %v4695 = vsel %vm3056, %v1743, -inf
      %v4696 = vrot.slane %v4695, 4
      %v4697 = vmax.f32 %v4695, %v4696
      %v4698 = vrot.slane %v4697, 2
      %v4699 = vmax.f32 %v4697, %v4698
      %v4700 = vrot.slane %v4699, 1
      %v4701 = vmax.f32 %v4699, %v4700
      %v4702 = vsel %vm3056, %v1746, -inf
      %v4703 = vrot.slane %v4702, 4
      %v4704 = vmax.f32 %v4702, %v4703
      %v4705 = vrot.slane %v4704, 2
      %v4706 = vmax.f32 %v4704, %v4705
      %v4707 = vrot.slane %v4706, 1
      %v4708 = vmax.f32 %v4706, %v4707
      %v4709 = vsel %vm3056, %v1749, -inf
      %v4710 = vrot.slane %v4709, 4
      %v4711 = vmax.f32 %v4709, %v4710
      %v4712 = vrot.slane %v4711, 2
      %v4713 = vmax.f32 %v4711, %v4712
      %v4714 = vrot.slane %v4713, 1
      %v4715 = vmax.f32 %v4713, %v4714
      %v4716 = vsel %vm3056, %v1752, -inf
      %v4717 = vrot.slane %v4716, 4
      %v4718 = vmax.f32 %v4716, %v4717
      %v4719 = vrot.slane %v4718, 2
      %v4720 = vmax.f32 %v4718, %v4719
      %v4721 = vrot.slane %v4720, 1
      %v4722 = vmax.f32 %v4720, %v4721
      %v4723 = vsel %vm3056, %v1755, -inf
      %v4724 = vrot.slane %v4723, 4
      %v4725 = vmax.f32 %v4723, %v4724
      %v4726 = vrot.slane %v4725, 2
      %v4727 = vmax.f32 %v4725, %v4726
      %v4728 = vrot.slane %v4727, 1
      %v4729 = vmax.f32 %v4727, %v4728
      %v4730 = vsel %vm3056, %v1758, -inf
      %v4731 = vrot.slane %v4730, 4
      %v4732 = vmax.f32 %v4730, %v4731
      %v4733 = vrot.slane %v4732, 2
      %v4734 = vmax.f32 %v4732, %v4733
      %v4735 = vrot.slane %v4734, 1
      %v4736 = vmax.f32 %v4734, %v4735
      %v4737 = vsel %vm3056, %v1761, -inf
      %v4738 = vrot.slane %v4737, 4
      %v4739 = vmax.f32 %v4737, %v4738
      %v4740 = vrot.slane %v4739, 2
      %v4741 = vmax.f32 %v4739, %v4740
      %v4742 = vrot.slane %v4741, 1
      %v4743 = vmax.f32 %v4741, %v4742
      %v4744 = vsel %vm3056, %v1764, -inf
      %v4745 = vrot.slane %v4744, 4
      %v4746 = vmax.f32 %v4744, %v4745
      %v4747 = vrot.slane %v4746, 2
      %v4748 = vmax.f32 %v4746, %v4747
      %v4749 = vrot.slane %v4748, 1
      %v4750 = vmax.f32 %v4748, %v4749
      %v4751 = vsel %vm3056, %v1767, -inf
      %v4752 = vrot.slane %v4751, 4
      %v4753 = vmax.f32 %v4751, %v4752
      %v4754 = vrot.slane %v4753, 2
      %v4755 = vmax.f32 %v4753, %v4754
      %v4756 = vrot.slane %v4755, 1
      %v4757 = vmax.f32 %v4755, %v4756
      %v4758 = vsel %vm3056, %v1770, -inf
      %v4759 = vrot.slane %v4758, 4
      %v4760 = vmax.f32 %v4758, %v4759
      %v4761 = vrot.slane %v4760, 2
      %v4762 = vmax.f32 %v4760, %v4761
      %v4763 = vrot.slane %v4762, 1
      %v4764 = vmax.f32 %v4762, %v4763
      %v4765 = vsel %vm3056, %v1773, -inf
      %v4766 = vrot.slane %v4765, 4
      %v4767 = vmax.f32 %v4765, %v4766
      %v4768 = vrot.slane %v4767, 2
      %v4769 = vmax.f32 %v4767, %v4768
      %v4770 = vrot.slane %v4769, 1
      %v4771 = vmax.f32 %v4769, %v4770
      %v4772 = vsel %vm3056, %v1776, -inf
      %v4773 = vrot.slane %v4772, 4
      %v4774 = vmax.f32 %v4772, %v4773
      %v4775 = vrot.slane %v4774, 2
      %v4776 = vmax.f32 %v4774, %v4775
      %v4777 = vrot.slane %v4776, 1
      %v4778 = vmax.f32 %v4776, %v4777
      %v4779 = vsel %vm3056, %v1779, -inf
      %v4780 = vrot.slane %v4779, 4
      %v4781 = vmax.f32 %v4779, %v4780
      %v4782 = vrot.slane %v4781, 2
      %v4783 = vmax.f32 %v4781, %v4782
      %v4784 = vrot.slane %v4783, 1
      %v4785 = vmax.f32 %v4783, %v4784
      %v4786 = vsel %vm3056, %v1782, -inf
      %v4787 = vrot.slane %v4786, 4
      %v4788 = vmax.f32 %v4786, %v4787
      %v4789 = vrot.slane %v4788, 2
      %v4790 = vmax.f32 %v4788, %v4789
      %v4791 = vrot.slane %v4790, 1
      %v4792 = vmax.f32 %v4790, %v4791
      %v4793 = vsel %vm3056, %v1785, -inf
      %v4794 = vrot.slane %v4793, 4
      %v4795 = vmax.f32 %v4793, %v4794
      %v4796 = vrot.slane %v4795, 2
      %v4797 = vmax.f32 %v4795, %v4796
      %v4798 = vrot.slane %v4797, 1
      %v4799 = vmax.f32 %v4797, %v4798
      %v4800 = vsel %vm3056, %v1788, -inf
      %v4801 = vrot.slane %v4800, 4
      %v4802 = vmax.f32 %v4800, %v4801
      %v4803 = vrot.slane %v4802, 2
      %v4804 = vmax.f32 %v4802, %v4803
      %v4805 = vrot.slane %v4804, 1
      %v4806 = vmax.f32 %v4804, %v4805
      %v4807 = vsel %vm3056, %v1791, -inf
      %v4808 = vrot.slane %v4807, 4
      %v4809 = vmax.f32 %v4807, %v4808
      %v4810 = vrot.slane %v4809, 2
      %v4811 = vmax.f32 %v4809, %v4810
      %v4812 = vrot.slane %v4811, 1
      %v4813 = vmax.f32 %v4811, %v4812
      %v4814 = vsel %vm3056, %v1794, -inf
      %v4815 = vrot.slane %v4814, 4
      %v4816 = vmax.f32 %v4814, %v4815
      %v4817 = vrot.slane %v4816, 2
      %v4818 = vmax.f32 %v4816, %v4817
      %v4819 = vrot.slane %v4818, 1
      %v4820 = vmax.f32 %v4818, %v4819
      %v4821 = vsel %vm3056, %v1797, -inf
      %v4822 = vrot.slane %v4821, 4
      %v4823 = vmax.f32 %v4821, %v4822
      %v4824 = vrot.slane %v4823, 2
      %v4825 = vmax.f32 %v4823, %v4824
      %v4826 = vrot.slane %v4825, 1
      %v4827 = vmax.f32 %v4825, %v4826
      %v4828 = vsel %vm3056, %v1800, -inf
      %v4829 = vrot.slane %v4828, 4
      %v4830 = vmax.f32 %v4828, %v4829
      %v4831 = vrot.slane %v4830, 2
      %v4832 = vmax.f32 %v4830, %v4831
      %v4833 = vrot.slane %v4832, 1
      %v4834 = vmax.f32 %v4832, %v4833
      %v4835 = vsel %vm3056, %v1803, -inf
      %v4836 = vrot.slane %v4835, 4
      %v4837 = vmax.f32 %v4835, %v4836
      %v4838 = vrot.slane %v4837, 2
      %v4839 = vmax.f32 %v4837, %v4838
      %v4840 = vrot.slane %v4839, 1
      %v4841 = vmax.f32 %v4839, %v4840
      %v4842 = vsel %vm3056, %v1806, -inf
      %v4843 = vrot.slane %v4842, 4
      %v4844 = vmax.f32 %v4842, %v4843
      %v4845 = vrot.slane %v4844, 2
      %v4846 = vmax.f32 %v4844, %v4845
      %v4847 = vrot.slane %v4846, 1
      %v4848 = vmax.f32 %v4846, %v4847
      %v4849 = vsel %vm3056, %v1809, -inf
      %v4850 = vrot.slane %v4849, 4
      %v4851 = vmax.f32 %v4849, %v4850
      %v4852 = vrot.slane %v4851, 2
      %v4853 = vmax.f32 %v4851, %v4852
      %v4854 = vrot.slane %v4853, 1
      %v4855 = vmax.f32 %v4853, %v4854
      %v4856 = vsel %vm3056, %v1812, -inf
      %v4857 = vrot.slane %v4856, 4
      %v4858 = vmax.f32 %v4856, %v4857
      %v4859 = vrot.slane %v4858, 2
      %v4860 = vmax.f32 %v4858, %v4859
      %v4861 = vrot.slane %v4860, 1
      %v4862 = vmax.f32 %v4860, %v4861
      %v4863 = vsel %vm3056, %v1815, -inf
      %v4864 = vrot.slane %v4863, 4
      %v4865 = vmax.f32 %v4863, %v4864
      %v4866 = vrot.slane %v4865, 2
      %v4867 = vmax.f32 %v4865, %v4866
      %v4868 = vrot.slane %v4867, 1
      %v4869 = vmax.f32 %v4867, %v4868
      %v4870 = vsel %vm3056, %v1818, -inf
      %v4871 = vrot.slane %v4870, 4
      %v4872 = vmax.f32 %v4870, %v4871
      %v4873 = vrot.slane %v4872, 2
      %v4874 = vmax.f32 %v4872, %v4873
      %v4875 = vrot.slane %v4874, 1
      %v4876 = vmax.f32 %v4874, %v4875
      %v4877 = vsel %vm3056, %v1821, -inf
      %v4878 = vrot.slane %v4877, 4
      %v4879 = vmax.f32 %v4877, %v4878
      %v4880 = vrot.slane %v4879, 2
      %v4881 = vmax.f32 %v4879, %v4880
      %v4882 = vrot.slane %v4881, 1
      %v4883 = vmax.f32 %v4881, %v4882
      %v4884 = vsel %vm3056, %v1824, -inf
      %v4885 = vrot.slane %v4884, 4
      %v4886 = vmax.f32 %v4884, %v4885
      %v4887 = vrot.slane %v4886, 2
      %v4888 = vmax.f32 %v4886, %v4887
      %v4889 = vrot.slane %v4888, 1
      %v4890 = vmax.f32 %v4888, %v4889
      %v4891 = vsel %vm3056, %v1827, -inf
      %v4892 = vrot.slane %v4891, 4
      %v4893 = vmax.f32 %v4891, %v4892
      %v4894 = vrot.slane %v4893, 2
      %v4895 = vmax.f32 %v4893, %v4894
      %v4896 = vrot.slane %v4895, 1
      %v4897 = vmax.f32 %v4895, %v4896
      %v4898 = vsel %vm3056, %v1830, -inf
      %v4899 = vrot.slane %v4898, 4
      %v4900 = vmax.f32 %v4898, %v4899
      %v4901 = vrot.slane %v4900, 2
      %v4902 = vmax.f32 %v4900, %v4901
      %v4903 = vrot.slane %v4902, 1
      %v4904 = vmax.f32 %v4902, %v4903
      %v4905 = vsel %vm3056, %v1833, -inf
      %v4906 = vrot.slane %v4905, 4
      %v4907 = vmax.f32 %v4905, %v4906
      %v4908 = vrot.slane %v4907, 2
      %v4909 = vmax.f32 %v4907, %v4908
      %v4910 = vrot.slane %v4909, 1
      %v4911 = vmax.f32 %v4909, %v4910
      %v4912 = vsel %vm3056, %v1836, -inf
      %v4913 = vrot.slane %v4912, 4
      %v4914 = vmax.f32 %v4912, %v4913
      %v4915 = vrot.slane %v4914, 2
      %v4916 = vmax.f32 %v4914, %v4915
      %v4917 = vrot.slane %v4916, 1
      %v4918 = vmax.f32 %v4916, %v4917
      %v4919 = vsel %vm3056, %v1839, -inf
      %v4920 = vrot.slane %v4919, 4
      %v4921 = vmax.f32 %v4919, %v4920
      %v4922 = vrot.slane %v4921, 2
      %v4923 = vmax.f32 %v4921, %v4922
      %v4924 = vrot.slane %v4923, 1
      %v4925 = vmax.f32 %v4923, %v4924
      %v4926 = vsel %vm3056, %v1842, -inf
      %v4927 = vrot.slane %v4926, 4
      %v4928 = vmax.f32 %v4926, %v4927
      %v4929 = vrot.slane %v4928, 2
      %v4930 = vmax.f32 %v4928, %v4929
      %v4931 = vrot.slane %v4930, 1
      %v4932 = vmax.f32 %v4930, %v4931
      %v4933 = vsel %vm3056, %v1845, -inf
      %v4934 = vrot.slane %v4933, 4
      %v4935 = vmax.f32 %v4933, %v4934
      %v4936 = vrot.slane %v4935, 2
      %v4937 = vmax.f32 %v4935, %v4936
      %v4938 = vrot.slane %v4937, 1
      %v4939 = vmax.f32 %v4937, %v4938
      %v4940 = vsel %vm3056, %v1848, -inf
      %v4941 = vrot.slane %v4940, 4
      %v4942 = vmax.f32 %v4940, %v4941
      %v4943 = vrot.slane %v4942, 2
      %v4944 = vmax.f32 %v4942, %v4943
      %v4945 = vrot.slane %v4944, 1
      %v4946 = vmax.f32 %v4944, %v4945
      %v4947 = vsel %vm3056, %v1851, -inf
      %v4948 = vrot.slane %v4947, 4
      %v4949 = vmax.f32 %v4947, %v4948
      %v4950 = vrot.slane %v4949, 2
      %v4951 = vmax.f32 %v4949, %v4950
      %v4952 = vrot.slane %v4951, 1
      %v4953 = vmax.f32 %v4951, %v4952
      %v4954 = vsel %vm3056, %v1854, -inf
      %v4955 = vrot.slane %v4954, 4
      %v4956 = vmax.f32 %v4954, %v4955
      %v4957 = vrot.slane %v4956, 2
      %v4958 = vmax.f32 %v4956, %v4957
      %v4959 = vrot.slane %v4958, 1
      %v4960 = vmax.f32 %v4958, %v4959
      %v4961 = vsel %vm3056, %v1857, -inf
      %v4962 = vrot.slane %v4961, 4
      %v4963 = vmax.f32 %v4961, %v4962
      %v4964 = vrot.slane %v4963, 2
      %v4965 = vmax.f32 %v4963, %v4964
      %v4966 = vrot.slane %v4965, 1
      %v4967 = vmax.f32 %v4965, %v4966
      %v4968 = vsel %vm3056, %v1860, -inf
      %v4969 = vrot.slane %v4968, 4
      %v4970 = vmax.f32 %v4968, %v4969
      %v4971 = vrot.slane %v4970, 2
      %v4972 = vmax.f32 %v4970, %v4971
      %v4973 = vrot.slane %v4972, 1
      %v4974 = vmax.f32 %v4972, %v4973
      %v4975 = vsel %vm3056, %v1863, -inf
      %v4976 = vrot.slane %v4975, 4
      %v4977 = vmax.f32 %v4975, %v4976
      %v4978 = vrot.slane %v4977, 2
      %v4979 = vmax.f32 %v4977, %v4978
      %v4980 = vrot.slane %v4979, 1
      %v4981 = vmax.f32 %v4979, %v4980
      %v4982 = vsel %vm3056, %v1866, -inf
      %v4983 = vrot.slane %v4982, 4
      %v4984 = vmax.f32 %v4982, %v4983
      %v4985 = vrot.slane %v4984, 2
      %v4986 = vmax.f32 %v4984, %v4985
      %v4987 = vrot.slane %v4986, 1
      %v4988 = vmax.f32 %v4986, %v4987
      %v4989 = vsel %vm3056, %v1869, -inf
      %v4990 = vrot.slane %v4989, 4
      %v4991 = vmax.f32 %v4989, %v4990
      %v4992 = vrot.slane %v4991, 2
      %v4993 = vmax.f32 %v4991, %v4992
      %v4994 = vrot.slane %v4993, 1
      %v4995 = vmax.f32 %v4993, %v4994
      %v4996 = vsel %vm3056, %v1872, -inf
      %v4997 = vrot.slane %v4996, 4
      %v4998 = vmax.f32 %v4996, %v4997
      %v4999 = vrot.slane %v4998, 2
      %v5000 = vmax.f32 %v4998, %v4999
      %v5001 = vrot.slane %v5000, 1
      %v5002 = vmax.f32 %v5000, %v5001
      %v5003 = vsel %vm3056, %v1875, -inf
      %v5004 = vrot.slane %v5003, 4
      %v5005 = vmax.f32 %v5003, %v5004
      %v5006 = vrot.slane %v5005, 2
      %v5007 = vmax.f32 %v5005, %v5006
      %v5008 = vrot.slane %v5007, 1
      %v5009 = vmax.f32 %v5007, %v5008
      %v5010 = vsel %vm3056, %v1878, -inf
      %v5011 = vrot.slane %v5010, 4
      %v5012 = vmax.f32 %v5010, %v5011
      %v5013 = vrot.slane %v5012, 2
      %v5014 = vmax.f32 %v5012, %v5013
      %v5015 = vrot.slane %v5014, 1
      %v5016 = vmax.f32 %v5014, %v5015
      %v5017 = vsel %vm3056, %v1881, -inf
      %v5018 = vrot.slane %v5017, 4
      %v5019 = vmax.f32 %v5017, %v5018
      %v5020 = vrot.slane %v5019, 2
      %v5021 = vmax.f32 %v5019, %v5020
      %v5022 = vrot.slane %v5021, 1
      %v5023 = vmax.f32 %v5021, %v5022
      %v5024 = vsel %vm3056, %v1884, -inf
      %v5025 = vrot.slane %v5024, 4
      %v5026 = vmax.f32 %v5024, %v5025
      %v5027 = vrot.slane %v5026, 2
      %v5028 = vmax.f32 %v5026, %v5027
      %v5029 = vrot.slane %v5028, 1
      %v5030 = vmax.f32 %v5028, %v5029
      %v5031 = vsel %vm3056, %v1887, -inf
      %v5032 = vrot.slane %v5031, 4
      %v5033 = vmax.f32 %v5031, %v5032
      %v5034 = vrot.slane %v5033, 2
      %v5035 = vmax.f32 %v5033, %v5034
      %v5036 = vrot.slane %v5035, 1
      %v5037 = vmax.f32 %v5035, %v5036
      %v5038 = vsel %vm3056, %v1890, -inf
      %v5039 = vrot.slane %v5038, 4
      %v5040 = vmax.f32 %v5038, %v5039
      %v5041 = vrot.slane %v5040, 2
      %v5042 = vmax.f32 %v5040, %v5041
      %v5043 = vrot.slane %v5042, 1
      %v5044 = vmax.f32 %v5042, %v5043
      %v5045 = vsel %vm3056, %v1893, -inf
      %v5046 = vrot.slane %v5045, 4
      %v5047 = vmax.f32 %v5045, %v5046
      %v5048 = vrot.slane %v5047, 2
      %v5049 = vmax.f32 %v5047, %v5048
      %v5050 = vrot.slane %v5049, 1
      %v5051 = vmax.f32 %v5049, %v5050
      %v5052 = vsel %vm3056, %v1896, -inf
      %v5053 = vrot.slane %v5052, 4
      %v5054 = vmax.f32 %v5052, %v5053
      %v5055 = vrot.slane %v5054, 2
      %v5056 = vmax.f32 %v5054, %v5055
      %v5057 = vrot.slane %v5056, 1
      %v5058 = vmax.f32 %v5056, %v5057
      %v5059 = vsel %vm3056, %v1899, -inf
      %v5060 = vrot.slane %v5059, 4
      %v5061 = vmax.f32 %v5059, %v5060
      %v5062 = vrot.slane %v5061, 2
      %v5063 = vmax.f32 %v5061, %v5062
      %v5064 = vrot.slane %v5063, 1
      %v5065 = vmax.f32 %v5063, %v5064
      %v5066 = vsel %vm3056, %v1902, -inf
      %v5067 = vrot.slane %v5066, 4
      %v5068 = vmax.f32 %v5066, %v5067
      %v5069 = vrot.slane %v5068, 2
      %v5070 = vmax.f32 %v5068, %v5069
      %v5071 = vrot.slane %v5070, 1
      %v5072 = vmax.f32 %v5070, %v5071
      %v5073 = vsel %vm3056, %v1905, -inf
      %v5074 = vrot.slane %v5073, 4
      %v5075 = vmax.f32 %v5073, %v5074
      %v5076 = vrot.slane %v5075, 2
      %v5077 = vmax.f32 %v5075, %v5076
      %v5078 = vrot.slane %v5077, 1
      %v5079 = vmax.f32 %v5077, %v5078
      %v5080 = vsel %vm3056, %v1908, -inf
      %v5081 = vrot.slane %v5080, 4
      %v5082 = vmax.f32 %v5080, %v5081
      %v5083 = vrot.slane %v5082, 2
      %v5084 = vmax.f32 %v5082, %v5083
      %v5085 = vrot.slane %v5084, 1
      %v5086 = vmax.f32 %v5084, %v5085
      %v5087 = vsel %vm3056, %v1911, -inf
      %v5088 = vrot.slane %v5087, 4
      %v5089 = vmax.f32 %v5087, %v5088
      %v5090 = vrot.slane %v5089, 2
      %v5091 = vmax.f32 %v5089, %v5090
      %v5092 = vrot.slane %v5091, 1
      %v5093 = vmax.f32 %v5091, %v5092
      %v5094 = vsel %vm3056, %v1914, -inf
      %v5095 = vrot.slane %v5094, 4
      %v5096 = vmax.f32 %v5094, %v5095
      %v5097 = vrot.slane %v5096, 2
      %v5098 = vmax.f32 %v5096, %v5097
      %v5099 = vrot.slane %v5098, 1
      %v5100 = vmax.f32 %v5098, %v5099
      %v5101 = vsel %vm3056, %v1917, -inf
      %v5102 = vrot.slane %v5101, 4
      %v5103 = vmax.f32 %v5101, %v5102
      %v5104 = vrot.slane %v5103, 2
      %v5105 = vmax.f32 %v5103, %v5104
      %v5106 = vrot.slane %v5105, 1
      %v5107 = vmax.f32 %v5105, %v5106
      %v5108 = vsel %vm3056, %v1920, -inf
      %v5109 = vrot.slane %v5108, 4
      %v5110 = vmax.f32 %v5108, %v5109
      %v5111 = vrot.slane %v5110, 2
      %v5112 = vmax.f32 %v5110, %v5111
      %v5113 = vrot.slane %v5112, 1
      %v5114 = vmax.f32 %v5112, %v5113
      %v5115 = vsel %vm3056, %v1923, -inf
      %v5116 = vrot.slane %v5115, 4
      %v5117 = vmax.f32 %v5115, %v5116
      %v5118 = vrot.slane %v5117, 2
      %v5119 = vmax.f32 %v5117, %v5118
      %v5120 = vrot.slane %v5119, 1
      %v5121 = vmax.f32 %v5119, %v5120
      %v5122 = vsel %vm3056, %v1926, -inf
      %v5123 = vrot.slane %v5122, 4
      %v5124 = vmax.f32 %v5122, %v5123
      %v5125 = vrot.slane %v5124, 2
      %v5126 = vmax.f32 %v5124, %v5125
      %v5127 = vrot.slane %v5126, 1
      %v5128 = vmax.f32 %v5126, %v5127
      %v5129 = vsel %vm3056, %v1929, -inf
      %v5130 = vrot.slane %v5129, 4
      %v5131 = vmax.f32 %v5129, %v5130
      %v5132 = vrot.slane %v5131, 2
      %v5133 = vmax.f32 %v5131, %v5132
      %v5134 = vrot.slane %v5133, 1
      %v5135 = vmax.f32 %v5133, %v5134
      %v5136 = vsel %vm3056, %v1932, -inf
      %v5137 = vrot.slane %v5136, 4
      %v5138 = vmax.f32 %v5136, %v5137
      %v5139 = vrot.slane %v5138, 2
      %v5140 = vmax.f32 %v5138, %v5139
      %v5141 = vrot.slane %v5140, 1
      %v5142 = vmax.f32 %v5140, %v5141
      %v5143 = vsel %vm3056, %v1935, -inf
      %v5144 = vrot.slane %v5143, 4
      %v5145 = vmax.f32 %v5143, %v5144
      %v5146 = vrot.slane %v5145, 2
      %v5147 = vmax.f32 %v5145, %v5146
      %v5148 = vrot.slane %v5147, 1
      %v5149 = vmax.f32 %v5147, %v5148
      %v5150 = vsel %vm3056, %v1938, -inf
      %v5151 = vrot.slane %v5150, 4
      %v5152 = vmax.f32 %v5150, %v5151
      %v5153 = vrot.slane %v5152, 2
      %v5154 = vmax.f32 %v5152, %v5153
      %v5155 = vrot.slane %v5154, 1
      %v5156 = vmax.f32 %v5154, %v5155
      %v5157 = vsel %vm3056, %v1941, -inf
      %v5158 = vrot.slane %v5157, 4
      %v5159 = vmax.f32 %v5157, %v5158
      %v5160 = vrot.slane %v5159, 2
      %v5161 = vmax.f32 %v5159, %v5160
      %v5162 = vrot.slane %v5161, 1
      %v5163 = vmax.f32 %v5161, %v5162
      %v5164 = vsel %vm3056, %v1944, -inf
      %v5165 = vrot.slane %v5164, 4
      %v5166 = vmax.f32 %v5164, %v5165
      %v5167 = vrot.slane %v5166, 2
      %v5168 = vmax.f32 %v5166, %v5167
      %v5169 = vrot.slane %v5168, 1
      %v5170 = vmax.f32 %v5168, %v5169
      %v5171 = vsel %vm3056, %v1947, -inf
      %v5172 = vrot.slane %v5171, 4
      %v5173 = vmax.f32 %v5171, %v5172
      %v5174 = vrot.slane %v5173, 2
      %v5175 = vmax.f32 %v5173, %v5174
      %v5176 = vrot.slane %v5175, 1
      %v5177 = vmax.f32 %v5175, %v5176
      %v5178 = vsel %vm3056, %v1950, -inf
      %v5179 = vrot.slane %v5178, 4
      %v5180 = vmax.f32 %v5178, %v5179
      %v5181 = vrot.slane %v5180, 2
      %v5182 = vmax.f32 %v5180, %v5181
      %v5183 = vrot.slane %v5182, 1
      %v5184 = vmax.f32 %v5182, %v5183
      %v5185 = vsel %vm3056, %v1953, -inf
      %v5186 = vrot.slane %v5185, 4
      %v5187 = vmax.f32 %v5185, %v5186
      %v5188 = vrot.slane %v5187, 2
      %v5189 = vmax.f32 %v5187, %v5188
      %v5190 = vrot.slane %v5189, 1
      %v5191 = vmax.f32 %v5189, %v5190
      %v5192 = vsel %vm3056, %v1956, -inf
      %v5193 = vrot.slane %v5192, 4
      %v5194 = vmax.f32 %v5192, %v5193
      %v5195 = vrot.slane %v5194, 2
      %v5196 = vmax.f32 %v5194, %v5195
      %v5197 = vrot.slane %v5196, 1
      %v5198 = vmax.f32 %v5196, %v5197
      %v5199 = vsel %vm3056, %v1959, -inf
      %v5200 = vrot.slane %v5199, 4
      %v5201 = vmax.f32 %v5199, %v5200
      %v5202 = vrot.slane %v5201, 2
      %v5203 = vmax.f32 %v5201, %v5202
      %v5204 = vrot.slane %v5203, 1
      %v5205 = vmax.f32 %v5203, %v5204
      %v5206 = vsel %vm3056, %v1962, -inf
      %v5207 = vrot.slane %v5206, 4
      %v5208 = vmax.f32 %v5206, %v5207
      %v5209 = vrot.slane %v5208, 2
      %v5210 = vmax.f32 %v5208, %v5209
      %v5211 = vrot.slane %v5210, 1
      %v5212 = vmax.f32 %v5210, %v5211
      %v5213 = vsel %vm3056, %v1965, -inf
      %v5214 = vrot.slane %v5213, 4
      %v5215 = vmax.f32 %v5213, %v5214
      %v5216 = vrot.slane %v5215, 2
      %v5217 = vmax.f32 %v5215, %v5216
      %v5218 = vrot.slane %v5217, 1
      %v5219 = vmax.f32 %v5217, %v5218
      %v5220 = vsel %vm3056, %v1968, -inf
      %v5221 = vrot.slane %v5220, 4
      %v5222 = vmax.f32 %v5220, %v5221
      %v5223 = vrot.slane %v5222, 2
      %v5224 = vmax.f32 %v5222, %v5223
      %v5225 = vrot.slane %v5224, 1
      %v5226 = vmax.f32 %v5224, %v5225
      %v5227 = vsel %vm3056, %v1971, -inf
      %v5228 = vrot.slane %v5227, 4
      %v5229 = vmax.f32 %v5227, %v5228
      %v5230 = vrot.slane %v5229, 2
      %v5231 = vmax.f32 %v5229, %v5230
      %v5232 = vrot.slane %v5231, 1
      %v5233 = vmax.f32 %v5231, %v5232
      %v5234 = vsel %vm3056, %v1974, -inf
      %v5235 = vrot.slane %v5234, 4
      %v5236 = vmax.f32 %v5234, %v5235
      %v5237 = vrot.slane %v5236, 2
      %v5238 = vmax.f32 %v5236, %v5237
      %v5239 = vrot.slane %v5238, 1
      %v5240 = vmax.f32 %v5238, %v5239
      %v5241 = vsel %vm3056, %v1977, -inf
      %v5242 = vrot.slane %v5241, 4
      %v5243 = vmax.f32 %v5241, %v5242
      %v5244 = vrot.slane %v5243, 2
      %v5245 = vmax.f32 %v5243, %v5244
      %v5246 = vrot.slane %v5245, 1
      %v5247 = vmax.f32 %v5245, %v5246
      %v5248 = vsel %vm3056, %v1980, -inf
      %v5249 = vrot.slane %v5248, 4
      %v5250 = vmax.f32 %v5248, %v5249
      %v5251 = vrot.slane %v5250, 2
      %v5252 = vmax.f32 %v5250, %v5251
      %v5253 = vrot.slane %v5252, 1
      %v5254 = vmax.f32 %v5252, %v5253
      %v5255 = vsel %vm3056, %v1983, -inf
      %v5256 = vrot.slane %v5255, 4
      %v5257 = vmax.f32 %v5255, %v5256
      %v5258 = vrot.slane %v5257, 2
      %v5259 = vmax.f32 %v5257, %v5258
      %v5260 = vrot.slane %v5259, 1
      %v5261 = vmax.f32 %v5259, %v5260
      %v5262 = vsel %vm3056, %v1986, -inf
      %v5263 = vrot.slane %v5262, 4
      %v5264 = vmax.f32 %v5262, %v5263
      %v5265 = vrot.slane %v5264, 2
      %v5266 = vmax.f32 %v5264, %v5265
      %v5267 = vrot.slane %v5266, 1
      %v5268 = vmax.f32 %v5266, %v5267
      %v5269 = vsel %vm3056, %v1989, -inf
      %v5270 = vrot.slane %v5269, 4
      %v5271 = vmax.f32 %v5269, %v5270
      %v5272 = vrot.slane %v5271, 2
      %v5273 = vmax.f32 %v5271, %v5272
      %v5274 = vrot.slane %v5273, 1
      %v5275 = vmax.f32 %v5273, %v5274
      %v5276 = vsel %vm3056, %v1992, -inf
      %v5277 = vrot.slane %v5276, 4
      %v5278 = vmax.f32 %v5276, %v5277
      %v5279 = vrot.slane %v5278, 2
      %v5280 = vmax.f32 %v5278, %v5279
      %v5281 = vrot.slane %v5280, 1
      %v5282 = vmax.f32 %v5280, %v5281
      %v5283 = vsel %vm3056, %v1995, -inf
      %v5284 = vrot.slane %v5283, 4
      %v5285 = vmax.f32 %v5283, %v5284
      %v5286 = vrot.slane %v5285, 2
      %v5287 = vmax.f32 %v5285, %v5286
      %v5288 = vrot.slane %v5287, 1
      %v5289 = vmax.f32 %v5287, %v5288
      %v5290 = vsel %vm3056, %v1998, -inf
      %v5291 = vrot.slane %v5290, 4
      %v5292 = vmax.f32 %v5290, %v5291
      %v5293 = vrot.slane %v5292, 2
      %v5294 = vmax.f32 %v5292, %v5293
      %v5295 = vrot.slane %v5294, 1
      %v5296 = vmax.f32 %v5294, %v5295
      %v5297 = vsel %vm3056, %v2001, -inf
      %v5298 = vrot.slane %v5297, 4
      %v5299 = vmax.f32 %v5297, %v5298
      %v5300 = vrot.slane %v5299, 2
      %v5301 = vmax.f32 %v5299, %v5300
      %v5302 = vrot.slane %v5301, 1
      %v5303 = vmax.f32 %v5301, %v5302
      %v5304 = vsel %vm3056, %v2004, -inf
      %v5305 = vrot.slane %v5304, 4
      %v5306 = vmax.f32 %v5304, %v5305
      %v5307 = vrot.slane %v5306, 2
      %v5308 = vmax.f32 %v5306, %v5307
      %v5309 = vrot.slane %v5308, 1
      %v5310 = vmax.f32 %v5308, %v5309
      %v5311 = vsel %vm3056, %v2007, -inf
      %v5312 = vrot.slane %v5311, 4
      %v5313 = vmax.f32 %v5311, %v5312
      %v5314 = vrot.slane %v5313, 2
      %v5315 = vmax.f32 %v5313, %v5314
      %v5316 = vrot.slane %v5315, 1
      %v5317 = vmax.f32 %v5315, %v5316
      %v5318 = vsel %vm3056, %v2010, -inf
      %v5319 = vrot.slane %v5318, 4
      %v5320 = vmax.f32 %v5318, %v5319
      %v5321 = vrot.slane %v5320, 2
      %v5322 = vmax.f32 %v5320, %v5321
      %v5323 = vrot.slane %v5322, 1
      %v5324 = vmax.f32 %v5322, %v5323
      %v5325 = vsel %vm3056, %v2013, -inf
      %v5326 = vrot.slane %v5325, 4
      %v5327 = vmax.f32 %v5325, %v5326
      %v5328 = vrot.slane %v5327, 2
      %v5329 = vmax.f32 %v5327, %v5328
      %v5330 = vrot.slane %v5329, 1
      %v5331 = vmax.f32 %v5329, %v5330
      %v5332 = vsel %vm3056, %v2016, -inf
      %v5333 = vrot.slane %v5332, 4
      %v5334 = vmax.f32 %v5332, %v5333
      %v5335 = vrot.slane %v5334, 2
      %v5336 = vmax.f32 %v5334, %v5335
      %v5337 = vrot.slane %v5336, 1
      %v5338 = vmax.f32 %v5336, %v5337
      %v5339 = vsel %vm3056, %v2019, -inf
      %v5340 = vrot.slane %v5339, 4
      %v5341 = vmax.f32 %v5339, %v5340
      %v5342 = vrot.slane %v5341, 2
      %v5343 = vmax.f32 %v5341, %v5342
      %v5344 = vrot.slane %v5343, 1
      %v5345 = vmax.f32 %v5343, %v5344
      %v5346 = vsel %vm3056, %v2022, -inf
      %v5347 = vrot.slane %v5346, 4
      %v5348 = vmax.f32 %v5346, %v5347
      %v5349 = vrot.slane %v5348, 2
      %v5350 = vmax.f32 %v5348, %v5349
      %v5351 = vrot.slane %v5350, 1
      %v5352 = vmax.f32 %v5350, %v5351
      %v5353 = vsel %vm3056, %v2025, -inf
      %v5354 = vrot.slane %v5353, 4
      %v5355 = vmax.f32 %v5353, %v5354
      %v5356 = vrot.slane %v5355, 2
      %v5357 = vmax.f32 %v5355, %v5356
      %v5358 = vrot.slane %v5357, 1
      %v5359 = vmax.f32 %v5357, %v5358
      %v5360 = vsel %vm3056, %v2028, -inf
      %v5361 = vrot.slane %v5360, 4
      %v5362 = vmax.f32 %v5360, %v5361
      %v5363 = vrot.slane %v5362, 2
      %v5364 = vmax.f32 %v5362, %v5363
      %v5365 = vrot.slane %v5364, 1
      %v5366 = vmax.f32 %v5364, %v5365
      %v5367 = vsel %vm3056, %v2031, -inf
      %v5368 = vrot.slane %v5367, 4
      %v5369 = vmax.f32 %v5367, %v5368
      %v5370 = vrot.slane %v5369, 2
      %v5371 = vmax.f32 %v5369, %v5370
      %v5372 = vrot.slane %v5371, 1
      %v5373 = vmax.f32 %v5371, %v5372
      %v5374 = vsel %vm3056, %v2034, -inf
      %v5375 = vrot.slane %v5374, 4
      %v5376 = vmax.f32 %v5374, %v5375
      %v5377 = vrot.slane %v5376, 2
      %v5378 = vmax.f32 %v5376, %v5377
      %v5379 = vrot.slane %v5378, 1
      %v5380 = vmax.f32 %v5378, %v5379
      %v5381 = vsel %vm3056, %v2037, -inf
      %v5382 = vrot.slane %v5381, 4
      %v5383 = vmax.f32 %v5381, %v5382
      %v5384 = vrot.slane %v5383, 2
      %v5385 = vmax.f32 %v5383, %v5384
      %v5386 = vrot.slane %v5385, 1
      %v5387 = vmax.f32 %v5385, %v5386
      %v5388 = vsel %vm3056, %v2040, -inf
      %v5389 = vrot.slane %v5388, 4
      %v5390 = vmax.f32 %v5388, %v5389
      %v5391 = vrot.slane %v5390, 2
      %v5392 = vmax.f32 %v5390, %v5391
      %v5393 = vrot.slane %v5392, 1
      %v5394 = vmax.f32 %v5392, %v5393
      %v5395 = vsel %vm3056, %v2043, -inf
      %v5396 = vrot.slane %v5395, 4
      %v5397 = vmax.f32 %v5395, %v5396
      %v5398 = vrot.slane %v5397, 2
      %v5399 = vmax.f32 %v5397, %v5398
      %v5400 = vrot.slane %v5399, 1
      %v5401 = vmax.f32 %v5399, %v5400
      %v5402 = vsel %vm3056, %v2046, -inf
      %v5403 = vrot.slane %v5402, 4
      %v5404 = vmax.f32 %v5402, %v5403
      %v5405 = vrot.slane %v5404, 2
      %v5406 = vmax.f32 %v5404, %v5405
      %v5407 = vrot.slane %v5406, 1
      %v5408 = vmax.f32 %v5406, %v5407
      %v5409 = vsel %vm3056, %v2049, -inf
      %v5410 = vrot.slane %v5409, 4
      %v5411 = vmax.f32 %v5409, %v5410
      %v5412 = vrot.slane %v5411, 2
      %v5413 = vmax.f32 %v5411, %v5412
      %v5414 = vrot.slane %v5413, 1
      %v5415 = vmax.f32 %v5413, %v5414
      %v5416 = vsel %vm3056, %v2052, -inf
      %v5417 = vrot.slane %v5416, 4
      %v5418 = vmax.f32 %v5416, %v5417
      %v5419 = vrot.slane %v5418, 2
      %v5420 = vmax.f32 %v5418, %v5419
      %v5421 = vrot.slane %v5420, 1
      %v5422 = vmax.f32 %v5420, %v5421
      %v5423 = vsel %vm3056, %v2055, -inf
      %v5424 = vrot.slane %v5423, 4
      %v5425 = vmax.f32 %v5423, %v5424
      %v5426 = vrot.slane %v5425, 2
      %v5427 = vmax.f32 %v5425, %v5426
      %v5428 = vrot.slane %v5427, 1
      %v5429 = vmax.f32 %v5427, %v5428
      %v5430 = vsel %vm3056, %v2058, -inf
      %v5431 = vrot.slane %v5430, 4
      %v5432 = vmax.f32 %v5430, %v5431
      %v5433 = vrot.slane %v5432, 2
      %v5434 = vmax.f32 %v5432, %v5433
      %v5435 = vrot.slane %v5434, 1
      %v5436 = vmax.f32 %v5434, %v5435
      %v5437 = vsel %vm3056, %v2061, -inf
      %v5438 = vrot.slane %v5437, 4
      %v5439 = vmax.f32 %v5437, %v5438
      %v5440 = vrot.slane %v5439, 2
      %v5441 = vmax.f32 %v5439, %v5440
      %v5442 = vrot.slane %v5441, 1
      %v5443 = vmax.f32 %v5441, %v5442
      %v5444 = vsel %vm3056, %v2064, -inf
      %v5445 = vrot.slane %v5444, 4
      %v5446 = vmax.f32 %v5444, %v5445
      %v5447 = vrot.slane %v5446, 2
      %v5448 = vmax.f32 %v5446, %v5447
      %v5449 = vrot.slane %v5448, 1
      %v5450 = vmax.f32 %v5448, %v5449
      %v5451 = vsel %vm3056, %v2067, -inf
      %v5452 = vrot.slane %v5451, 4
      %v5453 = vmax.f32 %v5451, %v5452
      %v5454 = vrot.slane %v5453, 2
      %v5455 = vmax.f32 %v5453, %v5454
      %v5456 = vrot.slane %v5455, 1
      %v5457 = vmax.f32 %v5455, %v5456
      %v5458 = vsel %vm3056, %v2070, -inf
      %v5459 = vrot.slane %v5458, 4
      %v5460 = vmax.f32 %v5458, %v5459
      %v5461 = vrot.slane %v5460, 2
      %v5462 = vmax.f32 %v5460, %v5461
      %v5463 = vrot.slane %v5462, 1
      %v5464 = vmax.f32 %v5462, %v5463
      %v5465 = vsel %vm3056, %v2073, -inf
      %v5466 = vrot.slane %v5465, 4
      %v5467 = vmax.f32 %v5465, %v5466
      %v5468 = vrot.slane %v5467, 2
      %v5469 = vmax.f32 %v5467, %v5468
      %v5470 = vrot.slane %v5469, 1
      %v5471 = vmax.f32 %v5469, %v5470
      %v5472 = vsel %vm3056, %v2076, -inf
      %v5473 = vrot.slane %v5472, 4
      %v5474 = vmax.f32 %v5472, %v5473
      %v5475 = vrot.slane %v5474, 2
      %v5476 = vmax.f32 %v5474, %v5475
      %v5477 = vrot.slane %v5476, 1
      %v5478 = vmax.f32 %v5476, %v5477
      %v5479 = vsel %vm3056, %v2079, -inf
      %v5480 = vrot.slane %v5479, 4
      %v5481 = vmax.f32 %v5479, %v5480
      %v5482 = vrot.slane %v5481, 2
      %v5483 = vmax.f32 %v5481, %v5482
      %v5484 = vrot.slane %v5483, 1
      %v5485 = vmax.f32 %v5483, %v5484
      %v5486 = vsel %vm3056, %v2082, -inf
      %v5487 = vrot.slane %v5486, 4
      %v5488 = vmax.f32 %v5486, %v5487
      %v5489 = vrot.slane %v5488, 2
      %v5490 = vmax.f32 %v5488, %v5489
      %v5491 = vrot.slane %v5490, 1
      %v5492 = vmax.f32 %v5490, %v5491
      %v5493 = vsel %vm3056, %v2085, -inf
      %v5494 = vrot.slane %v5493, 4
      %v5495 = vmax.f32 %v5493, %v5494
      %v5496 = vrot.slane %v5495, 2
      %v5497 = vmax.f32 %v5495, %v5496
      %v5498 = vrot.slane %v5497, 1
      %v5499 = vmax.f32 %v5497, %v5498
      %v5500 = vsel %vm3056, %v2088, -inf
      %v5501 = vrot.slane %v5500, 4
      %v5502 = vmax.f32 %v5500, %v5501
      %v5503 = vrot.slane %v5502, 2
      %v5504 = vmax.f32 %v5502, %v5503
      %v5505 = vrot.slane %v5504, 1
      %v5506 = vmax.f32 %v5504, %v5505
      %v5507 = vsel %vm3056, %v2091, -inf
      %v5508 = vrot.slane %v5507, 4
      %v5509 = vmax.f32 %v5507, %v5508
      %v5510 = vrot.slane %v5509, 2
      %v5511 = vmax.f32 %v5509, %v5510
      %v5512 = vrot.slane %v5511, 1
      %v5513 = vmax.f32 %v5511, %v5512
      %v5514 = vsel %vm3056, %v2094, -inf
      %v5515 = vrot.slane %v5514, 4
      %v5516 = vmax.f32 %v5514, %v5515
      %v5517 = vrot.slane %v5516, 2
      %v5518 = vmax.f32 %v5516, %v5517
      %v5519 = vrot.slane %v5518, 1
      %v5520 = vmax.f32 %v5518, %v5519
      %v5521 = vsel %vm3056, %v2097, -inf
      %v5522 = vrot.slane %v5521, 4
      %v5523 = vmax.f32 %v5521, %v5522
      %v5524 = vrot.slane %v5523, 2
      %v5525 = vmax.f32 %v5523, %v5524
      %v5526 = vrot.slane %v5525, 1
      %v5527 = vmax.f32 %v5525, %v5526
      %v5528 = vsel %vm3056, %v2100, -inf
      %v5529 = vrot.slane %v5528, 4
      %v5530 = vmax.f32 %v5528, %v5529
      %v5531 = vrot.slane %v5530, 2
      %v5532 = vmax.f32 %v5530, %v5531
      %v5533 = vrot.slane %v5532, 1
      %v5534 = vmax.f32 %v5532, %v5533
      %v5535 = vsel %vm3056, %v2103, -inf
      %v5536 = vrot.slane %v5535, 4
      %v5537 = vmax.f32 %v5535, %v5536
      %v5538 = vrot.slane %v5537, 2
      %v5539 = vmax.f32 %v5537, %v5538
      %v5540 = vrot.slane %v5539, 1
      %v5541 = vmax.f32 %v5539, %v5540
      %v5542 = vsel %vm3056, %v2106, -inf
      %v5543 = vrot.slane %v5542, 4
      %v5544 = vmax.f32 %v5542, %v5543
      %v5545 = vrot.slane %v5544, 2
      %v5546 = vmax.f32 %v5544, %v5545
      %v5547 = vrot.slane %v5546, 1
      %v5548 = vmax.f32 %v5546, %v5547
      %v5549 = vsel %vm3056, %v2109, -inf
      %v5550 = vrot.slane %v5549, 4
      %v5551 = vmax.f32 %v5549, %v5550
      %v5552 = vrot.slane %v5551, 2
      %v5553 = vmax.f32 %v5551, %v5552
      %v5554 = vrot.slane %v5553, 1
      %v5555 = vmax.f32 %v5553, %v5554
      %v5556 = vsel %vm3056, %v2112, -inf
      %v5557 = vrot.slane %v5556, 4
      %v5558 = vmax.f32 %v5556, %v5557
      %v5559 = vrot.slane %v5558, 2
      %v5560 = vmax.f32 %v5558, %v5559
      %v5561 = vrot.slane %v5560, 1
      %v5562 = vmax.f32 %v5560, %v5561
      %v5563 = vsel %vm3056, %v2115, -inf
      %v5564 = vrot.slane %v5563, 4
      %v5565 = vmax.f32 %v5563, %v5564
      %v5566 = vrot.slane %v5565, 2
      %v5567 = vmax.f32 %v5565, %v5566
      %v5568 = vrot.slane %v5567, 1
      %v5569 = vmax.f32 %v5567, %v5568
      %v5570 = vsel %vm3056, %v2118, -inf
      %v5571 = vrot.slane %v5570, 4
      %v5572 = vmax.f32 %v5570, %v5571
      %v5573 = vrot.slane %v5572, 2
      %v5574 = vmax.f32 %v5572, %v5573
      %v5575 = vrot.slane %v5574, 1
      %v5576 = vmax.f32 %v5574, %v5575
      %v5577 = vsel %vm3056, %v2121, -inf
      %v5578 = vrot.slane %v5577, 4
      %v5579 = vmax.f32 %v5577, %v5578
      %v5580 = vrot.slane %v5579, 2
      %v5581 = vmax.f32 %v5579, %v5580
      %v5582 = vrot.slane %v5581, 1
      %v5583 = vmax.f32 %v5581, %v5582
      %v5584 = vsel %vm3056, %v2124, -inf
      %v5585 = vrot.slane %v5584, 4
      %v5586 = vmax.f32 %v5584, %v5585
      %v5587 = vrot.slane %v5586, 2
      %v5588 = vmax.f32 %v5586, %v5587
      %v5589 = vrot.slane %v5588, 1
      %v5590 = vmax.f32 %v5588, %v5589
      %v5591 = vsel %vm3056, %v2127, -inf
      %v5592 = vrot.slane %v5591, 4
      %v5593 = vmax.f32 %v5591, %v5592
      %v5594 = vrot.slane %v5593, 2
      %v5595 = vmax.f32 %v5593, %v5594
      %v5596 = vrot.slane %v5595, 1
      %v5597 = vmax.f32 %v5595, %v5596
      %v5598 = vsel %vm3056, %v2130, -inf
      %v5599 = vrot.slane %v5598, 4
      %v5600 = vmax.f32 %v5598, %v5599
      %v5601 = vrot.slane %v5600, 2
      %v5602 = vmax.f32 %v5600, %v5601
      %v5603 = vrot.slane %v5602, 1
      %v5604 = vmax.f32 %v5602, %v5603
      %v5605 = vsel %vm3056, %v2133, -inf
      %v5606 = vrot.slane %v5605, 4
      %v5607 = vmax.f32 %v5605, %v5606
      %v5608 = vrot.slane %v5607, 2
      %v5609 = vmax.f32 %v5607, %v5608
      %v5610 = vrot.slane %v5609, 1
      %v5611 = vmax.f32 %v5609, %v5610
      %v5612 = vsel %vm3056, %v2136, -inf
      %v5613 = vrot.slane %v5612, 4
      %v5614 = vmax.f32 %v5612, %v5613
      %v5615 = vrot.slane %v5614, 2
      %v5616 = vmax.f32 %v5614, %v5615
      %v5617 = vrot.slane %v5616, 1
      %v5618 = vmax.f32 %v5616, %v5617
      %v5619 = vsel %vm3056, %v2139, -inf
      %v5620 = vrot.slane %v5619, 4
      %v5621 = vmax.f32 %v5619, %v5620
      %v5622 = vrot.slane %v5621, 2
      %v5623 = vmax.f32 %v5621, %v5622
      %v5624 = vrot.slane %v5623, 1
      %v5625 = vmax.f32 %v5623, %v5624
      %v5626 = vsel %vm3056, %v2142, -inf
      %v5627 = vrot.slane %v5626, 4
      %v5628 = vmax.f32 %v5626, %v5627
      %v5629 = vrot.slane %v5628, 2
      %v5630 = vmax.f32 %v5628, %v5629
      %v5631 = vrot.slane %v5630, 1
      %v5632 = vmax.f32 %v5630, %v5631
      %v5633 = vsel %vm3056, %v2145, -inf
      %v5634 = vrot.slane %v5633, 4
      %v5635 = vmax.f32 %v5633, %v5634
      %v5636 = vrot.slane %v5635, 2
      %v5637 = vmax.f32 %v5635, %v5636
      %v5638 = vrot.slane %v5637, 1
      %v5639 = vmax.f32 %v5637, %v5638
      %v5640 = vsel %vm3056, %v2148, -inf
      %v5641 = vrot.slane %v5640, 4
      %v5642 = vmax.f32 %v5640, %v5641
      %v5643 = vrot.slane %v5642, 2
      %v5644 = vmax.f32 %v5642, %v5643
      %v5645 = vrot.slane %v5644, 1
      %v5646 = vmax.f32 %v5644, %v5645
      %v5647 = vsel %vm3056, %v2151, -inf
      %v5648 = vrot.slane %v5647, 4
      %v5649 = vmax.f32 %v5647, %v5648
      %v5650 = vrot.slane %v5649, 2
      %v5651 = vmax.f32 %v5649, %v5650
      %v5652 = vrot.slane %v5651, 1
      %v5653 = vmax.f32 %v5651, %v5652
      %v5654 = vsel %vm3056, %v2154, -inf
      %v5655 = vrot.slane %v5654, 4
      %v5656 = vmax.f32 %v5654, %v5655
      %v5657 = vrot.slane %v5656, 2
      %v5658 = vmax.f32 %v5656, %v5657
      %v5659 = vrot.slane %v5658, 1
      %v5660 = vmax.f32 %v5658, %v5659
      %v5661 = vsel %vm3056, %v2157, -inf
      %v5662 = vrot.slane %v5661, 4
      %v5663 = vmax.f32 %v5661, %v5662
      %v5664 = vrot.slane %v5663, 2
      %v5665 = vmax.f32 %v5663, %v5664
      %v5666 = vrot.slane %v5665, 1
      %v5667 = vmax.f32 %v5665, %v5666
      %v5668 = vsel %vm3056, %v2160, -inf
      %v5669 = vrot.slane %v5668, 4
      %v5670 = vmax.f32 %v5668, %v5669
      %v5671 = vrot.slane %v5670, 2
      %v5672 = vmax.f32 %v5670, %v5671
      %v5673 = vrot.slane %v5672, 1
      %v5674 = vmax.f32 %v5672, %v5673
      %v5675 = vsel %vm3056, %v2163, -inf
      %v5676 = vrot.slane %v5675, 4
      %v5677 = vmax.f32 %v5675, %v5676
      %v5678 = vrot.slane %v5677, 2
      %v5679 = vmax.f32 %v5677, %v5678
      %v5680 = vrot.slane %v5679, 1
      %v5681 = vmax.f32 %v5679, %v5680
      %v5682 = vsel %vm3056, %v2166, -inf
      %v5683 = vrot.slane %v5682, 4
      %v5684 = vmax.f32 %v5682, %v5683
      %v5685 = vrot.slane %v5684, 2
      %v5686 = vmax.f32 %v5684, %v5685
      %v5687 = vrot.slane %v5686, 1
      %v5688 = vmax.f32 %v5686, %v5687
      %v5689 = vsel %vm3056, %v2169, -inf
      %v5690 = vrot.slane %v5689, 4
      %v5691 = vmax.f32 %v5689, %v5690
      %v5692 = vrot.slane %v5691, 2
      %v5693 = vmax.f32 %v5691, %v5692
      %v5694 = vrot.slane %v5693, 1
      %v5695 = vmax.f32 %v5693, %v5694
      %v5696 = vsel %vm3056, %v2172, -inf
      %v5697 = vrot.slane %v5696, 4
      %v5698 = vmax.f32 %v5696, %v5697
      %v5699 = vrot.slane %v5698, 2
      %v5700 = vmax.f32 %v5698, %v5699
      %v5701 = vrot.slane %v5700, 1
      %v5702 = vmax.f32 %v5700, %v5701
      %v5703 = vsel %vm3056, %v2175, -inf
      %v5704 = vrot.slane %v5703, 4
      %v5705 = vmax.f32 %v5703, %v5704
      %v5706 = vrot.slane %v5705, 2
      %v5707 = vmax.f32 %v5705, %v5706
      %v5708 = vrot.slane %v5707, 1
      %v5709 = vmax.f32 %v5707, %v5708
      %v5710 = vsel %vm3056, %v2178, -inf
      %v5711 = vrot.slane %v5710, 4
      %v5712 = vmax.f32 %v5710, %v5711
      %v5713 = vrot.slane %v5712, 2
      %v5714 = vmax.f32 %v5712, %v5713
      %v5715 = vrot.slane %v5714, 1
      %v5716 = vmax.f32 %v5714, %v5715
      %v5717 = vsel %vm3056, %v2181, -inf
      %v5718 = vrot.slane %v5717, 4
      %v5719 = vmax.f32 %v5717, %v5718
      %v5720 = vrot.slane %v5719, 2
      %v5721 = vmax.f32 %v5719, %v5720
      %v5722 = vrot.slane %v5721, 1
      %v5723 = vmax.f32 %v5721, %v5722
      %v5724 = vsel %vm3056, %v2184, -inf
      %v5725 = vrot.slane %v5724, 4
      %v5726 = vmax.f32 %v5724, %v5725
      %v5727 = vrot.slane %v5726, 2
      %v5728 = vmax.f32 %v5726, %v5727
      %v5729 = vrot.slane %v5728, 1
      %v5730 = vmax.f32 %v5728, %v5729
      %v5731 = vsel %vm3056, %v2187, -inf
      %v5732 = vrot.slane %v5731, 4
      %v5733 = vmax.f32 %v5731, %v5732
      %v5734 = vrot.slane %v5733, 2
      %v5735 = vmax.f32 %v5733, %v5734
      %v5736 = vrot.slane %v5735, 1
      %v5737 = vmax.f32 %v5735, %v5736
      %v5738 = vsel %vm3056, %v2190, -inf
      %v5739 = vrot.slane %v5738, 4
      %v5740 = vmax.f32 %v5738, %v5739
      %v5741 = vrot.slane %v5740, 2
      %v5742 = vmax.f32 %v5740, %v5741
      %v5743 = vrot.slane %v5742, 1
      %v5744 = vmax.f32 %v5742, %v5743
      %v5745 = vsel %vm3056, %v2193, -inf
      %v5746 = vrot.slane %v5745, 4
      %v5747 = vmax.f32 %v5745, %v5746
      %v5748 = vrot.slane %v5747, 2
      %v5749 = vmax.f32 %v5747, %v5748
      %v5750 = vrot.slane %v5749, 1
      %v5751 = vmax.f32 %v5749, %v5750
      %v5752 = vsel %vm3056, %v2196, -inf
      %v5753 = vrot.slane %v5752, 4
      %v5754 = vmax.f32 %v5752, %v5753
      %v5755 = vrot.slane %v5754, 2
      %v5756 = vmax.f32 %v5754, %v5755
      %v5757 = vrot.slane %v5756, 1
      %v5758 = vmax.f32 %v5756, %v5757
      %v5759 = vsel %vm3056, %v2199, -inf
      %v5760 = vrot.slane %v5759, 4
      %v5761 = vmax.f32 %v5759, %v5760
      %v5762 = vrot.slane %v5761, 2
      %v5763 = vmax.f32 %v5761, %v5762
      %v5764 = vrot.slane %v5763, 1
      %v5765 = vmax.f32 %v5763, %v5764
      %v5766 = vsel %vm3056, %v2202, -inf
      %v5767 = vrot.slane %v5766, 4
      %v5768 = vmax.f32 %v5766, %v5767
      %v5769 = vrot.slane %v5768, 2
      %v5770 = vmax.f32 %v5768, %v5769
      %v5771 = vrot.slane %v5770, 1
      %v5772 = vmax.f32 %v5770, %v5771
      %v5773 = vsel %vm3056, %v2205, -inf
      %v5774 = vrot.slane %v5773, 4
      %v5775 = vmax.f32 %v5773, %v5774
      %v5776 = vrot.slane %v5775, 2
      %v5777 = vmax.f32 %v5775, %v5776
      %v5778 = vrot.slane %v5777, 1
      %v5779 = vmax.f32 %v5777, %v5778
      %v5780 = vsel %vm3056, %v2208, -inf
      %v5781 = vrot.slane %v5780, 4
      %v5782 = vmax.f32 %v5780, %v5781
      %v5783 = vrot.slane %v5782, 2
      %v5784 = vmax.f32 %v5782, %v5783
      %v5785 = vrot.slane %v5784, 1
      %v5786 = vmax.f32 %v5784, %v5785
      %v5787 = vsel %vm3056, %v2211, -inf
      %v5788 = vrot.slane %v5787, 4
      %v5789 = vmax.f32 %v5787, %v5788
      %v5790 = vrot.slane %v5789, 2
      %v5791 = vmax.f32 %v5789, %v5790
      %v5792 = vrot.slane %v5791, 1
      %v5793 = vmax.f32 %v5791, %v5792
      %v5794 = vsel %vm3056, %v2214, -inf
      %v5795 = vrot.slane %v5794, 4
      %v5796 = vmax.f32 %v5794, %v5795
      %v5797 = vrot.slane %v5796, 2
      %v5798 = vmax.f32 %v5796, %v5797
      %v5799 = vrot.slane %v5798, 1
      %v5800 = vmax.f32 %v5798, %v5799
      %v5801 = vsel %vm3056, %v2217, -inf
      %v5802 = vrot.slane %v5801, 4
      %v5803 = vmax.f32 %v5801, %v5802
      %v5804 = vrot.slane %v5803, 2
      %v5805 = vmax.f32 %v5803, %v5804
      %v5806 = vrot.slane %v5805, 1
      %v5807 = vmax.f32 %v5805, %v5806
      %v5808 = vsel %vm3056, %v2220, -inf
      %v5809 = vrot.slane %v5808, 4
      %v5810 = vmax.f32 %v5808, %v5809
      %v5811 = vrot.slane %v5810, 2
      %v5812 = vmax.f32 %v5810, %v5811
      %v5813 = vrot.slane %v5812, 1
      %v5814 = vmax.f32 %v5812, %v5813
      %v5815 = vsel %vm3056, %v2223, -inf
      %v5816 = vrot.slane %v5815, 4
      %v5817 = vmax.f32 %v5815, %v5816
      %v5818 = vrot.slane %v5817, 2
      %v5819 = vmax.f32 %v5817, %v5818
      %v5820 = vrot.slane %v5819, 1
      %v5821 = vmax.f32 %v5819, %v5820
      %v5822 = vsel %vm3056, %v2226, -inf
      %v5823 = vrot.slane %v5822, 4
      %v5824 = vmax.f32 %v5822, %v5823
      %v5825 = vrot.slane %v5824, 2
      %v5826 = vmax.f32 %v5824, %v5825
      %v5827 = vrot.slane %v5826, 1
      %v5828 = vmax.f32 %v5826, %v5827
      %v5829 = vsel %vm3056, %v2229, -inf
      %v5830 = vrot.slane %v5829, 4
      %v5831 = vmax.f32 %v5829, %v5830
      %v5832 = vrot.slane %v5831, 2
      %v5833 = vmax.f32 %v5831, %v5832
      %v5834 = vrot.slane %v5833, 1
      %v5835 = vmax.f32 %v5833, %v5834
      %v5836 = vsel %vm3056, %v2232, -inf
      %v5837 = vrot.slane %v5836, 4
      %v5838 = vmax.f32 %v5836, %v5837
      %v5839 = vrot.slane %v5838, 2
      %v5840 = vmax.f32 %v5838, %v5839
      %v5841 = vrot.slane %v5840, 1
      %v5842 = vmax.f32 %v5840, %v5841
      %v5843 = vsel %vm3056, %v2235, -inf
      %v5844 = vrot.slane %v5843, 4
      %v5845 = vmax.f32 %v5843, %v5844
      %v5846 = vrot.slane %v5845, 2
      %v5847 = vmax.f32 %v5845, %v5846
      %v5848 = vrot.slane %v5847, 1
      %v5849 = vmax.f32 %v5847, %v5848
      %v5850 = vsel %vm3056, %v2238, -inf
      %v5851 = vrot.slane %v5850, 4
      %v5852 = vmax.f32 %v5850, %v5851
      %v5853 = vrot.slane %v5852, 2
      %v5854 = vmax.f32 %v5852, %v5853
      %v5855 = vrot.slane %v5854, 1
      %v5856 = vmax.f32 %v5854, %v5855
      %v5857 = vsel %vm3056, %v2241, -inf
      %v5858 = vrot.slane %v5857, 4
      %v5859 = vmax.f32 %v5857, %v5858
      %v5860 = vrot.slane %v5859, 2
      %v5861 = vmax.f32 %v5859, %v5860
      %v5862 = vrot.slane %v5861, 1
      %v5863 = vmax.f32 %v5861, %v5862
      %v5864 = vsel %vm3056, %v2244, -inf
      %v5865 = vrot.slane %v5864, 4
      %v5866 = vmax.f32 %v5864, %v5865
      %v5867 = vrot.slane %v5866, 2
      %v5868 = vmax.f32 %v5866, %v5867
      %v5869 = vrot.slane %v5868, 1
      %v5870 = vmax.f32 %v5868, %v5869
      %v5871 = vsel %vm3056, %v2247, -inf
      %v5872 = vrot.slane %v5871, 4
      %v5873 = vmax.f32 %v5871, %v5872
      %v5874 = vrot.slane %v5873, 2
      %v5875 = vmax.f32 %v5873, %v5874
      %v5876 = vrot.slane %v5875, 1
      %v5877 = vmax.f32 %v5875, %v5876
      %v5878 = vsel %vm3056, %v2250, -inf
      %v5879 = vrot.slane %v5878, 4
      %v5880 = vmax.f32 %v5878, %v5879
      %v5881 = vrot.slane %v5880, 2
      %v5882 = vmax.f32 %v5880, %v5881
      %v5883 = vrot.slane %v5882, 1
      %v5884 = vmax.f32 %v5882, %v5883
      %v5885 = vsel %vm3056, %v2253, -inf
      %v5886 = vrot.slane %v5885, 4
      %v5887 = vmax.f32 %v5885, %v5886
      %v5888 = vrot.slane %v5887, 2
      %v5889 = vmax.f32 %v5887, %v5888
      %v5890 = vrot.slane %v5889, 1
      %v5891 = vmax.f32 %v5889, %v5890
      %v5892 = vsel %vm3056, %v2256, -inf
      %v5893 = vrot.slane %v5892, 4
      %v5894 = vmax.f32 %v5892, %v5893
      %v5895 = vrot.slane %v5894, 2
      %v5896 = vmax.f32 %v5894, %v5895
      %v5897 = vrot.slane %v5896, 1
      %v5898 = vmax.f32 %v5896, %v5897
      %v5899 = vsel %vm3056, %v2259, -inf
      %v5900 = vrot.slane %v5899, 4
      %v5901 = vmax.f32 %v5899, %v5900
      %v5902 = vrot.slane %v5901, 2
      %v5903 = vmax.f32 %v5901, %v5902
      %v5904 = vrot.slane %v5903, 1
      %v5905 = vmax.f32 %v5903, %v5904
      %v5906 = vsel %vm3056, %v2262, -inf
      %v5907 = vrot.slane %v5906, 4
      %v5908 = vmax.f32 %v5906, %v5907
      %v5909 = vrot.slane %v5908, 2
      %v5910 = vmax.f32 %v5908, %v5909
      %v5911 = vrot.slane %v5910, 1
      %v5912 = vmax.f32 %v5910, %v5911
      %v5913 = vsel %vm3056, %v2265, -inf
      %v5914 = vrot.slane %v5913, 4
      %v5915 = vmax.f32 %v5913, %v5914
      %v5916 = vrot.slane %v5915, 2
      %v5917 = vmax.f32 %v5915, %v5916
      %v5918 = vrot.slane %v5917, 1
      %v5919 = vmax.f32 %v5917, %v5918
      %v5920 = vsel %vm3056, %v2268, -inf
      %v5921 = vrot.slane %v5920, 4
      %v5922 = vmax.f32 %v5920, %v5921
      %v5923 = vrot.slane %v5922, 2
      %v5924 = vmax.f32 %v5922, %v5923
      %v5925 = vrot.slane %v5924, 1
      %v5926 = vmax.f32 %v5924, %v5925
      %v5927 = vsel %vm3056, %v2271, -inf
      %v5928 = vrot.slane %v5927, 4
      %v5929 = vmax.f32 %v5927, %v5928
      %v5930 = vrot.slane %v5929, 2
      %v5931 = vmax.f32 %v5929, %v5930
      %v5932 = vrot.slane %v5931, 1
      %v5933 = vmax.f32 %v5931, %v5932
      %v5934 = vsel %vm3056, %v2274, -inf
      %v5935 = vrot.slane %v5934, 4
      %v5936 = vmax.f32 %v5934, %v5935
      %v5937 = vrot.slane %v5936, 2
      %v5938 = vmax.f32 %v5936, %v5937
      %v5939 = vrot.slane %v5938, 1
      %v5940 = vmax.f32 %v5938, %v5939
      %v5941 = vsel %vm3056, %v2277, -inf
      %v5942 = vrot.slane %v5941, 4
      %v5943 = vmax.f32 %v5941, %v5942
      %v5944 = vrot.slane %v5943, 2
      %v5945 = vmax.f32 %v5943, %v5944
      %v5946 = vrot.slane %v5945, 1
      %v5947 = vmax.f32 %v5945, %v5946
      %v5948 = vsel %vm3056, %v2280, -inf
      %v5949 = vrot.slane %v5948, 4
      %v5950 = vmax.f32 %v5948, %v5949
      %v5951 = vrot.slane %v5950, 2
      %v5952 = vmax.f32 %v5950, %v5951
      %v5953 = vrot.slane %v5952, 1
      %v5954 = vmax.f32 %v5952, %v5953
      %v5955 = vsel %vm3056, %v2283, -inf
      %v5956 = vrot.slane %v5955, 4
      %v5957 = vmax.f32 %v5955, %v5956
      %v5958 = vrot.slane %v5957, 2
      %v5959 = vmax.f32 %v5957, %v5958
      %v5960 = vrot.slane %v5959, 1
      %v5961 = vmax.f32 %v5959, %v5960
      %v5962 = vsel %vm3056, %v2286, -inf
      %v5963 = vrot.slane %v5962, 4
      %v5964 = vmax.f32 %v5962, %v5963
      %v5965 = vrot.slane %v5964, 2
      %v5966 = vmax.f32 %v5964, %v5965
      %v5967 = vrot.slane %v5966, 1
      %v5968 = vmax.f32 %v5966, %v5967
      %v5969 = vsel %vm3056, %v2289, -inf
      %v5970 = vrot.slane %v5969, 4
      %v5971 = vmax.f32 %v5969, %v5970
      %v5972 = vrot.slane %v5971, 2
      %v5973 = vmax.f32 %v5971, %v5972
      %v5974 = vrot.slane %v5973, 1
      %v5975 = vmax.f32 %v5973, %v5974
      %v5976 = vsel %vm3056, %v2292, -inf
      %v5977 = vrot.slane %v5976, 4
      %v5978 = vmax.f32 %v5976, %v5977
      %v5979 = vrot.slane %v5978, 2
      %v5980 = vmax.f32 %v5978, %v5979
      %v5981 = vrot.slane %v5980, 1
      %v5982 = vmax.f32 %v5980, %v5981
      %v5983 = vsel %vm3056, %v2295, -inf
      %v5984 = vrot.slane %v5983, 4
      %v5985 = vmax.f32 %v5983, %v5984
      %v5986 = vrot.slane %v5985, 2
      %v5987 = vmax.f32 %v5985, %v5986
      %v5988 = vrot.slane %v5987, 1
      %v5989 = vmax.f32 %v5987, %v5988
      %v5990 = vsel %vm3056, %v2298, -inf
      %v5991 = vrot.slane %v5990, 4
      %v5992 = vmax.f32 %v5990, %v5991
      %v5993 = vrot.slane %v5992, 2
      %v5994 = vmax.f32 %v5992, %v5993
      %v5995 = vrot.slane %v5994, 1
      %v5996 = vmax.f32 %v5994, %v5995
      %v5997 = vsel %vm3056, %v2301, -inf
      %v5998 = vrot.slane %v5997, 4
      %v5999 = vmax.f32 %v5997, %v5998
      %v6000 = vrot.slane %v5999, 2
      %v6001 = vmax.f32 %v5999, %v6000
      %v6002 = vrot.slane %v6001, 1
      %v6003 = vmax.f32 %v6001, %v6002
      %v6004 = vsel %vm3056, %v2304, -inf
      %v6005 = vrot.slane %v6004, 4
      %v6006 = vmax.f32 %v6004, %v6005
      %v6007 = vrot.slane %v6006, 2
      %v6008 = vmax.f32 %v6006, %v6007
      %v6009 = vrot.slane %v6008, 1
      %v6010 = vmax.f32 %v6008, %v6009
      %v6011 = vsel %vm3056, %v2307, -inf
      %v6012 = vrot.slane %v6011, 4
      %v6013 = vmax.f32 %v6011, %v6012
      %v6014 = vrot.slane %v6013, 2
      %v6015 = vmax.f32 %v6013, %v6014
      %v6016 = vrot.slane %v6015, 1
      %v6017 = vmax.f32 %v6015, %v6016
      %v6018 = vsel %vm3056, %v2310, -inf
      %v6019 = vrot.slane %v6018, 4
      %v6020 = vmax.f32 %v6018, %v6019
      %v6021 = vrot.slane %v6020, 2
      %v6022 = vmax.f32 %v6020, %v6021
      %v6023 = vrot.slane %v6022, 1
      %v6024 = vmax.f32 %v6022, %v6023
      %v6025 = vsel %vm3056, %v2313, -inf
      %v6026 = vrot.slane %v6025, 4
      %v6027 = vmax.f32 %v6025, %v6026
      %v6028 = vrot.slane %v6027, 2
      %v6029 = vmax.f32 %v6027, %v6028
      %v6030 = vrot.slane %v6029, 1
      %v6031 = vmax.f32 %v6029, %v6030
      %v6032 = vsel %vm3056, %v2316, -inf
      %v6033 = vrot.slane %v6032, 4
      %v6034 = vmax.f32 %v6032, %v6033
      %v6035 = vrot.slane %v6034, 2
      %v6036 = vmax.f32 %v6034, %v6035
      %v6037 = vrot.slane %v6036, 1
      %v6038 = vmax.f32 %v6036, %v6037
      %v6039 = vsel %vm3056, %v2319, -inf
      %v6040 = vrot.slane %v6039, 4
      %v6041 = vmax.f32 %v6039, %v6040
      %v6042 = vrot.slane %v6041, 2
      %v6043 = vmax.f32 %v6041, %v6042
      %v6044 = vrot.slane %v6043, 1
      %v6045 = vmax.f32 %v6043, %v6044
      %v6046 = vsel %vm3056, %v2322, -inf
      %v6047 = vrot.slane %v6046, 4
      %v6048 = vmax.f32 %v6046, %v6047
      %v6049 = vrot.slane %v6048, 2
      %v6050 = vmax.f32 %v6048, %v6049
      %v6051 = vrot.slane %v6050, 1
      %v6052 = vmax.f32 %v6050, %v6051
      %v6053 = vsel %vm3056, %v2325, -inf
      %v6054 = vrot.slane %v6053, 4
      %v6055 = vmax.f32 %v6053, %v6054
      %v6056 = vrot.slane %v6055, 2
      %v6057 = vmax.f32 %v6055, %v6056
      %v6058 = vrot.slane %v6057, 1
      %v6059 = vmax.f32 %v6057, %v6058
      %v6060 = vsel %vm3056, %v2328, -inf
      %v6061 = vrot.slane %v6060, 4
      %v6062 = vmax.f32 %v6060, %v6061
      %v6063 = vrot.slane %v6062, 2
      %v6064 = vmax.f32 %v6062, %v6063
      %v6065 = vrot.slane %v6064, 1
      %v6066 = vmax.f32 %v6064, %v6065
      %v6067 = vsel %vm3056, %v2331, -inf
      %v6068 = vrot.slane %v6067, 4
      %v6069 = vmax.f32 %v6067, %v6068
      %v6070 = vrot.slane %v6069, 2
      %v6071 = vmax.f32 %v6069, %v6070
      %v6072 = vrot.slane %v6071, 1
      %v6073 = vmax.f32 %v6071, %v6072
      %v6074 = vsel %vm3056, %v2334, -inf
      %v6075 = vrot.slane %v6074, 4
      %v6076 = vmax.f32 %v6074, %v6075
      %v6077 = vrot.slane %v6076, 2
      %v6078 = vmax.f32 %v6076, %v6077
      %v6079 = vrot.slane %v6078, 1
      %v6080 = vmax.f32 %v6078, %v6079
      %v6081 = vsel %vm3056, %v2337, -inf
      %v6082 = vrot.slane %v6081, 4
      %v6083 = vmax.f32 %v6081, %v6082
      %v6084 = vrot.slane %v6083, 2
      %v6085 = vmax.f32 %v6083, %v6084
      %v6086 = vrot.slane %v6085, 1
      %v6087 = vmax.f32 %v6085, %v6086
      %v6088 = vsel %vm3056, %v2340, -inf
      %v6089 = vrot.slane %v6088, 4
      %v6090 = vmax.f32 %v6088, %v6089
      %v6091 = vrot.slane %v6090, 2
      %v6092 = vmax.f32 %v6090, %v6091
      %v6093 = vrot.slane %v6092, 1
      %v6094 = vmax.f32 %v6092, %v6093
      %v6095 = vsel %vm3056, %v2343, -inf
      %v6096 = vrot.slane %v6095, 4
      %v6097 = vmax.f32 %v6095, %v6096
      %v6098 = vrot.slane %v6097, 2
      %v6099 = vmax.f32 %v6097, %v6098
      %v6100 = vrot.slane %v6099, 1
      %v6101 = vmax.f32 %v6099, %v6100
      %v6102 = vsel %vm3056, %v2346, -inf
      %v6103 = vrot.slane %v6102, 4
      %v6104 = vmax.f32 %v6102, %v6103
      %v6105 = vrot.slane %v6104, 2
      %v6106 = vmax.f32 %v6104, %v6105
      %v6107 = vrot.slane %v6106, 1
      %v6108 = vmax.f32 %v6106, %v6107
      %v6109 = vsel %vm3056, %v2349, -inf
      %v6110 = vrot.slane %v6109, 4
      %v6111 = vmax.f32 %v6109, %v6110
      %v6112 = vrot.slane %v6111, 2
      %v6113 = vmax.f32 %v6111, %v6112
      %v6114 = vrot.slane %v6113, 1
      %v6115 = vmax.f32 %v6113, %v6114
      %v6116 = vsel %vm3056, %v2352, -inf
      %v6117 = vrot.slane %v6116, 4
      %v6118 = vmax.f32 %v6116, %v6117
      %v6119 = vrot.slane %v6118, 2
      %v6120 = vmax.f32 %v6118, %v6119
      %v6121 = vrot.slane %v6120, 1
      %v6122 = vmax.f32 %v6120, %v6121
      %v6123 = vsel %vm3056, %v2355, -inf
      %v6124 = vrot.slane %v6123, 4
      %v6125 = vmax.f32 %v6123, %v6124
      %v6126 = vrot.slane %v6125, 2
      %v6127 = vmax.f32 %v6125, %v6126
      %v6128 = vrot.slane %v6127, 1
      %v6129 = vmax.f32 %v6127, %v6128
      %v6130 = vsel %vm3056, %v2358, -inf
      %v6131 = vrot.slane %v6130, 4
      %v6132 = vmax.f32 %v6130, %v6131
      %v6133 = vrot.slane %v6132, 2
      %v6134 = vmax.f32 %v6132, %v6133
      %v6135 = vrot.slane %v6134, 1
      %v6136 = vmax.f32 %v6134, %v6135
      %v6137 = vsel %vm3056, %v2361, -inf
      %v6138 = vrot.slane %v6137, 4
      %v6139 = vmax.f32 %v6137, %v6138
      %v6140 = vrot.slane %v6139, 2
      %v6141 = vmax.f32 %v6139, %v6140
      %v6142 = vrot.slane %v6141, 1
      %v6143 = vmax.f32 %v6141, %v6142
      %v6144 = vsel %vm3056, %v2364, -inf
      %v6145 = vrot.slane %v6144, 4
      %v6146 = vmax.f32 %v6144, %v6145
      %v6147 = vrot.slane %v6146, 2
      %v6148 = vmax.f32 %v6146, %v6147
      %v6149 = vrot.slane %v6148, 1
      %v6150 = vmax.f32 %v6148, %v6149
      %v6151 = vsel %vm3056, %v2367, -inf
      %v6152 = vrot.slane %v6151, 4
      %v6153 = vmax.f32 %v6151, %v6152
      %v6154 = vrot.slane %v6153, 2
      %v6155 = vmax.f32 %v6153, %v6154
      %v6156 = vrot.slane %v6155, 1
      %v6157 = vmax.f32 %v6155, %v6156
      %v6158 = vsel %vm3056, %v2370, -inf
      %v6159 = vrot.slane %v6158, 4
      %v6160 = vmax.f32 %v6158, %v6159
      %v6161 = vrot.slane %v6160, 2
      %v6162 = vmax.f32 %v6160, %v6161
      %v6163 = vrot.slane %v6162, 1
      %v6164 = vmax.f32 %v6162, %v6163
      %v6165 = vsel %vm3056, %v2373, -inf
      %v6166 = vrot.slane %v6165, 4
      %v6167 = vmax.f32 %v6165, %v6166
      %v6168 = vrot.slane %v6167, 2
      %v6169 = vmax.f32 %v6167, %v6168
      %v6170 = vrot.slane %v6169, 1
      %v6171 = vmax.f32 %v6169, %v6170
      %v6172 = vsel %vm3056, %v2376, -inf
      %v6173 = vrot.slane %v6172, 4
      %v6174 = vmax.f32 %v6172, %v6173
      %v6175 = vrot.slane %v6174, 2
      %v6176 = vmax.f32 %v6174, %v6175
      %v6177 = vrot.slane %v6176, 1
      %v6178 = vmax.f32 %v6176, %v6177
      %v6179 = vsel %vm3056, %v2379, -inf
      %v6180 = vrot.slane %v6179, 4
      %v6181 = vmax.f32 %v6179, %v6180
      %v6182 = vrot.slane %v6181, 2
      %v6183 = vmax.f32 %v6181, %v6182
      %v6184 = vrot.slane %v6183, 1
      %v6185 = vmax.f32 %v6183, %v6184
      %v6186 = vsel %vm3056, %v2382, -inf
      %v6187 = vrot.slane %v6186, 4
      %v6188 = vmax.f32 %v6186, %v6187
      %v6189 = vrot.slane %v6188, 2
      %v6190 = vmax.f32 %v6188, %v6189
      %v6191 = vrot.slane %v6190, 1
      %v6192 = vmax.f32 %v6190, %v6191
      %v6193 = vsel %vm3056, %v2385, -inf
      %v6194 = vrot.slane %v6193, 4
      %v6195 = vmax.f32 %v6193, %v6194
      %v6196 = vrot.slane %v6195, 2
      %v6197 = vmax.f32 %v6195, %v6196
      %v6198 = vrot.slane %v6197, 1
      %v6199 = vmax.f32 %v6197, %v6198
      %v6200 = vsel %vm3056, %v2388, -inf
      %v6201 = vrot.slane %v6200, 4
      %v6202 = vmax.f32 %v6200, %v6201
      %v6203 = vrot.slane %v6202, 2
      %v6204 = vmax.f32 %v6202, %v6203
      %v6205 = vrot.slane %v6204, 1
      %v6206 = vmax.f32 %v6204, %v6205
      %v6207 = vsel %vm3056, %v2391, -inf
      %v6208 = vrot.slane %v6207, 4
      %v6209 = vmax.f32 %v6207, %v6208
      %v6210 = vrot.slane %v6209, 2
      %v6211 = vmax.f32 %v6209, %v6210
      %v6212 = vrot.slane %v6211, 1
      %v6213 = vmax.f32 %v6211, %v6212
      %v6214 = vsel %vm3056, %v2394, -inf
      %v6215 = vrot.slane %v6214, 4
      %v6216 = vmax.f32 %v6214, %v6215
      %v6217 = vrot.slane %v6216, 2
      %v6218 = vmax.f32 %v6216, %v6217
      %v6219 = vrot.slane %v6218, 1
      %v6220 = vmax.f32 %v6218, %v6219
      %v6221 = vsel %vm3056, %v2397, -inf
      %v6222 = vrot.slane %v6221, 4
      %v6223 = vmax.f32 %v6221, %v6222
      %v6224 = vrot.slane %v6223, 2
      %v6225 = vmax.f32 %v6223, %v6224
      %v6226 = vrot.slane %v6225, 1
      %v6227 = vmax.f32 %v6225, %v6226
      %v6228 = vsel %vm3056, %v2400, -inf
      %v6229 = vrot.slane %v6228, 4
      %v6230 = vmax.f32 %v6228, %v6229
      %v6231 = vrot.slane %v6230, 2
      %v6232 = vmax.f32 %v6230, %v6231
      %v6233 = vrot.slane %v6232, 1
      %v6234 = vmax.f32 %v6232, %v6233
      %v6235 = vsel %vm3056, %v2403, -inf
      %v6236 = vrot.slane %v6235, 4
      %v6237 = vmax.f32 %v6235, %v6236
      %v6238 = vrot.slane %v6237, 2
      %v6239 = vmax.f32 %v6237, %v6238
      %v6240 = vrot.slane %v6239, 1
      %v6241 = vmax.f32 %v6239, %v6240
      %v6242 = vsel %vm3056, %v2406, -inf
      %v6243 = vrot.slane %v6242, 4
      %v6244 = vmax.f32 %v6242, %v6243
      %v6245 = vrot.slane %v6244, 2
      %v6246 = vmax.f32 %v6244, %v6245
      %v6247 = vrot.slane %v6246, 1
      %v6248 = vmax.f32 %v6246, %v6247
      %v6249 = vsel %vm3056, %v2409, -inf
      %v6250 = vrot.slane %v6249, 4
      %v6251 = vmax.f32 %v6249, %v6250
      %v6252 = vrot.slane %v6251, 2
      %v6253 = vmax.f32 %v6251, %v6252
      %v6254 = vrot.slane %v6253, 1
      %v6255 = vmax.f32 %v6253, %v6254
      %v6256 = vsel %vm3056, %v2412, -inf
      %v6257 = vrot.slane %v6256, 4
      %v6258 = vmax.f32 %v6256, %v6257
      %v6259 = vrot.slane %v6258, 2
      %v6260 = vmax.f32 %v6258, %v6259
      %v6261 = vrot.slane %v6260, 1
      %v6262 = vmax.f32 %v6260, %v6261
      %v6263 = vsel %vm3056, %v2415, -inf
      %v6264 = vrot.slane %v6263, 4
      %v6265 = vmax.f32 %v6263, %v6264
      %v6266 = vrot.slane %v6265, 2
      %v6267 = vmax.f32 %v6265, %v6266
      %v6268 = vrot.slane %v6267, 1
      %v6269 = vmax.f32 %v6267, %v6268
      %v6270 = vsel %vm3056, %v2418, -inf
      %v6271 = vrot.slane %v6270, 4
      %v6272 = vmax.f32 %v6270, %v6271
      %v6273 = vrot.slane %v6272, 2
      %v6274 = vmax.f32 %v6272, %v6273
      %v6275 = vrot.slane %v6274, 1
      %v6276 = vmax.f32 %v6274, %v6275
      %v6277 = vsel %vm3056, %v2421, -inf
      %v6278 = vrot.slane %v6277, 4
      %v6279 = vmax.f32 %v6277, %v6278
      %v6280 = vrot.slane %v6279, 2
      %v6281 = vmax.f32 %v6279, %v6280
      %v6282 = vrot.slane %v6281, 1
      %v6283 = vmax.f32 %v6281, %v6282
      %v6284 = vsel %vm3056, %v2424, -inf
      %v6285 = vrot.slane %v6284, 4
      %v6286 = vmax.f32 %v6284, %v6285
      %v6287 = vrot.slane %v6286, 2
      %v6288 = vmax.f32 %v6286, %v6287
      %v6289 = vrot.slane %v6288, 1
      %v6290 = vmax.f32 %v6288, %v6289
      %v6291 = vsel %vm3056, %v2427, -inf
      %v6292 = vrot.slane %v6291, 4
      %v6293 = vmax.f32 %v6291, %v6292
      %v6294 = vrot.slane %v6293, 2
      %v6295 = vmax.f32 %v6293, %v6294
      %v6296 = vrot.slane %v6295, 1
      %v6297 = vmax.f32 %v6295, %v6296
      %v6298 = vsel %vm3056, %v2430, -inf
      %v6299 = vrot.slane %v6298, 4
      %v6300 = vmax.f32 %v6298, %v6299
      %v6301 = vrot.slane %v6300, 2
      %v6302 = vmax.f32 %v6300, %v6301
      %v6303 = vrot.slane %v6302, 1
      %v6304 = vmax.f32 %v6302, %v6303
      %v6305 = vsel %vm3056, %v2433, -inf
      %v6306 = vrot.slane %v6305, 4
      %v6307 = vmax.f32 %v6305, %v6306
      %v6308 = vrot.slane %v6307, 2
      %v6309 = vmax.f32 %v6307, %v6308
      %v6310 = vrot.slane %v6309, 1
      %v6311 = vmax.f32 %v6309, %v6310
      %v6312 = vsel %vm3056, %v2436, -inf
      %v6313 = vrot.slane %v6312, 4
      %v6314 = vmax.f32 %v6312, %v6313
      %v6315 = vrot.slane %v6314, 2
      %v6316 = vmax.f32 %v6314, %v6315
      %v6317 = vrot.slane %v6316, 1
      %v6318 = vmax.f32 %v6316, %v6317
      %v6319 = vsel %vm3056, %v2439, -inf
      %v6320 = vrot.slane %v6319, 4
      %v6321 = vmax.f32 %v6319, %v6320
      %v6322 = vrot.slane %v6321, 2
      %v6323 = vmax.f32 %v6321, %v6322
      %v6324 = vrot.slane %v6323, 1
      %v6325 = vmax.f32 %v6323, %v6324
      %v6326 = vsel %vm3056, %v2442, -inf
      %v6327 = vrot.slane %v6326, 4
      %v6328 = vmax.f32 %v6326, %v6327
      %v6329 = vrot.slane %v6328, 2
      %v6330 = vmax.f32 %v6328, %v6329
      %v6331 = vrot.slane %v6330, 1
      %v6332 = vmax.f32 %v6330, %v6331
      %v6333 = vsel %vm3056, %v2445, -inf
      %v6334 = vrot.slane %v6333, 4
      %v6335 = vmax.f32 %v6333, %v6334
      %v6336 = vrot.slane %v6335, 2
      %v6337 = vmax.f32 %v6335, %v6336
      %v6338 = vrot.slane %v6337, 1
      %v6339 = vmax.f32 %v6337, %v6338
      %v6340 = vsel %vm3056, %v2448, -inf
      %v6341 = vrot.slane %v6340, 4
      %v6342 = vmax.f32 %v6340, %v6341
      %v6343 = vrot.slane %v6342, 2
      %v6344 = vmax.f32 %v6342, %v6343
      %v6345 = vrot.slane %v6344, 1
      %v6346 = vmax.f32 %v6344, %v6345
      %v6347 = vsel %vm3056, %v2451, -inf
      %v6348 = vrot.slane %v6347, 4
      %v6349 = vmax.f32 %v6347, %v6348
      %v6350 = vrot.slane %v6349, 2
      %v6351 = vmax.f32 %v6349, %v6350
      %v6352 = vrot.slane %v6351, 1
      %v6353 = vmax.f32 %v6351, %v6352
      %v6354 = vsel %vm3056, %v2454, -inf
      %v6355 = vrot.slane %v6354, 4
      %v6356 = vmax.f32 %v6354, %v6355
      %v6357 = vrot.slane %v6356, 2
      %v6358 = vmax.f32 %v6356, %v6357
      %v6359 = vrot.slane %v6358, 1
      %v6360 = vmax.f32 %v6358, %v6359
      %v6361 = vsel %vm3056, %v2457, -inf
      %v6362 = vrot.slane %v6361, 4
      %v6363 = vmax.f32 %v6361, %v6362
      %v6364 = vrot.slane %v6363, 2
      %v6365 = vmax.f32 %v6363, %v6364
      %v6366 = vrot.slane %v6365, 1
      %v6367 = vmax.f32 %v6365, %v6366
      %v6368 = vsel %vm3056, %v2460, -inf
      %v6369 = vrot.slane %v6368, 4
      %v6370 = vmax.f32 %v6368, %v6369
      %v6371 = vrot.slane %v6370, 2
      %v6372 = vmax.f32 %v6370, %v6371
      %v6373 = vrot.slane %v6372, 1
      %v6374 = vmax.f32 %v6372, %v6373
      %v6375 = vsel %vm3056, %v2463, -inf
      %v6376 = vrot.slane %v6375, 4
      %v6377 = vmax.f32 %v6375, %v6376
      %v6378 = vrot.slane %v6377, 2
      %v6379 = vmax.f32 %v6377, %v6378
      %v6380 = vrot.slane %v6379, 1
      %v6381 = vmax.f32 %v6379, %v6380
      %v6382 = vsel %vm3056, %v2466, -inf
      %v6383 = vrot.slane %v6382, 4
      %v6384 = vmax.f32 %v6382, %v6383
      %v6385 = vrot.slane %v6384, 2
      %v6386 = vmax.f32 %v6384, %v6385
      %v6387 = vrot.slane %v6386, 1
      %v6388 = vmax.f32 %v6386, %v6387
      %v6389 = vsel %vm3056, %v2469, -inf
      %v6390 = vrot.slane %v6389, 4
      %v6391 = vmax.f32 %v6389, %v6390
      %v6392 = vrot.slane %v6391, 2
      %v6393 = vmax.f32 %v6391, %v6392
      %v6394 = vrot.slane %v6393, 1
      %v6395 = vmax.f32 %v6393, %v6394
      %v6396 = vsel %vm3056, %v2472, -inf
      %v6397 = vrot.slane %v6396, 4
      %v6398 = vmax.f32 %v6396, %v6397
      %v6399 = vrot.slane %v6398, 2
      %v6400 = vmax.f32 %v6398, %v6399
      %v6401 = vrot.slane %v6400, 1
      %v6402 = vmax.f32 %v6400, %v6401
      %v6403 = vsel %vm3056, %v2475, -inf
      %v6404 = vrot.slane %v6403, 4
      %v6405 = vmax.f32 %v6403, %v6404
      %v6406 = vrot.slane %v6405, 2
      %v6407 = vmax.f32 %v6405, %v6406
      %v6408 = vrot.slane %v6407, 1
      %v6409 = vmax.f32 %v6407, %v6408
      %v6410 = vsel %vm3056, %v2478, -inf
      %v6411 = vrot.slane %v6410, 4
      %v6412 = vmax.f32 %v6410, %v6411
      %v6413 = vrot.slane %v6412, 2
      %v6414 = vmax.f32 %v6412, %v6413
      %v6415 = vrot.slane %v6414, 1
      %v6416 = vmax.f32 %v6414, %v6415
      %v6417 = vsel %vm3056, %v2481, -inf
      %v6418 = vrot.slane %v6417, 4
      %v6419 = vmax.f32 %v6417, %v6418
      %v6420 = vrot.slane %v6419, 2
      %v6421 = vmax.f32 %v6419, %v6420
      %v6422 = vrot.slane %v6421, 1
      %v6423 = vmax.f32 %v6421, %v6422
      %v6424 = vsel %vm3056, %v2484, -inf
      %v6425 = vrot.slane %v6424, 4
      %v6426 = vmax.f32 %v6424, %v6425
      %v6427 = vrot.slane %v6426, 2
      %v6428 = vmax.f32 %v6426, %v6427
      %v6429 = vrot.slane %v6428, 1
      %v6430 = vmax.f32 %v6428, %v6429
      %v6431 = vsel %vm3056, %v2487, -inf
      %v6432 = vrot.slane %v6431, 4
      %v6433 = vmax.f32 %v6431, %v6432
      %v6434 = vrot.slane %v6433, 2
      %v6435 = vmax.f32 %v6433, %v6434
      %v6436 = vrot.slane %v6435, 1
      %v6437 = vmax.f32 %v6435, %v6436
      %v6438 = vsel %vm3056, %v2490, -inf
      %v6439 = vrot.slane %v6438, 4
      %v6440 = vmax.f32 %v6438, %v6439
      %v6441 = vrot.slane %v6440, 2
      %v6442 = vmax.f32 %v6440, %v6441
      %v6443 = vrot.slane %v6442, 1
      %v6444 = vmax.f32 %v6442, %v6443
      %v6445 = vsel %vm3056, %v2493, -inf
      %v6446 = vrot.slane %v6445, 4
      %v6447 = vmax.f32 %v6445, %v6446
      %v6448 = vrot.slane %v6447, 2
      %v6449 = vmax.f32 %v6447, %v6448
      %v6450 = vrot.slane %v6449, 1
      %v6451 = vmax.f32 %v6449, %v6450
      %v6452 = vsel %vm3056, %v2496, -inf
      %v6453 = vrot.slane %v6452, 4
      %v6454 = vmax.f32 %v6452, %v6453
      %v6455 = vrot.slane %v6454, 2
      %v6456 = vmax.f32 %v6454, %v6455
      %v6457 = vrot.slane %v6456, 1
      %v6458 = vmax.f32 %v6456, %v6457
      %v6459 = vsel %vm3056, %v2499, -inf
      %v6460 = vrot.slane %v6459, 4
      %v6461 = vmax.f32 %v6459, %v6460
      %v6462 = vrot.slane %v6461, 2
      %v6463 = vmax.f32 %v6461, %v6462
      %v6464 = vrot.slane %v6463, 1
      %v6465 = vmax.f32 %v6463, %v6464
      %v6466 = vsel %vm3056, %v2502, -inf
      %v6467 = vrot.slane %v6466, 4
      %v6468 = vmax.f32 %v6466, %v6467
      %v6469 = vrot.slane %v6468, 2
      %v6470 = vmax.f32 %v6468, %v6469
      %v6471 = vrot.slane %v6470, 1
      %v6472 = vmax.f32 %v6470, %v6471
      %v6473 = vsel %vm3056, %v2505, -inf
      %v6474 = vrot.slane %v6473, 4
      %v6475 = vmax.f32 %v6473, %v6474
      %v6476 = vrot.slane %v6475, 2
      %v6477 = vmax.f32 %v6475, %v6476
      %v6478 = vrot.slane %v6477, 1
      %v6479 = vmax.f32 %v6477, %v6478
      %v6480 = vsel %vm3056, %v2508, -inf
      %v6481 = vrot.slane %v6480, 4
      %v6482 = vmax.f32 %v6480, %v6481
      %v6483 = vrot.slane %v6482, 2
      %v6484 = vmax.f32 %v6482, %v6483
      %v6485 = vrot.slane %v6484, 1
      %v6486 = vmax.f32 %v6484, %v6485
      %v6487 = vsel %vm3056, %v2511, -inf
      %v6488 = vrot.slane %v6487, 4
      %v6489 = vmax.f32 %v6487, %v6488
      %v6490 = vrot.slane %v6489, 2
      %v6491 = vmax.f32 %v6489, %v6490
      %v6492 = vrot.slane %v6491, 1
      %v6493 = vmax.f32 %v6491, %v6492
      %v6494 = vsel %vm3056, %v2514, -inf
      %v6495 = vrot.slane %v6494, 4
      %v6496 = vmax.f32 %v6494, %v6495
      %v6497 = vrot.slane %v6496, 2
      %v6498 = vmax.f32 %v6496, %v6497
      %v6499 = vrot.slane %v6498, 1
      %v6500 = vmax.f32 %v6498, %v6499
      %v6501 = vsel %vm3056, %v2517, -inf
      %v6502 = vrot.slane %v6501, 4
      %v6503 = vmax.f32 %v6501, %v6502
      %v6504 = vrot.slane %v6503, 2
      %v6505 = vmax.f32 %v6503, %v6504
      %v6506 = vrot.slane %v6505, 1
      %v6507 = vmax.f32 %v6505, %v6506
      %v6508 = vsel %vm3056, %v2520, -inf
      %v6509 = vrot.slane %v6508, 4
      %v6510 = vmax.f32 %v6508, %v6509
      %v6511 = vrot.slane %v6510, 2
      %v6512 = vmax.f32 %v6510, %v6511
      %v6513 = vrot.slane %v6512, 1
      %v6514 = vmax.f32 %v6512, %v6513
      %v6515 = vsel %vm3056, %v2523, -inf
      %v6516 = vrot.slane %v6515, 4
      %v6517 = vmax.f32 %v6515, %v6516
      %v6518 = vrot.slane %v6517, 2
      %v6519 = vmax.f32 %v6517, %v6518
      %v6520 = vrot.slane %v6519, 1
      %v6521 = vmax.f32 %v6519, %v6520
      %v6522 = vsel %vm3056, %v2526, -inf
      %v6523 = vrot.slane %v6522, 4
      %v6524 = vmax.f32 %v6522, %v6523
      %v6525 = vrot.slane %v6524, 2
      %v6526 = vmax.f32 %v6524, %v6525
      %v6527 = vrot.slane %v6526, 1
      %v6528 = vmax.f32 %v6526, %v6527
      %v6529 = vsel %vm3056, %v2529, -inf
      %v6530 = vrot.slane %v6529, 4
      %v6531 = vmax.f32 %v6529, %v6530
      %v6532 = vrot.slane %v6531, 2
      %v6533 = vmax.f32 %v6531, %v6532
      %v6534 = vrot.slane %v6533, 1
      %v6535 = vmax.f32 %v6533, %v6534
      %v6536 = vsel %vm3056, %v2532, -inf
      %v6537 = vrot.slane %v6536, 4
      %v6538 = vmax.f32 %v6536, %v6537
      %v6539 = vrot.slane %v6538, 2
      %v6540 = vmax.f32 %v6538, %v6539
      %v6541 = vrot.slane %v6540, 1
      %v6542 = vmax.f32 %v6540, %v6541
      %v6543 = vsel %vm3056, %v2535, -inf
      %v6544 = vrot.slane %v6543, 4
      %v6545 = vmax.f32 %v6543, %v6544
      %v6546 = vrot.slane %v6545, 2
      %v6547 = vmax.f32 %v6545, %v6546
      %v6548 = vrot.slane %v6547, 1
      %v6549 = vmax.f32 %v6547, %v6548
      %v6550 = vsel %vm3056, %v2538, -inf
      %v6551 = vrot.slane %v6550, 4
      %v6552 = vmax.f32 %v6550, %v6551
      %v6553 = vrot.slane %v6552, 2
      %v6554 = vmax.f32 %v6552, %v6553
      %v6555 = vrot.slane %v6554, 1
      %v6556 = vmax.f32 %v6554, %v6555
      %v6557 = vsel %vm3056, %v2541, -inf
      %v6558 = vrot.slane %v6557, 4
      %v6559 = vmax.f32 %v6557, %v6558
      %v6560 = vrot.slane %v6559, 2
      %v6561 = vmax.f32 %v6559, %v6560
      %v6562 = vrot.slane %v6561, 1
      %v6563 = vmax.f32 %v6561, %v6562
      %v6564 = vsel %vm3056, %v2544, -inf
      %v6565 = vrot.slane %v6564, 4
      %v6566 = vmax.f32 %v6564, %v6565
      %v6567 = vrot.slane %v6566, 2
      %v6568 = vmax.f32 %v6566, %v6567
      %v6569 = vrot.slane %v6568, 1
      %v6570 = vmax.f32 %v6568, %v6569
      %v6571 = vsel %vm3056, %v2547, -inf
      %v6572 = vrot.slane %v6571, 4
      %v6573 = vmax.f32 %v6571, %v6572
      %v6574 = vrot.slane %v6573, 2
      %v6575 = vmax.f32 %v6573, %v6574
      %v6576 = vrot.slane %v6575, 1
      %v6577 = vmax.f32 %v6575, %v6576
      %v6578 = vsel %vm3056, %v2550, -inf
      %v6579 = vrot.slane %v6578, 4
      %v6580 = vmax.f32 %v6578, %v6579
      %v6581 = vrot.slane %v6580, 2
      %v6582 = vmax.f32 %v6580, %v6581
      %v6583 = vrot.slane %v6582, 1
      %v6584 = vmax.f32 %v6582, %v6583
      %v6585 = vsel %vm3056, %v2553, -inf
      %v6586 = vrot.slane %v6585, 4
      %v6587 = vmax.f32 %v6585, %v6586
      %v6588 = vrot.slane %v6587, 2
      %v6589 = vmax.f32 %v6587, %v6588
      %v6590 = vrot.slane %v6589, 1
      %v6591 = vmax.f32 %v6589, %v6590
      %v6592 = vsel %vm3056, %v2556, -inf
      %v6593 = vrot.slane %v6592, 4
      %v6594 = vmax.f32 %v6592, %v6593
      %v6595 = vrot.slane %v6594, 2
      %v6596 = vmax.f32 %v6594, %v6595
      %v6597 = vrot.slane %v6596, 1
      %v6598 = vmax.f32 %v6596, %v6597
      %v6599 = vsel %vm3056, %v2559, -inf
      %v6600 = vrot.slane %v6599, 4
      %v6601 = vmax.f32 %v6599, %v6600
      %v6602 = vrot.slane %v6601, 2
      %v6603 = vmax.f32 %v6601, %v6602
      %v6604 = vrot.slane %v6603, 1
      %v6605 = vmax.f32 %v6603, %v6604
      %v6606 = vsel %vm3056, %v2562, -inf
      %v6607 = vrot.slane %v6606, 4
      %v6608 = vmax.f32 %v6606, %v6607
      %v6609 = vrot.slane %v6608, 2
      %v6610 = vmax.f32 %v6608, %v6609
      %v6611 = vrot.slane %v6610, 1
      %v6612 = vmax.f32 %v6610, %v6611
      %v6613 = vsel %vm3056, %v2565, -inf
      %v6614 = vrot.slane %v6613, 4
      %v6615 = vmax.f32 %v6613, %v6614
      %v6616 = vrot.slane %v6615, 2
      %v6617 = vmax.f32 %v6615, %v6616
      %v6618 = vrot.slane %v6617, 1
      %v6619 = vmax.f32 %v6617, %v6618
      %v6620 = vsel %vm3056, %v2568, -inf
      %v6621 = vrot.slane %v6620, 4
      %v6622 = vmax.f32 %v6620, %v6621
      %v6623 = vrot.slane %v6622, 2
      %v6624 = vmax.f32 %v6622, %v6623
      %v6625 = vrot.slane %v6624, 1
      %v6626 = vmax.f32 %v6624, %v6625
      %v6627 = vsel %vm3056, %v2571, -inf
      %v6628 = vrot.slane %v6627, 4
      %v6629 = vmax.f32 %v6627, %v6628
      %v6630 = vrot.slane %v6629, 2
      %v6631 = vmax.f32 %v6629, %v6630
      %v6632 = vrot.slane %v6631, 1
      %v6633 = vmax.f32 %v6631, %v6632
      %v6634 = vsel %vm3056, %v2574, -inf
      %v6635 = vrot.slane %v6634, 4
      %v6636 = vmax.f32 %v6634, %v6635
      %v6637 = vrot.slane %v6636, 2
      %v6638 = vmax.f32 %v6636, %v6637
      %v6639 = vrot.slane %v6638, 1
      %v6640 = vmax.f32 %v6638, %v6639
      %v6641 = vsel %vm3056, %v2577, -inf
      %v6642 = vrot.slane %v6641, 4
      %v6643 = vmax.f32 %v6641, %v6642
      %v6644 = vrot.slane %v6643, 2
      %v6645 = vmax.f32 %v6643, %v6644
      %v6646 = vrot.slane %v6645, 1
      %v6647 = vmax.f32 %v6645, %v6646
      %v6648 = vsel %vm3056, %v2580, -inf
      %v6649 = vrot.slane %v6648, 4
      %v6650 = vmax.f32 %v6648, %v6649
      %v6651 = vrot.slane %v6650, 2
      %v6652 = vmax.f32 %v6650, %v6651
      %v6653 = vrot.slane %v6652, 1
      %v6654 = vmax.f32 %v6652, %v6653
      %v6655 = vsel %vm3056, %v2583, -inf
      %v6656 = vrot.slane %v6655, 4
      %v6657 = vmax.f32 %v6655, %v6656
      %v6658 = vrot.slane %v6657, 2
      %v6659 = vmax.f32 %v6657, %v6658
      %v6660 = vrot.slane %v6659, 1
      %v6661 = vmax.f32 %v6659, %v6660
      %v6662 = vsel %vm3056, %v2586, -inf
      %v6663 = vrot.slane %v6662, 4
      %v6664 = vmax.f32 %v6662, %v6663
      %v6665 = vrot.slane %v6664, 2
      %v6666 = vmax.f32 %v6664, %v6665
      %v6667 = vrot.slane %v6666, 1
      %v6668 = vmax.f32 %v6666, %v6667
      %v6669 = vsel %vm3056, %v2589, -inf
      %v6670 = vrot.slane %v6669, 4
      %v6671 = vmax.f32 %v6669, %v6670
      %v6672 = vrot.slane %v6671, 2
      %v6673 = vmax.f32 %v6671, %v6672
      %v6674 = vrot.slane %v6673, 1
      %v6675 = vmax.f32 %v6673, %v6674
      %v6676 = vsel %vm3056, %v2592, -inf
      %v6677 = vrot.slane %v6676, 4
      %v6678 = vmax.f32 %v6676, %v6677
      %v6679 = vrot.slane %v6678, 2
      %v6680 = vmax.f32 %v6678, %v6679
      %v6681 = vrot.slane %v6680, 1
      %v6682 = vmax.f32 %v6680, %v6681
      %v6683 = vsel %vm3056, %v2595, -inf
      %v6684 = vrot.slane %v6683, 4
      %v6685 = vmax.f32 %v6683, %v6684
      %v6686 = vrot.slane %v6685, 2
      %v6687 = vmax.f32 %v6685, %v6686
      %v6688 = vrot.slane %v6687, 1
      %v6689 = vmax.f32 %v6687, %v6688
      %v6690 = vsel %vm3056, %v2598, -inf
      %v6691 = vrot.slane %v6690, 4
      %v6692 = vmax.f32 %v6690, %v6691
      %v6693 = vrot.slane %v6692, 2
      %v6694 = vmax.f32 %v6692, %v6693
      %v6695 = vrot.slane %v6694, 1
      %v6696 = vmax.f32 %v6694, %v6695
      %v6697 = vsel %vm3056, %v2601, -inf
      %v6698 = vrot.slane %v6697, 4
      %v6699 = vmax.f32 %v6697, %v6698
      %v6700 = vrot.slane %v6699, 2
      %v6701 = vmax.f32 %v6699, %v6700
      %v6702 = vrot.slane %v6701, 1
      %v6703 = vmax.f32 %v6701, %v6702
      %v6704 = vsel %vm3056, %v2604, -inf
      %v6705 = vrot.slane %v6704, 4
      %v6706 = vmax.f32 %v6704, %v6705
      %v6707 = vrot.slane %v6706, 2
      %v6708 = vmax.f32 %v6706, %v6707
      %v6709 = vrot.slane %v6708, 1
      %v6710 = vmax.f32 %v6708, %v6709
      %v6711 = vsel %vm3056, %v2607, -inf
      %v6712 = vrot.slane %v6711, 4
      %v6713 = vmax.f32 %v6711, %v6712
      %v6714 = vrot.slane %v6713, 2
      %v6715 = vmax.f32 %v6713, %v6714
      %v6716 = vrot.slane %v6715, 1
      %v6717 = vmax.f32 %v6715, %v6716
      %v6718 = vsel %vm3056, %v2610, -inf
      %v6719 = vrot.slane %v6718, 4
      %v6720 = vmax.f32 %v6718, %v6719
      %v6721 = vrot.slane %v6720, 2
      %v6722 = vmax.f32 %v6720, %v6721
      %v6723 = vrot.slane %v6722, 1
      %v6724 = vmax.f32 %v6722, %v6723
      %v6725 = vsel %vm3056, %v2613, -inf
      %v6726 = vrot.slane %v6725, 4
      %v6727 = vmax.f32 %v6725, %v6726
      %v6728 = vrot.slane %v6727, 2
      %v6729 = vmax.f32 %v6727, %v6728
      %v6730 = vrot.slane %v6729, 1
      %v6731 = vmax.f32 %v6729, %v6730
      %v6732 = vsel %vm3056, %v2616, -inf
      %v6733 = vrot.slane %v6732, 4
      %v6734 = vmax.f32 %v6732, %v6733
      %v6735 = vrot.slane %v6734, 2
      %v6736 = vmax.f32 %v6734, %v6735
      %v6737 = vrot.slane %v6736, 1
      %v6738 = vmax.f32 %v6736, %v6737
      %v6739 = vsel %vm3056, %v2619, -inf
      %v6740 = vrot.slane %v6739, 4
      %v6741 = vmax.f32 %v6739, %v6740
      %v6742 = vrot.slane %v6741, 2
      %v6743 = vmax.f32 %v6741, %v6742
      %v6744 = vrot.slane %v6743, 1
      %v6745 = vmax.f32 %v6743, %v6744
      %v6746 = vsel %vm3056, %v2622, -inf
      %v6747 = vrot.slane %v6746, 4
      %v6748 = vmax.f32 %v6746, %v6747
      %v6749 = vrot.slane %v6748, 2
      %v6750 = vmax.f32 %v6748, %v6749
      %v6751 = vrot.slane %v6750, 1
      %v6752 = vmax.f32 %v6750, %v6751
      %v6753 = vsel %vm3056, %v2625, -inf
      %v6754 = vrot.slane %v6753, 4
      %v6755 = vmax.f32 %v6753, %v6754
      %v6756 = vrot.slane %v6755, 2
      %v6757 = vmax.f32 %v6755, %v6756
      %v6758 = vrot.slane %v6757, 1
      %v6759 = vmax.f32 %v6757, %v6758
      %v6760 = vsel %vm3056, %v2628, -inf
      %v6761 = vrot.slane %v6760, 4
      %v6762 = vmax.f32 %v6760, %v6761
      %v6763 = vrot.slane %v6762, 2
      %v6764 = vmax.f32 %v6762, %v6763
      %v6765 = vrot.slane %v6764, 1
      %v6766 = vmax.f32 %v6764, %v6765
      %v6767 = vsel %vm3056, %v2631, -inf
      %v6768 = vrot.slane %v6767, 4
      %v6769 = vmax.f32 %v6767, %v6768
      %v6770 = vrot.slane %v6769, 2
      %v6771 = vmax.f32 %v6769, %v6770
      %v6772 = vrot.slane %v6771, 1
      %v6773 = vmax.f32 %v6771, %v6772
      %v6774 = vsel %vm3056, %v2634, -inf
      %v6775 = vrot.slane %v6774, 4
      %v6776 = vmax.f32 %v6774, %v6775
      %v6777 = vrot.slane %v6776, 2
      %v6778 = vmax.f32 %v6776, %v6777
      %v6779 = vrot.slane %v6778, 1
      %v6780 = vmax.f32 %v6778, %v6779
      %v6781 = vsel %vm3056, %v2637, -inf
      %v6782 = vrot.slane %v6781, 4
      %v6783 = vmax.f32 %v6781, %v6782
      %v6784 = vrot.slane %v6783, 2
      %v6785 = vmax.f32 %v6783, %v6784
      %v6786 = vrot.slane %v6785, 1
      %v6787 = vmax.f32 %v6785, %v6786
      %v6788 = vsel %vm3056, %v2640, -inf
      %v6789 = vrot.slane %v6788, 4
      %v6790 = vmax.f32 %v6788, %v6789
      %v6791 = vrot.slane %v6790, 2
      %v6792 = vmax.f32 %v6790, %v6791
      %v6793 = vrot.slane %v6792, 1
      %v6794 = vmax.f32 %v6792, %v6793
      %v6795 = vsel %vm3056, %v2643, -inf
      %v6796 = vrot.slane %v6795, 4
      %v6797 = vmax.f32 %v6795, %v6796
      %v6798 = vrot.slane %v6797, 2
      %v6799 = vmax.f32 %v6797, %v6798
      %v6800 = vrot.slane %v6799, 1
      %v6801 = vmax.f32 %v6799, %v6800
      %v6802 = vsel %vm3056, %v2646, -inf
      %v6803 = vrot.slane %v6802, 4
      %v6804 = vmax.f32 %v6802, %v6803
      %v6805 = vrot.slane %v6804, 2
      %v6806 = vmax.f32 %v6804, %v6805
      %v6807 = vrot.slane %v6806, 1
      %v6808 = vmax.f32 %v6806, %v6807
      %v6809 = vsel %vm3056, %v2649, -inf
      %v6810 = vrot.slane %v6809, 4
      %v6811 = vmax.f32 %v6809, %v6810
      %v6812 = vrot.slane %v6811, 2
      %v6813 = vmax.f32 %v6811, %v6812
      %v6814 = vrot.slane %v6813, 1
      %v6815 = vmax.f32 %v6813, %v6814
      %v6816 = vsel %vm3056, %v2652, -inf
      %v6817 = vrot.slane %v6816, 4
      %v6818 = vmax.f32 %v6816, %v6817
      %v6819 = vrot.slane %v6818, 2
      %v6820 = vmax.f32 %v6818, %v6819
      %v6821 = vrot.slane %v6820, 1
      %v6822 = vmax.f32 %v6820, %v6821
      %v6823 = vsel %vm3056, %v2655, -inf
      %v6824 = vrot.slane %v6823, 4
      %v6825 = vmax.f32 %v6823, %v6824
      %v6826 = vrot.slane %v6825, 2
      %v6827 = vmax.f32 %v6825, %v6826
      %v6828 = vrot.slane %v6827, 1
      %v6829 = vmax.f32 %v6827, %v6828
      %v6830 = vsel %vm3056, %v2658, -inf
      %v6831 = vrot.slane %v6830, 4
      %v6832 = vmax.f32 %v6830, %v6831
      %v6833 = vrot.slane %v6832, 2
      %v6834 = vmax.f32 %v6832, %v6833
      %v6835 = vrot.slane %v6834, 1
      %v6836 = vmax.f32 %v6834, %v6835
      %v6837 = vsel %vm3056, %v2661, -inf
      %v6838 = vrot.slane %v6837, 4
      %v6839 = vmax.f32 %v6837, %v6838
      %v6840 = vrot.slane %v6839, 2
      %v6841 = vmax.f32 %v6839, %v6840
      %v6842 = vrot.slane %v6841, 1
      %v6843 = vmax.f32 %v6841, %v6842
      %v6844 = vsel %vm3056, %v2664, -inf
      %v6845 = vrot.slane %v6844, 4
      %v6846 = vmax.f32 %v6844, %v6845
      %v6847 = vrot.slane %v6846, 2
      %v6848 = vmax.f32 %v6846, %v6847
      %v6849 = vrot.slane %v6848, 1
      %v6850 = vmax.f32 %v6848, %v6849
      %v6851 = vsel %vm3056, %v2667, -inf
      %v6852 = vrot.slane %v6851, 4
      %v6853 = vmax.f32 %v6851, %v6852
      %v6854 = vrot.slane %v6853, 2
      %v6855 = vmax.f32 %v6853, %v6854
      %v6856 = vrot.slane %v6855, 1
      %v6857 = vmax.f32 %v6855, %v6856
      %v6858 = vsel %vm3056, %v2670, -inf
      %v6859 = vrot.slane %v6858, 4
      %v6860 = vmax.f32 %v6858, %v6859
      %v6861 = vrot.slane %v6860, 2
      %v6862 = vmax.f32 %v6860, %v6861
      %v6863 = vrot.slane %v6862, 1
      %v6864 = vmax.f32 %v6862, %v6863
      %v6865 = vsel %vm3056, %v2673, -inf
      %v6866 = vrot.slane %v6865, 4
      %v6867 = vmax.f32 %v6865, %v6866
      %v6868 = vrot.slane %v6867, 2
      %v6869 = vmax.f32 %v6867, %v6868
      %v6870 = vrot.slane %v6869, 1
      %v6871 = vmax.f32 %v6869, %v6870
      %v6872 = vsel %vm3056, %v2676, -inf
      %v6873 = vrot.slane %v6872, 4
      %v6874 = vmax.f32 %v6872, %v6873
      %v6875 = vrot.slane %v6874, 2
      %v6876 = vmax.f32 %v6874, %v6875
      %v6877 = vrot.slane %v6876, 1
      %v6878 = vmax.f32 %v6876, %v6877
      %v6879 = vsel %vm3056, %v2679, -inf
      %v6880 = vrot.slane %v6879, 4
      %v6881 = vmax.f32 %v6879, %v6880
      %v6882 = vrot.slane %v6881, 2
      %v6883 = vmax.f32 %v6881, %v6882
      %v6884 = vrot.slane %v6883, 1
      %v6885 = vmax.f32 %v6883, %v6884
      %v6886 = vsel %vm3056, %v2682, -inf
      %v6887 = vrot.slane %v6886, 4
      %v6888 = vmax.f32 %v6886, %v6887
      %v6889 = vrot.slane %v6888, 2
      %v6890 = vmax.f32 %v6888, %v6889
      %v6891 = vrot.slane %v6890, 1
      %v6892 = vmax.f32 %v6890, %v6891
      %v6893 = vsel %vm3056, %v2685, -inf
      %v6894 = vrot.slane %v6893, 4
      %v6895 = vmax.f32 %v6893, %v6894
      %v6896 = vrot.slane %v6895, 2
      %v6897 = vmax.f32 %v6895, %v6896
      %v6898 = vrot.slane %v6897, 1
      %v6899 = vmax.f32 %v6897, %v6898
      %v6900 = vsel %vm3056, %v2688, -inf
      %v6901 = vrot.slane %v6900, 4
      %v6902 = vmax.f32 %v6900, %v6901
      %v6903 = vrot.slane %v6902, 2
      %v6904 = vmax.f32 %v6902, %v6903
      %v6905 = vrot.slane %v6904, 1
      %v6906 = vmax.f32 %v6904, %v6905
      %v6907 = vsel %vm3056, %v2691, -inf
      %v6908 = vrot.slane %v6907, 4
      %v6909 = vmax.f32 %v6907, %v6908
      %v6910 = vrot.slane %v6909, 2
      %v6911 = vmax.f32 %v6909, %v6910
      %v6912 = vrot.slane %v6911, 1
      %v6913 = vmax.f32 %v6911, %v6912
      %v6914 = vsel %vm3056, %v2694, -inf
      %v6915 = vrot.slane %v6914, 4
      %v6916 = vmax.f32 %v6914, %v6915
      %v6917 = vrot.slane %v6916, 2
      %v6918 = vmax.f32 %v6916, %v6917
      %v6919 = vrot.slane %v6918, 1
      %v6920 = vmax.f32 %v6918, %v6919
      %v6921 = vsel %vm3056, %v2697, -inf
      %v6922 = vrot.slane %v6921, 4
      %v6923 = vmax.f32 %v6921, %v6922
      %v6924 = vrot.slane %v6923, 2
      %v6925 = vmax.f32 %v6923, %v6924
      %v6926 = vrot.slane %v6925, 1
      %v6927 = vmax.f32 %v6925, %v6926
      %v6928 = vsel %vm3056, %v2700, -inf
      %v6929 = vrot.slane %v6928, 4
      %v6930 = vmax.f32 %v6928, %v6929
      %v6931 = vrot.slane %v6930, 2
      %v6932 = vmax.f32 %v6930, %v6931
      %v6933 = vrot.slane %v6932, 1
      %v6934 = vmax.f32 %v6932, %v6933
      %v6935 = vsel %vm3056, %v2703, -inf
      %v6936 = vrot.slane %v6935, 4
      %v6937 = vmax.f32 %v6935, %v6936
      %v6938 = vrot.slane %v6937, 2
      %v6939 = vmax.f32 %v6937, %v6938
      %v6940 = vrot.slane %v6939, 1
      %v6941 = vmax.f32 %v6939, %v6940
      %v6942 = vsel %vm3056, %v2706, -inf
      %v6943 = vrot.slane %v6942, 4
      %v6944 = vmax.f32 %v6942, %v6943
      %v6945 = vrot.slane %v6944, 2
      %v6946 = vmax.f32 %v6944, %v6945
      %v6947 = vrot.slane %v6946, 1
      %v6948 = vmax.f32 %v6946, %v6947
      %v6949 = vsel %vm3056, %v2709, -inf
      %v6950 = vrot.slane %v6949, 4
      %v6951 = vmax.f32 %v6949, %v6950
      %v6952 = vrot.slane %v6951, 2
      %v6953 = vmax.f32 %v6951, %v6952
      %v6954 = vrot.slane %v6953, 1
      %v6955 = vmax.f32 %v6953, %v6954
      %v6956 = vsel %vm3056, %v2712, -inf
      %v6957 = vrot.slane %v6956, 4
      %v6958 = vmax.f32 %v6956, %v6957
      %v6959 = vrot.slane %v6958, 2
      %v6960 = vmax.f32 %v6958, %v6959
      %v6961 = vrot.slane %v6960, 1
      %v6962 = vmax.f32 %v6960, %v6961
      %v6963 = vsel %vm3056, %v2715, -inf
      %v6964 = vrot.slane %v6963, 4
      %v6965 = vmax.f32 %v6963, %v6964
      %v6966 = vrot.slane %v6965, 2
      %v6967 = vmax.f32 %v6965, %v6966
      %v6968 = vrot.slane %v6967, 1
      %v6969 = vmax.f32 %v6967, %v6968
      %v6970 = vsel %vm3056, %v2718, -inf
      %v6971 = vrot.slane %v6970, 4
      %v6972 = vmax.f32 %v6970, %v6971
      %v6973 = vrot.slane %v6972, 2
      %v6974 = vmax.f32 %v6972, %v6973
      %v6975 = vrot.slane %v6974, 1
      %v6976 = vmax.f32 %v6974, %v6975
      %v6977 = vsel %vm3056, %v2721, -inf
      %v6978 = vrot.slane %v6977, 4
      %v6979 = vmax.f32 %v6977, %v6978
      %v6980 = vrot.slane %v6979, 2
      %v6981 = vmax.f32 %v6979, %v6980
      %v6982 = vrot.slane %v6981, 1
      %v6983 = vmax.f32 %v6981, %v6982
      %v6984 = vsel %vm3056, %v2724, -inf
      %v6985 = vrot.slane %v6984, 4
      %v6986 = vmax.f32 %v6984, %v6985
      %v6987 = vrot.slane %v6986, 2
      %v6988 = vmax.f32 %v6986, %v6987
      %v6989 = vrot.slane %v6988, 1
      %v6990 = vmax.f32 %v6988, %v6989
      %v6991 = vsel %vm3056, %v2727, -inf
      %v6992 = vrot.slane %v6991, 4
      %v6993 = vmax.f32 %v6991, %v6992
      %v6994 = vrot.slane %v6993, 2
      %v6995 = vmax.f32 %v6993, %v6994
      %v6996 = vrot.slane %v6995, 1
      %v6997 = vmax.f32 %v6995, %v6996
      %v6998 = vsel %vm3056, %v2730, -inf
      %v6999 = vrot.slane %v6998, 4
      %v7000 = vmax.f32 %v6998, %v6999
      %v7001 = vrot.slane %v7000, 2
      %v7002 = vmax.f32 %v7000, %v7001
      %v7003 = vrot.slane %v7002, 1
      %v7004 = vmax.f32 %v7002, %v7003
      %v7005 = vsel %vm3056, %v2733, -inf
      %v7006 = vrot.slane %v7005, 4
      %v7007 = vmax.f32 %v7005, %v7006
      %v7008 = vrot.slane %v7007, 2
      %v7009 = vmax.f32 %v7007, %v7008
      %v7010 = vrot.slane %v7009, 1
      %v7011 = vmax.f32 %v7009, %v7010
      %v7012 = vsel %vm3056, %v2736, -inf
      %v7013 = vrot.slane %v7012, 4
      %v7014 = vmax.f32 %v7012, %v7013
      %v7015 = vrot.slane %v7014, 2
      %v7016 = vmax.f32 %v7014, %v7015
      %v7017 = vrot.slane %v7016, 1
      %v7018 = vmax.f32 %v7016, %v7017
      %v7019 = vsel %vm3056, %v2739, -inf
      %v7020 = vrot.slane %v7019, 4
      %v7021 = vmax.f32 %v7019, %v7020
      %v7022 = vrot.slane %v7021, 2
      %v7023 = vmax.f32 %v7021, %v7022
      %v7024 = vrot.slane %v7023, 1
      %v7025 = vmax.f32 %v7023, %v7024
      %v7026 = vsel %vm3056, %v2742, -inf
      %v7027 = vrot.slane %v7026, 4
      %v7028 = vmax.f32 %v7026, %v7027
      %v7029 = vrot.slane %v7028, 2
      %v7030 = vmax.f32 %v7028, %v7029
      %v7031 = vrot.slane %v7030, 1
      %v7032 = vmax.f32 %v7030, %v7031
      %v7033 = vsel %vm3056, %v2745, -inf
      %v7034 = vrot.slane %v7033, 4
      %v7035 = vmax.f32 %v7033, %v7034
      %v7036 = vrot.slane %v7035, 2
      %v7037 = vmax.f32 %v7035, %v7036
      %v7038 = vrot.slane %v7037, 1
      %v7039 = vmax.f32 %v7037, %v7038
      %v7040 = vsel %vm3056, %v2748, -inf
      %v7041 = vrot.slane %v7040, 4
      %v7042 = vmax.f32 %v7040, %v7041
      %v7043 = vrot.slane %v7042, 2
      %v7044 = vmax.f32 %v7042, %v7043
      %v7045 = vrot.slane %v7044, 1
      %v7046 = vmax.f32 %v7044, %v7045
      %v7047 = vsel %vm3056, %v2751, -inf
      %v7048 = vrot.slane %v7047, 4
      %v7049 = vmax.f32 %v7047, %v7048
      %v7050 = vrot.slane %v7049, 2
      %v7051 = vmax.f32 %v7049, %v7050
      %v7052 = vrot.slane %v7051, 1
      %v7053 = vmax.f32 %v7051, %v7052
      %v7054 = vsel %vm3056, %v2754, -inf
      %v7055 = vrot.slane %v7054, 4
      %v7056 = vmax.f32 %v7054, %v7055
      %v7057 = vrot.slane %v7056, 2
      %v7058 = vmax.f32 %v7056, %v7057
      %v7059 = vrot.slane %v7058, 1
      %v7060 = vmax.f32 %v7058, %v7059
      %v7061 = vsel %vm3056, %v2757, -inf
      %v7062 = vrot.slane %v7061, 4
      %v7063 = vmax.f32 %v7061, %v7062
      %v7064 = vrot.slane %v7063, 2
      %v7065 = vmax.f32 %v7063, %v7064
      %v7066 = vrot.slane %v7065, 1
      %v7067 = vmax.f32 %v7065, %v7066
      %v7068 = vsel %vm3056, %v2760, -inf
      %v7069 = vrot.slane %v7068, 4
      %v7070 = vmax.f32 %v7068, %v7069
      %v7071 = vrot.slane %v7070, 2
      %v7072 = vmax.f32 %v7070, %v7071
      %v7073 = vrot.slane %v7072, 1
      %v7074 = vmax.f32 %v7072, %v7073
      %v7075 = vsel %vm3056, %v2763, -inf
      %v7076 = vrot.slane %v7075, 4
      %v7077 = vmax.f32 %v7075, %v7076
      %v7078 = vrot.slane %v7077, 2
      %v7079 = vmax.f32 %v7077, %v7078
      %v7080 = vrot.slane %v7079, 1
      %v7081 = vmax.f32 %v7079, %v7080
      %v7082 = vsel %vm3056, %v2766, -inf
      %v7083 = vrot.slane %v7082, 4
      %v7084 = vmax.f32 %v7082, %v7083
      %v7085 = vrot.slane %v7084, 2
      %v7086 = vmax.f32 %v7084, %v7085
      %v7087 = vrot.slane %v7086, 1
      %v7088 = vmax.f32 %v7086, %v7087
      %v7089 = vsel %vm3056, %v2769, -inf
      %v7090 = vrot.slane %v7089, 4
      %v7091 = vmax.f32 %v7089, %v7090
      %v7092 = vrot.slane %v7091, 2
      %v7093 = vmax.f32 %v7091, %v7092
      %v7094 = vrot.slane %v7093, 1
      %v7095 = vmax.f32 %v7093, %v7094
      %v7096 = vsel %vm3056, %v2772, -inf
      %v7097 = vrot.slane %v7096, 4
      %v7098 = vmax.f32 %v7096, %v7097
      %v7099 = vrot.slane %v7098, 2
      %v7100 = vmax.f32 %v7098, %v7099
      %v7101 = vrot.slane %v7100, 1
      %v7102 = vmax.f32 %v7100, %v7101
      %v7103 = vsel %vm3056, %v2775, -inf
      %v7104 = vrot.slane %v7103, 4
      %v7105 = vmax.f32 %v7103, %v7104
      %v7106 = vrot.slane %v7105, 2
      %v7107 = vmax.f32 %v7105, %v7106
      %v7108 = vrot.slane %v7107, 1
      %v7109 = vmax.f32 %v7107, %v7108
      %v7110 = vsel %vm3056, %v2778, -inf
      %v7111 = vrot.slane %v7110, 4
      %v7112 = vmax.f32 %v7110, %v7111
      %v7113 = vrot.slane %v7112, 2
      %v7114 = vmax.f32 %v7112, %v7113
      %v7115 = vrot.slane %v7114, 1
      %v7116 = vmax.f32 %v7114, %v7115
      %v7117 = vsel %vm3056, %v2781, -inf
      %v7118 = vrot.slane %v7117, 4
      %v7119 = vmax.f32 %v7117, %v7118
      %v7120 = vrot.slane %v7119, 2
      %v7121 = vmax.f32 %v7119, %v7120
      %v7122 = vrot.slane %v7121, 1
      %v7123 = vmax.f32 %v7121, %v7122
      %v7124 = vsel %vm3056, %v2784, -inf
      %v7125 = vrot.slane %v7124, 4
      %v7126 = vmax.f32 %v7124, %v7125
      %v7127 = vrot.slane %v7126, 2
      %v7128 = vmax.f32 %v7126, %v7127
      %v7129 = vrot.slane %v7128, 1
      %v7130 = vmax.f32 %v7128, %v7129
      %v7131 = vsel %vm3056, %v2787, -inf
      %v7132 = vrot.slane %v7131, 4
      %v7133 = vmax.f32 %v7131, %v7132
      %v7134 = vrot.slane %v7133, 2
      %v7135 = vmax.f32 %v7133, %v7134
      %v7136 = vrot.slane %v7135, 1
      %v7137 = vmax.f32 %v7135, %v7136
      %v7138 = vsel %vm3056, %v2790, -inf
      %v7139 = vrot.slane %v7138, 4
      %v7140 = vmax.f32 %v7138, %v7139
      %v7141 = vrot.slane %v7140, 2
      %v7142 = vmax.f32 %v7140, %v7141
      %v7143 = vrot.slane %v7142, 1
      %v7144 = vmax.f32 %v7142, %v7143
      %v7145 = vsel %vm3056, %v2793, -inf
      %v7146 = vrot.slane %v7145, 4
      %v7147 = vmax.f32 %v7145, %v7146
      %v7148 = vrot.slane %v7147, 2
      %v7149 = vmax.f32 %v7147, %v7148
      %v7150 = vrot.slane %v7149, 1
      %v7151 = vmax.f32 %v7149, %v7150
      %v7152 = vsel %vm3056, %v2796, -inf
      %v7153 = vrot.slane %v7152, 4
      %v7154 = vmax.f32 %v7152, %v7153
      %v7155 = vrot.slane %v7154, 2
      %v7156 = vmax.f32 %v7154, %v7155
      %v7157 = vrot.slane %v7156, 1
      %v7158 = vmax.f32 %v7156, %v7157
      %v7159 = vsel %vm3056, %v2799, -inf
      %v7160 = vrot.slane %v7159, 4
      %v7161 = vmax.f32 %v7159, %v7160
      %v7162 = vrot.slane %v7161, 2
      %v7163 = vmax.f32 %v7161, %v7162
      %v7164 = vrot.slane %v7163, 1
      %v7165 = vmax.f32 %v7163, %v7164
      %v7166 = vsel %vm3056, %v2802, -inf
      %v7167 = vrot.slane %v7166, 4
      %v7168 = vmax.f32 %v7166, %v7167
      %v7169 = vrot.slane %v7168, 2
      %v7170 = vmax.f32 %v7168, %v7169
      %v7171 = vrot.slane %v7170, 1
      %v7172 = vmax.f32 %v7170, %v7171
      %v7173 = vsel %vm3056, %v2805, -inf
      %v7174 = vrot.slane %v7173, 4
      %v7175 = vmax.f32 %v7173, %v7174
      %v7176 = vrot.slane %v7175, 2
      %v7177 = vmax.f32 %v7175, %v7176
      %v7178 = vrot.slane %v7177, 1
      %v7179 = vmax.f32 %v7177, %v7178
      %v7180 = vsel %vm3056, %v2808, -inf
      %v7181 = vrot.slane %v7180, 4
      %v7182 = vmax.f32 %v7180, %v7181
      %v7183 = vrot.slane %v7182, 2
      %v7184 = vmax.f32 %v7182, %v7183
      %v7185 = vrot.slane %v7184, 1
      %v7186 = vmax.f32 %v7184, %v7185
      %v7187 = vsel %vm3056, %v2811, -inf
      %v7188 = vrot.slane %v7187, 4
      %v7189 = vmax.f32 %v7187, %v7188
      %v7190 = vrot.slane %v7189, 2
      %v7191 = vmax.f32 %v7189, %v7190
      %v7192 = vrot.slane %v7191, 1
      %v7193 = vmax.f32 %v7191, %v7192
      %v7194 = vsel %vm3056, %v2814, -inf
      %v7195 = vrot.slane %v7194, 4
      %v7196 = vmax.f32 %v7194, %v7195
      %v7197 = vrot.slane %v7196, 2
      %v7198 = vmax.f32 %v7196, %v7197
      %v7199 = vrot.slane %v7198, 1
      %v7200 = vmax.f32 %v7198, %v7199
      %v7201 = vsel %vm3056, %v2817, -inf
      %v7202 = vrot.slane %v7201, 4
      %v7203 = vmax.f32 %v7201, %v7202
      %v7204 = vrot.slane %v7203, 2
      %v7205 = vmax.f32 %v7203, %v7204
      %v7206 = vrot.slane %v7205, 1
      %v7207 = vmax.f32 %v7205, %v7206
      %v7208 = vsel %vm3056, %v2820, -inf
      %v7209 = vrot.slane %v7208, 4
      %v7210 = vmax.f32 %v7208, %v7209
      %v7211 = vrot.slane %v7210, 2
      %v7212 = vmax.f32 %v7210, %v7211
      %v7213 = vrot.slane %v7212, 1
      %v7214 = vmax.f32 %v7212, %v7213
      %v7215 = vsel %vm3056, %v2823, -inf
      %v7216 = vrot.slane %v7215, 4
      %v7217 = vmax.f32 %v7215, %v7216
      %v7218 = vrot.slane %v7217, 2
      %v7219 = vmax.f32 %v7217, %v7218
      %v7220 = vrot.slane %v7219, 1
      %v7221 = vmax.f32 %v7219, %v7220
      %v7222 = vsel %vm3056, %v2826, -inf
      %v7223 = vrot.slane %v7222, 4
      %v7224 = vmax.f32 %v7222, %v7223
      %v7225 = vrot.slane %v7224, 2
      %v7226 = vmax.f32 %v7224, %v7225
      %v7227 = vrot.slane %v7226, 1
      %v7228 = vmax.f32 %v7226, %v7227
      %v7229 = vsel %vm3056, %v2829, -inf
      %v7230 = vrot.slane %v7229, 4
      %v7231 = vmax.f32 %v7229, %v7230
      %v7232 = vrot.slane %v7231, 2
      %v7233 = vmax.f32 %v7231, %v7232
      %v7234 = vrot.slane %v7233, 1
      %v7235 = vmax.f32 %v7233, %v7234
      %v7236 = vsel %vm3056, %v2832, -inf
      %v7237 = vrot.slane %v7236, 4
      %v7238 = vmax.f32 %v7236, %v7237
      %v7239 = vrot.slane %v7238, 2
      %v7240 = vmax.f32 %v7238, %v7239
      %v7241 = vrot.slane %v7240, 1
      %v7242 = vmax.f32 %v7240, %v7241
      %v7243 = vsel %vm3056, %v2835, -inf
      %v7244 = vrot.slane %v7243, 4
      %v7245 = vmax.f32 %v7243, %v7244
      %v7246 = vrot.slane %v7245, 2
      %v7247 = vmax.f32 %v7245, %v7246
      %v7248 = vrot.slane %v7247, 1
      %v7249 = vmax.f32 %v7247, %v7248
      %v7250 = vsel %vm3056, %v2838, -inf
      %v7251 = vrot.slane %v7250, 4
      %v7252 = vmax.f32 %v7250, %v7251
      %v7253 = vrot.slane %v7252, 2
      %v7254 = vmax.f32 %v7252, %v7253
      %v7255 = vrot.slane %v7254, 1
      %v7256 = vmax.f32 %v7254, %v7255
      %v7257 = vsel %vm3056, %v2841, -inf
      %v7258 = vrot.slane %v7257, 4
      %v7259 = vmax.f32 %v7257, %v7258
      %v7260 = vrot.slane %v7259, 2
      %v7261 = vmax.f32 %v7259, %v7260
      %v7262 = vrot.slane %v7261, 1
      %v7263 = vmax.f32 %v7261, %v7262
      %v7264 = vsel %vm3056, %v2844, -inf
      %v7265 = vrot.slane %v7264, 4
      %v7266 = vmax.f32 %v7264, %v7265
      %v7267 = vrot.slane %v7266, 2
      %v7268 = vmax.f32 %v7266, %v7267
      %v7269 = vrot.slane %v7268, 1
      %v7270 = vmax.f32 %v7268, %v7269
      %v7271 = vsel %vm3056, %v2847, -inf
      %v7272 = vrot.slane %v7271, 4
      %v7273 = vmax.f32 %v7271, %v7272
      %v7274 = vrot.slane %v7273, 2
      %v7275 = vmax.f32 %v7273, %v7274
      %v7276 = vrot.slane %v7275, 1
      %v7277 = vmax.f32 %v7275, %v7276
      %v7278 = vsel %vm3056, %v2850, -inf
      %v7279 = vrot.slane %v7278, 4
      %v7280 = vmax.f32 %v7278, %v7279
      %v7281 = vrot.slane %v7280, 2
      %v7282 = vmax.f32 %v7280, %v7281
      %v7283 = vrot.slane %v7282, 1
      %v7284 = vmax.f32 %v7282, %v7283
      %v7285 = vsel %vm3056, %v2853, -inf
      %v7286 = vrot.slane %v7285, 4
      %v7287 = vmax.f32 %v7285, %v7286
      %v7288 = vrot.slane %v7287, 2
      %v7289 = vmax.f32 %v7287, %v7288
      %v7290 = vrot.slane %v7289, 1
      %v7291 = vmax.f32 %v7289, %v7290
      %v7292 = vsel %vm3056, %v2856, -inf
      %v7293 = vrot.slane %v7292, 4
      %v7294 = vmax.f32 %v7292, %v7293
      %v7295 = vrot.slane %v7294, 2
      %v7296 = vmax.f32 %v7294, %v7295
      %v7297 = vrot.slane %v7296, 1
      %v7298 = vmax.f32 %v7296, %v7297
      %v7299 = vsel %vm3056, %v2859, -inf
      %v7300 = vrot.slane %v7299, 4
      %v7301 = vmax.f32 %v7299, %v7300
      %v7302 = vrot.slane %v7301, 2
      %v7303 = vmax.f32 %v7301, %v7302
      %v7304 = vrot.slane %v7303, 1
      %v7305 = vmax.f32 %v7303, %v7304
      %v7306 = vsel %vm3056, %v2862, -inf
      %v7307 = vrot.slane %v7306, 4
      %v7308 = vmax.f32 %v7306, %v7307
      %v7309 = vrot.slane %v7308, 2
      %v7310 = vmax.f32 %v7308, %v7309
      %v7311 = vrot.slane %v7310, 1
      %v7312 = vmax.f32 %v7310, %v7311
      %v7313 = vsel %vm3056, %v2865, -inf
      %v7314 = vrot.slane %v7313, 4
      %v7315 = vmax.f32 %v7313, %v7314
      %v7316 = vrot.slane %v7315, 2
      %v7317 = vmax.f32 %v7315, %v7316
      %v7318 = vrot.slane %v7317, 1
      %v7319 = vmax.f32 %v7317, %v7318
      %v7320 = vsel %vm3056, %v2868, -inf
      %v7321 = vrot.slane %v7320, 4
      %v7322 = vmax.f32 %v7320, %v7321
      %v7323 = vrot.slane %v7322, 2
      %v7324 = vmax.f32 %v7322, %v7323
      %v7325 = vrot.slane %v7324, 1
      %v7326 = vmax.f32 %v7324, %v7325
      %v7327 = vsel %vm3056, %v2871, -inf
      %v7328 = vrot.slane %v7327, 4
      %v7329 = vmax.f32 %v7327, %v7328
      %v7330 = vrot.slane %v7329, 2
      %v7331 = vmax.f32 %v7329, %v7330
      %v7332 = vrot.slane %v7331, 1
      %v7333 = vmax.f32 %v7331, %v7332
      %v7334 = vsel %vm3056, %v2874, -inf
      %v7335 = vrot.slane %v7334, 4
      %v7336 = vmax.f32 %v7334, %v7335
      %v7337 = vrot.slane %v7336, 2
      %v7338 = vmax.f32 %v7336, %v7337
      %v7339 = vrot.slane %v7338, 1
      %v7340 = vmax.f32 %v7338, %v7339
      %v7341 = vsel %vm3056, %v2877, -inf
      %v7342 = vrot.slane %v7341, 4
      %v7343 = vmax.f32 %v7341, %v7342
      %v7344 = vrot.slane %v7343, 2
      %v7345 = vmax.f32 %v7343, %v7344
      %v7346 = vrot.slane %v7345, 1
      %v7347 = vmax.f32 %v7345, %v7346
      %v7348 = vsel %vm3056, %v2880, -inf
      %v7349 = vrot.slane %v7348, 4
      %v7350 = vmax.f32 %v7348, %v7349
      %v7351 = vrot.slane %v7350, 2
      %v7352 = vmax.f32 %v7350, %v7351
      %v7353 = vrot.slane %v7352, 1
      %v7354 = vmax.f32 %v7352, %v7353
      %v7355 = vsel %vm3056, %v2883, -inf
      %v7356 = vrot.slane %v7355, 4
      %v7357 = vmax.f32 %v7355, %v7356
      %v7358 = vrot.slane %v7357, 2
      %v7359 = vmax.f32 %v7357, %v7358
      %v7360 = vrot.slane %v7359, 1
      %v7361 = vmax.f32 %v7359, %v7360
      %v7362 = vsel %vm3056, %v2886, -inf
      %v7363 = vrot.slane %v7362, 4
      %v7364 = vmax.f32 %v7362, %v7363
      %v7365 = vrot.slane %v7364, 2
      %v7366 = vmax.f32 %v7364, %v7365
      %v7367 = vrot.slane %v7366, 1
      %v7368 = vmax.f32 %v7366, %v7367
      %v7369 = vsel %vm3056, %v2889, -inf
      %v7370 = vrot.slane %v7369, 4
      %v7371 = vmax.f32 %v7369, %v7370
      %v7372 = vrot.slane %v7371, 2
      %v7373 = vmax.f32 %v7371, %v7372
      %v7374 = vrot.slane %v7373, 1
      %v7375 = vmax.f32 %v7373, %v7374
      %v7376 = vsel %vm3056, %v2892, -inf
      %v7377 = vrot.slane %v7376, 4
      %v7378 = vmax.f32 %v7376, %v7377
      %v7379 = vrot.slane %v7378, 2
      %v7380 = vmax.f32 %v7378, %v7379
      %v7381 = vrot.slane %v7380, 1
      %v7382 = vmax.f32 %v7380, %v7381
      %v7383 = vsel %vm3056, %v2895, -inf
      %v7384 = vrot.slane %v7383, 4
      %v7385 = vmax.f32 %v7383, %v7384
      %v7386 = vrot.slane %v7385, 2
      %v7387 = vmax.f32 %v7385, %v7386
      %v7388 = vrot.slane %v7387, 1
      %v7389 = vmax.f32 %v7387, %v7388
      %v7390 = vsel %vm3056, %v2898, -inf
      %v7391 = vrot.slane %v7390, 4
      %v7392 = vmax.f32 %v7390, %v7391
      %v7393 = vrot.slane %v7392, 2
      %v7394 = vmax.f32 %v7392, %v7393
      %v7395 = vrot.slane %v7394, 1
      %v7396 = vmax.f32 %v7394, %v7395
      %v7397 = vsel %vm3056, %v2901, -inf
      %v7398 = vrot.slane %v7397, 4
      %v7399 = vmax.f32 %v7397, %v7398
      %v7400 = vrot.slane %v7399, 2
      %v7401 = vmax.f32 %v7399, %v7400
      %v7402 = vrot.slane %v7401, 1
      %v7403 = vmax.f32 %v7401, %v7402
      %v7404 = vsel %vm3056, %v2904, -inf
      %v7405 = vrot.slane %v7404, 4
      %v7406 = vmax.f32 %v7404, %v7405
      %v7407 = vrot.slane %v7406, 2
      %v7408 = vmax.f32 %v7406, %v7407
      %v7409 = vrot.slane %v7408, 1
      %v7410 = vmax.f32 %v7408, %v7409
      %v7411 = vsel %vm3056, %v2907, -inf
      %v7412 = vrot.slane %v7411, 4
      %v7413 = vmax.f32 %v7411, %v7412
      %v7414 = vrot.slane %v7413, 2
      %v7415 = vmax.f32 %v7413, %v7414
      %v7416 = vrot.slane %v7415, 1
      %v7417 = vmax.f32 %v7415, %v7416
      %v7418 = vsel %vm3056, %v2910, -inf
      %v7419 = vrot.slane %v7418, 4
      %v7420 = vmax.f32 %v7418, %v7419
      %v7421 = vrot.slane %v7420, 2
      %v7422 = vmax.f32 %v7420, %v7421
      %v7423 = vrot.slane %v7422, 1
      %v7424 = vmax.f32 %v7422, %v7423
      %v7425 = vsel %vm3056, %v2913, -inf
      %v7426 = vrot.slane %v7425, 4
      %v7427 = vmax.f32 %v7425, %v7426
      %v7428 = vrot.slane %v7427, 2
      %v7429 = vmax.f32 %v7427, %v7428
      %v7430 = vrot.slane %v7429, 1
      %v7431 = vmax.f32 %v7429, %v7430
      %v7432 = vsel %vm3056, %v2916, -inf
      %v7433 = vrot.slane %v7432, 4
      %v7434 = vmax.f32 %v7432, %v7433
      %v7435 = vrot.slane %v7434, 2
      %v7436 = vmax.f32 %v7434, %v7435
      %v7437 = vrot.slane %v7436, 1
      %v7438 = vmax.f32 %v7436, %v7437
      %v7439 = vsel %vm3056, %v2919, -inf
      %v7440 = vrot.slane %v7439, 4
      %v7441 = vmax.f32 %v7439, %v7440
      %v7442 = vrot.slane %v7441, 2
      %v7443 = vmax.f32 %v7441, %v7442
      %v7444 = vrot.slane %v7443, 1
      %v7445 = vmax.f32 %v7443, %v7444
      %v7446 = vsel %vm3056, %v2922, -inf
      %v7447 = vrot.slane %v7446, 4
      %v7448 = vmax.f32 %v7446, %v7447
      %v7449 = vrot.slane %v7448, 2
      %v7450 = vmax.f32 %v7448, %v7449
      %v7451 = vrot.slane %v7450, 1
      %v7452 = vmax.f32 %v7450, %v7451
      %v7453 = vsel %vm3056, %v2925, -inf
      %v7454 = vrot.slane %v7453, 4
      %v7455 = vmax.f32 %v7453, %v7454
      %v7456 = vrot.slane %v7455, 2
      %v7457 = vmax.f32 %v7455, %v7456
      %v7458 = vrot.slane %v7457, 1
      %v7459 = vmax.f32 %v7457, %v7458
      %v7460 = vsel %vm3056, %v2928, -inf
      %v7461 = vrot.slane %v7460, 4
      %v7462 = vmax.f32 %v7460, %v7461
      %v7463 = vrot.slane %v7462, 2
      %v7464 = vmax.f32 %v7462, %v7463
      %v7465 = vrot.slane %v7464, 1
      %v7466 = vmax.f32 %v7464, %v7465
      %v7467 = vsel %vm3056, %v2931, -inf
      %v7468 = vrot.slane %v7467, 4
      %v7469 = vmax.f32 %v7467, %v7468
      %v7470 = vrot.slane %v7469, 2
      %v7471 = vmax.f32 %v7469, %v7470
      %v7472 = vrot.slane %v7471, 1
      %v7473 = vmax.f32 %v7471, %v7472
      %v7474 = vsel %vm3056, %v2934, -inf
      %v7475 = vrot.slane %v7474, 4
      %v7476 = vmax.f32 %v7474, %v7475
      %v7477 = vrot.slane %v7476, 2
      %v7478 = vmax.f32 %v7476, %v7477
      %v7479 = vrot.slane %v7478, 1
      %v7480 = vmax.f32 %v7478, %v7479
      %v7481 = vsel %vm3056, %v2937, -inf
      %v7482 = vrot.slane %v7481, 4
      %v7483 = vmax.f32 %v7481, %v7482
      %v7484 = vrot.slane %v7483, 2
      %v7485 = vmax.f32 %v7483, %v7484
      %v7486 = vrot.slane %v7485, 1
      %v7487 = vmax.f32 %v7485, %v7486
      %v7488 = vsel %vm3056, %v2940, -inf
      %v7489 = vrot.slane %v7488, 4
      %v7490 = vmax.f32 %v7488, %v7489
      %v7491 = vrot.slane %v7490, 2
      %v7492 = vmax.f32 %v7490, %v7491
      %v7493 = vrot.slane %v7492, 1
      %v7494 = vmax.f32 %v7492, %v7493
      %v7495 = vsel %vm3056, %v2943, -inf
      %v7496 = vrot.slane %v7495, 4
      %v7497 = vmax.f32 %v7495, %v7496
      %v7498 = vrot.slane %v7497, 2
      %v7499 = vmax.f32 %v7497, %v7498
      %v7500 = vrot.slane %v7499, 1
      %v7501 = vmax.f32 %v7499, %v7500
      %v7502 = vsel %vm3056, %v2946, -inf
      %v7503 = vrot.slane %v7502, 4
      %v7504 = vmax.f32 %v7502, %v7503
      %v7505 = vrot.slane %v7504, 2
      %v7506 = vmax.f32 %v7504, %v7505
      %v7507 = vrot.slane %v7506, 1
      %v7508 = vmax.f32 %v7506, %v7507
      %v7509 = vsel %vm3056, %v2949, -inf
      %v7510 = vrot.slane %v7509, 4
      %v7511 = vmax.f32 %v7509, %v7510
      %v7512 = vrot.slane %v7511, 2
      %v7513 = vmax.f32 %v7511, %v7512
      %v7514 = vrot.slane %v7513, 1
      %v7515 = vmax.f32 %v7513, %v7514
      %v7516 = vsel %vm3056, %v2952, -inf
      %v7517 = vrot.slane %v7516, 4
      %v7518 = vmax.f32 %v7516, %v7517
      %v7519 = vrot.slane %v7518, 2
      %v7520 = vmax.f32 %v7518, %v7519
      %v7521 = vrot.slane %v7520, 1
      %v7522 = vmax.f32 %v7520, %v7521
      %v7523 = vsel %vm3056, %v2955, -inf
      %v7524 = vrot.slane %v7523, 4
      %v7525 = vmax.f32 %v7523, %v7524
      %v7526 = vrot.slane %v7525, 2
      %v7527 = vmax.f32 %v7525, %v7526
      %v7528 = vrot.slane %v7527, 1
      %v7529 = vmax.f32 %v7527, %v7528
      %v7530 = vsel %vm3056, %v2958, -inf
      %v7531 = vrot.slane %v7530, 4
      %v7532 = vmax.f32 %v7530, %v7531
      %v7533 = vrot.slane %v7532, 2
      %v7534 = vmax.f32 %v7532, %v7533
      %v7535 = vrot.slane %v7534, 1
      %v7536 = vmax.f32 %v7534, %v7535
      %v7537 = vsel %vm3056, %v2961, -inf
      %v7538 = vrot.slane %v7537, 4
      %v7539 = vmax.f32 %v7537, %v7538
      %v7540 = vrot.slane %v7539, 2
      %v7541 = vmax.f32 %v7539, %v7540
      %v7542 = vrot.slane %v7541, 1
      %v7543 = vmax.f32 %v7541, %v7542
      %v7544 = vsel %vm3056, %v2964, -inf
      %v7545 = vrot.slane %v7544, 4
      %v7546 = vmax.f32 %v7544, %v7545
      %v7547 = vrot.slane %v7546, 2
      %v7548 = vmax.f32 %v7546, %v7547
      %v7549 = vrot.slane %v7548, 1
      %v7550 = vmax.f32 %v7548, %v7549
      %v7551 = vsel %vm3056, %v2967, -inf
      %v7552 = vrot.slane %v7551, 4
      %v7553 = vmax.f32 %v7551, %v7552
      %v7554 = vrot.slane %v7553, 2
      %v7555 = vmax.f32 %v7553, %v7554
      %v7556 = vrot.slane %v7555, 1
      %v7557 = vmax.f32 %v7555, %v7556
      %v7558 = vsel %vm3056, %v2970, -inf
      %v7559 = vrot.slane %v7558, 4
      %v7560 = vmax.f32 %v7558, %v7559
      %v7561 = vrot.slane %v7560, 2
      %v7562 = vmax.f32 %v7560, %v7561
      %v7563 = vrot.slane %v7562, 1
      %v7564 = vmax.f32 %v7562, %v7563
      %v7565 = vsel %vm3056, %v2973, -inf
      %v7566 = vrot.slane %v7565, 4
      %v7567 = vmax.f32 %v7565, %v7566
      %v7568 = vrot.slane %v7567, 2
      %v7569 = vmax.f32 %v7567, %v7568
      %v7570 = vrot.slane %v7569, 1
      %v7571 = vmax.f32 %v7569, %v7570
      %v7572 = vsel %vm3056, %v2976, -inf
      %v7573 = vrot.slane %v7572, 4
      %v7574 = vmax.f32 %v7572, %v7573
      %v7575 = vrot.slane %v7574, 2
      %v7576 = vmax.f32 %v7574, %v7575
      %v7577 = vrot.slane %v7576, 1
      %v7578 = vmax.f32 %v7576, %v7577
      %v7579 = vsel %vm3056, %v2979, -inf
      %v7580 = vrot.slane %v7579, 4
      %v7581 = vmax.f32 %v7579, %v7580
      %v7582 = vrot.slane %v7581, 2
      %v7583 = vmax.f32 %v7581, %v7582
      %v7584 = vrot.slane %v7583, 1
      %v7585 = vmax.f32 %v7583, %v7584
      %v7586 = vsel %vm3056, %v2982, -inf
      %v7587 = vrot.slane %v7586, 4
      %v7588 = vmax.f32 %v7586, %v7587
      %v7589 = vrot.slane %v7588, 2
      %v7590 = vmax.f32 %v7588, %v7589
      %v7591 = vrot.slane %v7590, 1
      %v7592 = vmax.f32 %v7590, %v7591
      %v7593 = vsel %vm3056, %v2985, -inf
      %v7594 = vrot.slane %v7593, 4
      %v7595 = vmax.f32 %v7593, %v7594
      %v7596 = vrot.slane %v7595, 2
      %v7597 = vmax.f32 %v7595, %v7596
      %v7598 = vrot.slane %v7597, 1
      %v7599 = vmax.f32 %v7597, %v7598
      %v7600 = vsel %vm3056, %v2988, -inf
      %v7601 = vrot.slane %v7600, 4
      %v7602 = vmax.f32 %v7600, %v7601
      %v7603 = vrot.slane %v7602, 2
      %v7604 = vmax.f32 %v7602, %v7603
      %v7605 = vrot.slane %v7604, 1
      %v7606 = vmax.f32 %v7604, %v7605
      %v7607 = vsel %vm3056, %v2991, -inf
      %v7608 = vrot.slane %v7607, 4
      %v7609 = vmax.f32 %v7607, %v7608
      %v7610 = vrot.slane %v7609, 2
      %v7611 = vmax.f32 %v7609, %v7610
      %v7612 = vrot.slane %v7611, 1
      %v7613 = vmax.f32 %v7611, %v7612
      %v7614 = vsel %vm3056, %v2994, -inf
      %v7615 = vrot.slane %v7614, 4
      %v7616 = vmax.f32 %v7614, %v7615
      %v7617 = vrot.slane %v7616, 2
      %v7618 = vmax.f32 %v7616, %v7617
      %v7619 = vrot.slane %v7618, 1
      %v7620 = vmax.f32 %v7618, %v7619
      %v7621 = vsel %vm3056, %v2997, -inf
      %v7622 = vrot.slane %v7621, 4
      %v7623 = vmax.f32 %v7621, %v7622
      %v7624 = vrot.slane %v7623, 2
      %v7625 = vmax.f32 %v7623, %v7624
      %v7626 = vrot.slane %v7625, 1
      %v7627 = vmax.f32 %v7625, %v7626
      %v7628 = vsel %vm3056, %v3000, -inf
      %v7629 = vrot.slane %v7628, 4
      %v7630 = vmax.f32 %v7628, %v7629
      %v7631 = vrot.slane %v7630, 2
      %v7632 = vmax.f32 %v7630, %v7631
      %v7633 = vrot.slane %v7632, 1
      %v7634 = vmax.f32 %v7632, %v7633
      %v7635 = vsel %vm3056, %v3003, -inf
      %v7636 = vrot.slane %v7635, 4
      %v7637 = vmax.f32 %v7635, %v7636
      %v7638 = vrot.slane %v7637, 2
      %v7639 = vmax.f32 %v7637, %v7638
      %v7640 = vrot.slane %v7639, 1
      %v7641 = vmax.f32 %v7639, %v7640
      %v7642 = vsel %vm3056, %v3006, -inf
      %v7643 = vrot.slane %v7642, 4
      %v7644 = vmax.f32 %v7642, %v7643
      %v7645 = vrot.slane %v7644, 2
      %v7646 = vmax.f32 %v7644, %v7645
      %v7647 = vrot.slane %v7646, 1
      %v7648 = vmax.f32 %v7646, %v7647
      %v7649 = vsel %vm3056, %v3009, -inf
      %v7650 = vrot.slane %v7649, 4
      %v7651 = vmax.f32 %v7649, %v7650
      %v7652 = vrot.slane %v7651, 2
      %v7653 = vmax.f32 %v7651, %v7652
      %v7654 = vrot.slane %v7653, 1
      %v7655 = vmax.f32 %v7653, %v7654
      %v7656 = vsel %vm3056, %v3012, -inf
      %v7657 = vrot.slane %v7656, 4
      %v7658 = vmax.f32 %v7656, %v7657
      %v7659 = vrot.slane %v7658, 2
      %v7660 = vmax.f32 %v7658, %v7659
      %v7661 = vrot.slane %v7660, 1
      %v7662 = vmax.f32 %v7660, %v7661
      %v7663 = vsel %vm3056, %v3015, -inf
      %v7664 = vrot.slane %v7663, 4
      %v7665 = vmax.f32 %v7663, %v7664
      %v7666 = vrot.slane %v7665, 2
      %v7667 = vmax.f32 %v7665, %v7666
      %v7668 = vrot.slane %v7667, 1
      %v7669 = vmax.f32 %v7667, %v7668
      %v7670 = vsel %vm3056, %v3018, -inf
      %v7671 = vrot.slane %v7670, 4
      %v7672 = vmax.f32 %v7670, %v7671
      %v7673 = vrot.slane %v7672, 2
      %v7674 = vmax.f32 %v7672, %v7673
      %v7675 = vrot.slane %v7674, 1
      %v7676 = vmax.f32 %v7674, %v7675
      %v7677 = vsel %vm3056, %v3021, -inf
      %v7678 = vrot.slane %v7677, 4
      %v7679 = vmax.f32 %v7677, %v7678
      %v7680 = vrot.slane %v7679, 2
      %v7681 = vmax.f32 %v7679, %v7680
      %v7682 = vrot.slane %v7681, 1
      %v7683 = vmax.f32 %v7681, %v7682
      %v7684 = vsel %vm3056, %v3024, -inf
      %v7685 = vrot.slane %v7684, 4
      %v7686 = vmax.f32 %v7684, %v7685
      %v7687 = vrot.slane %v7686, 2
      %v7688 = vmax.f32 %v7686, %v7687
      %v7689 = vrot.slane %v7688, 1
      %v7690 = vmax.f32 %v7688, %v7689
      %v7691 = vsel %vm3056, %v3027, -inf
      %v7692 = vrot.slane %v7691, 4
      %v7693 = vmax.f32 %v7691, %v7692
      %v7694 = vrot.slane %v7693, 2
      %v7695 = vmax.f32 %v7693, %v7694
      %v7696 = vrot.slane %v7695, 1
      %v7697 = vmax.f32 %v7695, %v7696
      %v7698 = vsel %vm3056, %v3030, -inf
      %v7699 = vrot.slane %v7698, 4
      %v7700 = vmax.f32 %v7698, %v7699
      %v7701 = vrot.slane %v7700, 2
      %v7702 = vmax.f32 %v7700, %v7701
      %v7703 = vrot.slane %v7702, 1
      %v7704 = vmax.f32 %v7702, %v7703
      %v7705 = vsel %vm3056, %v3033, -inf
      %v7706 = vrot.slane %v7705, 4
      %v7707 = vmax.f32 %v7705, %v7706
      %v7708 = vrot.slane %v7707, 2
      %v7709 = vmax.f32 %v7707, %v7708
      %v7710 = vrot.slane %v7709, 1
      %v7711 = vmax.f32 %v7709, %v7710
      %v7712 = vsel %vm3056, %v3036, -inf
      %v7713 = vrot.slane %v7712, 4
      %v7714 = vmax.f32 %v7712, %v7713
      %v7715 = vrot.slane %v7714, 2
      %v7716 = vmax.f32 %v7714, %v7715
      %v7717 = vrot.slane %v7716, 1
      %v7718 = vmax.f32 %v7716, %v7717
      %v7719 = vsel %vm3056, %v3039, -inf
      %v7720 = vrot.slane %v7719, 4
      %v7721 = vmax.f32 %v7719, %v7720
      %v7722 = vrot.slane %v7721, 2
      %v7723 = vmax.f32 %v7721, %v7722
      %v7724 = vrot.slane %v7723, 1
      %v7725 = vmax.f32 %v7723, %v7724
      %v7726 = vsel %vm3056, %v3042, -inf
      %v7727 = vrot.slane %v7726, 4
      %v7728 = vmax.f32 %v7726, %v7727
      %v7729 = vrot.slane %v7728, 2
      %v7730 = vmax.f32 %v7728, %v7729
      %v7731 = vrot.slane %v7730, 1
      %v7732 = vmax.f32 %v7730, %v7731
      %v7733 = vsel %vm3056, %v3045, -inf
      %v7734 = vrot.slane %v7733, 4
      %v7735 = vmax.f32 %v7733, %v7734
      %v7736 = vrot.slane %v7735, 2
      %v7737 = vmax.f32 %v7735, %v7736
      %v7738 = vrot.slane %v7737, 1
      %v7739 = vmax.f32 %v7737, %v7738
      %v7740 = vsel %vm3056, %v3048, -inf
      %v7741 = vrot.slane %v7740, 4
      %v7742 = vmax.f32 %v7740, %v7741
      %v7743 = vrot.slane %v7742, 2
      %v7744 = vmax.f32 %v7742, %v7743
      %v7745 = vrot.slane %v7744, 1
      %v7746 = vmax.f32 %v7744, %v7745
      %v7747 = vsel %vm3056, %v3051, -inf
      %v7748 = vrot.slane %v7747, 4
      %v7749 = vmax.f32 %v7747, %v7748
      %v7750 = vrot.slane %v7749, 2
      %v7751 = vmax.f32 %v7749, %v7750
      %v7752 = vrot.slane %v7751, 1
      %v7753 = vmax.f32 %v7751, %v7752
      %v7754 = vsel %vm3056, %v3054, -inf
      %v7755 = vrot.slane %v7754, 4
      %v7756 = vmax.f32 %v7754, %v7755
      %v7757 = vrot.slane %v7756, 2
      %v7758 = vmax.f32 %v7756, %v7757
      %v7759 = vrot.slane %v7758, 1
      %v7760 = vmax.f32 %v7758, %v7759
      %v7761 = vmax.f32 %v3063, %v3161
      %v7762 = vmax.f32 %v3070, %v3168
      %v7763 = vmax.f32 %v3077, %v3175
      %v7764 = vmax.f32 %v3084, %v3182
      %v7765 = vmax.f32 %v3091, %v3189
      %v7766 = vmax.f32 %v3098, %v3196
      %v7767 = vmax.f32 %v3105, %v3203
      %v7768 = vmax.f32 %v3112, %v3210
      %v7769 = vmax.f32 %v3119, %v3217
      %v7770 = vmax.f32 %v3126, %v3224
      %v7771 = vmax.f32 %v3133, %v3231
      %v7772 = vmax.f32 %v3140, %v3238
      %v7773 = vmax.f32 %v3147, %v3245
      %v7774 = vmax.f32 %v3154, %v3252
      %v7775 = vmax.f32 %v3847, %v3945
      %v7776 = vmax.f32 %v3854, %v3952
      %v7777 = vmax.f32 %v3861, %v3959
      %v7778 = vmax.f32 %v3868, %v3966
      %v7779 = vmax.f32 %v3875, %v3973
      %v7780 = vmax.f32 %v3882, %v3980
      %v7781 = vmax.f32 %v3889, %v3987
      %v7782 = vmax.f32 %v3896, %v3994
      %v7783 = vmax.f32 %v3903, %v4001
      %v7784 = vmax.f32 %v3910, %v4008
      %v7785 = vmax.f32 %v3917, %v4015
      %v7786 = vmax.f32 %v3924, %v4022
      %v7787 = vmax.f32 %v3931, %v4029
      %v7788 = vmax.f32 %v3938, %v4036
      %v7789 = vmax.f32 %v4631, %v4729
      %v7790 = vmax.f32 %v4638, %v4736
      %v7791 = vmax.f32 %v4645, %v4743
      %v7792 = vmax.f32 %v4652, %v4750
      %v7793 = vmax.f32 %v4659, %v4757
      %v7794 = vmax.f32 %v4666, %v4764
      %v7795 = vmax.f32 %v4673, %v4771
      %v7796 = vmax.f32 %v4680, %v4778
      %v7797 = vmax.f32 %v4687, %v4785
      %v7798 = vmax.f32 %v4694, %v4792
      %v7799 = vmax.f32 %v4701, %v4799
      %v7800 = vmax.f32 %v4708, %v4806
      %v7801 = vmax.f32 %v4715, %v4813
      %v7802 = vmax.f32 %v4722, %v4820
      %v7803 = vmax.f32 %v5415, %v5513
      %v7804 = vmax.f32 %v5422, %v5520
      %v7805 = vmax.f32 %v5429, %v5527
      %v7806 = vmax.f32 %v5436, %v5534
      %v7807 = vmax.f32 %v5443, %v5541
      %v7808 = vmax.f32 %v5450, %v5548
      %v7809 = vmax.f32 %v5457, %v5555
      %v7810 = vmax.f32 %v5464, %v5562
      %v7811 = vmax.f32 %v5471, %v5569
      %v7812 = vmax.f32 %v5478, %v5576
      %v7813 = vmax.f32 %v5485, %v5583
      %v7814 = vmax.f32 %v5492, %v5590
      %v7815 = vmax.f32 %v5499, %v5597
      %v7816 = vmax.f32 %v5506, %v5604
      %v7817 = vmax.f32 %v6199, %v6297
      %v7818 = vmax.f32 %v6206, %v6304
      %v7819 = vmax.f32 %v6213, %v6311
      %v7820 = vmax.f32 %v6220, %v6318
      %v7821 = vmax.f32 %v6227, %v6325
      %v7822 = vmax.f32 %v6234, %v6332
      %v7823 = vmax.f32 %v6241, %v6339
      %v7824 = vmax.f32 %v6248, %v6346
      %v7825 = vmax.f32 %v6255, %v6353
      %v7826 = vmax.f32 %v6262, %v6360
      %v7827 = vmax.f32 %v6269, %v6367
      %v7828 = vmax.f32 %v6276, %v6374
      %v7829 = vmax.f32 %v6283, %v6381
      %v7830 = vmax.f32 %v6290, %v6388
      %v7831 = vmax.f32 %v6983, %v7081
      %v7832 = vmax.f32 %v6990, %v7088
      %v7833 = vmax.f32 %v6997, %v7095
      %v7834 = vmax.f32 %v7004, %v7102
      %v7835 = vmax.f32 %v7011, %v7109
      %v7836 = vmax.f32 %v7018, %v7116
      %v7837 = vmax.f32 %v7025, %v7123
      %v7838 = vmax.f32 %v7032, %v7130
      %v7839 = vmax.f32 %v7039, %v7137
      %v7840 = vmax.f32 %v7046, %v7144
      %v7841 = vmax.f32 %v7053, %v7151
      %v7842 = vmax.f32 %v7060, %v7158
      %v7843 = vmax.f32 %v7067, %v7165
      %v7844 = vmax.f32 %v7074, %v7172
      %v7845 = vmax.f32 %v7761, %v3259
      %v7846 = vmax.f32 %v7762, %v3266
      %v7847 = vmax.f32 %v7763, %v3273
      %v7848 = vmax.f32 %v7764, %v3280
      %v7849 = vmax.f32 %v7765, %v3287
      %v7850 = vmax.f32 %v7766, %v3294
      %v7851 = vmax.f32 %v7767, %v3301
      %v7852 = vmax.f32 %v7768, %v3308
      %v7853 = vmax.f32 %v7769, %v3315
      %v7854 = vmax.f32 %v7770, %v3322
      %v7855 = vmax.f32 %v7771, %v3329
      %v7856 = vmax.f32 %v7772, %v3336
      %v7857 = vmax.f32 %v7773, %v3343
      %v7858 = vmax.f32 %v7774, %v3350
      %v7859 = vmax.f32 %v7775, %v4043
      %v7860 = vmax.f32 %v7776, %v4050
      %v7861 = vmax.f32 %v7777, %v4057
      %v7862 = vmax.f32 %v7778, %v4064
      %v7863 = vmax.f32 %v7779, %v4071
      %v7864 = vmax.f32 %v7780, %v4078
      %v7865 = vmax.f32 %v7781, %v4085
      %v7866 = vmax.f32 %v7782, %v4092
      %v7867 = vmax.f32 %v7783, %v4099
      %v7868 = vmax.f32 %v7784, %v4106
      %v7869 = vmax.f32 %v7785, %v4113
      %v7870 = vmax.f32 %v7786, %v4120
      %v7871 = vmax.f32 %v7787, %v4127
      %v7872 = vmax.f32 %v7788, %v4134
      %v7873 = vmax.f32 %v7789, %v4827
      %v7874 = vmax.f32 %v7790, %v4834
      %v7875 = vmax.f32 %v7791, %v4841
      %v7876 = vmax.f32 %v7792, %v4848
      %v7877 = vmax.f32 %v7793, %v4855
      %v7878 = vmax.f32 %v7794, %v4862
      %v7879 = vmax.f32 %v7795, %v4869
      %v7880 = vmax.f32 %v7796, %v4876
      %v7881 = vmax.f32 %v7797, %v4883
      %v7882 = vmax.f32 %v7798, %v4890
      %v7883 = vmax.f32 %v7799, %v4897
      %v7884 = vmax.f32 %v7800, %v4904
      %v7885 = vmax.f32 %v7801, %v4911
      %v7886 = vmax.f32 %v7802, %v4918
      %v7887 = vmax.f32 %v7803, %v5611
      %v7888 = vmax.f32 %v7804, %v5618
      %v7889 = vmax.f32 %v7805, %v5625
      %v7890 = vmax.f32 %v7806, %v5632
      %v7891 = vmax.f32 %v7807, %v5639
      %v7892 = vmax.f32 %v7808, %v5646
      %v7893 = vmax.f32 %v7809, %v5653
      %v7894 = vmax.f32 %v7810, %v5660
      %v7895 = vmax.f32 %v7811, %v5667
      %v7896 = vmax.f32 %v7812, %v5674
      %v7897 = vmax.f32 %v7813, %v5681
      %v7898 = vmax.f32 %v7814, %v5688
      %v7899 = vmax.f32 %v7815, %v5695
      %v7900 = vmax.f32 %v7816, %v5702
      %v7901 = vmax.f32 %v7817, %v6395
      %v7902 = vmax.f32 %v7818, %v6402
      %v7903 = vmax.f32 %v7819, %v6409
      %v7904 = vmax.f32 %v7820, %v6416
      %v7905 = vmax.f32 %v7821, %v6423
      %v7906 = vmax.f32 %v7822, %v6430
      %v7907 = vmax.f32 %v7823, %v6437
      %v7908 = vmax.f32 %v7824, %v6444
      %v7909 = vmax.f32 %v7825, %v6451
      %v7910 = vmax.f32 %v7826, %v6458
      %v7911 = vmax.f32 %v7827, %v6465
      %v7912 = vmax.f32 %v7828, %v6472
      %v7913 = vmax.f32 %v7829, %v6479
      %v7914 = vmax.f32 %v7830, %v6486
      %v7915 = vmax.f32 %v7831, %v7179
      %v7916 = vmax.f32 %v7832, %v7186
      %v7917 = vmax.f32 %v7833, %v7193
      %v7918 = vmax.f32 %v7834, %v7200
      %v7919 = vmax.f32 %v7835, %v7207
      %v7920 = vmax.f32 %v7836, %v7214
      %v7921 = vmax.f32 %v7837, %v7221
      %v7922 = vmax.f32 %v7838, %v7228
      %v7923 = vmax.f32 %v7839, %v7235
      %v7924 = vmax.f32 %v7840, %v7242
      %v7925 = vmax.f32 %v7841, %v7249
      %v7926 = vmax.f32 %v7842, %v7256
      %v7927 = vmax.f32 %v7843, %v7263
      %v7928 = vmax.f32 %v7844, %v7270
      %v7929 = vmax.f32 %v7845, %v3357
      %v7930 = vmax.f32 %v7846, %v3364
      %v7931 = vmax.f32 %v7847, %v3371
      %v7932 = vmax.f32 %v7848, %v3378
      %v7933 = vmax.f32 %v7849, %v3385
      %v7934 = vmax.f32 %v7850, %v3392
      %v7935 = vmax.f32 %v7851, %v3399
      %v7936 = vmax.f32 %v7852, %v3406
      %v7937 = vmax.f32 %v7853, %v3413
      %v7938 = vmax.f32 %v7854, %v3420
      %v7939 = vmax.f32 %v7855, %v3427
      %v7940 = vmax.f32 %v7856, %v3434
      %v7941 = vmax.f32 %v7857, %v3441
      %v7942 = vmax.f32 %v7858, %v3448
      %v7943 = vmax.f32 %v7859, %v4141
      %v7944 = vmax.f32 %v7860, %v4148
      %v7945 = vmax.f32 %v7861, %v4155
      %v7946 = vmax.f32 %v7862, %v4162
      %v7947 = vmax.f32 %v7863, %v4169
      %v7948 = vmax.f32 %v7864, %v4176
      %v7949 = vmax.f32 %v7865, %v4183
      %v7950 = vmax.f32 %v7866, %v4190
      %v7951 = vmax.f32 %v7867, %v4197
      %v7952 = vmax.f32 %v7868, %v4204
      %v7953 = vmax.f32 %v7869, %v4211
      %v7954 = vmax.f32 %v7870, %v4218
      %v7955 = vmax.f32 %v7871, %v4225
      %v7956 = vmax.f32 %v7872, %v4232
      %v7957 = vmax.f32 %v7873, %v4925
      %v7958 = vmax.f32 %v7874, %v4932
      %v7959 = vmax.f32 %v7875, %v4939
      %v7960 = vmax.f32 %v7876, %v4946
      %v7961 = vmax.f32 %v7877, %v4953
      %v7962 = vmax.f32 %v7878, %v4960
      %v7963 = vmax.f32 %v7879, %v4967
      %v7964 = vmax.f32 %v7880, %v4974
      %v7965 = vmax.f32 %v7881, %v4981
      %v7966 = vmax.f32 %v7882, %v4988
      %v7967 = vmax.f32 %v7883, %v4995
      %v7968 = vmax.f32 %v7884, %v5002
      %v7969 = vmax.f32 %v7885, %v5009
      %v7970 = vmax.f32 %v7886, %v5016
      %v7971 = vmax.f32 %v7887, %v5709
      %v7972 = vmax.f32 %v7888, %v5716
      %v7973 = vmax.f32 %v7889, %v5723
      %v7974 = vmax.f32 %v7890, %v5730
      %v7975 = vmax.f32 %v7891, %v5737
      %v7976 = vmax.f32 %v7892, %v5744
      %v7977 = vmax.f32 %v7893, %v5751
      %v7978 = vmax.f32 %v7894, %v5758
      %v7979 = vmax.f32 %v7895, %v5765
      %v7980 = vmax.f32 %v7896, %v5772
      %v7981 = vmax.f32 %v7897, %v5779
      %v7982 = vmax.f32 %v7898, %v5786
      %v7983 = vmax.f32 %v7899, %v5793
      %v7984 = vmax.f32 %v7900, %v5800
      %v7985 = vmax.f32 %v7901, %v6493
      %v7986 = vmax.f32 %v7902, %v6500
      %v7987 = vmax.f32 %v7903, %v6507
      %v7988 = vmax.f32 %v7904, %v6514
      %v7989 = vmax.f32 %v7905, %v6521
      %v7990 = vmax.f32 %v7906, %v6528
      %v7991 = vmax.f32 %v7907, %v6535
      %v7992 = vmax.f32 %v7908, %v6542
      %v7993 = vmax.f32 %v7909, %v6549
      %v7994 = vmax.f32 %v7910, %v6556
      %v7995 = vmax.f32 %v7911, %v6563
      %v7996 = vmax.f32 %v7912, %v6570
      %v7997 = vmax.f32 %v7913, %v6577
      %v7998 = vmax.f32 %v7914, %v6584
      %v7999 = vmax.f32 %v7915, %v7277
      %v8000 = vmax.f32 %v7916, %v7284
      %v8001 = vmax.f32 %v7917, %v7291
      %v8002 = vmax.f32 %v7918, %v7298
      %v8003 = vmax.f32 %v7919, %v7305
      %v8004 = vmax.f32 %v7920, %v7312
      %v8005 = vmax.f32 %v7921, %v7319
      %v8006 = vmax.f32 %v7922, %v7326
      %v8007 = vmax.f32 %v7923, %v7333
      %v8008 = vmax.f32 %v7924, %v7340
      %v8009 = vmax.f32 %v7925, %v7347
      %v8010 = vmax.f32 %v7926, %v7354
      %v8011 = vmax.f32 %v7927, %v7361
      %v8012 = vmax.f32 %v7928, %v7368
      %v8013 = vmax.f32 %v7929, %v3455
      %v8014 = vmax.f32 %v7930, %v3462
      %v8015 = vmax.f32 %v7931, %v3469
      %v8016 = vmax.f32 %v7932, %v3476
      %v8017 = vmax.f32 %v7933, %v3483
      %v8018 = vmax.f32 %v7934, %v3490
      %v8019 = vmax.f32 %v7935, %v3497
      %v8020 = vmax.f32 %v7936, %v3504
      %v8021 = vmax.f32 %v7937, %v3511
      %v8022 = vmax.f32 %v7938, %v3518
      %v8023 = vmax.f32 %v7939, %v3525
      %v8024 = vmax.f32 %v7940, %v3532
      %v8025 = vmax.f32 %v7941, %v3539
      %v8026 = vmax.f32 %v7942, %v3546
      %v8027 = vmax.f32 %v7943, %v4239
      %v8028 = vmax.f32 %v7944, %v4246
      %v8029 = vmax.f32 %v7945, %v4253
      %v8030 = vmax.f32 %v7946, %v4260
      %v8031 = vmax.f32 %v7947, %v4267
      %v8032 = vmax.f32 %v7948, %v4274
      %v8033 = vmax.f32 %v7949, %v4281
      %v8034 = vmax.f32 %v7950, %v4288
      %v8035 = vmax.f32 %v7951, %v4295
      %v8036 = vmax.f32 %v7952, %v4302
      %v8037 = vmax.f32 %v7953, %v4309
      %v8038 = vmax.f32 %v7954, %v4316
      %v8039 = vmax.f32 %v7955, %v4323
      %v8040 = vmax.f32 %v7956, %v4330
      %v8041 = vmax.f32 %v7957, %v5023
      %v8042 = vmax.f32 %v7958, %v5030
      %v8043 = vmax.f32 %v7959, %v5037
      %v8044 = vmax.f32 %v7960, %v5044
      %v8045 = vmax.f32 %v7961, %v5051
      %v8046 = vmax.f32 %v7962, %v5058
      %v8047 = vmax.f32 %v7963, %v5065
      %v8048 = vmax.f32 %v7964, %v5072
      %v8049 = vmax.f32 %v7965, %v5079
      %v8050 = vmax.f32 %v7966, %v5086
      %v8051 = vmax.f32 %v7967, %v5093
      %v8052 = vmax.f32 %v7968, %v5100
      %v8053 = vmax.f32 %v7969, %v5107
      %v8054 = vmax.f32 %v7970, %v5114
      %v8055 = vmax.f32 %v7971, %v5807
      %v8056 = vmax.f32 %v7972, %v5814
      %v8057 = vmax.f32 %v7973, %v5821
      %v8058 = vmax.f32 %v7974, %v5828
      %v8059 = vmax.f32 %v7975, %v5835
      %v8060 = vmax.f32 %v7976, %v5842
      %v8061 = vmax.f32 %v7977, %v5849
      %v8062 = vmax.f32 %v7978, %v5856
      %v8063 = vmax.f32 %v7979, %v5863
      %v8064 = vmax.f32 %v7980, %v5870
      %v8065 = vmax.f32 %v7981, %v5877
      %v8066 = vmax.f32 %v7982, %v5884
      %v8067 = vmax.f32 %v7983, %v5891
      %v8068 = vmax.f32 %v7984, %v5898
      %v8069 = vmax.f32 %v7985, %v6591
      %v8070 = vmax.f32 %v7986, %v6598
      %v8071 = vmax.f32 %v7987, %v6605
      %v8072 = vmax.f32 %v7988, %v6612
      %v8073 = vmax.f32 %v7989, %v6619
      %v8074 = vmax.f32 %v7990, %v6626
      %v8075 = vmax.f32 %v7991, %v6633
      %v8076 = vmax.f32 %v7992, %v6640
      %v8077 = vmax.f32 %v7993, %v6647
      %v8078 = vmax.f32 %v7994, %v6654
      %v8079 = vmax.f32 %v7995, %v6661
      %v8080 = vmax.f32 %v7996, %v6668
      %v8081 = vmax.f32 %v7997, %v6675
      %v8082 = vmax.f32 %v7998, %v6682
      %v8083 = vmax.f32 %v7999, %v7375
      %v8084 = vmax.f32 %v8000, %v7382
      %v8085 = vmax.f32 %v8001, %v7389
      %v8086 = vmax.f32 %v8002, %v7396
      %v8087 = vmax.f32 %v8003, %v7403
      %v8088 = vmax.f32 %v8004, %v7410
      %v8089 = vmax.f32 %v8005, %v7417
      %v8090 = vmax.f32 %v8006, %v7424
      %v8091 = vmax.f32 %v8007, %v7431
      %v8092 = vmax.f32 %v8008, %v7438
      %v8093 = vmax.f32 %v8009, %v7445
      %v8094 = vmax.f32 %v8010, %v7452
      %v8095 = vmax.f32 %v8011, %v7459
      %v8096 = vmax.f32 %v8012, %v7466
      %v8097 = vmax.f32 %v8013, %v3553
      %v8098 = vmax.f32 %v8014, %v3560
      %v8099 = vmax.f32 %v8015, %v3567
      %v8100 = vmax.f32 %v8016, %v3574
      %v8101 = vmax.f32 %v8017, %v3581
      %v8102 = vmax.f32 %v8018, %v3588
      %v8103 = vmax.f32 %v8019, %v3595
      %v8104 = vmax.f32 %v8020, %v3602
      %v8105 = vmax.f32 %v8021, %v3609
      %v8106 = vmax.f32 %v8022, %v3616
      %v8107 = vmax.f32 %v8023, %v3623
      %v8108 = vmax.f32 %v8024, %v3630
      %v8109 = vmax.f32 %v8025, %v3637
      %v8110 = vmax.f32 %v8026, %v3644
      %v8111 = vmax.f32 %v8027, %v4337
      %v8112 = vmax.f32 %v8028, %v4344
      %v8113 = vmax.f32 %v8029, %v4351
      %v8114 = vmax.f32 %v8030, %v4358
      %v8115 = vmax.f32 %v8031, %v4365
      %v8116 = vmax.f32 %v8032, %v4372
      %v8117 = vmax.f32 %v8033, %v4379
      %v8118 = vmax.f32 %v8034, %v4386
      %v8119 = vmax.f32 %v8035, %v4393
      %v8120 = vmax.f32 %v8036, %v4400
      %v8121 = vmax.f32 %v8037, %v4407
      %v8122 = vmax.f32 %v8038, %v4414
      %v8123 = vmax.f32 %v8039, %v4421
      %v8124 = vmax.f32 %v8040, %v4428
      %v8125 = vmax.f32 %v8041, %v5121
      %v8126 = vmax.f32 %v8042, %v5128
      %v8127 = vmax.f32 %v8043, %v5135
      %v8128 = vmax.f32 %v8044, %v5142
      %v8129 = vmax.f32 %v8045, %v5149
      %v8130 = vmax.f32 %v8046, %v5156
      %v8131 = vmax.f32 %v8047, %v5163
      %v8132 = vmax.f32 %v8048, %v5170
      %v8133 = vmax.f32 %v8049, %v5177
      %v8134 = vmax.f32 %v8050, %v5184
      %v8135 = vmax.f32 %v8051, %v5191
      %v8136 = vmax.f32 %v8052, %v5198
      %v8137 = vmax.f32 %v8053, %v5205
      %v8138 = vmax.f32 %v8054, %v5212
      %v8139 = vmax.f32 %v8055, %v5905
      %v8140 = vmax.f32 %v8056, %v5912
      %v8141 = vmax.f32 %v8057, %v5919
      %v8142 = vmax.f32 %v8058, %v5926
      %v8143 = vmax.f32 %v8059, %v5933
      %v8144 = vmax.f32 %v8060, %v5940
      %v8145 = vmax.f32 %v8061, %v5947
      %v8146 = vmax.f32 %v8062, %v5954
      %v8147 = vmax.f32 %v8063, %v5961
      %v8148 = vmax.f32 %v8064, %v5968
      %v8149 = vmax.f32 %v8065, %v5975
      %v8150 = vmax.f32 %v8066, %v5982
      %v8151 = vmax.f32 %v8067, %v5989
      %v8152 = vmax.f32 %v8068, %v5996
      %v8153 = vmax.f32 %v8069, %v6689
      %v8154 = vmax.f32 %v8070, %v6696
      %v8155 = vmax.f32 %v8071, %v6703
      %v8156 = vmax.f32 %v8072, %v6710
      %v8157 = vmax.f32 %v8073, %v6717
      %v8158 = vmax.f32 %v8074, %v6724
      %v8159 = vmax.f32 %v8075, %v6731
      %v8160 = vmax.f32 %v8076, %v6738
      %v8161 = vmax.f32 %v8077, %v6745
      %v8162 = vmax.f32 %v8078, %v6752
      %v8163 = vmax.f32 %v8079, %v6759
      %v8164 = vmax.f32 %v8080, %v6766
      %v8165 = vmax.f32 %v8081, %v6773
      %v8166 = vmax.f32 %v8082, %v6780
      %v8167 = vmax.f32 %v8083, %v7473
      %v8168 = vmax.f32 %v8084, %v7480
      %v8169 = vmax.f32 %v8085, %v7487
      %v8170 = vmax.f32 %v8086, %v7494
      %v8171 = vmax.f32 %v8087, %v7501
      %v8172 = vmax.f32 %v8088, %v7508
      %v8173 = vmax.f32 %v8089, %v7515
      %v8174 = vmax.f32 %v8090, %v7522
      %v8175 = vmax.f32 %v8091, %v7529
      %v8176 = vmax.f32 %v8092, %v7536
      %v8177 = vmax.f32 %v8093, %v7543
      %v8178 = vmax.f32 %v8094, %v7550
      %v8179 = vmax.f32 %v8095, %v7557
      %v8180 = vmax.f32 %v8096, %v7564
      %v8181 = vmax.f32 %v8097, %v3651
      %v8182 = vmax.f32 %v8098, %v3658
      %v8183 = vmax.f32 %v8099, %v3665
      %v8184 = vmax.f32 %v8100, %v3672
      %v8185 = vmax.f32 %v8101, %v3679
      %v8186 = vmax.f32 %v8102, %v3686
      %v8187 = vmax.f32 %v8103, %v3693
      %v8188 = vmax.f32 %v8104, %v3700
      %v8189 = vmax.f32 %v8105, %v3707
      %v8190 = vmax.f32 %v8106, %v3714
      %v8191 = vmax.f32 %v8107, %v3721
      %v8192 = vmax.f32 %v8108, %v3728
      %v8193 = vmax.f32 %v8109, %v3735
      %v8194 = vmax.f32 %v8110, %v3742
      %v8195 = vmax.f32 %v8111, %v4435
      %v8196 = vmax.f32 %v8112, %v4442
      %v8197 = vmax.f32 %v8113, %v4449
      %v8198 = vmax.f32 %v8114, %v4456
      %v8199 = vmax.f32 %v8115, %v4463
      %v8200 = vmax.f32 %v8116, %v4470
      %v8201 = vmax.f32 %v8117, %v4477
      %v8202 = vmax.f32 %v8118, %v4484
      %v8203 = vmax.f32 %v8119, %v4491
      %v8204 = vmax.f32 %v8120, %v4498
      %v8205 = vmax.f32 %v8121, %v4505
      %v8206 = vmax.f32 %v8122, %v4512
      %v8207 = vmax.f32 %v8123, %v4519
      %v8208 = vmax.f32 %v8124, %v4526
      %v8209 = vmax.f32 %v8125, %v5219
      %v8210 = vmax.f32 %v8126, %v5226
      %v8211 = vmax.f32 %v8127, %v5233
      %v8212 = vmax.f32 %v8128, %v5240
      %v8213 = vmax.f32 %v8129, %v5247
      %v8214 = vmax.f32 %v8130, %v5254
      %v8215 = vmax.f32 %v8131, %v5261
      %v8216 = vmax.f32 %v8132, %v5268
      %v8217 = vmax.f32 %v8133, %v5275
      %v8218 = vmax.f32 %v8134, %v5282
      %v8219 = vmax.f32 %v8135, %v5289
      %v8220 = vmax.f32 %v8136, %v5296
      %v8221 = vmax.f32 %v8137, %v5303
      %v8222 = vmax.f32 %v8138, %v5310
      %v8223 = vmax.f32 %v8139, %v6003
      %v8224 = vmax.f32 %v8140, %v6010
      %v8225 = vmax.f32 %v8141, %v6017
      %v8226 = vmax.f32 %v8142, %v6024
      %v8227 = vmax.f32 %v8143, %v6031
      %v8228 = vmax.f32 %v8144, %v6038
      %v8229 = vmax.f32 %v8145, %v6045
      %v8230 = vmax.f32 %v8146, %v6052
      %v8231 = vmax.f32 %v8147, %v6059
      %v8232 = vmax.f32 %v8148, %v6066
      %v8233 = vmax.f32 %v8149, %v6073
      %v8234 = vmax.f32 %v8150, %v6080
      %v8235 = vmax.f32 %v8151, %v6087
      %v8236 = vmax.f32 %v8152, %v6094
      %v8237 = vmax.f32 %v8153, %v6787
      %v8238 = vmax.f32 %v8154, %v6794
      %v8239 = vmax.f32 %v8155, %v6801
      %v8240 = vmax.f32 %v8156, %v6808
      %v8241 = vmax.f32 %v8157, %v6815
      %v8242 = vmax.f32 %v8158, %v6822
      %v8243 = vmax.f32 %v8159, %v6829
      %v8244 = vmax.f32 %v8160, %v6836
      %v8245 = vmax.f32 %v8161, %v6843
      %v8246 = vmax.f32 %v8162, %v6850
      %v8247 = vmax.f32 %v8163, %v6857
      %v8248 = vmax.f32 %v8164, %v6864
      %v8249 = vmax.f32 %v8165, %v6871
      %v8250 = vmax.f32 %v8166, %v6878
      %v8251 = vmax.f32 %v8167, %v7571
      %v8252 = vmax.f32 %v8168, %v7578
      %v8253 = vmax.f32 %v8169, %v7585
      %v8254 = vmax.f32 %v8170, %v7592
      %v8255 = vmax.f32 %v8171, %v7599
      %v8256 = vmax.f32 %v8172, %v7606
      %v8257 = vmax.f32 %v8173, %v7613
      %v8258 = vmax.f32 %v8174, %v7620
      %v8259 = vmax.f32 %v8175, %v7627
      %v8260 = vmax.f32 %v8176, %v7634
      %v8261 = vmax.f32 %v8177, %v7641
      %v8262 = vmax.f32 %v8178, %v7648
      %v8263 = vmax.f32 %v8179, %v7655
      %v8264 = vmax.f32 %v8180, %v7662
      %v8265 = vmax.f32 %v8181, %v3749
      %v8266 = vmax.f32 %v8182, %v3756
      %v8267 = vmax.f32 %v8183, %v3763
      %v8268 = vmax.f32 %v8184, %v3770
      %v8269 = vmax.f32 %v8185, %v3777
      %v8270 = vmax.f32 %v8186, %v3784
      %v8271 = vmax.f32 %v8187, %v3791
      %v8272 = vmax.f32 %v8188, %v3798
      %v8273 = vmax.f32 %v8189, %v3805
      %v8274 = vmax.f32 %v8190, %v3812
      %v8275 = vmax.f32 %v8191, %v3819
      %v8276 = vmax.f32 %v8192, %v3826
      %v8277 = vmax.f32 %v8193, %v3833
      %v8278 = vmax.f32 %v8194, %v3840
      %v8279 = vmax.f32 %v8195, %v4533
      %v8280 = vmax.f32 %v8196, %v4540
      %v8281 = vmax.f32 %v8197, %v4547
      %v8282 = vmax.f32 %v8198, %v4554
      %v8283 = vmax.f32 %v8199, %v4561
      %v8284 = vmax.f32 %v8200, %v4568
      %v8285 = vmax.f32 %v8201, %v4575
      %v8286 = vmax.f32 %v8202, %v4582
      %v8287 = vmax.f32 %v8203, %v4589
      %v8288 = vmax.f32 %v8204, %v4596
      %v8289 = vmax.f32 %v8205, %v4603
      %v8290 = vmax.f32 %v8206, %v4610
      %v8291 = vmax.f32 %v8207, %v4617
      %v8292 = vmax.f32 %v8208, %v4624
      %v8293 = vmax.f32 %v8209, %v5317
      %v8294 = vmax.f32 %v8210, %v5324
      %v8295 = vmax.f32 %v8211, %v5331
      %v8296 = vmax.f32 %v8212, %v5338
      %v8297 = vmax.f32 %v8213, %v5345
      %v8298 = vmax.f32 %v8214, %v5352
      %v8299 = vmax.f32 %v8215, %v5359
      %v8300 = vmax.f32 %v8216, %v5366
      %v8301 = vmax.f32 %v8217, %v5373
      %v8302 = vmax.f32 %v8218, %v5380
      %v8303 = vmax.f32 %v8219, %v5387
      %v8304 = vmax.f32 %v8220, %v5394
      %v8305 = vmax.f32 %v8221, %v5401
      %v8306 = vmax.f32 %v8222, %v5408
      %v8307 = vmax.f32 %v8223, %v6101
      %v8308 = vmax.f32 %v8224, %v6108
      %v8309 = vmax.f32 %v8225, %v6115
      %v8310 = vmax.f32 %v8226, %v6122
      %v8311 = vmax.f32 %v8227, %v6129
      %v8312 = vmax.f32 %v8228, %v6136
      %v8313 = vmax.f32 %v8229, %v6143
      %v8314 = vmax.f32 %v8230, %v6150
      %v8315 = vmax.f32 %v8231, %v6157
      %v8316 = vmax.f32 %v8232, %v6164
      %v8317 = vmax.f32 %v8233, %v6171
      %v8318 = vmax.f32 %v8234, %v6178
      %v8319 = vmax.f32 %v8235, %v6185
      %v8320 = vmax.f32 %v8236, %v6192
      %v8321 = vmax.f32 %v8237, %v6885
      %v8322 = vmax.f32 %v8238, %v6892
      %v8323 = vmax.f32 %v8239, %v6899
      %v8324 = vmax.f32 %v8240, %v6906
      %v8325 = vmax.f32 %v8241, %v6913
      %v8326 = vmax.f32 %v8242, %v6920
      %v8327 = vmax.f32 %v8243, %v6927
      %v8328 = vmax.f32 %v8244, %v6934
      %v8329 = vmax.f32 %v8245, %v6941
      %v8330 = vmax.f32 %v8246, %v6948
      %v8331 = vmax.f32 %v8247, %v6955
      %v8332 = vmax.f32 %v8248, %v6962
      %v8333 = vmax.f32 %v8249, %v6969
      %v8334 = vmax.f32 %v8250, %v6976
      %v8335 = vmax.f32 %v8251, %v7669
      %v8336 = vmax.f32 %v8252, %v7676
      %v8337 = vmax.f32 %v8253, %v7683
      %v8338 = vmax.f32 %v8254, %v7690
      %v8339 = vmax.f32 %v8255, %v7697
      %v8340 = vmax.f32 %v8256, %v7704
      %v8341 = vmax.f32 %v8257, %v7711
      %v8342 = vmax.f32 %v8258, %v7718
      %v8343 = vmax.f32 %v8259, %v7725
      %v8344 = vmax.f32 %v8260, %v7732
      %v8345 = vmax.f32 %v8261, %v7739
      %v8346 = vmax.f32 %v8262, %v7746
      %v8347 = vmax.f32 %v8263, %v7753
      %v8348 = vmax.f32 %v8264, %v7760
      %8349 = vst.msk [vmem:[#allocation2] sm:$0xff] %vm3056, 0.0
      %8350 = vst.msk [vmem:[#allocation2 + $0x8] sm:$0xff] %vm3056, 0.0
      %vm8351 = vcmask 254976
      %8352 = vst.msk [vmem:[#allocation2 + $0x10] sm:$0x3] %vm8351, 0.0
      %8353 = vst.msk [vmem:[#allocation2 + $0x18] sm:$0xff] %vm3056, 0.0
      %8354 = vst.msk [vmem:[#allocation2 + $0x20] sm:$0xff] %vm3056, 0.0
      %8355 = vst.msk [vmem:[#allocation2 + $0x28] sm:$0x3] %vm8351, 0.0
      %8356 = vst.msk [vmem:[#allocation2 + $0x30] sm:$0xff] %vm3056, 0.0
      %8357 = vst.msk [vmem:[#allocation2 + $0x38] sm:$0xff] %vm3056, 0.0
      %8358 = vst.msk [vmem:[#allocation2 + $0x40] sm:$0x3] %vm8351, 0.0
      %8359 = vst.msk [vmem:[#allocation2 + $0x48] sm:$0xff] %vm3056, 0.0
      %8360 = vst.msk [vmem:[#allocation2 + $0x50] sm:$0xff] %vm3056, 0.0
      %8361 = vst.msk [vmem:[#allocation2 + $0x58] sm:$0x3] %vm8351, 0.0
      %8362 = vst.msk [vmem:[#allocation2 + $0x60] sm:$0xff] %vm3056, 0.0
      %8363 = vst.msk [vmem:[#allocation2 + $0x68] sm:$0xff] %vm3056, 0.0
      %8364 = vst.msk [vmem:[#allocation2 + $0x70] sm:$0x3] %vm8351, 0.0
      %8365 = vst.msk [vmem:[#allocation2 + $0x78] sm:$0xff] %vm3056, 0.0
      %8366 = vst.msk [vmem:[#allocation2 + $0x80] sm:$0xff] %vm3056, 0.0
      %8367 = vst.msk [vmem:[#allocation2 + $0x88] sm:$0x3] %vm8351, 0.0
      %8368 = vst.msk [vmem:[#allocation2 + $0x90] sm:$0xff] %vm3056, 0.0
      %8369 = vst.msk [vmem:[#allocation2 + $0x98] sm:$0xff] %vm3056, 0.0
      %8370 = vst.msk [vmem:[#allocation2 + $0xa0] sm:$0x3] %vm8351, 0.0
      %8371 = vst.msk [vmem:[#allocation2 + $0xa8] sm:$0xff] %vm3056, 0.0
      %8372 = vst.msk [vmem:[#allocation2 + $0xb0] sm:$0xff] %vm3056, 0.0
      %8373 = vst.msk [vmem:[#allocation2 + $0xb8] sm:$0x3] %vm8351, 0.0
      %8374 = vst.msk [vmem:[#allocation2 + $0xc0] sm:$0xff] %vm3056, 0.0
      %8375 = vst.msk [vmem:[#allocation2 + $0xc8] sm:$0xff] %vm3056, 0.0
      %8376 = vst.msk [vmem:[#allocation2 + $0xd0] sm:$0x3] %vm8351, 0.0
      %8377 = vst.msk [vmem:[#allocation2 + $0xd8] sm:$0xff] %vm3056, 0.0
      %8378 = vst.msk [vmem:[#allocation2 + $0xe0] sm:$0xff] %vm3056, 0.0
      %8379 = vst.msk [vmem:[#allocation2 + $0xe8] sm:$0x3] %vm8351, 0.0
      %vm8464 = vcmask 1041409
      %v8465 = vsel %vm8464, %v8266, %v8265
      %vm8466 = vcmask 1042434
      %v8467 = vsel %vm8466, %v8267, %v8465
      %vm8468 = vcmask 1043459
      %v8469 = vsel %vm8468, %v8268, %v8467
      %vm8470 = vcmask 1044484
      %v8471 = vsel %vm8470, %v8269, %v8469
      %vm8472 = vcmask 1045509
      %v8473 = vsel %vm8472, %v8270, %v8471
      %vm8474 = vcmask 1046534
      %v8475 = vsel %vm8474, %v8271, %v8473
      %vm8476 = vcmask 1047559
      %v8477 = vsel %vm8476, %v8272, %v8475
      %v8478 = vsel %vm8464, %v8274, %v8273
      %v8479 = vsel %vm8466, %v8275, %v8478
      %v8480 = vsel %vm8468, %v8276, %v8479
      %v8481 = vsel %vm8470, %v8277, %v8480
      %v8482 = vsel %vm8472, %v8278, %v8481
      %v8483 = vsel %vm8464, %v8280, %v8279
      %v8484 = vsel %vm8466, %v8281, %v8483
      %v8485 = vsel %vm8468, %v8282, %v8484
      %v8486 = vsel %vm8470, %v8283, %v8485
      %v8487 = vsel %vm8472, %v8284, %v8486
      %v8488 = vsel %vm8474, %v8285, %v8487
      %v8489 = vsel %vm8476, %v8286, %v8488
      %v8490 = vsel %vm8464, %v8288, %v8287
      %v8491 = vsel %vm8466, %v8289, %v8490
      %v8492 = vsel %vm8468, %v8290, %v8491
      %v8493 = vsel %vm8470, %v8291, %v8492
      %v8494 = vsel %vm8472, %v8292, %v8493
      %v8495 = vsel %vm8464, %v8294, %v8293
      %v8496 = vsel %vm8466, %v8295, %v8495
      %v8497 = vsel %vm8468, %v8296, %v8496
      %v8498 = vsel %vm8470, %v8297, %v8497
      %v8499 = vsel %vm8472, %v8298, %v8498
      %v8500 = vsel %vm8474, %v8299, %v8499
      %v8501 = vsel %vm8476, %v8300, %v8500
      %v8502 = vsel %vm8464, %v8302, %v8301
      %v8503 = vsel %vm8466, %v8303, %v8502
      %v8504 = vsel %vm8468, %v8304, %v8503
      %v8505 = vsel %vm8470, %v8305, %v8504
      %v8506 = vsel %vm8472, %v8306, %v8505
      %v8507 = vsel %vm8464, %v8308, %v8307
      %v8508 = vsel %vm8466, %v8309, %v8507
      %v8509 = vsel %vm8468, %v8310, %v8508
      %v8510 = vsel %vm8470, %v8311, %v8509
      %v8511 = vsel %vm8472, %v8312, %v8510
      %v8512 = vsel %vm8474, %v8313, %v8511
      %v8513 = vsel %vm8476, %v8314, %v8512
      %v8514 = vsel %vm8464, %v8316, %v8315
      %v8515 = vsel %vm8466, %v8317, %v8514
      %v8516 = vsel %vm8468, %v8318, %v8515
      %v8517 = vsel %vm8470, %v8319, %v8516
      %v8518 = vsel %vm8472, %v8320, %v8517
      %v8519 = vsel %vm8464, %v8322, %v8321
      %v8520 = vsel %vm8466, %v8323, %v8519
      %v8521 = vsel %vm8468, %v8324, %v8520
      %v8522 = vsel %vm8470, %v8325, %v8521
      %v8523 = vsel %vm8472, %v8326, %v8522
      %v8524 = vsel %vm8474, %v8327, %v8523
      %v8525 = vsel %vm8476, %v8328, %v8524
      %v8526 = vsel %vm8464, %v8330, %v8329
      %v8527 = vsel %vm8466, %v8331, %v8526
      %v8528 = vsel %vm8468, %v8332, %v8527
      %v8529 = vsel %vm8470, %v8333, %v8528
      %v8530 = vsel %vm8472, %v8334, %v8529
      %v8531 = vsel %vm8464, %v8336, %v8335
      %v8532 = vsel %vm8466, %v8337, %v8531
      %v8533 = vsel %vm8468, %v8338, %v8532
      %v8534 = vsel %vm8470, %v8339, %v8533
      %v8535 = vsel %vm8472, %v8340, %v8534
      %v8536 = vsel %vm8474, %v8341, %v8535
      %v8537 = vsel %vm8476, %v8342, %v8536
      %v8538 = vsel %vm8464, %v8344, %v8343
      %v8539 = vsel %vm8466, %v8345, %v8538
      %v8540 = vsel %vm8468, %v8346, %v8539
      %v8541 = vsel %vm8470, %v8347, %v8540
      %v8542 = vsel %vm8472, %v8348, %v8541
      %s8555 = scalar_lea.vmem [#allocation2], 48
      %8556 = vst.msk [vmem:[%s8555 + $0x2] sm:$0xff] %vm3056, %v8477
      %vm8557 = vcmask 259072
      %8558 = vst.msk [vmem:[%s8555 + $0xa] sm:$0x3f] %vm8557, %v8482
      %8559 = vst.msk [vmem:[%s8555 + $0x1a] sm:$0xff] %vm3056, %v8489
      %8560 = vst.msk [vmem:[%s8555 + $0x22] sm:$0x3f] %vm8557, %v8494
      %8561 = vst.msk [vmem:[%s8555 + $0x32] sm:$0xff] %vm3056, %v8501
      %8562 = vst.msk [vmem:[%s8555 + $0x3a] sm:$0x3f] %vm8557, %v8506
      %8563 = vst.msk [vmem:[%s8555 + $0x4a] sm:$0xff] %vm3056, %v8513
      %8564 = vst.msk [vmem:[%s8555 + $0x52] sm:$0x3f] %vm8557, %v8518
      %8565 = vst.msk [vmem:[%s8555 + $0x62] sm:$0xff] %vm3056, %v8525
      %8566 = vst.msk [vmem:[%s8555 + $0x6a] sm:$0x3f] %vm8557, %v8530
      %8567 = vst.msk [vmem:[%s8555 + $0x7a] sm:$0xff] %vm3056, %v8537
      %8568 = vst.msk [vmem:[%s8555 + $0x82] sm:$0x3f] %vm8557, %v8542
      %v8569 = vld [vmem:[#allocation2] sm:$0xff]
      %v8570 = vld [vmem:[#allocation2 + $0x8] sm:$0xff]
      %v8571 = vld [vmem:[#allocation2 + $0x18] sm:$0xff]
      %v8572 = vld [vmem:[#allocation2 + $0x20] sm:$0xff]
      %v8573 = vld [vmem:[#allocation2 + $0x30] sm:$0xff]
      %v8574 = vld [vmem:[#allocation2 + $0x38] sm:$0xff]
      %v8575 = vld [vmem:[#allocation2 + $0x48] sm:$0xff]
      %v8576 = vld [vmem:[#allocation2 + $0x50] sm:$0xff]
      %v8577 = vld [vmem:[#allocation2 + $0x60] sm:$0xff]
      %v8578 = vld [vmem:[#allocation2 + $0x68] sm:$0xff]
      %v8579 = vld [vmem:[#allocation2 + $0x78] sm:$0xff]
      %v8580 = vld [vmem:[#allocation2 + $0x80] sm:$0xff]
      %v8581 = vld [vmem:[#allocation2 + $0x90] sm:$0xff]
      %v8582 = vld [vmem:[#allocation2 + $0x98] sm:$0xff]
      %v8583 = vld [vmem:[#allocation2 + $0xa8] sm:$0xff]
      %v8584 = vld [vmem:[#allocation2 + $0xb0] sm:$0xff]
      %v8585 = vld [vmem:[%s3] sm:$0xff]
      %v8586 = vld [vmem:[%s3 + $0x8] sm:$0xff]
      %v8587 = vld [vmem:[%s3 + $0x10] sm:$0xff]
      %v8588 = vld [vmem:[%s3 + $0x18] sm:$0xff]
      %v8589 = vld [vmem:[#allocation2 + $0x1] sm:$0xff]
      %v8590 = vld [vmem:[#allocation2 + $0x9] sm:$0xff]
      %v8591 = vld [vmem:[#allocation2 + $0x19] sm:$0xff]
      %v8592 = vld [vmem:[#allocation2 + $0x21] sm:$0xff]
      %v8593 = vld [vmem:[#allocation2 + $0x31] sm:$0xff]
      %v8594 = vld [vmem:[#allocation2 + $0x39] sm:$0xff]
      %v8595 = vld [vmem:[#allocation2 + $0x49] sm:$0xff]
      %v8596 = vld [vmem:[#allocation2 + $0x51] sm:$0xff]
      %v8597 = vld [vmem:[#allocation2 + $0x61] sm:$0xff]
      %v8598 = vld [vmem:[#allocation2 + $0x69] sm:$0xff]
      %v8599 = vld [vmem:[#allocation2 + $0x79] sm:$0xff]
      %v8600 = vld [vmem:[#allocation2 + $0x81] sm:$0xff]
      %v8601 = vld [vmem:[#allocation2 + $0x91] sm:$0xff]
      %v8602 = vld [vmem:[#allocation2 + $0x99] sm:$0xff]
      %v8603 = vld [vmem:[#allocation2 + $0xa9] sm:$0xff]
      %v8604 = vld [vmem:[#allocation2 + $0xb1] sm:$0xff]
      %s8605 = scalar_lea.vmem %s3, 32
      %v8606 = vld [vmem:[%s8605] sm:$0xff]
      %v8607 = vld [vmem:[%s8605 + $0x8] sm:$0xff]
      %v8608 = vld [vmem:[%s8605 + $0x10] sm:$0xff]
      %v8609 = vld [vmem:[%s8605 + $0x18] sm:$0xff]
      %v8611 = vsel %vm3056, %v8589, 0
      %v8614 = vsel %vm3056, %v8590, 0
      %v8617 = vsel %vm3056, %v8591, 0
      %v8620 = vsel %vm3056, %v8592, 0
      %v8623 = vsel %vm3056, %v8593, 0
      %v8626 = vsel %vm3056, %v8594, 0
      %v8629 = vsel %vm3056, %v8595, 0
      %v8632 = vsel %vm3056, %v8596, 0
      %v8635 = vsel %vm3056, %v8597, 0
      %v8638 = vsel %vm3056, %v8598, 0
      %v8641 = vsel %vm3056, %v8599, 0
      %v8644 = vsel %vm3056, %v8600, 0
      %v8647 = vsel %vm3056, %v8601, 0
      %v8650 = vsel %vm3056, %v8602, 0
      %v8653 = vsel %vm3056, %v8603, 0
      %v8656 = vsel %vm3056, %v8604, 0
      %8658 = vmatpush.msra.mxu0 0.0
      %8659 = vmatpush.msra.mxu0 0.0
      %8660 = vmatpush.msra.mxu0 0.0
      %8661 = vmatpush.msra.mxu0 0.0
      %8662 = vmatpush.msra.mxu0 0.0
      %8663 = vmatpush.msra.mxu0 0.0
      %8664 = vmatpush.msra.mxu0 0.0
      %8665 = vmatpush.msra.mxu0 0.0
      %8666 = vmatpush.msra.mxu0 0.0
      %8667 = vmatpush.msra.mxu0 0.0
      %8668 = vmatpush.msra.mxu0 0.0
      %8669 = vmatpush.msra.mxu0 0.0
      %8670 = vmatpush.msra.mxu0 %v8609
      %8671 = vmatpush.msra.mxu0 %v8608
      %8672 = vmatpush.msra.mxu0 %v8607
      %8673 = vmatpush.msra.mxu0 %v8606
      %8674 = vmatmul.f32.gmra.mxu0 %v8611
      %v8675 = vpop.f32.mrf.mxu0
      %v8676 = vadd.f32 0.0, %v8675
      %8677 = vmatmul.f32.gmra.mxu0 %v8614
      %v8678 = vpop.f32.mrf.mxu0
      %v8679 = vadd.f32 0.0, %v8678
      %8680 = vmatmul.f32.gmra.mxu0 %v8617
      %v8681 = vpop.f32.mrf.mxu0
      %v8682 = vadd.f32 0.0, %v8681
      %8683 = vmatmul.f32.gmra.mxu0 %v8620
      %v8684 = vpop.f32.mrf.mxu0
      %v8685 = vadd.f32 0.0, %v8684
      %8686 = vmatmul.f32.gmra.mxu0 %v8623
      %v8687 = vpop.f32.mrf.mxu0
      %v8688 = vadd.f32 0.0, %v8687
      %8689 = vmatmul.f32.gmra.mxu0 %v8626
      %v8690 = vpop.f32.mrf.mxu0
      %v8691 = vadd.f32 0.0, %v8690
      %8692 = vmatmul.f32.gmra.mxu0 %v8629
      %v8693 = vpop.f32.mrf.mxu0
      %v8694 = vadd.f32 0.0, %v8693
      %8695 = vmatmul.f32.gmra.mxu0 %v8632
      %v8696 = vpop.f32.mrf.mxu0
      %v8697 = vadd.f32 0.0, %v8696
      %8698 = vmatmul.f32.gmra.mxu0 %v8635
      %v8699 = vpop.f32.mrf.mxu0
      %v8700 = vadd.f32 0.0, %v8699
      %8701 = vmatmul.f32.gmra.mxu0 %v8638
      %v8702 = vpop.f32.mrf.mxu0
      %v8703 = vadd.f32 0.0, %v8702
      %8704 = vmatmul.f32.gmra.mxu0 %v8641
      %v8705 = vpop.f32.mrf.mxu0
      %v8706 = vadd.f32 0.0, %v8705
      %8707 = vmatmul.f32.gmra.mxu0 %v8644
      %v8708 = vpop.f32.mrf.mxu0
      %v8709 = vadd.f32 0.0, %v8708
      %8710 = vmatmul.f32.gmra.mxu0 %v8647
      %v8711 = vpop.f32.mrf.mxu0
      %v8712 = vadd.f32 0.0, %v8711
      %8713 = vmatmul.f32.gmra.mxu0 %v8650
      %v8714 = vpop.f32.mrf.mxu0
      %v8715 = vadd.f32 0.0, %v8714
      %8716 = vmatmul.f32.gmra.mxu0 %v8653
      %v8717 = vpop.f32.mrf.mxu0
      %v8718 = vadd.f32 0.0, %v8717
      %8719 = vmatmul.f32.gmra.mxu0 %v8656
      %v8720 = vpop.f32.mrf.mxu0
      %v8721 = vadd.f32 0.0, %v8720
      %8722 = vdwg.mxu0
      %v8724 = vsel %vm3056, %v8569, 0
      %v8727 = vsel %vm3056, %v8570, 0
      %v8730 = vsel %vm3056, %v8571, 0
      %v8733 = vsel %vm3056, %v8572, 0
      %v8736 = vsel %vm3056, %v8573, 0
      %v8739 = vsel %vm3056, %v8574, 0
      %v8742 = vsel %vm3056, %v8575, 0
      %v8745 = vsel %vm3056, %v8576, 0
      %v8748 = vsel %vm3056, %v8577, 0
      %v8751 = vsel %vm3056, %v8578, 0
      %v8754 = vsel %vm3056, %v8579, 0
      %v8757 = vsel %vm3056, %v8580, 0
      %v8760 = vsel %vm3056, %v8581, 0
      %v8763 = vsel %vm3056, %v8582, 0
      %v8766 = vsel %vm3056, %v8583, 0
      %v8769 = vsel %vm3056, %v8584, 0
      %8771 = vmatpush.msra.mxu0 0.0
      %8772 = vmatpush.msra.mxu0 0.0
      %8773 = vmatpush.msra.mxu0 0.0
      %8774 = vmatpush.msra.mxu0 0.0
      %8775 = vmatpush.msra.mxu0 0.0
      %8776 = vmatpush.msra.mxu0 0.0
      %8777 = vmatpush.msra.mxu0 0.0
      %8778 = vmatpush.msra.mxu0 0.0
      %8779 = vmatpush.msra.mxu0 0.0
      %8780 = vmatpush.msra.mxu0 0.0
      %8781 = vmatpush.msra.mxu0 0.0
      %8782 = vmatpush.msra.mxu0 0.0
      %8783 = vmatpush.msra.mxu0 %v8588
      %8784 = vmatpush.msra.mxu0 %v8587
      %8785 = vmatpush.msra.mxu0 %v8586
      %8786 = vmatpush.msra.mxu0 %v8585
      %8787 = vmatmul.f32.gmra.mxu0 %v8724
      %v8788 = vpop.f32.mrf.mxu0
      %v8789 = vadd.f32 %v8676, %v8788
      %8790 = vmatmul.f32.gmra.mxu0 %v8727
      %v8791 = vpop.f32.mrf.mxu0
      %v8792 = vadd.f32 %v8679, %v8791
      %8793 = vmatmul.f32.gmra.mxu0 %v8730
      %v8794 = vpop.f32.mrf.mxu0
      %v8795 = vadd.f32 %v8682, %v8794
      %8796 = vmatmul.f32.gmra.mxu0 %v8733
      %v8797 = vpop.f32.mrf.mxu0
      %v8798 = vadd.f32 %v8685, %v8797
      %8799 = vmatmul.f32.gmra.mxu0 %v8736
      %v8800 = vpop.f32.mrf.mxu0
      %v8801 = vadd.f32 %v8688, %v8800
      %8802 = vmatmul.f32.gmra.mxu0 %v8739
      %v8803 = vpop.f32.mrf.mxu0
      %v8804 = vadd.f32 %v8691, %v8803
      %8805 = vmatmul.f32.gmra.mxu0 %v8742
      %v8806 = vpop.f32.mrf.mxu0
      %v8807 = vadd.f32 %v8694, %v8806
      %8808 = vmatmul.f32.gmra.mxu0 %v8745
      %v8809 = vpop.f32.mrf.mxu0
      %v8810 = vadd.f32 %v8697, %v8809
      %8811 = vmatmul.f32.gmra.mxu0 %v8748
      %v8812 = vpop.f32.mrf.mxu0
      %v8813 = vadd.f32 %v8700, %v8812
      %8814 = vmatmul.f32.gmra.mxu0 %v8751
      %v8815 = vpop.f32.mrf.mxu0
      %v8816 = vadd.f32 %v8703, %v8815
      %8817 = vmatmul.f32.gmra.mxu0 %v8754
      %v8818 = vpop.f32.mrf.mxu0
      %v8819 = vadd.f32 %v8706, %v8818
      %8820 = vmatmul.f32.gmra.mxu0 %v8757
      %v8821 = vpop.f32.mrf.mxu0
      %v8822 = vadd.f32 %v8709, %v8821
      %8823 = vmatmul.f32.gmra.mxu0 %v8760
      %v8824 = vpop.f32.mrf.mxu0
      %v8825 = vadd.f32 %v8712, %v8824
      %8826 = vmatmul.f32.gmra.mxu0 %v8763
      %v8827 = vpop.f32.mrf.mxu0
      %v8828 = vadd.f32 %v8715, %v8827
      %8829 = vmatmul.f32.gmra.mxu0 %v8766
      %v8830 = vpop.f32.mrf.mxu0
      %v8831 = vadd.f32 %v8718, %v8830
      %8832 = vmatmul.f32.gmra.mxu0 %v8769
      %v8833 = vpop.f32.mrf.mxu0
      %v8834 = vadd.f32 %v8721, %v8833
      %8835 = vdwg.mxu0
      %v8836 = vld [vmem:[#allocation2 + $0x2] sm:$0xff]
      %v8837 = vld [vmem:[#allocation2 + $0xa] sm:$0xff]
      %v8838 = vld [vmem:[#allocation2 + $0x1a] sm:$0xff]
      %v8839 = vld [vmem:[#allocation2 + $0x22] sm:$0xff]
      %v8840 = vld [vmem:[#allocation2 + $0x32] sm:$0xff]
      %v8841 = vld [vmem:[#allocation2 + $0x3a] sm:$0xff]
      %v8842 = vld [vmem:[#allocation2 + $0x4a] sm:$0xff]
      %v8843 = vld [vmem:[#allocation2 + $0x52] sm:$0xff]
      %v8844 = vld [vmem:[#allocation2 + $0x62] sm:$0xff]
      %v8845 = vld [vmem:[#allocation2 + $0x6a] sm:$0xff]
      %v8846 = vld [vmem:[#allocation2 + $0x7a] sm:$0xff]
      %v8847 = vld [vmem:[#allocation2 + $0x82] sm:$0xff]
      %v8848 = vld [vmem:[#allocation2 + $0x92] sm:$0xff]
      %v8849 = vld [vmem:[#allocation2 + $0x9a] sm:$0xff]
      %v8850 = vld [vmem:[#allocation2 + $0xaa] sm:$0xff]
      %v8851 = vld [vmem:[#allocation2 + $0xb2] sm:$0xff]
      %s8852 = scalar_lea.vmem %s3, 64
      %v8853 = vld [vmem:[%s8852] sm:$0xff]
      %v8854 = vld [vmem:[%s8852 + $0x8] sm:$0xff]
      %v8855 = vld [vmem:[%s8852 + $0x10] sm:$0xff]
      %v8856 = vld [vmem:[%s8852 + $0x18] sm:$0xff]
      %v8858 = vsel %vm3056, %v8836, 0
      %v8861 = vsel %vm3056, %v8837, 0
      %v8864 = vsel %vm3056, %v8838, 0
      %v8867 = vsel %vm3056, %v8839, 0
      %v8870 = vsel %vm3056, %v8840, 0
      %v8873 = vsel %vm3056, %v8841, 0
      %v8876 = vsel %vm3056, %v8842, 0
      %v8879 = vsel %vm3056, %v8843, 0
      %v8882 = vsel %vm3056, %v8844, 0
      %v8885 = vsel %vm3056, %v8845, 0
      %v8888 = vsel %vm3056, %v8846, 0
      %v8891 = vsel %vm3056, %v8847, 0
      %v8894 = vsel %vm3056, %v8848, 0
      %v8897 = vsel %vm3056, %v8849, 0
      %v8900 = vsel %vm3056, %v8850, 0
      %v8903 = vsel %vm3056, %v8851, 0
      %8905 = vmatpush.msra.mxu0 0.0
      %8906 = vmatpush.msra.mxu0 0.0
      %8907 = vmatpush.msra.mxu0 0.0
      %8908 = vmatpush.msra.mxu0 0.0
      %8909 = vmatpush.msra.mxu0 0.0
      %8910 = vmatpush.msra.mxu0 0.0
      %8911 = vmatpush.msra.mxu0 0.0
      %8912 = vmatpush.msra.mxu0 0.0
      %8913 = vmatpush.msra.mxu0 0.0
      %8914 = vmatpush.msra.mxu0 0.0
      %8915 = vmatpush.msra.mxu0 0.0
      %8916 = vmatpush.msra.mxu0 0.0
      %8917 = vmatpush.msra.mxu0 %v8856
      %8918 = vmatpush.msra.mxu0 %v8855
      %8919 = vmatpush.msra.mxu0 %v8854
      %8920 = vmatpush.msra.mxu0 %v8853
      %8921 = vmatmul.f32.gmra.mxu0 %v8858
      %v8922 = vpop.f32.mrf.mxu0
      %v8923 = vadd.f32 0.0, %v8922
      %8924 = vmatmul.f32.gmra.mxu0 %v8861
      %v8925 = vpop.f32.mrf.mxu0
      %v8926 = vadd.f32 0.0, %v8925
      %8927 = vmatmul.f32.gmra.mxu0 %v8864
      %v8928 = vpop.f32.mrf.mxu0
      %v8929 = vadd.f32 0.0, %v8928
      %8930 = vmatmul.f32.gmra.mxu0 %v8867
      %v8931 = vpop.f32.mrf.mxu0
      %v8932 = vadd.f32 0.0, %v8931
      %8933 = vmatmul.f32.gmra.mxu0 %v8870
      %v8934 = vpop.f32.mrf.mxu0
      %v8935 = vadd.f32 0.0, %v8934
      %8936 = vmatmul.f32.gmra.mxu0 %v8873
      %v8937 = vpop.f32.mrf.mxu0
      %v8938 = vadd.f32 0.0, %v8937
      %8939 = vmatmul.f32.gmra.mxu0 %v8876
      %v8940 = vpop.f32.mrf.mxu0
      %v8941 = vadd.f32 0.0, %v8940
      %8942 = vmatmul.f32.gmra.mxu0 %v8879
      %v8943 = vpop.f32.mrf.mxu0
      %v8944 = vadd.f32 0.0, %v8943
      %8945 = vmatmul.f32.gmra.mxu0 %v8882
      %v8946 = vpop.f32.mrf.mxu0
      %v8947 = vadd.f32 0.0, %v8946
      %8948 = vmatmul.f32.gmra.mxu0 %v8885
      %v8949 = vpop.f32.mrf.mxu0
      %v8950 = vadd.f32 0.0, %v8949
      %8951 = vmatmul.f32.gmra.mxu0 %v8888
      %v8952 = vpop.f32.mrf.mxu0
      %v8953 = vadd.f32 0.0, %v8952
      %8954 = vmatmul.f32.gmra.mxu0 %v8891
      %v8955 = vpop.f32.mrf.mxu0
      %v8956 = vadd.f32 0.0, %v8955
      %8957 = vmatmul.f32.gmra.mxu0 %v8894
      %v8958 = vpop.f32.mrf.mxu0
      %v8959 = vadd.f32 0.0, %v8958
      %8960 = vmatmul.f32.gmra.mxu0 %v8897
      %v8961 = vpop.f32.mrf.mxu0
      %v8962 = vadd.f32 0.0, %v8961
      %8963 = vmatmul.f32.gmra.mxu0 %v8900
      %v8964 = vpop.f32.mrf.mxu0
      %v8965 = vadd.f32 0.0, %v8964
      %8966 = vmatmul.f32.gmra.mxu0 %v8903
      %v8967 = vpop.f32.mrf.mxu0
      %v8968 = vadd.f32 0.0, %v8967
      %8969 = vdwg.mxu0
      %v8970 = vadd.f32 %v8789, %v8923
      %v8971 = vadd.f32 %v8792, %v8926
      %v8972 = vadd.f32 %v8795, %v8929
      %v8973 = vadd.f32 %v8798, %v8932
      %v8974 = vadd.f32 %v8801, %v8935
      %v8975 = vadd.f32 %v8804, %v8938
      %v8976 = vadd.f32 %v8807, %v8941
      %v8977 = vadd.f32 %v8810, %v8944
      %v8978 = vadd.f32 %v8813, %v8947
      %v8979 = vadd.f32 %v8816, %v8950
      %v8980 = vadd.f32 %v8819, %v8953
      %v8981 = vadd.f32 %v8822, %v8956
      %v8982 = vadd.f32 %v8825, %v8959
      %v8983 = vadd.f32 %v8828, %v8962
      %v8984 = vadd.f32 %v8831, %v8965
      %v8985 = vadd.f32 %v8834, %v8968
      %s8986 = scalar_lea.vmem [#allocation2], 24
      %v8987 = vld [vmem:[%s8986] sm:$0xff]
      %v8988 = vld [vmem:[%s8986 + $0x8] sm:$0xff]
      %v8989 = vld [vmem:[%s8986 + $0x18] sm:$0xff]
      %v8990 = vld [vmem:[%s8986 + $0x20] sm:$0xff]
      %v8991 = vld [vmem:[%s8986 + $0x30] sm:$0xff]
      %v8992 = vld [vmem:[%s8986 + $0x38] sm:$0xff]
      %v8993 = vld [vmem:[%s8986 + $0x48] sm:$0xff]
      %v8994 = vld [vmem:[%s8986 + $0x50] sm:$0xff]
      %v8995 = vld [vmem:[%s8986 + $0x60] sm:$0xff]
      %v8996 = vld [vmem:[%s8986 + $0x68] sm:$0xff]
      %v8997 = vld [vmem:[%s8986 + $0x78] sm:$0xff]
      %v8998 = vld [vmem:[%s8986 + $0x80] sm:$0xff]
      %v8999 = vld [vmem:[%s8986 + $0x90] sm:$0xff]
      %v9000 = vld [vmem:[%s8986 + $0x98] sm:$0xff]
      %v9001 = vld [vmem:[%s8986 + $0xa8] sm:$0xff]
      %v9002 = vld [vmem:[%s8986 + $0xb0] sm:$0xff]
      %s9003 = scalar_lea.vmem %s3, 96
      %v9004 = vld [vmem:[%s9003] sm:$0xff]
      %v9005 = vld [vmem:[%s9003 + $0x8] sm:$0xff]
      %v9006 = vld [vmem:[%s9003 + $0x10] sm:$0xff]
      %v9007 = vld [vmem:[%s9003 + $0x18] sm:$0xff]
      %v9009 = vsel %vm3056, %v8987, 0
      %v9012 = vsel %vm3056, %v8988, 0
      %v9015 = vsel %vm3056, %v8989, 0
      %v9018 = vsel %vm3056, %v8990, 0
      %v9021 = vsel %vm3056, %v8991, 0
      %v9024 = vsel %vm3056, %v8992, 0
      %v9027 = vsel %vm3056, %v8993, 0
      %v9030 = vsel %vm3056, %v8994, 0
      %v9033 = vsel %vm3056, %v8995, 0
      %v9036 = vsel %vm3056, %v8996, 0
      %v9039 = vsel %vm3056, %v8997, 0
      %v9042 = vsel %vm3056, %v8998, 0
      %v9045 = vsel %vm3056, %v8999, 0
      %v9048 = vsel %vm3056, %v9000, 0
      %v9051 = vsel %vm3056, %v9001, 0
      %v9054 = vsel %vm3056, %v9002, 0
      %9056 = vmatpush.msra.mxu0 0.0
      %9057 = vmatpush.msra.mxu0 0.0
      %9058 = vmatpush.msra.mxu0 0.0
      %9059 = vmatpush.msra.mxu0 0.0
      %9060 = vmatpush.msra.mxu0 0.0
      %9061 = vmatpush.msra.mxu0 0.0
      %9062 = vmatpush.msra.mxu0 0.0
      %9063 = vmatpush.msra.mxu0 0.0
      %9064 = vmatpush.msra.mxu0 0.0
      %9065 = vmatpush.msra.mxu0 0.0
      %9066 = vmatpush.msra.mxu0 0.0
      %9067 = vmatpush.msra.mxu0 0.0
      %9068 = vmatpush.msra.mxu0 %v9007
      %9069 = vmatpush.msra.mxu0 %v9006
      %9070 = vmatpush.msra.mxu0 %v9005
      %9071 = vmatpush.msra.mxu0 %v9004
      %9072 = vmatmul.f32.gmra.mxu0 %v9009
      %v9073 = vpop.f32.mrf.mxu0
      %v9074 = vadd.f32 0.0, %v9073
      %9075 = vmatmul.f32.gmra.mxu0 %v9012
      %v9076 = vpop.f32.mrf.mxu0
      %v9077 = vadd.f32 0.0, %v9076
      %9078 = vmatmul.f32.gmra.mxu0 %v9015
      %v9079 = vpop.f32.mrf.mxu0
      %v9080 = vadd.f32 0.0, %v9079
      %9081 = vmatmul.f32.gmra.mxu0 %v9018
      %v9082 = vpop.f32.mrf.mxu0
      %v9083 = vadd.f32 0.0, %v9082
      %9084 = vmatmul.f32.gmra.mxu0 %v9021
      %v9085 = vpop.f32.mrf.mxu0
      %v9086 = vadd.f32 0.0, %v9085
      %9087 = vmatmul.f32.gmra.mxu0 %v9024
      %v9088 = vpop.f32.mrf.mxu0
      %v9089 = vadd.f32 0.0, %v9088
      %9090 = vmatmul.f32.gmra.mxu0 %v9027
      %v9091 = vpop.f32.mrf.mxu0
      %v9092 = vadd.f32 0.0, %v9091
      %9093 = vmatmul.f32.gmra.mxu0 %v9030
      %v9094 = vpop.f32.mrf.mxu0
      %v9095 = vadd.f32 0.0, %v9094
      %9096 = vmatmul.f32.gmra.mxu0 %v9033
      %v9097 = vpop.f32.mrf.mxu0
      %v9098 = vadd.f32 0.0, %v9097
      %9099 = vmatmul.f32.gmra.mxu0 %v9036
      %v9100 = vpop.f32.mrf.mxu0
      %v9101 = vadd.f32 0.0, %v9100
      %9102 = vmatmul.f32.gmra.mxu0 %v9039
      %v9103 = vpop.f32.mrf.mxu0
      %v9104 = vadd.f32 0.0, %v9103
      %9105 = vmatmul.f32.gmra.mxu0 %v9042
      %v9106 = vpop.f32.mrf.mxu0
      %v9107 = vadd.f32 0.0, %v9106
      %9108 = vmatmul.f32.gmra.mxu0 %v9045
      %v9109 = vpop.f32.mrf.mxu0
      %v9110 = vadd.f32 0.0, %v9109
      %9111 = vmatmul.f32.gmra.mxu0 %v9048
      %v9112 = vpop.f32.mrf.mxu0
      %v9113 = vadd.f32 0.0, %v9112
      %9114 = vmatmul.f32.gmra.mxu0 %v9051
      %v9115 = vpop.f32.mrf.mxu0
      %v9116 = vadd.f32 0.0, %v9115
      %9117 = vmatmul.f32.gmra.mxu0 %v9054
      %v9118 = vpop.f32.mrf.mxu0
      %v9119 = vadd.f32 0.0, %v9118
      %9120 = vdwg.mxu0
      %v9121 = vadd.f32 %v8970, %v9074
      %v9122 = vadd.f32 %v8971, %v9077
      %v9123 = vadd.f32 %v8972, %v9080
      %v9124 = vadd.f32 %v8973, %v9083
      %v9125 = vadd.f32 %v8974, %v9086
      %v9126 = vadd.f32 %v8975, %v9089
      %v9127 = vadd.f32 %v8976, %v9092
      %v9128 = vadd.f32 %v8977, %v9095
      %v9129 = vadd.f32 %v8978, %v9098
      %v9130 = vadd.f32 %v8979, %v9101
      %v9131 = vadd.f32 %v8980, %v9104
      %v9132 = vadd.f32 %v8981, %v9107
      %v9133 = vadd.f32 %v8982, %v9110
      %v9134 = vadd.f32 %v8983, %v9113
      %v9135 = vadd.f32 %v8984, %v9116
      %v9136 = vadd.f32 %v8985, %v9119
      %v9137 = vld [vmem:[%s8986 + $0x1] sm:$0xff]
      %v9138 = vld [vmem:[%s8986 + $0x9] sm:$0xff]
      %v9139 = vld [vmem:[%s8986 + $0x19] sm:$0xff]
      %v9140 = vld [vmem:[%s8986 + $0x21] sm:$0xff]
      %v9141 = vld [vmem:[%s8986 + $0x31] sm:$0xff]
      %v9142 = vld [vmem:[%s8986 + $0x39] sm:$0xff]
      %v9143 = vld [vmem:[%s8986 + $0x49] sm:$0xff]
      %v9144 = vld [vmem:[%s8986 + $0x51] sm:$0xff]
      %v9145 = vld [vmem:[%s8986 + $0x61] sm:$0xff]
      %v9146 = vld [vmem:[%s8986 + $0x69] sm:$0xff]
      %v9147 = vld [vmem:[%s8986 + $0x79] sm:$0xff]
      %v9148 = vld [vmem:[%s8986 + $0x81] sm:$0xff]
      %v9149 = vld [vmem:[%s8986 + $0x91] sm:$0xff]
      %v9150 = vld [vmem:[%s8986 + $0x99] sm:$0xff]
      %v9151 = vld [vmem:[%s8986 + $0xa9] sm:$0xff]
      %v9152 = vld [vmem:[%s8986 + $0xb1] sm:$0xff]
      %s9153 = scalar_lea.vmem %s3, 128
      %v9154 = vld [vmem:[%s9153] sm:$0xff]
      %v9155 = vld [vmem:[%s9153 + $0x8] sm:$0xff]
      %v9156 = vld [vmem:[%s9153 + $0x10] sm:$0xff]
      %v9157 = vld [vmem:[%s9153 + $0x18] sm:$0xff]
      %v9159 = vsel %vm3056, %v9137, 0
      %v9162 = vsel %vm3056, %v9138, 0
      %v9165 = vsel %vm3056, %v9139, 0
      %v9168 = vsel %vm3056, %v9140, 0
      %v9171 = vsel %vm3056, %v9141, 0
      %v9174 = vsel %vm3056, %v9142, 0
      %v9177 = vsel %vm3056, %v9143, 0
      %v9180 = vsel %vm3056, %v9144, 0
      %v9183 = vsel %vm3056, %v9145, 0
      %v9186 = vsel %vm3056, %v9146, 0
      %v9189 = vsel %vm3056, %v9147, 0
      %v9192 = vsel %vm3056, %v9148, 0
      %v9195 = vsel %vm3056, %v9149, 0
      %v9198 = vsel %vm3056, %v9150, 0
      %v9201 = vsel %vm3056, %v9151, 0
      %v9204 = vsel %vm3056, %v9152, 0
      %9206 = vmatpush.msra.mxu0 0.0
      %9207 = vmatpush.msra.mxu0 0.0
      %9208 = vmatpush.msra.mxu0 0.0
      %9209 = vmatpush.msra.mxu0 0.0
      %9210 = vmatpush.msra.mxu0 0.0
      %9211 = vmatpush.msra.mxu0 0.0
      %9212 = vmatpush.msra.mxu0 0.0
      %9213 = vmatpush.msra.mxu0 0.0
      %9214 = vmatpush.msra.mxu0 0.0
      %9215 = vmatpush.msra.mxu0 0.0
      %9216 = vmatpush.msra.mxu0 0.0
      %9217 = vmatpush.msra.mxu0 0.0
      %9218 = vmatpush.msra.mxu0 %v9157
      %9219 = vmatpush.msra.mxu0 %v9156
      %9220 = vmatpush.msra.mxu0 %v9155
      %9221 = vmatpush.msra.mxu0 %v9154
      %9222 = vmatmul.f32.gmra.mxu0 %v9159
      %v9223 = vpop.f32.mrf.mxu0
      %v9224 = vadd.f32 0.0, %v9223
      %9225 = vmatmul.f32.gmra.mxu0 %v9162
      %v9226 = vpop.f32.mrf.mxu0
      %v9227 = vadd.f32 0.0, %v9226
      %9228 = vmatmul.f32.gmra.mxu0 %v9165
      %v9229 = vpop.f32.mrf.mxu0
      %v9230 = vadd.f32 0.0, %v9229
      %9231 = vmatmul.f32.gmra.mxu0 %v9168
      %v9232 = vpop.f32.mrf.mxu0
      %v9233 = vadd.f32 0.0, %v9232
      %9234 = vmatmul.f32.gmra.mxu0 %v9171
      %v9235 = vpop.f32.mrf.mxu0
      %v9236 = vadd.f32 0.0, %v9235
      %9237 = vmatmul.f32.gmra.mxu0 %v9174
      %v9238 = vpop.f32.mrf.mxu0
      %v9239 = vadd.f32 0.0, %v9238
      %9240 = vmatmul.f32.gmra.mxu0 %v9177
      %v9241 = vpop.f32.mrf.mxu0
      %v9242 = vadd.f32 0.0, %v9241
      %9243 = vmatmul.f32.gmra.mxu0 %v9180
      %v9244 = vpop.f32.mrf.mxu0
      %v9245 = vadd.f32 0.0, %v9244
      %9246 = vmatmul.f32.gmra.mxu0 %v9183
      %v9247 = vpop.f32.mrf.mxu0
      %v9248 = vadd.f32 0.0, %v9247
      %9249 = vmatmul.f32.gmra.mxu0 %v9186
      %v9250 = vpop.f32.mrf.mxu0
      %v9251 = vadd.f32 0.0, %v9250
      %9252 = vmatmul.f32.gmra.mxu0 %v9189
      %v9253 = vpop.f32.mrf.mxu0
      %v9254 = vadd.f32 0.0, %v9253
      %9255 = vmatmul.f32.gmra.mxu0 %v9192
      %v9256 = vpop.f32.mrf.mxu0
      %v9257 = vadd.f32 0.0, %v9256
      %9258 = vmatmul.f32.gmra.mxu0 %v9195
      %v9259 = vpop.f32.mrf.mxu0
      %v9260 = vadd.f32 0.0, %v9259
      %9261 = vmatmul.f32.gmra.mxu0 %v9198
      %v9262 = vpop.f32.mrf.mxu0
      %v9263 = vadd.f32 0.0, %v9262
      %9264 = vmatmul.f32.gmra.mxu0 %v9201
      %v9265 = vpop.f32.mrf.mxu0
      %v9266 = vadd.f32 0.0, %v9265
      %9267 = vmatmul.f32.gmra.mxu0 %v9204
      %v9268 = vpop.f32.mrf.mxu0
      %v9269 = vadd.f32 0.0, %v9268
      %9270 = vdwg.mxu0
      %v9271 = vadd.f32 %v9121, %v9224
      %v9272 = vadd.f32 %v9122, %v9227
      %v9273 = vadd.f32 %v9123, %v9230
      %v9274 = vadd.f32 %v9124, %v9233
      %v9275 = vadd.f32 %v9125, %v9236
      %v9276 = vadd.f32 %v9126, %v9239
      %v9277 = vadd.f32 %v9127, %v9242
      %v9278 = vadd.f32 %v9128, %v9245
      %v9279 = vadd.f32 %v9129, %v9248
      %v9280 = vadd.f32 %v9130, %v9251
      %v9281 = vadd.f32 %v9131, %v9254
      %v9282 = vadd.f32 %v9132, %v9257
      %v9283 = vadd.f32 %v9133, %v9260
      %v9284 = vadd.f32 %v9134, %v9263
      %v9285 = vadd.f32 %v9135, %v9266
      %v9286 = vadd.f32 %v9136, %v9269
      %v9287 = vld [vmem:[%s8986 + $0x2] sm:$0xff]
      %v9288 = vld [vmem:[%s8986 + $0xa] sm:$0xff]
      %v9289 = vld [vmem:[%s8986 + $0x1a] sm:$0xff]
      %v9290 = vld [vmem:[%s8986 + $0x22] sm:$0xff]
      %v9291 = vld [vmem:[%s8986 + $0x32] sm:$0xff]
      %v9292 = vld [vmem:[%s8986 + $0x3a] sm:$0xff]
      %v9293 = vld [vmem:[%s8986 + $0x4a] sm:$0xff]
      %v9294 = vld [vmem:[%s8986 + $0x52] sm:$0xff]
      %v9295 = vld [vmem:[%s8986 + $0x62] sm:$0xff]
      %v9296 = vld [vmem:[%s8986 + $0x6a] sm:$0xff]
      %v9297 = vld [vmem:[%s8986 + $0x7a] sm:$0xff]
      %v9298 = vld [vmem:[%s8986 + $0x82] sm:$0xff]
      %v9299 = vld [vmem:[%s8986 + $0x92] sm:$0xff]
      %v9300 = vld [vmem:[%s8986 + $0x9a] sm:$0xff]
      %v9301 = vld [vmem:[%s8986 + $0xaa] sm:$0xff]
      %v9302 = vld [vmem:[%s8986 + $0xb2] sm:$0xff]
      %s9303 = scalar_lea.vmem %s3, 160
      %v9304 = vld [vmem:[%s9303] sm:$0xff]
      %v9305 = vld [vmem:[%s9303 + $0x8] sm:$0xff]
      %v9306 = vld [vmem:[%s9303 + $0x10] sm:$0xff]
      %v9307 = vld [vmem:[%s9303 + $0x18] sm:$0xff]
      %v9309 = vsel %vm3056, %v9287, 0
      %v9312 = vsel %vm3056, %v9288, 0
      %v9315 = vsel %vm3056, %v9289, 0
      %v9318 = vsel %vm3056, %v9290, 0
      %v9321 = vsel %vm3056, %v9291, 0
      %v9324 = vsel %vm3056, %v9292, 0
      %v9327 = vsel %vm3056, %v9293, 0
      %v9330 = vsel %vm3056, %v9294, 0
      %v9333 = vsel %vm3056, %v9295, 0
      %v9336 = vsel %vm3056, %v9296, 0
      %v9339 = vsel %vm3056, %v9297, 0
      %v9342 = vsel %vm3056, %v9298, 0
      %v9345 = vsel %vm3056, %v9299, 0
      %v9348 = vsel %vm3056, %v9300, 0
      %v9351 = vsel %vm3056, %v9301, 0
      %v9354 = vsel %vm3056, %v9302, 0
      %9356 = vmatpush.msra.mxu0 0.0
      %9357 = vmatpush.msra.mxu0 0.0
      %9358 = vmatpush.msra.mxu0 0.0
      %9359 = vmatpush.msra.mxu0 0.0
      %9360 = vmatpush.msra.mxu0 0.0
      %9361 = vmatpush.msra.mxu0 0.0
      %9362 = vmatpush.msra.mxu0 0.0
      %9363 = vmatpush.msra.mxu0 0.0
      %9364 = vmatpush.msra.mxu0 0.0
      %9365 = vmatpush.msra.mxu0 0.0
      %9366 = vmatpush.msra.mxu0 0.0
      %9367 = vmatpush.msra.mxu0 0.0
      %9368 = vmatpush.msra.mxu0 %v9307
      %9369 = vmatpush.msra.mxu0 %v9306
      %9370 = vmatpush.msra.mxu0 %v9305
      %9371 = vmatpush.msra.mxu0 %v9304
      %9372 = vmatmul.f32.gmra.mxu0 %v9309
      %v9373 = vpop.f32.mrf.mxu0
      %v9374 = vadd.f32 0.0, %v9373
      %9375 = vmatmul.f32.gmra.mxu0 %v9312
      %v9376 = vpop.f32.mrf.mxu0
      %v9377 = vadd.f32 0.0, %v9376
      %9378 = vmatmul.f32.gmra.mxu0 %v9315
      %v9379 = vpop.f32.mrf.mxu0
      %v9380 = vadd.f32 0.0, %v9379
      %9381 = vmatmul.f32.gmra.mxu0 %v9318
      %v9382 = vpop.f32.mrf.mxu0
      %v9383 = vadd.f32 0.0, %v9382
      %9384 = vmatmul.f32.gmra.mxu0 %v9321
      %v9385 = vpop.f32.mrf.mxu0
      %v9386 = vadd.f32 0.0, %v9385
      %9387 = vmatmul.f32.gmra.mxu0 %v9324
      %v9388 = vpop.f32.mrf.mxu0
      %v9389 = vadd.f32 0.0, %v9388
      %9390 = vmatmul.f32.gmra.mxu0 %v9327
      %v9391 = vpop.f32.mrf.mxu0
      %v9392 = vadd.f32 0.0, %v9391
      %9393 = vmatmul.f32.gmra.mxu0 %v9330
      %v9394 = vpop.f32.mrf.mxu0
      %v9395 = vadd.f32 0.0, %v9394
      %9396 = vmatmul.f32.gmra.mxu0 %v9333
      %v9397 = vpop.f32.mrf.mxu0
      %v9398 = vadd.f32 0.0, %v9397
      %9399 = vmatmul.f32.gmra.mxu0 %v9336
      %v9400 = vpop.f32.mrf.mxu0
      %v9401 = vadd.f32 0.0, %v9400
      %9402 = vmatmul.f32.gmra.mxu0 %v9339
      %v9403 = vpop.f32.mrf.mxu0
      %v9404 = vadd.f32 0.0, %v9403
      %9405 = vmatmul.f32.gmra.mxu0 %v9342
      %v9406 = vpop.f32.mrf.mxu0
      %v9407 = vadd.f32 0.0, %v9406
      %9408 = vmatmul.f32.gmra.mxu0 %v9345
      %v9409 = vpop.f32.mrf.mxu0
      %v9410 = vadd.f32 0.0, %v9409
      %9411 = vmatmul.f32.gmra.mxu0 %v9348
      %v9412 = vpop.f32.mrf.mxu0
      %v9413 = vadd.f32 0.0, %v9412
      %9414 = vmatmul.f32.gmra.mxu0 %v9351
      %v9415 = vpop.f32.mrf.mxu0
      %v9416 = vadd.f32 0.0, %v9415
      %9417 = vmatmul.f32.gmra.mxu0 %v9354
      %v9418 = vpop.f32.mrf.mxu0
      %v9419 = vadd.f32 0.0, %v9418
      %9420 = vdwg.mxu0
      %v9421 = vadd.f32 %v9271, %v9374
      %v9422 = vadd.f32 %v9272, %v9377
      %v9423 = vadd.f32 %v9273, %v9380
      %v9424 = vadd.f32 %v9274, %v9383
      %v9425 = vadd.f32 %v9275, %v9386
      %v9426 = vadd.f32 %v9276, %v9389
      %v9427 = vadd.f32 %v9277, %v9392
      %v9428 = vadd.f32 %v9278, %v9395
      %v9429 = vadd.f32 %v9279, %v9398
      %v9430 = vadd.f32 %v9280, %v9401
      %v9431 = vadd.f32 %v9281, %v9404
      %v9432 = vadd.f32 %v9282, %v9407
      %v9433 = vadd.f32 %v9283, %v9410
      %v9434 = vadd.f32 %v9284, %v9413
      %v9435 = vadd.f32 %v9285, %v9416
      %v9436 = vadd.f32 %v9286, %v9419
      %v9437 = vld [vmem:[%s8555] sm:$0xff]
      %v9438 = vld [vmem:[%s8555 + $0x8] sm:$0xff]
      %v9439 = vld [vmem:[%s8555 + $0x18] sm:$0xff]
      %v9440 = vld [vmem:[%s8555 + $0x20] sm:$0xff]
      %v9441 = vld [vmem:[%s8555 + $0x30] sm:$0xff]
      %v9442 = vld [vmem:[%s8555 + $0x38] sm:$0xff]
      %v9443 = vld [vmem:[%s8555 + $0x48] sm:$0xff]
      %v9444 = vld [vmem:[%s8555 + $0x50] sm:$0xff]
      %v9445 = vld [vmem:[%s8555 + $0x60] sm:$0xff]
      %v9446 = vld [vmem:[%s8555 + $0x68] sm:$0xff]
      %v9447 = vld [vmem:[%s8555 + $0x78] sm:$0xff]
      %v9448 = vld [vmem:[%s8555 + $0x80] sm:$0xff]
      %v9449 = vld [vmem:[%s8555 + $0x90] sm:$0xff]
      %v9450 = vld [vmem:[%s8555 + $0x98] sm:$0xff]
      %v9451 = vld [vmem:[%s8555 + $0xa8] sm:$0xff]
      %v9452 = vld [vmem:[%s8555 + $0xb0] sm:$0xff]
      %s9453 = scalar_lea.vmem %s3, 192
      %v9454 = vld [vmem:[%s9453] sm:$0xff]
      %v9455 = vld [vmem:[%s9453 + $0x8] sm:$0xff]
      %v9456 = vld [vmem:[%s9453 + $0x10] sm:$0xff]
      %v9457 = vld [vmem:[%s9453 + $0x18] sm:$0xff]
      %v9459 = vsel %vm3056, %v9437, 0
      %v9462 = vsel %vm3056, %v9438, 0
      %v9465 = vsel %vm3056, %v9439, 0
      %v9468 = vsel %vm3056, %v9440, 0
      %v9471 = vsel %vm3056, %v9441, 0
      %v9474 = vsel %vm3056, %v9442, 0
      %v9477 = vsel %vm3056, %v9443, 0
      %v9480 = vsel %vm3056, %v9444, 0
      %v9483 = vsel %vm3056, %v9445, 0
      %v9486 = vsel %vm3056, %v9446, 0
      %v9489 = vsel %vm3056, %v9447, 0
      %v9492 = vsel %vm3056, %v9448, 0
      %v9495 = vsel %vm3056, %v9449, 0
      %v9498 = vsel %vm3056, %v9450, 0
      %v9501 = vsel %vm3056, %v9451, 0
      %v9504 = vsel %vm3056, %v9452, 0
      %9506 = vmatpush.msra.mxu0 0.0
      %9507 = vmatpush.msra.mxu0 0.0
      %9508 = vmatpush.msra.mxu0 0.0
      %9509 = vmatpush.msra.mxu0 0.0
      %9510 = vmatpush.msra.mxu0 0.0
      %9511 = vmatpush.msra.mxu0 0.0
      %9512 = vmatpush.msra.mxu0 0.0
      %9513 = vmatpush.msra.mxu0 0.0
      %9514 = vmatpush.msra.mxu0 0.0
      %9515 = vmatpush.msra.mxu0 0.0
      %9516 = vmatpush.msra.mxu0 0.0
      %9517 = vmatpush.msra.mxu0 0.0
      %9518 = vmatpush.msra.mxu0 %v9457
      %9519 = vmatpush.msra.mxu0 %v9456
      %9520 = vmatpush.msra.mxu0 %v9455
      %9521 = vmatpush.msra.mxu0 %v9454
      %9522 = vmatmul.f32.gmra.mxu0 %v9459
      %v9523 = vpop.f32.mrf.mxu0
      %v9524 = vadd.f32 0.0, %v9523
      %9525 = vmatmul.f32.gmra.mxu0 %v9462
      %v9526 = vpop.f32.mrf.mxu0
      %v9527 = vadd.f32 0.0, %v9526
      %9528 = vmatmul.f32.gmra.mxu0 %v9465
      %v9529 = vpop.f32.mrf.mxu0
      %v9530 = vadd.f32 0.0, %v9529
      %9531 = vmatmul.f32.gmra.mxu0 %v9468
      %v9532 = vpop.f32.mrf.mxu0
      %v9533 = vadd.f32 0.0, %v9532
      %9534 = vmatmul.f32.gmra.mxu0 %v9471
      %v9535 = vpop.f32.mrf.mxu0
      %v9536 = vadd.f32 0.0, %v9535
      %9537 = vmatmul.f32.gmra.mxu0 %v9474
      %v9538 = vpop.f32.mrf.mxu0
      %v9539 = vadd.f32 0.0, %v9538
      %9540 = vmatmul.f32.gmra.mxu0 %v9477
      %v9541 = vpop.f32.mrf.mxu0
      %v9542 = vadd.f32 0.0, %v9541
      %9543 = vmatmul.f32.gmra.mxu0 %v9480
      %v9544 = vpop.f32.mrf.mxu0
      %v9545 = vadd.f32 0.0, %v9544
      %9546 = vmatmul.f32.gmra.mxu0 %v9483
      %v9547 = vpop.f32.mrf.mxu0
      %v9548 = vadd.f32 0.0, %v9547
      %9549 = vmatmul.f32.gmra.mxu0 %v9486
      %v9550 = vpop.f32.mrf.mxu0
      %v9551 = vadd.f32 0.0, %v9550
      %9552 = vmatmul.f32.gmra.mxu0 %v9489
      %v9553 = vpop.f32.mrf.mxu0
      %v9554 = vadd.f32 0.0, %v9553
      %9555 = vmatmul.f32.gmra.mxu0 %v9492
      %v9556 = vpop.f32.mrf.mxu0
      %v9557 = vadd.f32 0.0, %v9556
      %9558 = vmatmul.f32.gmra.mxu0 %v9495
      %v9559 = vpop.f32.mrf.mxu0
      %v9560 = vadd.f32 0.0, %v9559
      %9561 = vmatmul.f32.gmra.mxu0 %v9498
      %v9562 = vpop.f32.mrf.mxu0
      %v9563 = vadd.f32 0.0, %v9562
      %9564 = vmatmul.f32.gmra.mxu0 %v9501
      %v9565 = vpop.f32.mrf.mxu0
      %v9566 = vadd.f32 0.0, %v9565
      %9567 = vmatmul.f32.gmra.mxu0 %v9504
      %v9568 = vpop.f32.mrf.mxu0
      %v9569 = vadd.f32 0.0, %v9568
      %9570 = vdwg.mxu0
      %v9571 = vadd.f32 %v9421, %v9524
      %v9572 = vadd.f32 %v9422, %v9527
      %v9573 = vadd.f32 %v9423, %v9530
      %v9574 = vadd.f32 %v9424, %v9533
      %v9575 = vadd.f32 %v9425, %v9536
      %v9576 = vadd.f32 %v9426, %v9539
      %v9577 = vadd.f32 %v9427, %v9542
      %v9578 = vadd.f32 %v9428, %v9545
      %v9579 = vadd.f32 %v9429, %v9548
      %v9580 = vadd.f32 %v9430, %v9551
      %v9581 = vadd.f32 %v9431, %v9554
      %v9582 = vadd.f32 %v9432, %v9557
      %v9583 = vadd.f32 %v9433, %v9560
      %v9584 = vadd.f32 %v9434, %v9563
      %v9585 = vadd.f32 %v9435, %v9566
      %v9586 = vadd.f32 %v9436, %v9569
      %v9587 = vld [vmem:[%s8555 + $0x1] sm:$0xff]
      %v9588 = vld [vmem:[%s8555 + $0x9] sm:$0xff]
      %v9589 = vld [vmem:[%s8555 + $0x19] sm:$0xff]
      %v9590 = vld [vmem:[%s8555 + $0x21] sm:$0xff]
      %v9591 = vld [vmem:[%s8555 + $0x31] sm:$0xff]
      %v9592 = vld [vmem:[%s8555 + $0x39] sm:$0xff]
      %v9593 = vld [vmem:[%s8555 + $0x49] sm:$0xff]
      %v9594 = vld [vmem:[%s8555 + $0x51] sm:$0xff]
      %v9595 = vld [vmem:[%s8555 + $0x61] sm:$0xff]
      %v9596 = vld [vmem:[%s8555 + $0x69] sm:$0xff]
      %v9597 = vld [vmem:[%s8555 + $0x79] sm:$0xff]
      %v9598 = vld [vmem:[%s8555 + $0x81] sm:$0xff]
      %v9599 = vld [vmem:[%s8555 + $0x91] sm:$0xff]
      %v9600 = vld [vmem:[%s8555 + $0x99] sm:$0xff]
      %v9601 = vld [vmem:[%s8555 + $0xa9] sm:$0xff]
      %v9602 = vld [vmem:[%s8555 + $0xb1] sm:$0xff]
      %s9603 = scalar_lea.vmem %s3, 224
      %v9604 = vld [vmem:[%s9603] sm:$0xff]
      %v9605 = vld [vmem:[%s9603 + $0x8] sm:$0xff]
      %v9606 = vld [vmem:[%s9603 + $0x10] sm:$0xff]
      %v9607 = vld [vmem:[%s9603 + $0x18] sm:$0xff]
      %v9609 = vsel %vm3056, %v9587, 0
      %v9612 = vsel %vm3056, %v9588, 0
      %v9615 = vsel %vm3056, %v9589, 0
      %v9618 = vsel %vm3056, %v9590, 0
      %v9621 = vsel %vm3056, %v9591, 0
      %v9624 = vsel %vm3056, %v9592, 0
      %v9627 = vsel %vm3056, %v9593, 0
      %v9630 = vsel %vm3056, %v9594, 0
      %v9633 = vsel %vm3056, %v9595, 0
      %v9636 = vsel %vm3056, %v9596, 0
      %v9639 = vsel %vm3056, %v9597, 0
      %v9642 = vsel %vm3056, %v9598, 0
      %v9645 = vsel %vm3056, %v9599, 0
      %v9648 = vsel %vm3056, %v9600, 0
      %v9651 = vsel %vm3056, %v9601, 0
      %v9654 = vsel %vm3056, %v9602, 0
      %9656 = vmatpush.msra.mxu0 0.0
      %9657 = vmatpush.msra.mxu0 0.0
      %9658 = vmatpush.msra.mxu0 0.0
      %9659 = vmatpush.msra.mxu0 0.0
      %9660 = vmatpush.msra.mxu0 0.0
      %9661 = vmatpush.msra.mxu0 0.0
      %9662 = vmatpush.msra.mxu0 0.0
      %9663 = vmatpush.msra.mxu0 0.0
      %9664 = vmatpush.msra.mxu0 0.0
      %9665 = vmatpush.msra.mxu0 0.0
      %9666 = vmatpush.msra.mxu0 0.0
      %9667 = vmatpush.msra.mxu0 0.0
      %9668 = vmatpush.msra.mxu0 %v9607
      %9669 = vmatpush.msra.mxu0 %v9606
      %9670 = vmatpush.msra.mxu0 %v9605
      %9671 = vmatpush.msra.mxu0 %v9604
      %9672 = vmatmul.f32.gmra.mxu0 %v9609
      %v9673 = vpop.f32.mrf.mxu0
      %v9674 = vadd.f32 0.0, %v9673
      %9675 = vmatmul.f32.gmra.mxu0 %v9612
      %v9676 = vpop.f32.mrf.mxu0
      %v9677 = vadd.f32 0.0, %v9676
      %9678 = vmatmul.f32.gmra.mxu0 %v9615
      %v9679 = vpop.f32.mrf.mxu0
      %v9680 = vadd.f32 0.0, %v9679
      %9681 = vmatmul.f32.gmra.mxu0 %v9618
      %v9682 = vpop.f32.mrf.mxu0
      %v9683 = vadd.f32 0.0, %v9682
      %9684 = vmatmul.f32.gmra.mxu0 %v9621
      %v9685 = vpop.f32.mrf.mxu0
      %v9686 = vadd.f32 0.0, %v9685
      %9687 = vmatmul.f32.gmra.mxu0 %v9624
      %v9688 = vpop.f32.mrf.mxu0
      %v9689 = vadd.f32 0.0, %v9688
      %9690 = vmatmul.f32.gmra.mxu0 %v9627
      %v9691 = vpop.f32.mrf.mxu0
      %v9692 = vadd.f32 0.0, %v9691
      %9693 = vmatmul.f32.gmra.mxu0 %v9630
      %v9694 = vpop.f32.mrf.mxu0
      %v9695 = vadd.f32 0.0, %v9694
      %9696 = vmatmul.f32.gmra.mxu0 %v9633
      %v9697 = vpop.f32.mrf.mxu0
      %v9698 = vadd.f32 0.0, %v9697
      %9699 = vmatmul.f32.gmra.mxu0 %v9636
      %v9700 = vpop.f32.mrf.mxu0
      %v9701 = vadd.f32 0.0, %v9700
      %9702 = vmatmul.f32.gmra.mxu0 %v9639
      %v9703 = vpop.f32.mrf.mxu0
      %v9704 = vadd.f32 0.0, %v9703
      %9705 = vmatmul.f32.gmra.mxu0 %v9642
      %v9706 = vpop.f32.mrf.mxu0
      %v9707 = vadd.f32 0.0, %v9706
      %9708 = vmatmul.f32.gmra.mxu0 %v9645
      %v9709 = vpop.f32.mrf.mxu0
      %v9710 = vadd.f32 0.0, %v9709
      %9711 = vmatmul.f32.gmra.mxu0 %v9648
      %v9712 = vpop.f32.mrf.mxu0
      %v9713 = vadd.f32 0.0, %v9712
      %9714 = vmatmul.f32.gmra.mxu0 %v9651
      %v9715 = vpop.f32.mrf.mxu0
      %v9716 = vadd.f32 0.0, %v9715
      %9717 = vmatmul.f32.gmra.mxu0 %v9654
      %v9718 = vpop.f32.mrf.mxu0
      %v9719 = vadd.f32 0.0, %v9718
      %9720 = vdwg.mxu0
      %v9721 = vadd.f32 %v9571, %v9674
      %v9722 = vadd.f32 %v9572, %v9677
      %v9723 = vadd.f32 %v9573, %v9680
      %v9724 = vadd.f32 %v9574, %v9683
      %v9725 = vadd.f32 %v9575, %v9686
      %v9726 = vadd.f32 %v9576, %v9689
      %v9727 = vadd.f32 %v9577, %v9692
      %v9728 = vadd.f32 %v9578, %v9695
      %v9729 = vadd.f32 %v9579, %v9698
      %v9730 = vadd.f32 %v9580, %v9701
      %v9731 = vadd.f32 %v9581, %v9704
      %v9732 = vadd.f32 %v9582, %v9707
      %v9733 = vadd.f32 %v9583, %v9710
      %v9734 = vadd.f32 %v9584, %v9713
      %v9735 = vadd.f32 %v9585, %v9716
      %v9736 = vadd.f32 %v9586, %v9719
      %v9737 = vld [vmem:[%s8555 + $0x2] sm:$0xff]
      %v9738 = vld [vmem:[%s8555 + $0xa] sm:$0xff]
      %v9739 = vld [vmem:[%s8555 + $0x1a] sm:$0xff]
      %v9740 = vld [vmem:[%s8555 + $0x22] sm:$0xff]
      %v9741 = vld [vmem:[%s8555 + $0x32] sm:$0xff]
      %v9742 = vld [vmem:[%s8555 + $0x3a] sm:$0xff]
      %v9743 = vld [vmem:[%s8555 + $0x4a] sm:$0xff]
      %v9744 = vld [vmem:[%s8555 + $0x52] sm:$0xff]
      %v9745 = vld [vmem:[%s8555 + $0x62] sm:$0xff]
      %v9746 = vld [vmem:[%s8555 + $0x6a] sm:$0xff]
      %v9747 = vld [vmem:[%s8555 + $0x7a] sm:$0xff]
      %v9748 = vld [vmem:[%s8555 + $0x82] sm:$0xff]
      %v9749 = vld [vmem:[%s8555 + $0x92] sm:$0xff]
      %v9750 = vld [vmem:[%s8555 + $0x9a] sm:$0xff]
      %v9751 = vld [vmem:[%s8555 + $0xaa] sm:$0xff]
      %v9752 = vld [vmem:[%s8555 + $0xb2] sm:$0xff]
      %s9753 = scalar_lea.vmem %s3, 256
      %v9754 = vld [vmem:[%s9753] sm:$0xff]
      %v9755 = vld [vmem:[%s9753 + $0x8] sm:$0xff]
      %v9756 = vld [vmem:[%s9753 + $0x10] sm:$0xff]
      %v9757 = vld [vmem:[%s9753 + $0x18] sm:$0xff]
      %v9759 = vsel %vm3056, %v9737, 0
      %v9762 = vsel %vm3056, %v9738, 0
      %v9765 = vsel %vm3056, %v9739, 0
      %v9768 = vsel %vm3056, %v9740, 0
      %v9771 = vsel %vm3056, %v9741, 0
      %v9774 = vsel %vm3056, %v9742, 0
      %v9777 = vsel %vm3056, %v9743, 0
      %v9780 = vsel %vm3056, %v9744, 0
      %v9783 = vsel %vm3056, %v9745, 0
      %v9786 = vsel %vm3056, %v9746, 0
      %v9789 = vsel %vm3056, %v9747, 0
      %v9792 = vsel %vm3056, %v9748, 0
      %v9795 = vsel %vm3056, %v9749, 0
      %v9798 = vsel %vm3056, %v9750, 0
      %v9801 = vsel %vm3056, %v9751, 0
      %v9804 = vsel %vm3056, %v9752, 0
      %9806 = vmatpush.msra.mxu0 0.0
      %9807 = vmatpush.msra.mxu0 0.0
      %9808 = vmatpush.msra.mxu0 0.0
      %9809 = vmatpush.msra.mxu0 0.0
      %9810 = vmatpush.msra.mxu0 0.0
      %9811 = vmatpush.msra.mxu0 0.0
      %9812 = vmatpush.msra.mxu0 0.0
      %9813 = vmatpush.msra.mxu0 0.0
      %9814 = vmatpush.msra.mxu0 0.0
      %9815 = vmatpush.msra.mxu0 0.0
      %9816 = vmatpush.msra.mxu0 0.0
      %9817 = vmatpush.msra.mxu0 0.0
      %9818 = vmatpush.msra.mxu0 %v9757
      %9819 = vmatpush.msra.mxu0 %v9756
      %9820 = vmatpush.msra.mxu0 %v9755
      %9821 = vmatpush.msra.mxu0 %v9754
      %9822 = vmatmul.f32.gmra.mxu0 %v9759
      %v9823 = vpop.f32.mrf.mxu0
      %v9824 = vadd.f32 0.0, %v9823
      %9825 = vmatmul.f32.gmra.mxu0 %v9762
      %v9826 = vpop.f32.mrf.mxu0
      %v9827 = vadd.f32 0.0, %v9826
      %9828 = vmatmul.f32.gmra.mxu0 %v9765
      %v9829 = vpop.f32.mrf.mxu0
      %v9830 = vadd.f32 0.0, %v9829
      %9831 = vmatmul.f32.gmra.mxu0 %v9768
      %v9832 = vpop.f32.mrf.mxu0
      %v9833 = vadd.f32 0.0, %v9832
      %9834 = vmatmul.f32.gmra.mxu0 %v9771
      %v9835 = vpop.f32.mrf.mxu0
      %v9836 = vadd.f32 0.0, %v9835
      %9837 = vmatmul.f32.gmra.mxu0 %v9774
      %v9838 = vpop.f32.mrf.mxu0
      %v9839 = vadd.f32 0.0, %v9838
      %9840 = vmatmul.f32.gmra.mxu0 %v9777
      %v9841 = vpop.f32.mrf.mxu0
      %v9842 = vadd.f32 0.0, %v9841
      %9843 = vmatmul.f32.gmra.mxu0 %v9780
      %v9844 = vpop.f32.mrf.mxu0
      %v9845 = vadd.f32 0.0, %v9844
      %9846 = vmatmul.f32.gmra.mxu0 %v9783
      %v9847 = vpop.f32.mrf.mxu0
      %v9848 = vadd.f32 0.0, %v9847
      %9849 = vmatmul.f32.gmra.mxu0 %v9786
      %v9850 = vpop.f32.mrf.mxu0
      %v9851 = vadd.f32 0.0, %v9850
      %9852 = vmatmul.f32.gmra.mxu0 %v9789
      %v9853 = vpop.f32.mrf.mxu0
      %v9854 = vadd.f32 0.0, %v9853
      %9855 = vmatmul.f32.gmra.mxu0 %v9792
      %v9856 = vpop.f32.mrf.mxu0
      %v9857 = vadd.f32 0.0, %v9856
      %9858 = vmatmul.f32.gmra.mxu0 %v9795
      %v9859 = vpop.f32.mrf.mxu0
      %v9860 = vadd.f32 0.0, %v9859
      %9861 = vmatmul.f32.gmra.mxu0 %v9798
      %v9862 = vpop.f32.mrf.mxu0
      %v9863 = vadd.f32 0.0, %v9862
      %9864 = vmatmul.f32.gmra.mxu0 %v9801
      %v9865 = vpop.f32.mrf.mxu0
      %v9866 = vadd.f32 0.0, %v9865
      %9867 = vmatmul.f32.gmra.mxu0 %v9804
      %v9868 = vpop.f32.mrf.mxu0
      %v9869 = vadd.f32 0.0, %v9868
      %9870 = vdwg.mxu0
      %v9871 = vadd.f32 %v9721, %v9824
      %v9872 = vadd.f32 %v9722, %v9827
      %v9873 = vadd.f32 %v9723, %v9830
      %v9874 = vadd.f32 %v9724, %v9833
      %v9875 = vadd.f32 %v9725, %v9836
      %v9876 = vadd.f32 %v9726, %v9839
      %v9877 = vadd.f32 %v9727, %v9842
      %v9878 = vadd.f32 %v9728, %v9845
      %v9879 = vadd.f32 %v9729, %v9848
      %v9880 = vadd.f32 %v9730, %v9851
      %v9881 = vadd.f32 %v9731, %v9854
      %v9882 = vadd.f32 %v9732, %v9857
      %v9883 = vadd.f32 %v9733, %v9860
      %v9884 = vadd.f32 %v9734, %v9863
      %v9885 = vadd.f32 %v9735, %v9866
      %v9886 = vadd.f32 %v9736, %v9869
      %v9887 = vld [vmem:[%s4] sm:$0x1]
      %v9889 = vperm.slane %v9887, 0
      %v9891 = vadd.f32 %v9871, %v9889
      %v9892 = vadd.f32 %v9872, %v9889
      %v9893 = vadd.f32 %v9873, %v9889
      %v9894 = vadd.f32 %v9874, %v9889
      %v9895 = vadd.f32 %v9875, %v9889
      %v9896 = vadd.f32 %v9876, %v9889
      %v9897 = vadd.f32 %v9877, %v9889
      %v9898 = vadd.f32 %v9878, %v9889
      %v9899 = vadd.f32 %v9879, %v9889
      %v9900 = vadd.f32 %v9880, %v9889
      %v9901 = vadd.f32 %v9881, %v9889
      %v9902 = vadd.f32 %v9882, %v9889
      %v9903 = vadd.f32 %v9883, %v9889
      %v9904 = vadd.f32 %v9884, %v9889
      %v9905 = vadd.f32 %v9885, %v9889
      %v9906 = vadd.f32 %v9886, %v9889
      %v9907 = vsel %vm3056, %v9891, -inf
      %v9908 = vrot.slane %v9907, 4
      %v9909 = vmax.f32 %v9907, %v9908
      %v9910 = vrot.slane %v9909, 2
      %v9911 = vmax.f32 %v9909, %v9910
      %v9912 = vrot.slane %v9911, 1
      %v9913 = vmax.f32 %v9911, %v9912
      %v9914 = vsel %vm3056, %v9892, -inf
      %v9915 = vrot.slane %v9914, 4
      %v9916 = vmax.f32 %v9914, %v9915
      %v9917 = vrot.slane %v9916, 2
      %v9918 = vmax.f32 %v9916, %v9917
      %v9919 = vrot.slane %v9918, 1
      %v9920 = vmax.f32 %v9918, %v9919
      %v9921 = vsel %vm3056, %v9893, -inf
      %v9922 = vrot.slane %v9921, 4
      %v9923 = vmax.f32 %v9921, %v9922
      %v9924 = vrot.slane %v9923, 2
      %v9925 = vmax.f32 %v9923, %v9924
      %v9926 = vrot.slane %v9925, 1
      %v9927 = vmax.f32 %v9925, %v9926
      %v9928 = vsel %vm3056, %v9894, -inf
      %v9929 = vrot.slane %v9928, 4
      %v9930 = vmax.f32 %v9928, %v9929
      %v9931 = vrot.slane %v9930, 2
      %v9932 = vmax.f32 %v9930, %v9931
      %v9933 = vrot.slane %v9932, 1
      %v9934 = vmax.f32 %v9932, %v9933
      %v9935 = vsel %vm3056, %v9895, -inf
      %v9936 = vrot.slane %v9935, 4
      %v9937 = vmax.f32 %v9935, %v9936
      %v9938 = vrot.slane %v9937, 2
      %v9939 = vmax.f32 %v9937, %v9938
      %v9940 = vrot.slane %v9939, 1
      %v9941 = vmax.f32 %v9939, %v9940
      %v9942 = vsel %vm3056, %v9896, -inf
      %v9943 = vrot.slane %v9942, 4
      %v9944 = vmax.f32 %v9942, %v9943
      %v9945 = vrot.slane %v9944, 2
      %v9946 = vmax.f32 %v9944, %v9945
      %v9947 = vrot.slane %v9946, 1
      %v9948 = vmax.f32 %v9946, %v9947
      %v9949 = vsel %vm3056, %v9897, -inf
      %v9950 = vrot.slane %v9949, 4
      %v9951 = vmax.f32 %v9949, %v9950
      %v9952 = vrot.slane %v9951, 2
      %v9953 = vmax.f32 %v9951, %v9952
      %v9954 = vrot.slane %v9953, 1
      %v9955 = vmax.f32 %v9953, %v9954
      %v9956 = vsel %vm3056, %v9898, -inf
      %v9957 = vrot.slane %v9956, 4
      %v9958 = vmax.f32 %v9956, %v9957
      %v9959 = vrot.slane %v9958, 2
      %v9960 = vmax.f32 %v9958, %v9959
      %v9961 = vrot.slane %v9960, 1
      %v9962 = vmax.f32 %v9960, %v9961
      %v9963 = vsel %vm3056, %v9899, -inf
      %v9964 = vrot.slane %v9963, 4
      %v9965 = vmax.f32 %v9963, %v9964
      %v9966 = vrot.slane %v9965, 2
      %v9967 = vmax.f32 %v9965, %v9966
      %v9968 = vrot.slane %v9967, 1
      %v9969 = vmax.f32 %v9967, %v9968
      %v9970 = vsel %vm3056, %v9900, -inf
      %v9971 = vrot.slane %v9970, 4
      %v9972 = vmax.f32 %v9970, %v9971
      %v9973 = vrot.slane %v9972, 2
      %v9974 = vmax.f32 %v9972, %v9973
      %v9975 = vrot.slane %v9974, 1
      %v9976 = vmax.f32 %v9974, %v9975
      %v9977 = vsel %vm3056, %v9901, -inf
      %v9978 = vrot.slane %v9977, 4
      %v9979 = vmax.f32 %v9977, %v9978
      %v9980 = vrot.slane %v9979, 2
      %v9981 = vmax.f32 %v9979, %v9980
      %v9982 = vrot.slane %v9981, 1
      %v9983 = vmax.f32 %v9981, %v9982
      %v9984 = vsel %vm3056, %v9902, -inf
      %v9985 = vrot.slane %v9984, 4
      %v9986 = vmax.f32 %v9984, %v9985
      %v9987 = vrot.slane %v9986, 2
      %v9988 = vmax.f32 %v9986, %v9987
      %v9989 = vrot.slane %v9988, 1
      %v9990 = vmax.f32 %v9988, %v9989
      %v9991 = vsel %vm3056, %v9903, -inf
      %v9992 = vrot.slane %v9991, 4
      %v9993 = vmax.f32 %v9991, %v9992
      %v9994 = vrot.slane %v9993, 2
      %v9995 = vmax.f32 %v9993, %v9994
      %v9996 = vrot.slane %v9995, 1
      %v9997 = vmax.f32 %v9995, %v9996
      %v9998 = vsel %vm3056, %v9904, -inf
      %v9999 = vrot.slane %v9998, 4
      %v10000 = vmax.f32 %v9998, %v9999
      %v10001 = vrot.slane %v10000, 2
      %v10002 = vmax.f32 %v10000, %v10001
      %v10003 = vrot.slane %v10002, 1
      %v10004 = vmax.f32 %v10002, %v10003
      %v10005 = vsel %vm3056, %v9905, -inf
      %v10006 = vrot.slane %v10005, 4
      %v10007 = vmax.f32 %v10005, %v10006
      %v10008 = vrot.slane %v10007, 2
      %v10009 = vmax.f32 %v10007, %v10008
      %v10010 = vrot.slane %v10009, 1
      %v10011 = vmax.f32 %v10009, %v10010
      %v10012 = vsel %vm3056, %v9906, -inf
      %v10013 = vrot.slane %v10012, 4
      %v10014 = vmax.f32 %v10012, %v10013
      %v10015 = vrot.slane %v10014, 2
      %v10016 = vmax.f32 %v10014, %v10015
      %v10017 = vrot.slane %v10016, 1
      %v10018 = vmax.f32 %v10016, %v10017
      %v10019 = vmax.f32 %v9913, %v9927
      %v10020 = vmax.f32 %v9920, %v9934
      %v10021 = vmax.f32 %v10019, %v9941
      %v10022 = vmax.f32 %v10020, %v9948
      %v10023 = vmax.f32 %v10021, %v9955
      %v10024 = vmax.f32 %v10022, %v9962
      %v10025 = vmax.f32 %v10023, %v9969
      %v10026 = vmax.f32 %v10024, %v9976
      %v10027 = vmax.f32 %v10025, %v9983
      %v10028 = vmax.f32 %v10026, %v9990
      %v10029 = vmax.f32 %v10027, %v9997
      %v10030 = vmax.f32 %v10028, %v10004
      %v10031 = vmax.f32 %v10029, %v10011
      %v10032 = vmax.f32 %v10030, %v10018
      %v10033 = vld [vmem:[%s6] sm:$0x1]
      %v10034 = vld [vmem:[%s5] sm:$0xff]
      %v10035 = vld [vmem:[%s5 + $0x8] sm:$0xff]
      %v10036 = vld [vmem:[%s5 + $0x10] sm:$0xff]
      %v10037 = vld [vmem:[%s5 + $0x18] sm:$0xff]
      %v10039 = vsel %vm3056, %v10031, 0
      %10041 = vmatpush.msra.mxu0 0.0
      %10042 = vmatpush.msra.mxu0 0.0
      %10043 = vmatpush.msra.mxu0 0.0
      %10044 = vmatpush.msra.mxu0 0.0
      %10045 = vmatpush.msra.mxu0 0.0
      %10046 = vmatpush.msra.mxu0 0.0
      %10047 = vmatpush.msra.mxu0 0.0
      %10048 = vmatpush.msra.mxu0 0.0
      %10049 = vmatpush.msra.mxu0 0.0
      %10050 = vmatpush.msra.mxu0 0.0
      %10051 = vmatpush.msra.mxu0 0.0
      %10052 = vmatpush.msra.mxu0 0.0
      %10053 = vmatpush.msra.mxu0 %v10037
      %10054 = vmatpush.msra.mxu0 %v10036
      %10055 = vmatpush.msra.mxu0 %v10035
      %10056 = vmatpush.msra.mxu0 %v10034
      %10057 = vmatmul.f32.gmra.mxu0 %v10039
      %v10058 = vpop.f32.mrf.mxu0
      %v10059 = vadd.f32 0.0, %v10058
      %10060 = vdwg.mxu0
      %v10061 = vadd.f32 %v10033, %v10059
      %s10062 = scalar_lea.vmem %s5, 32
      %v10063 = vld [vmem:[%s10062] sm:$0xff]
      %v10064 = vld [vmem:[%s10062 + $0x8] sm:$0xff]
      %v10065 = vld [vmem:[%s10062 + $0x10] sm:$0xff]
      %v10066 = vld [vmem:[%s10062 + $0x18] sm:$0xff]
      %v10068 = vsel %vm3056, %v10032, 0
      %10070 = vmatpush.msra.mxu0 0.0
      %10071 = vmatpush.msra.mxu0 0.0
      %10072 = vmatpush.msra.mxu0 0.0
      %10073 = vmatpush.msra.mxu0 0.0
      %10074 = vmatpush.msra.mxu0 0.0
      %10075 = vmatpush.msra.mxu0 0.0
      %10076 = vmatpush.msra.mxu0 0.0
      %10077 = vmatpush.msra.mxu0 0.0
      %10078 = vmatpush.msra.mxu0 0.0
      %10079 = vmatpush.msra.mxu0 0.0
      %10080 = vmatpush.msra.mxu0 0.0
      %10081 = vmatpush.msra.mxu0 0.0
      %10082 = vmatpush.msra.mxu0 %v10066
      %10083 = vmatpush.msra.mxu0 %v10065
      %10084 = vmatpush.msra.mxu0 %v10064
      %10085 = vmatpush.msra.mxu0 %v10063
      %10086 = vmatmul.f32.gmra.mxu0 %v10068
      %v10087 = vpop.f32.mrf.mxu0
      %v10088 = vadd.f32 0.0, %v10087
      %10089 = vdwg.mxu0
      %v10090 = vadd.f32 %v10061, %v10088
      %v10091 = vld [vmem:[%s7] sm:$0xff]
      %v10092 = vld [vmem:[%s7 + $0x8] sm:$0xff]
      %v10093 = vld [vmem:[%s7 + $0x10] sm:$0xff]
      %v10094 = vld [vmem:[%s7 + $0x18] sm:$0xff]
      %v10095 = vld [vmem:[%s7 + $0x20] sm:$0xff]
      %v10096 = vld [vmem:[%s7 + $0x28] sm:$0xff]
      %v10097 = vld [vmem:[%s7 + $0x30] sm:$0xff]
      %v10098 = vld [vmem:[%s7 + $0x38] sm:$0xff]
      %v10099 = vld [vmem:[#allocation3] sm:$0x1]
      %vm10100 = vcmask 523264
      %v10102 = vsel %vm10100, %v10090, 0
      %10104 = vmatpush.msra.mxu0 0.0
      %10105 = vmatpush.msra.mxu0 0.0
      %10106 = vmatpush.msra.mxu0 0.0
      %10107 = vmatpush.msra.mxu0 0.0
      %10108 = vmatpush.msra.mxu0 0.0
      %10109 = vmatpush.msra.mxu0 0.0
      %10110 = vmatpush.msra.mxu0 0.0
      %10111 = vmatpush.msra.mxu0 0.0
      %10112 = vmatpush.msra.mxu0 %v10098
      %10113 = vmatpush.msra.mxu0 %v10097
      %10114 = vmatpush.msra.mxu0 %v10096
      %10115 = vmatpush.msra.mxu0 %v10095
      %10116 = vmatpush.msra.mxu0 %v10094
      %10117 = vmatpush.msra.mxu0 %v10093
      %10118 = vmatpush.msra.mxu0 %v10092
      %10119 = vmatpush.msra.mxu0 %v10091
      %10120 = vmatmul.f32.gmra.mxu0 %v10102
      %v10121 = vpop.f32.mrf.mxu0
      %v10122 = vadd.f32 %v10099, %v10121
      %10123 = vdwg.mxu0
      %vm10124 = vcmask 0
      %10125 = vst.msk [vmem:[%s330] sm:$0x1] %vm10124, %v10122
      %p10126 = scmp.lt.s32.totalorder %s22, 1
      %s10127 = scalar_select %p10126, %s22, 1
      %s10128 = scalar_lea.vmem %s9, %s10127
      // Predicated region
      $region57: #{cnn_forward_pallas.1} parent=55 // pred_check
        %p10129 = pneg %p234
      $region58: #{cnn_forward_pallas.1} parent=55 // pred_check_branch
        %10131 = sbr.rel (%p10129) target = $region60
      $region59: #{cnn_forward_pallas.1} parent=55 // pred_region
        _
      $region60: #{cnn_forward_pallas.1} parent=55 // pred_fallthru
        _
    $region56: #{cnn_forward_pallas.1} parent=5 // pred_fallthru
      _
    %p10132 = scmp.le.s32.totalorder 2, %s17
    // Predicated region
    $region61: #{cnn_forward_pallas.1} parent=5 // pred_check
      %p10133 = pneg %p10132
    $region62: #{cnn_forward_pallas.1} parent=5 // pred_check_branch
      %10135 = sbr.rel (%p10133) target = $region64
    $region63: #{cnn_forward_pallas.1} parent=5 // pred_region
      %s10136 = ssub.s32 %s17, 2
      // Predicated region
      $region65: #{cnn_forward_pallas.1} parent=63 // pred_check
        %p10137 = pneg %p240
      $region66: #{cnn_forward_pallas.1} parent=63 // pred_check_branch
        %10139 = sbr.rel (%p10137) target = $region68
      $region67: #{cnn_forward_pallas.1} parent=63 // pred_region
        %p10140 = scmp.lt.s32.totalorder %s23, 1
        %s10141 = scalar_select %p10140, %s23, 1
        %s10142 = scalar_lea.vmem %s9, %s10141
      $region68: #{cnn_forward_pallas.1} parent=63 // pred_fallthru
        _
    $region64: #{cnn_forward_pallas.1} parent=5 // pred_fallthru
      _
  $region6: #{cnn_forward_pallas.1} parent=0 // loop_footer
    %s21 = sadd.s32 1, %s17
  $region7: #{cnn_forward_pallas.1} parent=0 // loop_footer_branch
    %16 = sbr.rel target = $region3
  $region8: #{cnn_forward_pallas.1} parent=0 // loop_exit
    _

</llo_original>
